<compile_context>
chip_gen: v5e
topology: v5e:2x2
jax: 0.10.0
libtpu: 0.0.40
codegen_flags: <defaults>
</compile_context>

<pallas_src>
import functools
import math

import jax
import jax.numpy as jnp
from jax import lax
from jax.experimental import pallas as pl
from jax.experimental.pallas import tpu as pltpu


def _cp(dims, est_bytes):
    """CompilerParams with a vmem limit sized from the actual block/scratch bytes."""
    return pltpu.CompilerParams(
        dimension_semantics=dims,
        vmem_limit_bytes=int(min(64 << 20, max(32 << 20, 2 * est_bytes))))


# --------------------------------------------------------------------------
# Kernel 1: LayerNorm fused into a matmul  (ln_1 + in_proj), two outputs x / z
# --------------------------------------------------------------------------

def _ln_matmul_kernel(x_ref, g_ref, b_ref, w_ref, xo_ref, zo_ref, *, eps, d_inner):
    x = x_ref[...]
    mu = jnp.mean(x, axis=-1, keepdims=True)
    xc = x - mu
    var = jnp.mean(xc * xc, axis=-1, keepdims=True)
    t = xc * lax.rsqrt(var + eps) * g_ref[...] + b_ref[...]
    res = jnp.dot(t.astype(jnp.bfloat16), w_ref[...],
                  preferred_element_type=jnp.float32)       # (tm, 2D)
    xo_ref[...] = res[:, :d_inner]
    zo_ref[...] = res[:, d_inner:]


def fused_ln_matmul(x2d, gamma, beta, w_bf, eps=1e-5):
    """LN(x) @ W split into (x, z).  x2d: (M, C), w_bf: (C, 2D) bf16."""
    m, c = x2d.shape
    n_out = w_bf.shape[1]
    d = n_out // 2
    tm = m
    for cand in (1024, 512, 256, 128):
        if m % cand == 0:
            tm = cand
            break
    est = 2 * tm * c * 4 + 2 * c * n_out * 2 + 2 * 2 * tm * d * 4
    return pl.pallas_call(
        functools.partial(_ln_matmul_kernel, eps=eps, d_inner=d),
        out_shape=(jax.ShapeDtypeStruct((m, d), jnp.float32),
                   jax.ShapeDtypeStruct((m, d), jnp.float32)),
        grid=(m // tm,),
        in_specs=[
            pl.BlockSpec((tm, c), lambda i: (i, 0)),
            pl.BlockSpec((1, c), lambda i: (0, 0)),
            pl.BlockSpec((1, c), lambda i: (0, 0)),
            pl.BlockSpec((c, n_out), lambda i: (0, 0)),
        ],
        out_specs=(pl.BlockSpec((tm, d), lambda i: (i, 0)),
                   pl.BlockSpec((tm, d), lambda i: (i, 0))),
        compiler_params=_cp(("parallel",), est),
    )(x2d, gamma.reshape(1, c), beta.reshape(1, c), w_bf)


# --------------------------------------------------------------------------
# Kernel 2: depthwise 3x3 conv + SiLU (SS2D conv2d)
# --------------------------------------------------------------------------

def _dwconv_silu_kernel(xp_ref, w_ref, b_ref, o_ref):
    h, w, _ = o_ref.shape
    xp = xp_ref[...]
    acc = jnp.zeros(o_ref.shape, jnp.float32)
    for dx in range(3):
        xs = xp[:, dx:dx + w, :]                 # one sublane shift per dx (3, not 9)
        for dy in range(3):                      # H slices are on the untiled dim: free
            acc = acc + xs[dy:dy + h, :, :] * w_ref[dy:dy + 1, dx:dx + 1, :]
    acc = acc + b_ref[...]
    o_ref[...] = acc * jax.nn.sigmoid(acc)       # SiLU


def dwconv3x3_silu(x, w3, b):
    """Depthwise 3x3 conv (padding=1) + SiLU. x: (B,H,W,D), w3: (3,3,D), b: (D,)."""
    B, H, W, D = x.shape
    xp = jnp.pad(x, ((0, 0), (1, 1), (1, 1), (0, 0)))
    est = 2 * (H + 2) * (W + 2) * D * 4 + 2 * H * W * D * 4 + 9 * D * 4
    return pl.pallas_call(
        _dwconv_silu_kernel,
        out_shape=jax.ShapeDtypeStruct((B, H, W, D), jnp.float32),
        grid=(B,),
        in_specs=[
            pl.BlockSpec((None, H + 2, W + 2, D), lambda b_: (b_, 0, 0, 0)),
            pl.BlockSpec((3, 3, D), lambda b_: (0, 0, 0)),
            pl.BlockSpec((1, D), lambda b_: (0, 0)),
        ],
        out_specs=pl.BlockSpec((None, H, W, D), lambda b_: (b_, 0, 0, 0)),
        compiler_params=_cp(("parallel",), est),
    )(xp, w3, b.reshape(1, D))


# --------------------------------------------------------------------------
# Kernel 3: selective-scan core, 4 directions per program
#   channels [0:D]  = row-major (hw) stream, channels [D:2D] = column-major (wh)
#   forward loop = directions 0 & 1, backward loop = directions 2 & 3
#   both chains are advanced inside the same loop body (interleaved)
# --------------------------------------------------------------------------

def _ss2d_scan_kernel(xhw_ref, xwh_ref,
                      wf_ref, bf_ref, af_ref,
                      wb_ref, bb_ref, ab_ref,
                      dsum_ref, out_ref,
                      x_scr, daf_scr, duf_scr, cf_scr, dab_scr, dub_scr, cb_scr,
                      *, n_state, ch, unroll):
    L, D2 = out_ref.shape
    N = n_state
    D = D2 // 2
    n_chunks = L // ch
    bpc = ch // unroll

    x_all = jnp.concatenate([xhw_ref[...], xwh_ref[...]], axis=-1)   # (L, D2)
    x_scr[...] = x_all
    out_ref[...] = x_all * dsum_ref[...]          # D-skip term for all four directions

    def prepare(base, w_ref, b_ref, a_ref, da_scr, du_scr, c_scr):
        # one narrow matmul gives delta (D2 cols) + B (2N cols) + C (2N cols)
        xblk = x_scr[pl.ds(base, ch), :]                                   # (ch, D2)
        dbc = jnp.dot(xblk.astype(jnp.bfloat16), w_ref[...],
                      preferred_element_type=jnp.float32) + b_ref[...]     # (ch, D2+4N)
        dt_raw = dbc[:, :D2]
        delta = jnp.maximum(dt_raw, 0.0) + jnp.log(1.0 + jnp.exp(-jnp.abs(dt_raw)))
        u = delta * xblk                                                   # (ch, D2)
        bv = dbc[:, D2:D2 + 2 * N]                                         # (ch, 2N)
        cv = dbc[:, D2 + 2 * N:D2 + 4 * N]                                 # (ch, 2N)
        # expand once per chunk (not per step): all transcendentals hoisted here
        da_scr[...] = jnp.exp(delta[:, None, :] * a_ref[...][None, :, :])  # (ch, N, D2)
        du_scr[...] = jnp.concatenate(
            [bv[:, :N, None] * u[:, None, :D],
             bv[:, N:, None] * u[:, None, D:]], axis=-1)                   # (ch, N, D2)
        c_scr[...] = jnp.concatenate(
            [jnp.broadcast_to(cv[:, :N, None], (ch, N, D)),
             jnp.broadcast_to(cv[:, N:, None], (ch, N, D))], axis=-1)      # (ch, N, D2)

    def block_scan(hh, da_b, du_b, c_b, reverse):
        order = range(unroll - 1, -1, -1) if reverse else range(unroll)
        ys = [None] * unroll
        for j in order:
            hh = da_b[j] * hh + du_b[j]                                # one (8,128) vreg
            ys[j] = jnp.sum(c_b[j] * hh, axis=0, keepdims=True)        # sublane reduce
        return hh, jnp.concatenate(ys, axis=0)                         # dense (8, D2)

    def chunk_body(ci, carry):
        hf, hb = carry
        base_f = pl.multiple_of(ci * ch, ch)
        base_b = pl.multiple_of((n_chunks - 1 - ci) * ch, ch)
        prepare(base_f, wf_ref, bf_ref, af_ref, daf_scr, duf_scr, cf_scr)
        prepare(base_b, wb_ref, bb_ref, ab_ref, dab_scr, dub_scr, cb_scr)

        def block_body(bi, hs):
            hfi, hbi = hs
            off_f = pl.multiple_of(bi * unroll, unroll)
            off_b = pl.multiple_of((bpc - 1 - bi) * unroll, unroll)
            hfi, yf = block_scan(hfi,
                                 daf_scr[pl.ds(off_f, unroll)],
                                 duf_scr[pl.ds(off_f, unroll)],
                                 cf_scr[pl.ds(off_f, unroll)], reverse=False)
            hbi, yb = block_scan(hbi,
                                 dab_scr[pl.ds(off_b, unroll)],
                                 dub_scr[pl.ds(off_b, unroll)],
                                 cb_scr[pl.ds(off_b, unroll)], reverse=True)
            gf = pl.multiple_of(base_f + off_f, unroll)
            gb = pl.multiple_of(base_b + off_b, unroll)
            out_ref[pl.ds(gf, unroll), :] = out_ref[pl.ds(gf, unroll), :] + yf
            out_ref[pl.ds(gb, unroll), :] = out_ref[pl.ds(gb, unroll), :] + yb
            return (hfi, hbi)

        return lax.fori_loop(0, bpc, block_body, (hf, hb))

    h0 = jnp.zeros((N, D2), jnp.float32)
    lax.fori_loop(0, n_chunks, chunk_body, (h0, h0))


def ss2d_scan(x_hw, x_wh, sp):
    """x_hw/x_wh: (B, L, D) packed streams -> (B, L, 2D) = (y1+y3 | y2+y4-in-wh-order)."""
    B, L, D = x_hw.shape
    D2 = 2 * D
    f, bw = sp["fwd"], sp["bwd"]
    N = f["a"].shape[0]
    assert L % 8 == 0, "L = H*W must be a multiple of 8 (pad the image)"
    unroll = 8
    ch = next(c for c in (512, 256, 128, 64, 32, 16, 8) if L % c == 0)
    wcols = D2 + 4 * N
    est = (2 * 2 * L * D * 4 + 2 * L * D2 * 4 + L * D2 * 4
           + 6 * ch * N * D2 * 4
           + 2 * 2 * (D2 * wcols * 2 + wcols * 4 + N * D2 * 4) + 4 * D2 * 4)
    kern = functools.partial(_ss2d_scan_kernel, n_state=N, ch=ch, unroll=unroll)
    return pl.pallas_call(
        kern,
        out_shape=jax.ShapeDtypeStruct((B, L, D2), jnp.float32),
        grid=(B,),
        in_specs=[
            pl.BlockSpec((None, L, D), lambda b: (b, 0, 0)),
            pl.BlockSpec((None, L, D), lambda b: (b, 0, 0)),
            pl.BlockSpec((D2, wcols), lambda b: (0, 0)),
            pl.BlockSpec((1, wcols), lambda b: (0, 0)),
            pl.BlockSpec((N, D2), lambda b: (0, 0)),
            pl.BlockSpec((D2, wcols), lambda b: (0, 0)),
            pl.BlockSpec((1, wcols), lambda b: (0, 0)),
            pl.BlockSpec((N, D2), lambda b: (0, 0)),
            pl.BlockSpec((1, D2), lambda b: (0, 0)),
        ],
        out_specs=pl.BlockSpec((None, L, D2), lambda b: (b, 0, 0)),
        scratch_shapes=[pltpu.VMEM((L, D2), jnp.float32)]
                      + [pltpu.VMEM((ch, N, D2), jnp.float32)] * 6,
        compiler_params=_cp(("parallel",), est),
    )(x_hw, x_wh, f["w"], f["bias"], f["a"], bw["w"], bw["bias"], bw["a"], sp["dsum"])


# --------------------------------------------------------------------------
# Kernel 4: out_norm + SiLU(z) gate + out_proj + skip_scale residual + ln_2
# --------------------------------------------------------------------------

def _out_stage_kernel(y_ref, z_ref, inp_ref, g_ref, b_ref, w_ref, skip_ref,
                      g2_ref, b2_ref, o1_ref, o2_ref, *, eps):
    y = y_ref[...]
    mu = jnp.mean(y, axis=-1, keepdims=True)
    yc = y - mu
    var = jnp.mean(yc * yc, axis=-1, keepdims=True)
    t = yc * lax.rsqrt(var + eps) * g_ref[...] + b_ref[...]       # out_norm
    z = z_ref[...]
    t = t * (z * jax.nn.sigmoid(z))                               # * SiLU(z)
    proj = jnp.dot(t.astype(jnp.bfloat16), w_ref[...],
                   preferred_element_type=jnp.float32)            # out_proj
    x1 = inp_ref[...] * skip_ref[...] + proj                      # input*skip_scale + attn
    o1_ref[...] = x1
    mu2 = jnp.mean(x1, axis=-1, keepdims=True)
    xc2 = x1 - mu2
    var2 = jnp.mean(xc2 * xc2, axis=-1, keepdims=True)
    o2_ref[...] = xc2 * lax.rsqrt(var2 + eps) * g2_ref[...] + b2_ref[...]   # ln_2


def out_stage(y, z, inp, g, b, w_bf, skip, g2, b2, eps=1e-5):
    M, D = y.shape
    C = inp.shape[1]
    tm = M
    for cand in (1024, 512, 256, 128):
        if M % cand == 0:
            tm = cand
            break
    est = 2 * tm * (2 * D + C) * 4 + 2 * 2 * tm * C * 4 + 2 * D * C * 2
    return pl.pallas_call(
        functools.partial(_out_stage_kernel, eps=eps),
        out_shape=(jax.ShapeDtypeStruct((M, C), jnp.float32),
                   jax.ShapeDtypeStruct((M, C), jnp.float32)),
        grid=(M // tm,),
        in_specs=[
            pl.BlockSpec((tm, D), lambda i: (i, 0)),
            pl.BlockSpec((tm, D), lambda i: (i, 0)),
            pl.BlockSpec((tm, C), lambda i: (i, 0)),
            pl.BlockSpec((1, D), lambda i: (0, 0)),
            pl.BlockSpec((1, D), lambda i: (0, 0)),
            pl.BlockSpec((D, C), lambda i: (0, 0)),
            pl.BlockSpec((1, C), lambda i: (0, 0)),
            pl.BlockSpec((1, C), lambda i: (0, 0)),
            pl.BlockSpec((1, C), lambda i: (0, 0)),
        ],
        out_specs=(pl.BlockSpec((tm, C), lambda i: (i, 0)),
                   pl.BlockSpec((tm, C), lambda i: (i, 0))),
        compiler_params=_cp(("parallel",), est),
    )(y, z, inp, g.reshape(1, D), b.reshape(1, D), w_bf,
      skip.reshape(1, C), g2.reshape(1, C), b2.reshape(1, C))


# --------------------------------------------------------------------------
# Kernel 5: ParameterFreeAttetion (is_light_sr=True) via im2col + one K=9*C matmul,
#           fused with skip_scale2 / skip_scale3 residuals
# --------------------------------------------------------------------------

def _pfa_kernel(lnp_ref, x1_ref, inp_ref, w_ref, bias_ref, s2_ref, s3_ref, o_ref):
    Hp, Wp, C = lnp_ref.shape
    H, W = Hp - 2, Wp - 2
    patches = jnp.concatenate(
        [lnp_ref[dy:dy + H, dx:dx + W, :] for dy in range(3) for dx in range(3)],
        axis=-1)                                                  # (H, W, 9C) im2col
    conv = lax.dot_general(
        patches.astype(jnp.bfloat16), w_ref[...],
        dimension_numbers=(((2,), (0,)), ((), ())),
        preferred_element_type=jnp.float32) + bias_ref[...]
    out = conv * jax.nn.sigmoid(conv)                             # SiLU(conv3x3(ln2))
    ln_int = lnp_ref[1:H + 1, 1:W + 1, :]                         # PFA input (= ln_2(x))
    pfa = (out + ln_int) * (jax.nn.sigmoid(out) - 0.5)
    o_ref[...] = x1_ref[...] * s2_ref[...] + pfa + inp_ref[...] * s3_ref[...]


def pfa_block(ln2p, x1, inp, w9_bf, bias, s2, s3):
    B, Hp, Wp, C = ln2p.shape
    H, W = Hp - 2, Wp - 2
    est = (2 * Hp * Wp * C * 4 + 2 * 2 * H * W * C * 4 + 2 * H * W * C * 4
           + H * W * 9 * C * 4 + 2 * 9 * C * C * 2)
    return pl.pallas_call(
        _pfa_kernel,
        out_shape=jax.ShapeDtypeStruct((B, H, W, C), jnp.float32),
        grid=(B,),
        in_specs=[
            pl.BlockSpec((None, Hp, Wp, C), lambda b: (b, 0, 0, 0)),
            pl.BlockSpec((None, H, W, C), lambda b: (b, 0, 0, 0)),
            pl.BlockSpec((None, H, W, C), lambda b: (b, 0, 0, 0)),
            pl.BlockSpec((9 * C, C), lambda b: (0, 0)),
            pl.BlockSpec((1, C), lambda b: (0, 0)),
            pl.BlockSpec((1, C), lambda b: (0, 0)),
            pl.BlockSpec((1, C), lambda b: (0, 0)),
        ],
        out_specs=pl.BlockSpec((None, H, W, C), lambda b: (b, 0, 0, 0)),
        compiler_params=_cp(("parallel",), est),
    )(ln2p, x1, inp, w9_bf, bias.reshape(1, C), s2.reshape(1, C), s3.reshape(1, C))


# --------------------------------------------------------------------------
# Module forward passes (small plain-JAX glue around the kernels)
# --------------------------------------------------------------------------

def vss_block_forward(x_blc, x_size, p):
    """VSSBlock.forward. x_blc: (B, L, C), L = H*W (row-major)."""
    B, L, C = x_blc.shape
    H, W = x_size
    M = B * L
    ss = p["ss2d"]
    D = ss["d_inner"]

    inp2d = x_blc.reshape(M, C)

    # ln_1 + in_proj (fused; x / z split inside the kernel)
    x_part, z = fused_ln_matmul(inp2d, p["ln1_g"], p["ln1_b"], ss["in_proj_w"])
    x_in = x_part.reshape(B, H, W, D)

    # depthwise conv + SiLU
    xc = dwconv3x3_silu(x_in, ss["conv_w"], ss["conv_b"])                   # (B, H, W, D)

    # row-major + column-major orderings; reverse directions run in-kernel
    x_hw = xc.reshape(B, L, D)
    x_wh = jnp.transpose(xc, (0, 2, 1, 3)).reshape(B, L, D)

    ys = ss2d_scan(x_hw, x_wh, ss["scan"])                                  # (B, L, 2D)
    y_wh = jnp.transpose(ys[:, :, D:].reshape(B, W, H, D), (0, 2, 1, 3)).reshape(B, L, D)
    y = ys[:, :, :D] + y_wh                                                 # y1+y2+y3+y4

    # out_norm + SiLU(z) + out_proj + skip_scale residual + ln_2 (fused)
    x1, ln2 = out_stage(y.reshape(M, D), z, inp2d,
                        ss["out_norm_g"], ss["out_norm_b"], ss["out_proj_w"],
                        p["skip_scale"], p["ln2_g"], p["ln2_b"])

    # PFA conv (im2col, single matmul) + skip_scale2 + skip_scale3 (fused)
    ln2p = jnp.pad(ln2.reshape(B, H, W, C), ((0, 0), (1, 1), (1, 1), (0, 0)))
    out = pfa_block(ln2p, x1.reshape(B, H, W, C), x_blc.reshape(B, H, W, C),
                    p["pfa_w"], p["pfa_b"], p["skip_scale2"], p["skip_scale3"])
    return out.reshape(B, L, C)


def basic_layer_forward(x, x_size, blocks):
    """BasicLayer.forward (downsample=None)."""
    for p in blocks:
        x = vss_block_forward(x, x_size, p)
    return x


# --------------------------------------------------------------------------
# Deterministic parameter initialization (shapes follow the PyTorch __init__),
# pre-packed into the fused / direction-paired layouts the kernels expect.
# --------------------------------------------------------------------------

def init_basic_layer_params(key, dim, d_state, expand, depth):
    C = dim
    D = int(expand * dim)              # d_inner
    N = d_state
    R = math.ceil(dim / 16)            # dt_rank
    K = 4
    D2 = 2 * D
    blocks = []
    for i in range(depth):
        bk = jax.random.fold_in(key, i)
        ks = jax.random.split(bk, 16)

        def rnd(j, shape, s=0.05):
            return s * jax.random.normal(ks[j], shape, jnp.float32)

        # raw PyTorch-layout SS2D parameters (K = 4 scan directions)
        x_proj_w = rnd(0, (K, R + 2 * N, D))                              # x_proj weights
        dt_w = (R ** -0.5) * (2.0 * jax.random.uniform(ks[1], (K, D, R)) - 1.0)
        dt = jnp.exp(jax.random.uniform(ks[2], (K, D))
                     * (math.log(0.1) - math.log(0.001)) + math.log(0.001))
        dt = jnp.maximum(dt, 1e-4)
        dt_bias = dt + jnp.log(-jnp.expm1(-dt))                           # inverse softplus
        a_log = jnp.broadcast_to(
            jnp.log(jnp.arange(1, N + 1, dtype=jnp.float32))[None, None, :], (K, D, N))
        ds = jnp.ones((K, D), jnp.float32)

        wx_dt = x_proj_w[:, :R, :]              # (K, R, D)
        wx_b = x_proj_w[:, R:R + N, :]          # (K, N, D)
        wx_c = x_proj_w[:, R + N:, :]           # (K, N, D)

        def pack_pair(ka, kb):
            # one (D2, D2 + 4N) weight per direction pair:
            #   cols [0:D2)        -> delta (x_proj dt rows composed with dt_proj)
            #   cols [D2:D2+2N)    -> B  (narrow, per-direction block-diagonal)
            #   cols [D2+2N:D2+4N) -> C
            w = jnp.zeros((D2, D2 + 4 * N), jnp.float32)
            w = w.at[:D, :D].set(wx_dt[ka].T @ dt_w[ka].T)
            w = w.at[D:, D:D2].set(wx_dt[kb].T @ dt_w[kb].T)
            w = w.at[:D, D2:D2 + N].set(wx_b[ka].T)
            w = w.at[D:, D2 + N:D2 + 2 * N].set(wx_b[kb].T)
            w = w.at[:D, D2 + 2 * N:D2 + 3 * N].set(wx_c[ka].T)
            w = w.at[D:, D2 + 3 * N:D2 + 4 * N].set(wx_c[kb].T)
            bias = jnp.zeros((1, D2 + 4 * N), jnp.float32)
            bias = bias.at[0, :D].set(dt_bias[ka]).at[0, D:D2].set(dt_bias[kb])
            # A laid out as one (N, D2) = (8, 128) tile: a[n, d] for the packed channel d
            a_mat = jnp.concatenate([-jnp.exp(a_log[ka]).T, -jnp.exp(a_log[kb]).T], axis=1)
            return dict(w=w.astype(jnp.bfloat16), bias=bias, a=a_mat)

        scan = dict(
            fwd=pack_pair(0, 1),        # row-major / column-major forward scans
            bwd=pack_pair(2, 3),        # their reversed counterparts
            dsum=jnp.concatenate([ds[0] + ds[2], ds[1] + ds[3]])[None, :],   # (1, 2D)
        )

        ss2d = dict(
            d_inner=D,
            in_proj_w=rnd(3, (C, 2 * D)).astype(jnp.bfloat16),   # Linear(C -> 2D), no bias
            conv_w=rnd(4, (3, 3, D)),                            # depthwise 3x3 (NHWC weight)
            conv_b=rnd(5, (D,)),
            out_norm_g=jnp.ones((D,), jnp.float32),
            out_norm_b=jnp.zeros((D,), jnp.float32),
            out_proj_w=rnd(6, (D, C)).astype(jnp.bfloat16),      # Linear(D -> C), no bias
            scan=scan,
        )
        blk = dict(
            ln1_g=jnp.ones((C,), jnp.float32), ln1_b=jnp.zeros((C,), jnp.float32),
            ln2_g=jnp.ones((C,), jnp.float32), ln2_b=jnp.zeros((C,), jnp.float32),
            skip_scale=jnp.ones((C,), jnp.float32),
            skip_scale2=jnp.ones((C,), jnp.float32),
            skip_scale3=jnp.ones((C,), jnp.float32),
            # im2col conv weight: row (dy*3+dx)*C + cin  ==  torch weight[cout, cin, dy, dx]
            pfa_w=rnd(7, (9 * C, C)).astype(jnp.bfloat16),
            pfa_b=rnd(8, (C,)),
            ss2d=ss2d,
        )
        blocks.append(blk)
    return blocks


# --------------------------------------------------------------------------
# Main
# --------------------------------------------------------------------------

if __name__ == "__main__":
    B, H, W, C = 2, 8, 8, 32        # (batch, height, width, dim);  L = H*W = 64
    DEPTH = 2
    D_STATE = 8
    EXPAND = 2.0                    # mlp_ratio -> SS2D expand

    key = jax.random.PRNGKey(0)
    k_x, k_p = jax.random.split(key)
    x = jax.random.normal(k_x, (B, H * W, C), jnp.float32)      # BasicLayer input: (B, L, C)
    blocks = init_basic_layer_params(k_p, dim=C, d_state=D_STATE, expand=EXPAND, depth=DEPTH)

    fwd = jax.jit(lambda inp: basic_layer_forward(inp, (H, W), blocks))
    out = jax.block_until_ready(fwd(x))

    assert out.shape == (B, H * W, C)
    assert bool(jnp.all(jnp.isfinite(out)))
    print("KERNEL_OK")
</pallas_src>

<mosaic_0001>
module attributes {stable_mosaic.version = 11 : i64} {
  func.func @_ln_matmul_kernel(%arg0: i32, %arg1: memref<128x32xf32, #tpu.memory_space<vmem>>, %arg2: memref<1x32xf32, #tpu.memory_space<vmem>>, %arg3: memref<1x32xf32, #tpu.memory_space<vmem>>, %arg4: memref<32x128xbf16, #tpu.memory_space<vmem>>, %arg5: memref<128x64xf32, #tpu.memory_space<vmem>>, %arg6: memref<128x64xf32, #tpu.memory_space<vmem>>) attributes {dimension_semantics = [#tpu.dimension_semantics<parallel>], iteration_bounds = array<i64: 1>, scalar_prefetch = 0 : i64, scratch_operands = 0 : i64, tpu.core_type = #tpu.core_type<tc>, window_params = [{transform_indices = @transform_0, window_bounds = array<i64: 128, 32>}, {pipeline_mode = #tpu.pipeline_mode<synchronous>, transform_indices = @transform_1, window_bounds = array<i64: 1, 32>}, {pipeline_mode = #tpu.pipeline_mode<synchronous>, transform_indices = @transform_2, window_bounds = array<i64: 1, 32>}, {pipeline_mode = #tpu.pipeline_mode<synchronous>, transform_indices = @transform_3, window_bounds = array<i64: 32, 128>}, {transform_indices = @transform_4, window_bounds = array<i64: 128, 64>}, {transform_indices = @transform_5, window_bounds = array<i64: 128, 64>}]} {
    %c0 = arith.constant 0 : index
    %c0_0 = arith.constant 0 : index
    %0 = vector.load %arg1[%c0, %c0_0] : memref<128x32xf32, #tpu.memory_space<vmem>>, vector<128x32xf32>
    %cst = arith.constant dense<0.000000e+00> : vector<128xf32>
    %1 = vector.multi_reduction <add>, %0, %cst [1] : vector<128x32xf32> to vector<128xf32>
    %2 = vector.shape_cast %1 : vector<128xf32> to vector<128x1xf32>
    %cst_1 = arith.constant 3.200000e+01 : f32
    %3 = vector.broadcast %cst_1 : f32 to vector<128x1xf32>
    %4 = arith.divf %2, %3 : vector<128x1xf32>
    %5 = vector.broadcast %4 : vector<128x1xf32> to vector<128x32xf32>
    %6 = arith.subf %0, %5 : vector<128x32xf32>
    %7 = arith.mulf %6, %6 : vector<128x32xf32>
    %cst_2 = arith.constant dense<0.000000e+00> : vector<128xf32>
    %8 = vector.multi_reduction <add>, %7, %cst_2 [1] : vector<128x32xf32> to vector<128xf32>
    %9 = vector.shape_cast %8 : vector<128xf32> to vector<128x1xf32>
    %cst_3 = arith.constant 3.200000e+01 : f32
    %10 = vector.broadcast %cst_3 : f32 to vector<128x1xf32>
    %11 = arith.divf %9, %10 : vector<128x1xf32>
    %cst_4 = arith.constant 9.99999974E-6 : f32
    %12 = vector.broadcast %cst_4 : f32 to vector<128x1xf32>
    %13 = arith.addf %11, %12 : vector<128x1xf32>
    %14 = math.rsqrt %13 : vector<128x1xf32>
    %15 = vector.broadcast %14 : vector<128x1xf32> to vector<128x32xf32>
    %16 = arith.mulf %6, %15 : vector<128x32xf32>
    %c0_5 = arith.constant 0 : index
    %c0_6 = arith.constant 0 : index
    %17 = vector.load %arg2[%c0_5, %c0_6] : memref<1x32xf32, #tpu.memory_space<vmem>>, vector<1x32xf32>
    %18 = vector.broadcast %17 : vector<1x32xf32> to vector<128x32xf32>
    %19 = arith.mulf %16, %18 : vector<128x32xf32>
    %c0_7 = arith.constant 0 : index
    %c0_8 = arith.constant 0 : index
    %20 = vector.load %arg3[%c0_7, %c0_8] : memref<1x32xf32, #tpu.memory_space<vmem>>, vector<1x32xf32>
    %21 = vector.broadcast %20 : vector<1x32xf32> to vector<128x32xf32>
    %22 = arith.addf %19, %21 : vector<128x32xf32>
    %23 = arith.truncf %22 : vector<128x32xf32> to vector<128x32xbf16>
    %c0_9 = arith.constant 0 : index
    %c0_10 = arith.constant 0 : index
    %24 = vector.load %arg4[%c0_9, %c0_10] : memref<32x128xbf16, #tpu.memory_space<vmem>>, vector<32x128xbf16>
    %cst_11 = arith.constant dense<0.000000e+00> : vector<128x128xf32>
    %25 = tpu.matmul %23, %24, %cst_11 {dimension_numbers = #tpu.dot_dimension_numbers<[1], [0], [0], [1], [0, 0, 1, 1], [], []>} : vector<128x32xbf16>, vector<32x128xbf16>, vector<128x128xf32> -> vector<128x128xf32>
    %26 = vector.extract_strided_slice %25 {offsets = [0, 0], sizes = [128, 64], strides = [1, 1]} : vector<128x128xf32> to vector<128x64xf32>
    %c0_12 = arith.constant 0 : index
    %c0_13 = arith.constant 0 : index
    %27 = vector.load %arg5[%c0_12, %c0_13] : memref<128x64xf32, #tpu.memory_space<vmem>>, vector<128x64xf32>
    tpu.vector_store %arg5[%c0_12, %c0_13], %26 {strides = array<i32>} : memref<128x64xf32, #tpu.memory_space<vmem>>, vector<128x64xf32>,
    %28 = vector.extract_strided_slice %25 {offsets = [0, 64], sizes = [128, 64], strides = [1, 1]} : vector<128x128xf32> to vector<128x64xf32>
    %c0_14 = arith.constant 0 : index
    %c0_15 = arith.constant 0 : index
    %29 = vector.load %arg6[%c0_14, %c0_15] : memref<128x64xf32, #tpu.memory_space<vmem>>, vector<128x64xf32>
    tpu.vector_store %arg6[%c0_14, %c0_15], %28 {strides = array<i32>} : memref<128x64xf32, #tpu.memory_space<vmem>>, vector<128x64xf32>,
    return
  }
  func.func @transform_0(%arg0: i32) -> (i32, i32) {
    %c0_i32 = arith.constant 0 : i32
    %c0_i32_0 = arith.constant 0 : i32
    return %arg0, %c0_i32 : i32, i32
  }
  func.func @transform_1(%arg0: i32) -> (i32, i32) {
    %c0_i32 = arith.constant 0 : i32
    %c0_i32_0 = arith.constant 0 : i32
    %c0_i32_1 = arith.constant 0 : i32
    return %c0_i32, %c0_i32_0 : i32, i32
  }
  func.func @transform_2(%arg0: i32) -> (i32, i32) {
    %c0_i32 = arith.constant 0 : i32
    %c0_i32_0 = arith.constant 0 : i32
    %c0_i32_1 = arith.constant 0 : i32
    return %c0_i32, %c0_i32_0 : i32, i32
  }
  func.func @transform_3(%arg0: i32) -> (i32, i32) {
    %c0_i32 = arith.constant 0 : i32
    %c0_i32_0 = arith.constant 0 : i32
    %c0_i32_1 = arith.constant 0 : i32
    return %c0_i32, %c0_i32_0 : i32, i32
  }
  func.func @transform_4(%arg0: i32) -> (i32, i32) {
    %c0_i32 = arith.constant 0 : i32
    %c0_i32_0 = arith.constant 0 : i32
    return %arg0, %c0_i32 : i32, i32
  }
  func.func @transform_5(%arg0: i32) -> (i32, i32) {
    %c0_i32 = arith.constant 0 : i32
    %c0_i32_0 = arith.constant 0 : i32
    return %arg0, %c0_i32 : i32, i32
  }
}

module attributes {stable_mosaic.version = 11 : i64} {
  func.func @_dwconv_silu_kernel(%arg0: i32, %arg1: memref<1x10x10x64xf32, #tpu.memory_space<vmem>>, %arg2: memref<3x3x64xf32, #tpu.memory_space<vmem>>, %arg3: memref<1x64xf32, #tpu.memory_space<vmem>>, %arg4: memref<1x8x8x64xf32, #tpu.memory_space<vmem>>) attributes {dimension_semantics = [#tpu.dimension_semantics<parallel>], iteration_bounds = array<i64: 2>, scalar_prefetch = 0 : i64, scratch_operands = 0 : i64, tpu.core_type = #tpu.core_type<tc>, window_params = [{transform_indices = @transform_0, window_bounds = array<i64: 1, 10, 10, 64>}, {pipeline_mode = #tpu.pipeline_mode<synchronous>, transform_indices = @transform_1, window_bounds = array<i64: 3, 3, 64>}, {pipeline_mode = #tpu.pipeline_mode<synchronous>, transform_indices = @transform_2, window_bounds = array<i64: 1, 64>}, {transform_indices = @transform_3, window_bounds = array<i64: 1, 8, 8, 64>}]} {
    %c0 = arith.constant 0 : index
    %c0_0 = arith.constant 0 : index
    %c0_1 = arith.constant 0 : index
    %c0_2 = arith.constant 0 : index
    %0 = vector.load %arg1[%c0, %c0_0, %c0_1, %c0_2] : memref<1x10x10x64xf32, #tpu.memory_space<vmem>>, vector<1x10x10x64xf32>
    %1 = vector.shape_cast %0 : vector<1x10x10x64xf32> to vector<10x10x64xf32>
    %cst = arith.constant 0.000000e+00 : f32
    %2 = vector.broadcast %cst : f32 to vector<8x8x64xf32>
    %3 = vector.extract_strided_slice %1 {offsets = [0, 0, 0], sizes = [10, 8, 64], strides = [1, 1, 1]} : vector<10x10x64xf32> to vector<10x8x64xf32>
    %4 = vector.extract_strided_slice %3 {offsets = [0, 0, 0], sizes = [8, 8, 64], strides = [1, 1, 1]} : vector<10x8x64xf32> to vector<8x8x64xf32>
    %c0_3 = arith.constant 0 : index
    %c0_4 = arith.constant 0 : index
    %c0_5 = arith.constant 0 : index
    %5 = vector.load %arg2[%c0_3, %c0_4, %c0_5] : memref<3x3x64xf32, #tpu.memory_space<vmem>>, vector<1x1x64xf32>
    %6 = vector.broadcast %5 : vector<1x1x64xf32> to vector<8x8x64xf32>
    %7 = arith.mulf %4, %6 : vector<8x8x64xf32>
    %8 = arith.addf %2, %7 : vector<8x8x64xf32>
    %9 = vector.extract_strided_slice %3 {offsets = [1, 0, 0], sizes = [8, 8, 64], strides = [1, 1, 1]} : vector<10x8x64xf32> to vector<8x8x64xf32>
    %c1 = arith.constant 1 : index
    %c0_6 = arith.constant 0 : index
    %c0_7 = arith.constant 0 : index
    %10 = vector.load %arg2[%c1, %c0_6, %c0_7] : memref<3x3x64xf32, #tpu.memory_space<vmem>>, vector<1x1x64xf32>
    %11 = vector.broadcast %10 : vector<1x1x64xf32> to vector<8x8x64xf32>
    %12 = arith.mulf %9, %11 : vector<8x8x64xf32>
    %13 = arith.addf %8, %12 : vector<8x8x64xf32>
    %14 = vector.extract_strided_slice %3 {offsets = [2, 0, 0], sizes = [8, 8, 64], strides = [1, 1, 1]} : vector<10x8x64xf32> to vector<8x8x64xf32>
    %c2 = arith.constant 2 : index
    %c0_8 = arith.constant 0 : index
    %c0_9 = arith.constant 0 : index
    %15 = vector.load %arg2[%c2, %c0_8, %c0_9] : memref<3x3x64xf32, #tpu.memory_space<vmem>>, vector<1x1x64xf32>
    %16 = vector.broadcast %15 : vector<1x1x64xf32> to vector<8x8x64xf32>
    %17 = arith.mulf %14, %16 : vector<8x8x64xf32>
    %18 = arith.addf %13, %17 : vector<8x8x64xf32>
    %19 = vector.extract_strided_slice %1 {offsets = [0, 1, 0], sizes = [10, 8, 64], strides = [1, 1, 1]} : vector<10x10x64xf32> to vector<10x8x64xf32>
    %20 = vector.extract_strided_slice %19 {offsets = [0, 0, 0], sizes = [8, 8, 64], strides = [1, 1, 1]} : vector<10x8x64xf32> to vector<8x8x64xf32>
    %c0_10 = arith.constant 0 : index
    %c1_11 = arith.constant 1 : index
    %c0_12 = arith.constant 0 : index
    %21 = vector.load %arg2[%c0_10, %c1_11, %c0_12] : memref<3x3x64xf32, #tpu.memory_space<vmem>>, vector<1x1x64xf32>
    %22 = vector.broadcast %21 : vector<1x1x64xf32> to vector<8x8x64xf32>
    %23 = arith.mulf %20, %22 : vector<8x8x64xf32>
    %24 = arith.addf %18, %23 : vector<8x8x64xf32>
    %25 = vector.extract_strided_slice %19 {offsets = [1, 0, 0], sizes = [8, 8, 64], strides = [1, 1, 1]} : vector<10x8x64xf32> to vector<8x8x64xf32>
    %c1_13 = arith.constant 1 : index
    %c1_14 = arith.constant 1 : index
    %c0_15 = arith.constant 0 : index
    %26 = vector.load %arg2[%c1_13, %c1_14, %c0_15] : memref<3x3x64xf32, #tpu.memory_space<vmem>>, vector<1x1x64xf32>
    %27 = vector.broadcast %26 : vector<1x1x64xf32> to vector<8x8x64xf32>
    %28 = arith.mulf %25, %27 : vector<8x8x64xf32>
    %29 = arith.addf %24, %28 : vector<8x8x64xf32>
    %30 = vector.extract_strided_slice %19 {offsets = [2, 0, 0], sizes = [8, 8, 64], strides = [1, 1, 1]} : vector<10x8x64xf32> to vector<8x8x64xf32>
    %c2_16 = arith.constant 2 : index
    %c1_17 = arith.constant 1 : index
    %c0_18 = arith.constant 0 : index
    %31 = vector.load %arg2[%c2_16, %c1_17, %c0_18] : memref<3x3x64xf32, #tpu.memory_space<vmem>>, vector<1x1x64xf32>
    %32 = vector.broadcast %31 : vector<1x1x64xf32> to vector<8x8x64xf32>
    %33 = arith.mulf %30, %32 : vector<8x8x64xf32>
    %34 = arith.addf %29, %33 : vector<8x8x64xf32>
    %35 = vector.extract_strided_slice %1 {offsets = [0, 2, 0], sizes = [10, 8, 64], strides = [1, 1, 1]} : vector<10x10x64xf32> to vector<10x8x64xf32>
    %36 = vector.extract_strided_slice %35 {offsets = [0, 0, 0], sizes = [8, 8, 64], strides = [1, 1, 1]} : vector<10x8x64xf32> to vector<8x8x64xf32>
    %c0_19 = arith.constant 0 : index
    %c2_20 = arith.constant 2 : index
    %c0_21 = arith.constant 0 : index
    %37 = vector.load %arg2[%c0_19, %c2_20, %c0_21] : memref<3x3x64xf32, #tpu.memory_space<vmem>>, vector<1x1x64xf32>
    %38 = vector.broadcast %37 : vector<1x1x64xf32> to vector<8x8x64xf32>
    %39 = arith.mulf %36, %38 : vector<8x8x64xf32>
    %40 = arith.addf %34, %39 : vector<8x8x64xf32>
    %41 = vector.extract_strided_slice %35 {offsets = [1, 0, 0], sizes = [8, 8, 64], strides = [1, 1, 1]} : vector<10x8x64xf32> to vector<8x8x64xf32>
    %c1_22 = arith.constant 1 : index
    %c2_23 = arith.constant 2 : index
    %c0_24 = arith.constant 0 : index
    %42 = vector.load %arg2[%c1_22, %c2_23, %c0_24] : memref<3x3x64xf32, #tpu.memory_space<vmem>>, vector<1x1x64xf32>
    %43 = vector.broadcast %42 : vector<1x1x64xf32> to vector<8x8x64xf32>
    %44 = arith.mulf %41, %43 : vector<8x8x64xf32>
    %45 = arith.addf %40, %44 : vector<8x8x64xf32>
    %46 = vector.extract_strided_slice %35 {offsets = [2, 0, 0], sizes = [8, 8, 64], strides = [1, 1, 1]} : vector<10x8x64xf32> to vector<8x8x64xf32>
    %c2_25 = arith.constant 2 : index
    %c2_26 = arith.constant 2 : index
    %c0_27 = arith.constant 0 : index
    %47 = vector.load %arg2[%c2_25, %c2_26, %c0_27] : memref<3x3x64xf32, #tpu.memory_space<vmem>>, vector<1x1x64xf32>
    %48 = vector.broadcast %47 : vector<1x1x64xf32> to vector<8x8x64xf32>
    %49 = arith.mulf %46, %48 : vector<8x8x64xf32>
    %50 = arith.addf %45, %49 : vector<8x8x64xf32>
    %c0_28 = arith.constant 0 : index
    %c0_29 = arith.constant 0 : index
    %51 = vector.load %arg3[%c0_28, %c0_29] : memref<1x64xf32, #tpu.memory_space<vmem>>, vector<1x64xf32>
    %52 = vector.shape_cast %51 : vector<1x64xf32> to vector<1x1x64xf32>
    %53 = vector.broadcast %52 : vector<1x1x64xf32> to vector<8x8x64xf32>
    %54 = arith.addf %50, %53 : vector<8x8x64xf32>
    %55 = arith.negf %54 : vector<8x8x64xf32>
    %56 = math.exp %55 : vector<8x8x64xf32>
    %cst_30 = arith.constant 1.000000e+00 : f32
    %57 = vector.broadcast %cst_30 : f32 to vector<8x8x64xf32>
    %58 = arith.addf %57, %56 : vector<8x8x64xf32>
    %59 = arith.divf %57, %58 : vector<8x8x64xf32>
    %60 = arith.mulf %54, %59 : vector<8x8x64xf32>
    %c0_31 = arith.constant 0 : index
    %c0_32 = arith.constant 0 : index
    %c0_33 = arith.constant 0 : index
    %c0_34 = arith.constant 0 : index
    %61 = vector.load %arg4[%c0_31, %c0_32, %c0_33, %c0_34] : memref<1x8x8x64xf32, #tpu.memory_space<vmem>>, vector<1x8x8x64xf32>
    %62 = vector.shape_cast %61 : vector<1x8x8x64xf32> to vector<8x8x64xf32>
    %63 = vector.shape_cast %60 : vector<8x8x64xf32> to vector<1x8x8x64xf32>
    tpu.vector_store %arg4[%c0_31, %c0_32, %c0_33, %c0_34], %63 {strides = array<i32>} : memref<1x8x8x64xf32, #tpu.memory_space<vmem>>, vector<1x8x8x64xf32>,
    return
  }
  func.func @transform_0(%arg0: i32) -> (i32, i32, i32, i32) {
    %c0_i32 = arith.constant 0 : i32
    %c0_i32_0 = arith.constant 0 : i32
    %c0_i32_1 = arith.constant 0 : i32
    %c0_i32_2 = arith.constant 0 : i32
    return %arg0, %c0_i32, %c0_i32_0, %c0_i32_1 : i32, i32, i32, i32
  }
  func.func @transform_1(%arg0: i32) -> (i32, i32, i32) {
    %c0_i32 = arith.constant 0 : i32
    %c0_i32_0 = arith.constant 0 : i32
    %c0_i32_1 = arith.constant 0 : i32
    %c0_i32_2 = arith.constant 0 : i32
    return %c0_i32, %c0_i32_0, %c0_i32_1 : i32, i32, i32
  }
  func.func @transform_2(%arg0: i32) -> (i32, i32) {
    %c0_i32 = arith.constant 0 : i32
    %c0_i32_0 = arith.constant 0 : i32
    %c0_i32_1 = arith.constant 0 : i32
    return %c0_i32, %c0_i32_0 : i32, i32
  }
  func.func @transform_3(%arg0: i32) -> (i32, i32, i32, i32) {
    %c0_i32 = arith.constant 0 : i32
    %c0_i32_0 = arith.constant 0 : i32
    %c0_i32_1 = arith.constant 0 : i32
    %c0_i32_2 = arith.constant 0 : i32
    return %arg0, %c0_i32, %c0_i32_0, %c0_i32_1 : i32, i32, i32, i32
  }
}

module attributes {stable_mosaic.version = 11 : i64} {
  func.func @_ss2d_scan_kernel(%arg0: i32, %arg1: memref<1x64x64xf32, #tpu.memory_space<vmem>>, %arg2: memref<1x64x64xf32, #tpu.memory_space<vmem>>, %arg3: memref<128x160xbf16, #tpu.memory_space<vmem>>, %arg4: memref<1x160xf32, #tpu.memory_space<vmem>>, %arg5: memref<8x128xf32, #tpu.memory_space<vmem>>, %arg6: memref<128x160xbf16, #tpu.memory_space<vmem>>, %arg7: memref<1x160xf32, #tpu.memory_space<vmem>>, %arg8: memref<8x128xf32, #tpu.memory_space<vmem>>, %arg9: memref<1x128xf32, #tpu.memory_space<vmem>>, %arg10: memref<1x64x128xf32, #tpu.memory_space<vmem>>, %arg11: memref<64x128xf32, #tpu.memory_space<vmem>>, %arg12: memref<64x8x128xf32, #tpu.memory_space<vmem>>, %arg13: memref<64x8x128xf32, #tpu.memory_space<vmem>>, %arg14: memref<64x8x128xf32, #tpu.memory_space<vmem>>, %arg15: memref<64x8x128xf32, #tpu.memory_space<vmem>>, %arg16: memref<64x8x128xf32, #tpu.memory_space<vmem>>, %arg17: memref<64x8x128xf32, #tpu.memory_space<vmem>>) attributes {dimension_semantics = [#tpu.dimension_semantics<parallel>], iteration_bounds = array<i64: 2>, scalar_prefetch = 0 : i64, scratch_operands = 7 : i64, tpu.core_type = #tpu.core_type<tc>, window_params = [{transform_indices = @transform_0, window_bounds = array<i64: 1, 64, 64>}, {transform_indices = @transform_1, window_bounds = array<i64: 1, 64, 64>}, {pipeline_mode = #tpu.pipeline_mode<synchronous>, transform_indices = @transform_2, window_bounds = array<i64: 128, 160>}, {pipeline_mode = #tpu.pipeline_mode<synchronous>, transform_indices = @transform_3, window_bounds = array<i64: 1, 160>}, {pipeline_mode = #tpu.pipeline_mode<synchronous>, transform_indices = @transform_4, window_bounds = array<i64: 8, 128>}, {pipeline_mode = #tpu.pipeline_mode<synchronous>, transform_indices = @transform_5, window_bounds = array<i64: 128, 160>}, {pipeline_mode = #tpu.pipeline_mode<synchronous>, transform_indices = @transform_6, window_bounds = array<i64: 1, 160>}, {pipeline_mode = #tpu.pipeline_mode<synchronous>, transform_indices = @transform_7, window_bounds = array<i64: 8, 128>}, {pipeline_mode = #tpu.pipeline_mode<synchronous>, transform_indices = @transform_8, window_bounds = array<i64: 1, 128>}, {transform_indices = @transform_9, window_bounds = array<i64: 1, 64, 128>}]} {
    %c0 = arith.constant 0 : index
    %c0_0 = arith.constant 0 : index
    %c0_1 = arith.constant 0 : index
    %0 = vector.load %arg1[%c0, %c0_0, %c0_1] : memref<1x64x64xf32, #tpu.memory_space<vmem>>, vector<1x64x64xf32>
    %1 = vector.shape_cast %0 : vector<1x64x64xf32> to vector<64x64xf32>
    %c0_2 = arith.constant 0 : index
    %c0_3 = arith.constant 0 : index
    %c0_4 = arith.constant 0 : index
    %2 = vector.load %arg2[%c0_2, %c0_3, %c0_4] : memref<1x64x64xf32, #tpu.memory_space<vmem>>, vector<1x64x64xf32>
    %3 = vector.shape_cast %2 : vector<1x64x64xf32> to vector<64x64xf32>
    %4 = tpu.concatenate %1, %3 in 1 : vector<64x64xf32>, vector<64x64xf32> -> vector<64x128xf32>
    %c0_5 = arith.constant 0 : index
    %c0_6 = arith.constant 0 : index
    %5 = vector.load %arg11[%c0_5, %c0_6] : memref<64x128xf32, #tpu.memory_space<vmem>>, vector<64x128xf32>
    tpu.vector_store %arg11[%c0_5, %c0_6], %4 {strides = array<i32>} : memref<64x128xf32, #tpu.memory_space<vmem>>, vector<64x128xf32>,
    %c0_7 = arith.constant 0 : index
    %c0_8 = arith.constant 0 : index
    %6 = vector.load %arg9[%c0_7, %c0_8] : memref<1x128xf32, #tpu.memory_space<vmem>>, vector<1x128xf32>
    %7 = vector.broadcast %6 : vector<1x128xf32> to vector<64x128xf32>
    %8 = arith.mulf %4, %7 : vector<64x128xf32>
    %c0_9 = arith.constant 0 : index
    %c0_10 = arith.constant 0 : index
    %c0_11 = arith.constant 0 : index
    %9 = vector.load %arg10[%c0_9, %c0_10, %c0_11] : memref<1x64x128xf32, #tpu.memory_space<vmem>>, vector<1x64x128xf32>
    %10 = vector.shape_cast %9 : vector<1x64x128xf32> to vector<64x128xf32>
    %11 = vector.shape_cast %8 : vector<64x128xf32> to vector<1x64x128xf32>
    tpu.vector_store %arg10[%c0_9, %c0_10, %c0_11], %11 {strides = array<i32>} : memref<1x64x128xf32, #tpu.memory_space<vmem>>, vector<1x64x128xf32>,
    %cst = arith.constant 0.000000e+00 : f32
    %12 = vector.broadcast %cst : f32 to vector<8x128xf32>
    %c0_i32 = arith.constant 0 : i32
    %c64_i32 = arith.constant 64 : i32
    %13 = arith.muli %c0_i32, %c64_i32 : i32
    %14 = tpu.assume_multiple %13, 64 : i32
    %c0_i32_12 = arith.constant 0 : i32
    %15 = arith.subi %c0_i32_12, %c0_i32 : i32
    %c64_i32_13 = arith.constant 64 : i32
    %16 = arith.muli %15, %c64_i32_13 : i32
    %17 = tpu.assume_multiple %16, 64 : i32
    %18 = arith.index_cast %14 : i32 to index
    %c0_14 = arith.constant 0 : index
    %19 = vector.load %arg11[%18, %c0_14] : memref<64x128xf32, #tpu.memory_space<vmem>>, vector<64x128xf32>
    %20 = arith.truncf %19 : vector<64x128xf32> to vector<64x128xbf16>
    %c0_15 = arith.constant 0 : index
    %c0_16 = arith.constant 0 : index
    %21 = vector.load %arg3[%c0_15, %c0_16] : memref<128x160xbf16, #tpu.memory_space<vmem>>, vector<128x160xbf16>
    %cst_17 = arith.constant dense<0.000000e+00> : vector<64x160xf32>
    %22 = tpu.matmul %20, %21, %cst_17 {dimension_numbers = #tpu.dot_dimension_numbers<[1], [0], [0], [1], [0, 0, 1, 1], [], []>} : vector<64x128xbf16>, vector<128x160xbf16>, vector<64x160xf32> -> vector<64x160xf32>
    %c0_18 = arith.constant 0 : index
    %c0_19 = arith.constant 0 : index
    %23 = vector.load %arg4[%c0_18, %c0_19] : memref<1x160xf32, #tpu.memory_space<vmem>>, vector<1x160xf32>
    %24 = vector.broadcast %23 : vector<1x160xf32> to vector<64x160xf32>
    %25 = arith.addf %22, %24 : vector<64x160xf32>
    %26 = vector.extract_strided_slice %25 {offsets = [0, 0], sizes = [64, 128], strides = [1, 1]} : vector<64x160xf32> to vector<64x128xf32>
    %cst_20 = arith.constant 0.000000e+00 : f32
    %27 = vector.broadcast %cst_20 : f32 to vector<64x128xf32>
    %28 = arith.maximumf %26, %27 : vector<64x128xf32>
    %29 = math.absf %26 : vector<64x128xf32>
    %cst_21 = arith.constant 0.000000e+00 : f32
    %30 = vector.broadcast %cst_21 : f32 to vector<64x128xf32>
    %31 = arith.subf %30, %29 : vector<64x128xf32>
    %32 = math.exp %31 : vector<64x128xf32>
    %cst_22 = arith.constant 1.000000e+00 : f32
    %33 = vector.broadcast %cst_22 : f32 to vector<64x128xf32>
    %34 = arith.addf %33, %32 : vector<64x128xf32>
    %35 = math.log %34 : vector<64x128xf32>
    %36 = arith.addf %28, %35 : vector<64x128xf32>
    %37 = arith.mulf %36, %19 : vector<64x128xf32>
    %38 = vector.extract_strided_slice %25 {offsets = [0, 128], sizes = [64, 16], strides = [1, 1]} : vector<64x160xf32> to vector<64x16xf32>
    %39 = vector.extract_strided_slice %25 {offsets = [0, 144], sizes = [64, 16], strides = [1, 1]} : vector<64x160xf32> to vector<64x16xf32>
    %40 = vector.shape_cast %36 : vector<64x128xf32> to vector<64x1x128xf32>
    %c0_23 = arith.constant 0 : index
    %c0_24 = arith.constant 0 : index
    %41 = vector.load %arg5[%c0_23, %c0_24] : memref<8x128xf32, #tpu.memory_space<vmem>>, vector<8x128xf32>
    %42 = vector.shape_cast %41 : vector<8x128xf32> to vector<1x8x128xf32>
    %43 = vector.broadcast %40 : vector<64x1x128xf32> to vector<64x8x128xf32>
    %44 = vector.broadcast %42 : vector<1x8x128xf32> to vector<64x8x128xf32>
    %45 = arith.mulf %43, %44 : vector<64x8x128xf32>
    %46 = math.exp %45 : vector<64x8x128xf32>
    %c0_25 = arith.constant 0 : index
    %c0_26 = arith.constant 0 : index
    %c0_27 = arith.constant 0 : index
    %47 = vector.load %arg12[%c0_25, %c0_26, %c0_27] : memref<64x8x128xf32, #tpu.memory_space<vmem>>, vector<64x8x128xf32>
    tpu.vector_store %arg12[%c0_25, %c0_26, %c0_27], %46 {strides = array<i32>} : memref<64x8x128xf32, #tpu.memory_space<vmem>>, vector<64x8x128xf32>,
    %48 = vector.extract_strided_slice %38 {offsets = [0, 0], sizes = [64, 8], strides = [1, 1]} : vector<64x16xf32> to vector<64x8xf32>
    %49 = vector.shape_cast %48 : vector<64x8xf32> to vector<64x8x1xf32>
    %50 = vector.extract_strided_slice %37 {offsets = [0, 0], sizes = [64, 64], strides = [1, 1]} : vector<64x128xf32> to vector<64x64xf32>
    %51 = vector.shape_cast %50 : vector<64x64xf32> to vector<64x1x64xf32>
    %52 = vector.broadcast %49 : vector<64x8x1xf32> to vector<64x8x64xf32>
    %53 = vector.broadcast %51 : vector<64x1x64xf32> to vector<64x8x64xf32>
    %54 = arith.mulf %52, %53 : vector<64x8x64xf32>
    %55 = vector.extract_strided_slice %38 {offsets = [0, 8], sizes = [64, 8], strides = [1, 1]} : vector<64x16xf32> to vector<64x8xf32>
    %56 = vector.shape_cast %55 : vector<64x8xf32> to vector<64x8x1xf32>
    %57 = vector.extract_strided_slice %37 {offsets = [0, 64], sizes = [64, 64], strides = [1, 1]} : vector<64x128xf32> to vector<64x64xf32>
    %58 = vector.shape_cast %57 : vector<64x64xf32> to vector<64x1x64xf32>
    %59 = vector.broadcast %56 : vector<64x8x1xf32> to vector<64x8x64xf32>
    %60 = vector.broadcast %58 : vector<64x1x64xf32> to vector<64x8x64xf32>
    %61 = arith.mulf %59, %60 : vector<64x8x64xf32>
    %62 = tpu.concatenate %54, %61 in 2 : vector<64x8x64xf32>, vector<64x8x64xf32> -> vector<64x8x128xf32>
    %c0_28 = arith.constant 0 : index
    %c0_29 = arith.constant 0 : index
    %c0_30 = arith.constant 0 : index
    %63 = vector.load %arg13[%c0_28, %c0_29, %c0_30] : memref<64x8x128xf32, #tpu.memory_space<vmem>>, vector<64x8x128xf32>
    tpu.vector_store %arg13[%c0_28, %c0_29, %c0_30], %62 {strides = array<i32>} : memref<64x8x128xf32, #tpu.memory_space<vmem>>, vector<64x8x128xf32>,
    %64 = vector.extract_strided_slice %39 {offsets = [0, 0], sizes = [64, 8], strides = [1, 1]} : vector<64x16xf32> to vector<64x8xf32>
    %65 = vector.shape_cast %64 : vector<64x8xf32> to vector<64x8x1xf32>
    %66 = vector.shape_cast %65 : vector<64x8x1xf32> to vector<64x8x1xf32>
    %67 = vector.broadcast %66 : vector<64x8x1xf32> to vector<64x8x64xf32>
    %68 = vector.extract_strided_slice %39 {offsets = [0, 8], sizes = [64, 8], strides = [1, 1]} : vector<64x16xf32> to vector<64x8xf32>
    %69 = vector.shape_cast %68 : vector<64x8xf32> to vector<64x8x1xf32>
    %70 = vector.shape_cast %69 : vector<64x8x1xf32> to vector<64x8x1xf32>
    %71 = vector.broadcast %70 : vector<64x8x1xf32> to vector<64x8x64xf32>
    %72 = tpu.concatenate %67, %71 in 2 : vector<64x8x64xf32>, vector<64x8x64xf32> -> vector<64x8x128xf32>
    %c0_31 = arith.constant 0 : index
    %c0_32 = arith.constant 0 : index
    %c0_33 = arith.constant 0 : index
    %73 = vector.load %arg14[%c0_31, %c0_32, %c0_33] : memref<64x8x128xf32, #tpu.memory_space<vmem>>, vector<64x8x128xf32>
    tpu.vector_store %arg14[%c0_31, %c0_32, %c0_33], %72 {strides = array<i32>} : memref<64x8x128xf32, #tpu.memory_space<vmem>>, vector<64x8x128xf32>,
    %74 = arith.index_cast %17 : i32 to index
    %c0_34 = arith.constant 0 : index
    %75 = vector.load %arg11[%74, %c0_34] : memref<64x128xf32, #tpu.memory_space<vmem>>, vector<64x128xf32>
    %76 = arith.truncf %75 : vector<64x128xf32> to vector<64x128xbf16>
    %c0_35 = arith.constant 0 : index
    %c0_36 = arith.constant 0 : index
    %77 = vector.load %arg6[%c0_35, %c0_36] : memref<128x160xbf16, #tpu.memory_space<vmem>>, vector<128x160xbf16>
    %cst_37 = arith.constant dense<0.000000e+00> : vector<64x160xf32>
    %78 = tpu.matmul %76, %77, %cst_37 {dimension_numbers = #tpu.dot_dimension_numbers<[1], [0], [0], [1], [0, 0, 1, 1], [], []>} : vector<64x128xbf16>, vector<128x160xbf16>, vector<64x160xf32> -> vector<64x160xf32>
    %c0_38 = arith.constant 0 : index
    %c0_39 = arith.constant 0 : index
    %79 = vector.load %arg7[%c0_38, %c0_39] : memref<1x160xf32, #tpu.memory_space<vmem>>, vector<1x160xf32>
    %80 = vector.broadcast %79 : vector<1x160xf32> to vector<64x160xf32>
    %81 = arith.addf %78, %80 : vector<64x160xf32>
    %82 = vector.extract_strided_slice %81 {offsets = [0, 0], sizes = [64, 128], strides = [1, 1]} : vector<64x160xf32> to vector<64x128xf32>
    %cst_40 = arith.constant 0.000000e+00 : f32
    %83 = vector.broadcast %cst_40 : f32 to vector<64x128xf32>
    %84 = arith.maximumf %82, %83 : vector<64x128xf32>
    %85 = math.absf %82 : vector<64x128xf32>
    %cst_41 = arith.constant 0.000000e+00 : f32
    %86 = vector.broadcast %cst_41 : f32 to vector<64x128xf32>
    %87 = arith.subf %86, %85 : vector<64x128xf32>
    %88 = math.exp %87 : vector<64x128xf32>
    %cst_42 = arith.constant 1.000000e+00 : f32
    %89 = vector.broadcast %cst_42 : f32 to vector<64x128xf32>
    %90 = arith.addf %89, %88 : vector<64x128xf32>
    %91 = math.log %90 : vector<64x128xf32>
    %92 = arith.addf %84, %91 : vector<64x128xf32>
    %93 = arith.mulf %92, %75 : vector<64x128xf32>
    %94 = vector.extract_strided_slice %81 {offsets = [0, 128], sizes = [64, 16], strides = [1, 1]} : vector<64x160xf32> to vector<64x16xf32>
    %95 = vector.extract_strided_slice %81 {offsets = [0, 144], sizes = [64, 16], strides = [1, 1]} : vector<64x160xf32> to vector<64x16xf32>
    %96 = vector.shape_cast %92 : vector<64x128xf32> to vector<64x1x128xf32>
    %c0_43 = arith.constant 0 : index
    %c0_44 = arith.constant 0 : index
    %97 = vector.load %arg8[%c0_43, %c0_44] : memref<8x128xf32, #tpu.memory_space<vmem>>, vector<8x128xf32>
    %98 = vector.shape_cast %97 : vector<8x128xf32> to vector<1x8x128xf32>
    %99 = vector.broadcast %96 : vector<64x1x128xf32> to vector<64x8x128xf32>
    %100 = vector.broadcast %98 : vector<1x8x128xf32> to vector<64x8x128xf32>
    %101 = arith.mulf %99, %100 : vector<64x8x128xf32>
    %102 = math.exp %101 : vector<64x8x128xf32>
    %c0_45 = arith.constant 0 : index
    %c0_46 = arith.constant 0 : index
    %c0_47 = arith.constant 0 : index
    %103 = vector.load %arg15[%c0_45, %c0_46, %c0_47] : memref<64x8x128xf32, #tpu.memory_space<vmem>>, vector<64x8x128xf32>
    tpu.vector_store %arg15[%c0_45, %c0_46, %c0_47], %102 {strides = array<i32>} : memref<64x8x128xf32, #tpu.memory_space<vmem>>, vector<64x8x128xf32>,
    %104 = vector.extract_strided_slice %94 {offsets = [0, 0], sizes = [64, 8], strides = [1, 1]} : vector<64x16xf32> to vector<64x8xf32>
    %105 = vector.shape_cast %104 : vector<64x8xf32> to vector<64x8x1xf32>
    %106 = vector.extract_strided_slice %93 {offsets = [0, 0], sizes = [64, 64], strides = [1, 1]} : vector<64x128xf32> to vector<64x64xf32>
    %107 = vector.shape_cast %106 : vector<64x64xf32> to vector<64x1x64xf32>
    %108 = vector.broadcast %105 : vector<64x8x1xf32> to vector<64x8x64xf32>
    %109 = vector.broadcast %107 : vector<64x1x64xf32> to vector<64x8x64xf32>
    %110 = arith.mulf %108, %109 : vector<64x8x64xf32>
    %111 = vector.extract_strided_slice %94 {offsets = [0, 8], sizes = [64, 8], strides = [1, 1]} : vector<64x16xf32> to vector<64x8xf32>
    %112 = vector.shape_cast %111 : vector<64x8xf32> to vector<64x8x1xf32>
    %113 = vector.extract_strided_slice %93 {offsets = [0, 64], sizes = [64, 64], strides = [1, 1]} : vector<64x128xf32> to vector<64x64xf32>
    %114 = vector.shape_cast %113 : vector<64x64xf32> to vector<64x1x64xf32>
    %115 = vector.broadcast %112 : vector<64x8x1xf32> to vector<64x8x64xf32>
    %116 = vector.broadcast %114 : vector<64x1x64xf32> to vector<64x8x64xf32>
    %117 = arith.mulf %115, %116 : vector<64x8x64xf32>
    %118 = tpu.concatenate %110, %117 in 2 : vector<64x8x64xf32>, vector<64x8x64xf32> -> vector<64x8x128xf32>
    %c0_48 = arith.constant 0 : index
    %c0_49 = arith.constant 0 : index
    %c0_50 = arith.constant 0 : index
    %119 = vector.load %arg16[%c0_48, %c0_49, %c0_50] : memref<64x8x128xf32, #tpu.memory_space<vmem>>, vector<64x8x128xf32>
    tpu.vector_store %arg16[%c0_48, %c0_49, %c0_50], %118 {strides = array<i32>} : memref<64x8x128xf32, #tpu.memory_space<vmem>>, vector<64x8x128xf32>,
    %120 = vector.extract_strided_slice %95 {offsets = [0, 0], sizes = [64, 8], strides = [1, 1]} : vector<64x16xf32> to vector<64x8xf32>
    %121 = vector.shape_cast %120 : vector<64x8xf32> to vector<64x8x1xf32>
    %122 = vector.shape_cast %121 : vector<64x8x1xf32> to vector<64x8x1xf32>
    %123 = vector.broadcast %122 : vector<64x8x1xf32> to vector<64x8x64xf32>
    %124 = vector.extract_strided_slice %95 {offsets = [0, 8], sizes = [64, 8], strides = [1, 1]} : vector<64x16xf32> to vector<64x8xf32>
    %125 = vector.shape_cast %124 : vector<64x8xf32> to vector<64x8x1xf32>
    %126 = vector.shape_cast %125 : vector<64x8x1xf32> to vector<64x8x1xf32>
    %127 = vector.broadcast %126 : vector<64x8x1xf32> to vector<64x8x64xf32>
    %128 = tpu.concatenate %123, %127 in 2 : vector<64x8x64xf32>, vector<64x8x64xf32> -> vector<64x8x128xf32>
    %c0_51 = arith.constant 0 : index
    %c0_52 = arith.constant 0 : index
    %c0_53 = arith.constant 0 : index
    %129 = vector.load %arg17[%c0_51, %c0_52, %c0_53] : memref<64x8x128xf32, #tpu.memory_space<vmem>>, vector<64x8x128xf32>
    tpu.vector_store %arg17[%c0_51, %c0_52, %c0_53], %128 {strides = array<i32>} : memref<64x8x128xf32, #tpu.memory_space<vmem>>, vector<64x8x128xf32>,
    %c0_i32_54 = arith.constant 0 : i32
    %c8_i32 = arith.constant 8 : i32
    %130 = arith.addi %c0_i32_54, %c8_i32 : i32
    %c1_i32 = arith.constant 1 : i32
    %131:2 = scf.for %arg18 = %c0_i32_54 to %130 step %c1_i32 iter_args(%arg19 = %12, %arg20 = %12) -> (vector<8x128xf32>, vector<8x128xf32>)  : i32 {
      %c8_i32_57 = arith.constant 8 : i32
      %132 = arith.muli %arg18, %c8_i32_57 : i32
      %133 = tpu.assume_multiple %132, 8 : i32
      %c7_i32 = arith.constant 7 : i32
      %134 = arith.subi %c7_i32, %arg18 : i32
      %c8_i32_58 = arith.constant 8 : i32
      %135 = arith.muli %134, %c8_i32_58 : i32
      %136 = tpu.assume_multiple %135, 8 : i32
      %137 = arith.index_cast %133 : i32 to index
      %c0_59 = arith.constant 0 : index
      %c0_60 = arith.constant 0 : index
      %138 = vector.load %arg12[%137, %c0_59, %c0_60] : memref<64x8x128xf32, #tpu.memory_space<vmem>>, vector<8x8x128xf32>
      %139 = arith.index_cast %133 : i32 to index
      %c0_61 = arith.constant 0 : index
      %c0_62 = arith.constant 0 : index
      %140 = vector.load %arg13[%139, %c0_61, %c0_62] : memref<64x8x128xf32, #tpu.memory_space<vmem>>, vector<8x8x128xf32>
      %141 = arith.index_cast %133 : i32 to index
      %c0_63 = arith.constant 0 : index
      %c0_64 = arith.constant 0 : index
      %142 = vector.load %arg14[%141, %c0_63, %c0_64] : memref<64x8x128xf32, #tpu.memory_space<vmem>>, vector<8x8x128xf32>
      %143 = vector.extract_strided_slice %138 {offsets = [0, 0, 0], sizes = [1, 8, 128], strides = [1, 1, 1]} : vector<8x8x128xf32> to vector<1x8x128xf32>
      %144 = vector.shape_cast %143 : vector<1x8x128xf32> to vector<8x128xf32>
      %145 = arith.mulf %144, %arg19 : vector<8x128xf32>
      %146 = vector.extract_strided_slice %140 {offsets = [0, 0, 0], sizes = [1, 8, 128], strides = [1, 1, 1]} : vector<8x8x128xf32> to vector<1x8x128xf32>
      %147 = vector.shape_cast %146 : vector<1x8x128xf32> to vector<8x128xf32>
      %148 = arith.addf %145, %147 : vector<8x128xf32>
      %149 = vector.extract_strided_slice %142 {offsets = [0, 0, 0], sizes = [1, 8, 128], strides = [1, 1, 1]} : vector<8x8x128xf32> to vector<1x8x128xf32>
      %150 = vector.shape_cast %149 : vector<1x8x128xf32> to vector<8x128xf32>
      %151 = arith.mulf %150, %148 : vector<8x128xf32>
      %cst_65 = arith.constant dense<0.000000e+00> : vector<128xf32>
      %152 = vector.multi_reduction <add>, %151, %cst_65 [0] : vector<8x128xf32> to vector<128xf32>
      %153 = vector.shape_cast %152 : vector<128xf32> to vector<1x128xf32>
      %154 = vector.extract_strided_slice %138 {offsets = [1, 0, 0], sizes = [1, 8, 128], strides = [1, 1, 1]} : vector<8x8x128xf32> to vector<1x8x128xf32>
      %155 = vector.shape_cast %154 : vector<1x8x128xf32> to vector<8x128xf32>
      %156 = arith.mulf %155, %148 : vector<8x128xf32>
      %157 = vector.extract_strided_slice %140 {offsets = [1, 0, 0], sizes = [1, 8, 128], strides = [1, 1, 1]} : vector<8x8x128xf32> to vector<1x8x128xf32>
      %158 = vector.shape_cast %157 : vector<1x8x128xf32> to vector<8x128xf32>
      %159 = arith.addf %156, %158 : vector<8x128xf32>
      %160 = vector.extract_strided_slice %142 {offsets = [1, 0, 0], sizes = [1, 8, 128], strides = [1, 1, 1]} : vector<8x8x128xf32> to vector<1x8x128xf32>
      %161 = vector.shape_cast %160 : vector<1x8x128xf32> to vector<8x128xf32>
      %162 = arith.mulf %161, %159 : vector<8x128xf32>
      %cst_66 = arith.constant dense<0.000000e+00> : vector<128xf32>
      %163 = vector.multi_reduction <add>, %162, %cst_66 [0] : vector<8x128xf32> to vector<128xf32>
      %164 = vector.shape_cast %163 : vector<128xf32> to vector<1x128xf32>
      %165 = vector.extract_strided_slice %138 {offsets = [2, 0, 0], sizes = [1, 8, 128], strides = [1, 1, 1]} : vector<8x8x128xf32> to vector<1x8x128xf32>
      %166 = vector.shape_cast %165 : vector<1x8x128xf32> to vector<8x128xf32>
      %167 = arith.mulf %166, %159 : vector<8x128xf32>
      %168 = vector.extract_strided_slice %140 {offsets = [2, 0, 0], sizes = [1, 8, 128], strides = [1, 1, 1]} : vector<8x8x128xf32> to vector<1x8x128xf32>
      %169 = vector.shape_cast %168 : vector<1x8x128xf32> to vector<8x128xf32>
      %170 = arith.addf %167, %169 : vector<8x128xf32>
      %171 = vector.extract_strided_slice %142 {offsets = [2, 0, 0], sizes = [1, 8, 128], strides = [1, 1, 1]} : vector<8x8x128xf32> to vector<1x8x128xf32>
      %172 = vector.shape_cast %171 : vector<1x8x128xf32> to vector<8x128xf32>
      %173 = arith.mulf %172, %170 : vector<8x128xf32>
      %cst_67 = arith.constant dense<0.000000e+00> : vector<128xf32>
      %174 = vector.multi_reduction <add>, %173, %cst_67 [0] : vector<8x128xf32> to vector<128xf32>
      %175 = vector.shape_cast %174 : vector<128xf32> to vector<1x128xf32>
      %176 = vector.extract_strided_slice %138 {offsets = [3, 0, 0], sizes = [1, 8, 128], strides = [1, 1, 1]} : vector<8x8x128xf32> to vector<1x8x128xf32>
      %177 = vector.shape_cast %176 : vector<1x8x128xf32> to vector<8x128xf32>
      %178 = arith.mulf %177, %170 : vector<8x128xf32>
      %179 = vector.extract_strided_slice %140 {offsets = [3, 0, 0], sizes = [1, 8, 128], strides = [1, 1, 1]} : vector<8x8x128xf32> to vector<1x8x128xf32>
      %180 = vector.shape_cast %179 : vector<1x8x128xf32> to vector<8x128xf32>
      %181 = arith.addf %178, %180 : vector<8x128xf32>
      %182 = vector.extract_strided_slice %142 {offsets = [3, 0, 0], sizes = [1, 8, 128], strides = [1, 1, 1]} : vector<8x8x128xf32> to vector<1x8x128xf32>
      %183 = vector.shape_cast %182 : vector<1x8x128xf32> to vector<8x128xf32>
      %184 = arith.mulf %183, %181 : vector<8x128xf32>
      %cst_68 = arith.constant dense<0.000000e+00> : vector<128xf32>
      %185 = vector.multi_reduction <add>, %184, %cst_68 [0] : vector<8x128xf32> to vector<128xf32>
      %186 = vector.shape_cast %185 : vector<128xf32> to vector<1x128xf32>
      %187 = vector.extract_strided_slice %138 {offsets = [4, 0, 0], sizes = [1, 8, 128], strides = [1, 1, 1]} : vector<8x8x128xf32> to vector<1x8x128xf32>
      %188 = vector.shape_cast %187 : vector<1x8x128xf32> to vector<8x128xf32>
      %189 = arith.mulf %188, %181 : vector<8x128xf32>
      %190 = vector.extract_strided_slice %140 {offsets = [4, 0, 0], sizes = [1, 8, 128], strides = [1, 1, 1]} : vector<8x8x128xf32> to vector<1x8x128xf32>
      %191 = vector.shape_cast %190 : vector<1x8x128xf32> to vector<8x128xf32>
      %192 = arith.addf %189, %191 : vector<8x128xf32>
      %193 = vector.extract_strided_slice %142 {offsets = [4, 0, 0], sizes = [1, 8, 128], strides = [1, 1, 1]} : vector<8x8x128xf32> to vector<1x8x128xf32>
      %194 = vector.shape_cast %193 : vector<1x8x128xf32> to vector<8x128xf32>
      %195 = arith.mulf %194, %192 : vector<8x128xf32>
      %cst_69 = arith.constant dense<0.000000e+00> : vector<128xf32>
      %196 = vector.multi_reduction <add>, %195, %cst_69 [0] : vector<8x128xf32> to vector<128xf32>
      %197 = vector.shape_cast %196 : vector<128xf32> to vector<1x128xf32>
      %198 = vector.extract_strided_slice %138 {offsets = [5, 0, 0], sizes = [1, 8, 128], strides = [1, 1, 1]} : vector<8x8x128xf32> to vector<1x8x128xf32>
      %199 = vector.shape_cast %198 : vector<1x8x128xf32> to vector<8x128xf32>
      %200 = arith.mulf %199, %192 : vector<8x128xf32>
      %201 = vector.extract_strided_slice %140 {offsets = [5, 0, 0], sizes = [1, 8, 128], strides = [1, 1, 1]} : vector<8x8x128xf32> to vector<1x8x128xf32>
      %202 = vector.shape_cast %201 : vector<1x8x128xf32> to vector<8x128xf32>
      %203 = arith.addf %200, %202 : vector<8x128xf32>
      %204 = vector.extract_strided_slice %142 {offsets = [5, 0, 0], sizes = [1, 8, 128], strides = [1, 1, 1]} : vector<8x8x128xf32> to vector<1x8x128xf32>
      %205 = vector.shape_cast %204 : vector<1x8x128xf32> to vector<8x128xf32>
      %206 = arith.mulf %205, %203 : vector<8x128xf32>
      %cst_70 = arith.constant dense<0.000000e+00> : vector<128xf32>
      %207 = vector.multi_reduction <add>, %206, %cst_70 [0] : vector<8x128xf32> to vector<128xf32>
      %208 = vector.shape_cast %207 : vector<128xf32> to vector<1x128xf32>
      %209 = vector.extract_strided_slice %138 {offsets = [6, 0, 0], sizes = [1, 8, 128], strides = [1, 1, 1]} : vector<8x8x128xf32> to vector<1x8x128xf32>
      %210 = vector.shape_cast %209 : vector<1x8x128xf32> to vector<8x128xf32>
      %211 = arith.mulf %210, %203 : vector<8x128xf32>
      %212 = vector.extract_strided_slice %140 {offsets = [6, 0, 0], sizes = [1, 8, 128], strides = [1, 1, 1]} : vector<8x8x128xf32> to vector<1x8x128xf32>
      %213 = vector.shape_cast %212 : vector<1x8x128xf32> to vector<8x128xf32>
      %214 = arith.addf %211, %213 : vector<8x128xf32>
      %215 = vector.extract_strided_slice %142 {offsets = [6, 0, 0], sizes = [1, 8, 128], strides = [1, 1, 1]} : vector<8x8x128xf32> to vector<1x8x128xf32>
      %216 = vector.shape_cast %215 : vector<1x8x128xf32> to vector<8x128xf32>
      %217 = arith.mulf %216, %214 : vector<8x128xf32>
      %cst_71 = arith.constant dense<0.000000e+00> : vector<128xf32>
      %218 = vector.multi_reduction <add>, %217, %cst_71 [0] : vector<8x128xf32> to vector<128xf32>
      %219 = vector.shape_cast %218 : vector<128xf32> to vector<1x128xf32>
      %220 = vector.extract_strided_slice %138 {offsets = [7, 0, 0], sizes = [1, 8, 128], strides = [1, 1, 1]} : vector<8x8x128xf32> to vector<1x8x128xf32>
      %221 = vector.shape_cast %220 : vector<1x8x128xf32> to vector<8x128xf32>
      %222 = arith.mulf %221, %214 : vector<8x128xf32>
      %223 = vector.extract_strided_slice %140 {offsets = [7, 0, 0], sizes = [1, 8, 128], strides = [1, 1, 1]} : vector<8x8x128xf32> to vector<1x8x128xf32>
      %224 = vector.shape_cast %223 : vector<1x8x128xf32> to vector<8x128xf32>
      %225 = arith.addf %222, %224 : vector<8x128xf32>
      %226 = vector.extract_strided_slice %142 {offsets = [7, 0, 0], sizes = [1, 8, 128], strides = [1, 1, 1]} : vector<8x8x128xf32> to vector<1x8x128xf32>
      %227 = vector.shape_cast %226 : vector<1x8x128xf32> to vector<8x128xf32>
      %228 = arith.mulf %227, %225 : vector<8x128xf32>
      %cst_72 = arith.constant dense<0.000000e+00> : vector<128xf32>
      %229 = vector.multi_reduction <add>, %228, %cst_72 [0] : vector<8x128xf32> to vector<128xf32>
      %230 = vector.shape_cast %229 : vector<128xf32> to vector<1x128xf32>
      %231 = tpu.concatenate %153, %164, %175, %186, %197, %208, %219, %230 in 0 : vector<1x128xf32>, vector<1x128xf32>, vector<1x128xf32>, vector<1x128xf32>, vector<1x128xf32>, vector<1x128xf32>, vector<1x128xf32>, vector<1x128xf32> -> vector<8x128xf32>
      %232 = arith.index_cast %136 : i32 to index
      %c0_73 = arith.constant 0 : index
      %c0_74 = arith.constant 0 : index
      %233 = vector.load %arg15[%232, %c0_73, %c0_74] : memref<64x8x128xf32, #tpu.memory_space<vmem>>, vector<8x8x128xf32>
      %234 = arith.index_cast %136 : i32 to index
      %c0_75 = arith.constant 0 : index
      %c0_76 = arith.constant 0 : index
      %235 = vector.load %arg16[%234, %c0_75, %c0_76] : memref<64x8x128xf32, #tpu.memory_space<vmem>>, vector<8x8x128xf32>
      %236 = arith.index_cast %136 : i32 to index
      %c0_77 = arith.constant 0 : index
      %c0_78 = arith.constant 0 : index
      %237 = vector.load %arg17[%236, %c0_77, %c0_78] : memref<64x8x128xf32, #tpu.memory_space<vmem>>, vector<8x8x128xf32>
      %238 = vector.extract_strided_slice %233 {offsets = [7, 0, 0], sizes = [1, 8, 128], strides = [1, 1, 1]} : vector<8x8x128xf32> to vector<1x8x128xf32>
      %239 = vector.shape_cast %238 : vector<1x8x128xf32> to vector<8x128xf32>
      %240 = arith.mulf %239, %arg20 : vector<8x128xf32>
      %241 = vector.extract_strided_slice %235 {offsets = [7, 0, 0], sizes = [1, 8, 128], strides = [1, 1, 1]} : vector<8x8x128xf32> to vector<1x8x128xf32>
      %242 = vector.shape_cast %241 : vector<1x8x128xf32> to vector<8x128xf32>
      %243 = arith.addf %240, %242 : vector<8x128xf32>
      %244 = vector.extract_strided_slice %237 {offsets = [7, 0, 0], sizes = [1, 8, 128], strides = [1, 1, 1]} : vector<8x8x128xf32> to vector<1x8x128xf32>
      %245 = vector.shape_cast %244 : vector<1x8x128xf32> to vector<8x128xf32>
      %246 = arith.mulf %245, %243 : vector<8x128xf32>
      %cst_79 = arith.constant dense<0.000000e+00> : vector<128xf32>
      %247 = vector.multi_reduction <add>, %246, %cst_79 [0] : vector<8x128xf32> to vector<128xf32>
      %248 = vector.shape_cast %247 : vector<128xf32> to vector<1x128xf32>
      %249 = vector.extract_strided_slice %233 {offsets = [6, 0, 0], sizes = [1, 8, 128], strides = [1, 1, 1]} : vector<8x8x128xf32> to vector<1x8x128xf32>
      %250 = vector.shape_cast %249 : vector<1x8x128xf32> to vector<8x128xf32>
      %251 = arith.mulf %250, %243 : vector<8x128xf32>
      %252 = vector.extract_strided_slice %235 {offsets = [6, 0, 0], sizes = [1, 8, 128], strides = [1, 1, 1]} : vector<8x8x128xf32> to vector<1x8x128xf32>
      %253 = vector.shape_cast %252 : vector<1x8x128xf32> to vector<8x128xf32>
      %254 = arith.addf %251, %253 : vector<8x128xf32>
      %255 = vector.extract_strided_slice %237 {offsets = [6, 0, 0], sizes = [1, 8, 128], strides = [1, 1, 1]} : vector<8x8x128xf32> to vector<1x8x128xf32>
      %256 = vector.shape_cast %255 : vector<1x8x128xf32> to vector<8x128xf32>
      %257 = arith.mulf %256, %254 : vector<8x128xf32>
      %cst_80 = arith.constant dense<0.000000e+00> : vector<128xf32>
      %258 = vector.multi_reduction <add>, %257, %cst_80 [0] : vector<8x128xf32> to vector<128xf32>
      %259 = vector.shape_cast %258 : vector<128xf32> to vector<1x128xf32>
      %260 = vector.extract_strided_slice %233 {offsets = [5, 0, 0], sizes = [1, 8, 128], strides = [1, 1, 1]} : vector<8x8x128xf32> to vector<1x8x128xf32>
      %261 = vector.shape_cast %260 : vector<1x8x128xf32> to vector<8x128xf32>
      %262 = arith.mulf %261, %254 : vector<8x128xf32>
      %263 = vector.extract_strided_slice %235 {offsets = [5, 0, 0], sizes = [1, 8, 128], strides = [1, 1, 1]} : vector<8x8x128xf32> to vector<1x8x128xf32>
      %264 = vector.shape_cast %263 : vector<1x8x128xf32> to vector<8x128xf32>
      %265 = arith.addf %262, %264 : vector<8x128xf32>
      %266 = vector.extract_strided_slice %237 {offsets = [5, 0, 0], sizes = [1, 8, 128], strides = [1, 1, 1]} : vector<8x8x128xf32> to vector<1x8x128xf32>
      %267 = vector.shape_cast %266 : vector<1x8x128xf32> to vector<8x128xf32>
      %268 = arith.mulf %267, %265 : vector<8x128xf32>
      %cst_81 = arith.constant dense<0.000000e+00> : vector<128xf32>
      %269 = vector.multi_reduction <add>, %268, %cst_81 [0] : vector<8x128xf32> to vector<128xf32>
      %270 = vector.shape_cast %269 : vector<128xf32> to vector<1x128xf32>
      %271 = vector.extract_strided_slice %233 {offsets = [4, 0, 0], sizes = [1, 8, 128], strides = [1, 1, 1]} : vector<8x8x128xf32> to vector<1x8x128xf32>
      %272 = vector.shape_cast %271 : vector<1x8x128xf32> to vector<8x128xf32>
      %273 = arith.mulf %272, %265 : vector<8x128xf32>
      %274 = vector.extract_strided_slice %235 {offsets = [4, 0, 0], sizes = [1, 8, 128], strides = [1, 1, 1]} : vector<8x8x128xf32> to vector<1x8x128xf32>
      %275 = vector.shape_cast %274 : vector<1x8x128xf32> to vector<8x128xf32>
      %276 = arith.addf %273, %275 : vector<8x128xf32>
      %277 = vector.extract_strided_slice %237 {offsets = [4, 0, 0], sizes = [1, 8, 128], strides = [1, 1, 1]} : vector<8x8x128xf32> to vector<1x8x128xf32>
      %278 = vector.shape_cast %277 : vector<1x8x128xf32> to vector<8x128xf32>
      %279 = arith.mulf %278, %276 : vector<8x128xf32>
      %cst_82 = arith.constant dense<0.000000e+00> : vector<128xf32>
      %280 = vector.multi_reduction <add>, %279, %cst_82 [0] : vector<8x128xf32> to vector<128xf32>
      %281 = vector.shape_cast %280 : vector<128xf32> to vector<1x128xf32>
      %282 = vector.extract_strided_slice %233 {offsets = [3, 0, 0], sizes = [1, 8, 128], strides = [1, 1, 1]} : vector<8x8x128xf32> to vector<1x8x128xf32>
      %283 = vector.shape_cast %282 : vector<1x8x128xf32> to vector<8x128xf32>
      %284 = arith.mulf %283, %276 : vector<8x128xf32>
      %285 = vector.extract_strided_slice %235 {offsets = [3, 0, 0], sizes = [1, 8, 128], strides = [1, 1, 1]} : vector<8x8x128xf32> to vector<1x8x128xf32>
      %286 = vector.shape_cast %285 : vector<1x8x128xf32> to vector<8x128xf32>
      %287 = arith.addf %284, %286 : vector<8x128xf32>
      %288 = vector.extract_strided_slice %237 {offsets = [3, 0, 0], sizes = [1, 8, 128], strides = [1, 1, 1]} : vector<8x8x128xf32> to vector<1x8x128xf32>
      %289 = vector.shape_cast %288 : vector<1x8x128xf32> to vector<8x128xf32>
      %290 = arith.mulf %289, %287 : vector<8x128xf32>
      %cst_83 = arith.constant dense<0.000000e+00> : vector<128xf32>
      %291 = vector.multi_reduction <add>, %290, %cst_83 [0] : vector<8x128xf32> to vector<128xf32>
      %292 = vector.shape_cast %291 : vector<128xf32> to vector<1x128xf32>
      %293 = vector.extract_strided_slice %233 {offsets = [2, 0, 0], sizes = [1, 8, 128], strides = [1, 1, 1]} : vector<8x8x128xf32> to vector<1x8x128xf32>
      %294 = vector.shape_cast %293 : vector<1x8x128xf32> to vector<8x128xf32>
      %295 = arith.mulf %294, %287 : vector<8x128xf32>
      %296 = vector.extract_strided_slice %235 {offsets = [2, 0, 0], sizes = [1, 8, 128], strides = [1, 1, 1]} : vector<8x8x128xf32> to vector<1x8x128xf32>
      %297 = vector.shape_cast %296 : vector<1x8x128xf32> to vector<8x128xf32>
      %298 = arith.addf %295, %297 : vector<8x128xf32>
      %299 = vector.extract_strided_slice %237 {offsets = [2, 0, 0], sizes = [1, 8, 128], strides = [1, 1, 1]} : vector<8x8x128xf32> to vector<1x8x128xf32>
      %300 = vector.shape_cast %299 : vector<1x8x128xf32> to vector<8x128xf32>
      %301 = arith.mulf %300, %298 : vector<8x128xf32>
      %cst_84 = arith.constant dense<0.000000e+00> : vector<128xf32>
      %302 = vector.multi_reduction <add>, %301, %cst_84 [0] : vector<8x128xf32> to vector<128xf32>
      %303 = vector.shape_cast %302 : vector<128xf32> to vector<1x128xf32>
      %304 = vector.extract_strided_slice %233 {offsets = [1, 0, 0], sizes = [1, 8, 128], strides = [1, 1, 1]} : vector<8x8x128xf32> to vector<1x8x128xf32>
      %305 = vector.shape_cast %304 : vector<1x8x128xf32> to vector<8x128xf32>
      %306 = arith.mulf %305, %298 : vector<8x128xf32>
      %307 = vector.extract_strided_slice %235 {offsets = [1, 0, 0], sizes = [1, 8, 128], strides = [1, 1, 1]} : vector<8x8x128xf32> to vector<1x8x128xf32>
      %308 = vector.shape_cast %307 : vector<1x8x128xf32> to vector<8x128xf32>
      %309 = arith.addf %306, %308 : vector<8x128xf32>
      %310 = vector.extract_strided_slice %237 {offsets = [1, 0, 0], sizes = [1, 8, 128], strides = [1, 1, 1]} : vector<8x8x128xf32> to vector<1x8x128xf32>
      %311 = vector.shape_cast %310 : vector<1x8x128xf32> to vector<8x128xf32>
      %312 = arith.mulf %311, %309 : vector<8x128xf32>
      %cst_85 = arith.constant dense<0.000000e+00> : vector<128xf32>
      %313 = vector.multi_reduction <add>, %312, %cst_85 [0] : vector<8x128xf32> to vector<128xf32>
      %314 = vector.shape_cast %313 : vector<128xf32> to vector<1x128xf32>
      %315 = vector.extract_strided_slice %233 {offsets = [0, 0, 0], sizes = [1, 8, 128], strides = [1, 1, 1]} : vector<8x8x128xf32> to vector<1x8x128xf32>
      %316 = vector.shape_cast %315 : vector<1x8x128xf32> to vector<8x128xf32>
      %317 = arith.mulf %316, %309 : vector<8x128xf32>
      %318 = vector.extract_strided_slice %235 {offsets = [0, 0, 0], sizes = [1, 8, 128], strides = [1, 1, 1]} : vector<8x8x128xf32> to vector<1x8x128xf32>
      %319 = vector.shape_cast %318 : vector<1x8x128xf32> to vector<8x128xf32>
      %320 = arith.addf %317, %319 : vector<8x128xf32>
      %321 = vector.extract_strided_slice %237 {offsets = [0, 0, 0], sizes = [1, 8, 128], strides = [1, 1, 1]} : vector<8x8x128xf32> to vector<1x8x128xf32>
      %322 = vector.shape_cast %321 : vector<1x8x128xf32> to vector<8x128xf32>
      %323 = arith.mulf %322, %320 : vector<8x128xf32>
      %cst_86 = arith.constant dense<0.000000e+00> : vector<128xf32>
      %324 = vector.multi_reduction <add>, %323, %cst_86 [0] : vector<8x128xf32> to vector<128xf32>
      %325 = vector.shape_cast %324 : vector<128xf32> to vector<1x128xf32>
      %326 = tpu.concatenate %325, %314, %303, %292, %281, %270, %259, %248 in 0 : vector<1x128xf32>, vector<1x128xf32>, vector<1x128xf32>, vector<1x128xf32>, vector<1x128xf32>, vector<1x128xf32>, vector<1x128xf32>, vector<1x128xf32> -> vector<8x128xf32>
      %327 = arith.addi %14, %133 : i32
      %328 = tpu.assume_multiple %327, 8 : i32
      %329 = arith.addi %17, %136 : i32
      %330 = tpu.assume_multiple %329, 8 : i32
      %c0_87 = arith.constant 0 : index
      %331 = arith.index_cast %328 : i32 to index
      %c0_88 = arith.constant 0 : index
      %332 = vector.load %arg10[%c0_87, %331, %c0_88] : memref<1x64x128xf32, #tpu.memory_space<vmem>>, vector<1x8x128xf32>
      %333 = vector.shape_cast %332 : vector<1x8x128xf32> to vector<8x128xf32>
      %334 = arith.addf %333, %231 : vector<8x128xf32>
      %c0_89 = arith.constant 0 : index
      %335 = arith.index_cast %328 : i32 to index
      %c0_90 = arith.constant 0 : index
      %336 = vector.load %arg10[%c0_89, %335, %c0_90] : memref<1x64x128xf32, #tpu.memory_space<vmem>>, vector<1x8x128xf32>
      %337 = vector.shape_cast %336 : vector<1x8x128xf32> to vector<8x128xf32>
      %338 = vector.shape_cast %334 : vector<8x128xf32> to vector<1x8x128xf32>
      tpu.vector_store %arg10[%c0_89, %335, %c0_90], %338 {strides = array<i32>} : memref<1x64x128xf32, #tpu.memory_space<vmem>>, vector<1x8x128xf32>,
      %c0_91 = arith.constant 0 : index
      %339 = arith.index_cast %330 : i32 to index
      %c0_92 = arith.constant 0 : index
      %340 = vector.load %arg10[%c0_91, %339, %c0_92] : memref<1x64x128xf32, #tpu.memory_space<vmem>>, vector<1x8x128xf32>
      %341 = vector.shape_cast %340 : vector<1x8x128xf32> to vector<8x128xf32>
      %342 = arith.addf %341, %326 : vector<8x128xf32>
      %c0_93 = arith.constant 0 : index
      %343 = arith.index_cast %330 : i32 to index
      %c0_94 = arith.constant 0 : index
      %344 = vector.load %arg10[%c0_93, %343, %c0_94] : memref<1x64x128xf32, #tpu.memory_space<vmem>>, vector<1x8x128xf32>
      %345 = vector.shape_cast %344 : vector<1x8x128xf32> to vector<8x128xf32>
      %346 = vector.shape_cast %342 : vector<8x128xf32> to vector<1x8x128xf32>
      tpu.vector_store %arg10[%c0_93, %343, %c0_94], %346 {strides = array<i32>} : memref<1x64x128xf32, #tpu.memory_space<vmem>>, vector<1x8x128xf32>,
      scf.yield %225, %320 : vector<8x128xf32>, vector<8x128xf32>
    }
    %c8_i32_55 = arith.constant 8 : i32
    %c1_i32_56 = arith.constant 1 : i32
    return
  }
  func.func @transform_0(%arg0: i32) -> (i32, i32, i32) {
    %c0_i32 = arith.constant 0 : i32
    %c0_i32_0 = arith.constant 0 : i32
    %c0_i32_1 = arith.constant 0 : i32
    return %arg0, %c0_i32, %c0_i32_0 : i32, i32, i32
  }
  func.func @transform_1(%arg0: i32) -> (i32, i32, i32) {
    %c0_i32 = arith.constant 0 : i32
    %c0_i32_0 = arith.constant 0 : i32
    %c0_i32_1 = arith.constant 0 : i32
    return %arg0, %c0_i32, %c0_i32_0 : i32, i32, i32
  }
  func.func @transform_2(%arg0: i32) -> (i32, i32) {
    %c0_i32 = arith.constant 0 : i32
    %c0_i32_0 = arith.constant 0 : i32
    %c0_i32_1 = arith.constant 0 : i32
    return %c0_i32, %c0_i32_0 : i32, i32
  }
  func.func @transform_3(%arg0: i32) -> (i32, i32) {
    %c0_i32 = arith.constant 0 : i32
    %c0_i32_0 = arith.constant 0 : i32
    %c0_i32_1 = arith.constant 0 : i32
    return %c0_i32, %c0_i32_0 : i32, i32
  }
  func.func @transform_4(%arg0: i32) -> (i32, i32) {
    %c0_i32 = arith.constant 0 : i32
    %c0_i32_0 = arith.constant 0 : i32
    %c0_i32_1 = arith.constant 0 : i32
    return %c0_i32, %c0_i32_0 : i32, i32
  }
  func.func @transform_5(%arg0: i32) -> (i32, i32) {
    %c0_i32 = arith.constant 0 : i32
    %c0_i32_0 = arith.constant 0 : i32
    %c0_i32_1 = arith.constant 0 : i32
    return %c0_i32, %c0_i32_0 : i32, i32
  }
  func.func @transform_6(%arg0: i32) -> (i32, i32) {
    %c0_i32 = arith.constant 0 : i32
    %c0_i32_0 = arith.constant 0 : i32
    %c0_i32_1 = arith.constant 0 : i32
    return %c0_i32, %c0_i32_0 : i32, i32
  }
  func.func @transform_7(%arg0: i32) -> (i32, i32) {
    %c0_i32 = arith.constant 0 : i32
    %c0_i32_0 = arith.constant 0 : i32
    %c0_i32_1 = arith.constant 0 : i32
    return %c0_i32, %c0_i32_0 : i32, i32
  }
  func.func @transform_8(%arg0: i32) -> (i32, i32) {
    %c0_i32 = arith.constant 0 : i32
    %c0_i32_0 = arith.constant 0 : i32
    %c0_i32_1 = arith.constant 0 : i32
    return %c0_i32, %c0_i32_0 : i32, i32
  }
  func.func @transform_9(%arg0: i32) -> (i32, i32, i32) {
    %c0_i32 = arith.constant 0 : i32
    %c0_i32_0 = arith.constant 0 : i32
    %c0_i32_1 = arith.constant 0 : i32
    return %arg0, %c0_i32, %c0_i32_0 : i32, i32, i32
  }
}

module attributes {stable_mosaic.version = 11 : i64} {
  func.func @_out_stage_kernel(%arg0: i32, %arg1: memref<128x64xf32, #tpu.memory_space<vmem>>, %arg2: memref<128x64xf32, #tpu.memory_space<vmem>>, %arg3: memref<128x32xf32, #tpu.memory_space<vmem>>, %arg4: memref<1x64xf32, #tpu.memory_space<vmem>>, %arg5: memref<1x64xf32, #tpu.memory_space<vmem>>, %arg6: memref<64x32xbf16, #tpu.memory_space<vmem>>, %arg7: memref<1x32xf32, #tpu.memory_space<vmem>>, %arg8: memref<1x32xf32, #tpu.memory_space<vmem>>, %arg9: memref<1x32xf32, #tpu.memory_space<vmem>>, %arg10: memref<128x32xf32, #tpu.memory_space<vmem>>, %arg11: memref<128x32xf32, #tpu.memory_space<vmem>>) attributes {dimension_semantics = [#tpu.dimension_semantics<parallel>], iteration_bounds = array<i64: 1>, scalar_prefetch = 0 : i64, scratch_operands = 0 : i64, tpu.core_type = #tpu.core_type<tc>, window_params = [{transform_indices = @transform_0, window_bounds = array<i64: 128, 64>}, {transform_indices = @transform_1, window_bounds = array<i64: 128, 64>}, {transform_indices = @transform_2, window_bounds = array<i64: 128, 32>}, {pipeline_mode = #tpu.pipeline_mode<synchronous>, transform_indices = @transform_3, window_bounds = array<i64: 1, 64>}, {pipeline_mode = #tpu.pipeline_mode<synchronous>, transform_indices = @transform_4, window_bounds = array<i64: 1, 64>}, {pipeline_mode = #tpu.pipeline_mode<synchronous>, transform_indices = @transform_5, window_bounds = array<i64: 64, 32>}, {pipeline_mode = #tpu.pipeline_mode<synchronous>, transform_indices = @transform_6, window_bounds = array<i64: 1, 32>}, {pipeline_mode = #tpu.pipeline_mode<synchronous>, transform_indices = @transform_7, window_bounds = array<i64: 1, 32>}, {pipeline_mode = #tpu.pipeline_mode<synchronous>, transform_indices = @transform_8, window_bounds = array<i64: 1, 32>}, {transform_indices = @transform_9, window_bounds = array<i64: 128, 32>}, {transform_indices = @transform_10, window_bounds = array<i64: 128, 32>}]} {
    %c0 = arith.constant 0 : index
    %c0_0 = arith.constant 0 : index
    %0 = vector.load %arg1[%c0, %c0_0] : memref<128x64xf32, #tpu.memory_space<vmem>>, vector<128x64xf32>
    %cst = arith.constant dense<0.000000e+00> : vector<128xf32>
    %1 = vector.multi_reduction <add>, %0, %cst [1] : vector<128x64xf32> to vector<128xf32>
    %2 = vector.shape_cast %1 : vector<128xf32> to vector<128x1xf32>
    %cst_1 = arith.constant 6.400000e+01 : f32
    %3 = vector.broadcast %cst_1 : f32 to vector<128x1xf32>
    %4 = arith.divf %2, %3 : vector<128x1xf32>
    %5 = vector.broadcast %4 : vector<128x1xf32> to vector<128x64xf32>
    %6 = arith.subf %0, %5 : vector<128x64xf32>
    %7 = arith.mulf %6, %6 : vector<128x64xf32>
    %cst_2 = arith.constant dense<0.000000e+00> : vector<128xf32>
    %8 = vector.multi_reduction <add>, %7, %cst_2 [1] : vector<128x64xf32> to vector<128xf32>
    %9 = vector.shape_cast %8 : vector<128xf32> to vector<128x1xf32>
    %cst_3 = arith.constant 6.400000e+01 : f32
    %10 = vector.broadcast %cst_3 : f32 to vector<128x1xf32>
    %11 = arith.divf %9, %10 : vector<128x1xf32>
    %cst_4 = arith.constant 9.99999974E-6 : f32
    %12 = vector.broadcast %cst_4 : f32 to vector<128x1xf32>
    %13 = arith.addf %11, %12 : vector<128x1xf32>
    %14 = math.rsqrt %13 : vector<128x1xf32>
    %15 = vector.broadcast %14 : vector<128x1xf32> to vector<128x64xf32>
    %16 = arith.mulf %6, %15 : vector<128x64xf32>
    %c0_5 = arith.constant 0 : index
    %c0_6 = arith.constant 0 : index
    %17 = vector.load %arg4[%c0_5, %c0_6] : memref<1x64xf32, #tpu.memory_space<vmem>>, vector<1x64xf32>
    %18 = vector.broadcast %17 : vector<1x64xf32> to vector<128x64xf32>
    %19 = arith.mulf %16, %18 : vector<128x64xf32>
    %c0_7 = arith.constant 0 : index
    %c0_8 = arith.constant 0 : index
    %20 = vector.load %arg5[%c0_7, %c0_8] : memref<1x64xf32, #tpu.memory_space<vmem>>, vector<1x64xf32>
    %21 = vector.broadcast %20 : vector<1x64xf32> to vector<128x64xf32>
    %22 = arith.addf %19, %21 : vector<128x64xf32>
    %c0_9 = arith.constant 0 : index
    %c0_10 = arith.constant 0 : index
    %23 = vector.load %arg2[%c0_9, %c0_10] : memref<128x64xf32, #tpu.memory_space<vmem>>, vector<128x64xf32>
    %24 = arith.negf %23 : vector<128x64xf32>
    %25 = math.exp %24 : vector<128x64xf32>
    %cst_11 = arith.constant 1.000000e+00 : f32
    %26 = vector.broadcast %cst_11 : f32 to vector<128x64xf32>
    %27 = arith.addf %26, %25 : vector<128x64xf32>
    %28 = arith.divf %26, %27 : vector<128x64xf32>
    %29 = arith.mulf %23, %28 : vector<128x64xf32>
    %30 = arith.mulf %22, %29 : vector<128x64xf32>
    %31 = arith.truncf %30 : vector<128x64xf32> to vector<128x64xbf16>
    %c0_12 = arith.constant 0 : index
    %c0_13 = arith.constant 0 : index
    %32 = vector.load %arg6[%c0_12, %c0_13] : memref<64x32xbf16, #tpu.memory_space<vmem>>, vector<64x32xbf16>
    %cst_14 = arith.constant dense<0.000000e+00> : vector<128x32xf32>
    %33 = tpu.matmul %31, %32, %cst_14 {dimension_numbers = #tpu.dot_dimension_numbers<[1], [0], [0], [1], [0, 0, 1, 1], [], []>} : vector<128x64xbf16>, vector<64x32xbf16>, vector<128x32xf32> -> vector<128x32xf32>
    %c0_15 = arith.constant 0 : index
    %c0_16 = arith.constant 0 : index
    %34 = vector.load %arg3[%c0_15, %c0_16] : memref<128x32xf32, #tpu.memory_space<vmem>>, vector<128x32xf32>
    %c0_17 = arith.constant 0 : index
    %c0_18 = arith.constant 0 : index
    %35 = vector.load %arg7[%c0_17, %c0_18] : memref<1x32xf32, #tpu.memory_space<vmem>>, vector<1x32xf32>
    %36 = vector.broadcast %35 : vector<1x32xf32> to vector<128x32xf32>
    %37 = arith.mulf %34, %36 : vector<128x32xf32>
    %38 = arith.addf %37, %33 : vector<128x32xf32>
    %c0_19 = arith.constant 0 : index
    %c0_20 = arith.constant 0 : index
    %39 = vector.load %arg10[%c0_19, %c0_20] : memref<128x32xf32, #tpu.memory_space<vmem>>, vector<128x32xf32>
    tpu.vector_store %arg10[%c0_19, %c0_20], %38 {strides = array<i32>} : memref<128x32xf32, #tpu.memory_space<vmem>>, vector<128x32xf32>,
    %cst_21 = arith.constant dense<0.000000e+00> : vector<128xf32>
    %40 = vector.multi_reduction <add>, %38, %cst_21 [1] : vector<128x32xf32> to vector<128xf32>
    %41 = vector.shape_cast %40 : vector<128xf32> to vector<128x1xf32>
    %cst_22 = arith.constant 3.200000e+01 : f32
    %42 = vector.broadcast %cst_22 : f32 to vector<128x1xf32>
    %43 = arith.divf %41, %42 : vector<128x1xf32>
    %44 = vector.broadcast %43 : vector<128x1xf32> to vector<128x32xf32>
    %45 = arith.subf %38, %44 : vector<128x32xf32>
    %46 = arith.mulf %45, %45 : vector<128x32xf32>
    %cst_23 = arith.constant dense<0.000000e+00> : vector<128xf32>
    %47 = vector.multi_reduction <add>, %46, %cst_23 [1] : vector<128x32xf32> to vector<128xf32>
    %48 = vector.shape_cast %47 : vector<128xf32> to vector<128x1xf32>
    %cst_24 = arith.constant 3.200000e+01 : f32
    %49 = vector.broadcast %cst_24 : f32 to vector<128x1xf32>
    %50 = arith.divf %48, %49 : vector<128x1xf32>
    %cst_25 = arith.constant 9.99999974E-6 : f32
    %51 = vector.broadcast %cst_25 : f32 to vector<128x1xf32>
    %52 = arith.addf %50, %51 : vector<128x1xf32>
    %53 = math.rsqrt %52 : vector<128x1xf32>
    %54 = vector.broadcast %53 : vector<128x1xf32> to vector<128x32xf32>
    %55 = arith.mulf %45, %54 : vector<128x32xf32>
    %c0_26 = arith.constant 0 : index
    %c0_27 = arith.constant 0 : index
    %56 = vector.load %arg8[%c0_26, %c0_27] : memref<1x32xf32, #tpu.memory_space<vmem>>, vector<1x32xf32>
    %57 = vector.broadcast %56 : vector<1x32xf32> to vector<128x32xf32>
    %58 = arith.mulf %55, %57 : vector<128x32xf32>
    %c0_28 = arith.constant 0 : index
    %c0_29 = arith.constant 0 : index
    %59 = vector.load %arg9[%c0_28, %c0_29] : memref<1x32xf32, #tpu.memory_space<vmem>>, vector<1x32xf32>
    %60 = vector.broadcast %59 : vector<1x32xf32> to vector<128x32xf32>
    %61 = arith.addf %58, %60 : vector<128x32xf32>
    %c0_30 = arith.constant 0 : index
    %c0_31 = arith.constant 0 : index
    %62 = vector.load %arg11[%c0_30, %c0_31] : memref<128x32xf32, #tpu.memory_space<vmem>>, vector<128x32xf32>
    tpu.vector_store %arg11[%c0_30, %c0_31], %61 {strides = array<i32>} : memref<128x32xf32, #tpu.memory_space<vmem>>, vector<128x32xf32>,
    return
  }
  func.func @transform_0(%arg0: i32) -> (i32, i32) {
    %c0_i32 = arith.constant 0 : i32
    %c0_i32_0 = arith.constant 0 : i32
    return %arg0, %c0_i32 : i32, i32
  }
  func.func @transform_1(%arg0: i32) -> (i32, i32) {
    %c0_i32 = arith.constant 0 : i32
    %c0_i32_0 = arith.constant 0 : i32
    return %arg0, %c0_i32 : i32, i32
  }
  func.func @transform_2(%arg0: i32) -> (i32, i32) {
    %c0_i32 = arith.constant 0 : i32
    %c0_i32_0 = arith.constant 0 : i32
    return %arg0, %c0_i32 : i32, i32
  }
  func.func @transform_3(%arg0: i32) -> (i32, i32) {
    %c0_i32 = arith.constant 0 : i32
    %c0_i32_0 = arith.constant 0 : i32
    %c0_i32_1 = arith.constant 0 : i32
    return %c0_i32, %c0_i32_0 : i32, i32
  }
  func.func @transform_4(%arg0: i32) -> (i32, i32) {
    %c0_i32 = arith.constant 0 : i32
    %c0_i32_0 = arith.constant 0 : i32
    %c0_i32_1 = arith.constant 0 : i32
    return %c0_i32, %c0_i32_0 : i32, i32
  }
  func.func @transform_5(%arg0: i32) -> (i32, i32) {
    %c0_i32 = arith.constant 0 : i32
    %c0_i32_0 = arith.constant 0 : i32
    %c0_i32_1 = arith.constant 0 : i32
    return %c0_i32, %c0_i32_0 : i32, i32
  }
  func.func @transform_6(%arg0: i32) -> (i32, i32) {
    %c0_i32 = arith.constant 0 : i32
    %c0_i32_0 = arith.constant 0 : i32
    %c0_i32_1 = arith.constant 0 : i32
    return %c0_i32, %c0_i32_0 : i32, i32
  }
  func.func @transform_7(%arg0: i32) -> (i32, i32) {
    %c0_i32 = arith.constant 0 : i32
    %c0_i32_0 = arith.constant 0 : i32
    %c0_i32_1 = arith.constant 0 : i32
    return %c0_i32, %c0_i32_0 : i32, i32
  }
  func.func @transform_8(%arg0: i32) -> (i32, i32) {
    %c0_i32 = arith.constant 0 : i32
    %c0_i32_0 = arith.constant 0 : i32
    %c0_i32_1 = arith.constant 0 : i32
    return %c0_i32, %c0_i32_0 : i32, i32
  }
  func.func @transform_9(%arg0: i32) -> (i32, i32) {
    %c0_i32 = arith.constant 0 : i32
    %c0_i32_0 = arith.constant 0 : i32
    return %arg0, %c0_i32 : i32, i32
  }
  func.func @transform_10(%arg0: i32) -> (i32, i32) {
    %c0_i32 = arith.constant 0 : i32
    %c0_i32_0 = arith.constant 0 : i32
    return %arg0, %c0_i32 : i32, i32
  }
}

module attributes {stable_mosaic.version = 11 : i64} {
  func.func @_pfa_kernel(%arg0: i32, %arg1: memref<1x10x10x32xf32, #tpu.memory_space<vmem>>, %arg2: memref<1x8x8x32xf32, #tpu.memory_space<vmem>>, %arg3: memref<1x8x8x32xf32, #tpu.memory_space<vmem>>, %arg4: memref<288x32xbf16, #tpu.memory_space<vmem>>, %arg5: memref<1x32xf32, #tpu.memory_space<vmem>>, %arg6: memref<1x32xf32, #tpu.memory_space<vmem>>, %arg7: memref<1x32xf32, #tpu.memory_space<vmem>>, %arg8: memref<1x8x8x32xf32, #tpu.memory_space<vmem>>) attributes {dimension_semantics = [#tpu.dimension_semantics<parallel>], iteration_bounds = array<i64: 2>, scalar_prefetch = 0 : i64, scratch_operands = 0 : i64, tpu.core_type = #tpu.core_type<tc>, window_params = [{transform_indices = @transform_0, window_bounds = array<i64: 1, 10, 10, 32>}, {transform_indices = @transform_1, window_bounds = array<i64: 1, 8, 8, 32>}, {transform_indices = @transform_2, window_bounds = array<i64: 1, 8, 8, 32>}, {pipeline_mode = #tpu.pipeline_mode<synchronous>, transform_indices = @transform_3, window_bounds = array<i64: 288, 32>}, {pipeline_mode = #tpu.pipeline_mode<synchronous>, transform_indices = @transform_4, window_bounds = array<i64: 1, 32>}, {pipeline_mode = #tpu.pipeline_mode<synchronous>, transform_indices = @transform_5, window_bounds = array<i64: 1, 32>}, {pipeline_mode = #tpu.pipeline_mode<synchronous>, transform_indices = @transform_6, window_bounds = array<i64: 1, 32>}, {transform_indices = @transform_7, window_bounds = array<i64: 1, 8, 8, 32>}]} {
    %c0 = arith.constant 0 : index
    %c0_0 = arith.constant 0 : index
    %c0_1 = arith.constant 0 : index
    %c0_2 = arith.constant 0 : index
    %0 = vector.load %arg1[%c0, %c0_0, %c0_1, %c0_2] : memref<1x10x10x32xf32, #tpu.memory_space<vmem>>, vector<1x8x8x32xf32>
    %1 = vector.shape_cast %0 : vector<1x8x8x32xf32> to vector<8x8x32xf32>
    %c0_3 = arith.constant 0 : index
    %c0_4 = arith.constant 0 : index
    %c1 = arith.constant 1 : index
    %c0_5 = arith.constant 0 : index
    %2 = vector.load %arg1[%c0_3, %c0_4, %c1, %c0_5] : memref<1x10x10x32xf32, #tpu.memory_space<vmem>>, vector<1x8x8x32xf32>
    %3 = vector.shape_cast %2 : vector<1x8x8x32xf32> to vector<8x8x32xf32>
    %c0_6 = arith.constant 0 : index
    %c0_7 = arith.constant 0 : index
    %c2 = arith.constant 2 : index
    %c0_8 = arith.constant 0 : index
    %4 = vector.load %arg1[%c0_6, %c0_7, %c2, %c0_8] : memref<1x10x10x32xf32, #tpu.memory_space<vmem>>, vector<1x8x8x32xf32>
    %5 = vector.shape_cast %4 : vector<1x8x8x32xf32> to vector<8x8x32xf32>
    %c0_9 = arith.constant 0 : index
    %c1_10 = arith.constant 1 : index
    %c0_11 = arith.constant 0 : index
    %c0_12 = arith.constant 0 : index
    %6 = vector.load %arg1[%c0_9, %c1_10, %c0_11, %c0_12] : memref<1x10x10x32xf32, #tpu.memory_space<vmem>>, vector<1x8x8x32xf32>
    %7 = vector.shape_cast %6 : vector<1x8x8x32xf32> to vector<8x8x32xf32>
    %c0_13 = arith.constant 0 : index
    %c1_14 = arith.constant 1 : index
    %c1_15 = arith.constant 1 : index
    %c0_16 = arith.constant 0 : index
    %8 = vector.load %arg1[%c0_13, %c1_14, %c1_15, %c0_16] : memref<1x10x10x32xf32, #tpu.memory_space<vmem>>, vector<1x8x8x32xf32>
    %9 = vector.shape_cast %8 : vector<1x8x8x32xf32> to vector<8x8x32xf32>
    %c0_17 = arith.constant 0 : index
    %c1_18 = arith.constant 1 : index
    %c2_19 = arith.constant 2 : index
    %c0_20 = arith.constant 0 : index
    %10 = vector.load %arg1[%c0_17, %c1_18, %c2_19, %c0_20] : memref<1x10x10x32xf32, #tpu.memory_space<vmem>>, vector<1x8x8x32xf32>
    %11 = vector.shape_cast %10 : vector<1x8x8x32xf32> to vector<8x8x32xf32>
    %c0_21 = arith.constant 0 : index
    %c2_22 = arith.constant 2 : index
    %c0_23 = arith.constant 0 : index
    %c0_24 = arith.constant 0 : index
    %12 = vector.load %arg1[%c0_21, %c2_22, %c0_23, %c0_24] : memref<1x10x10x32xf32, #tpu.memory_space<vmem>>, vector<1x8x8x32xf32>
    %13 = vector.shape_cast %12 : vector<1x8x8x32xf32> to vector<8x8x32xf32>
    %c0_25 = arith.constant 0 : index
    %c2_26 = arith.constant 2 : index
    %c1_27 = arith.constant 1 : index
    %c0_28 = arith.constant 0 : index
    %14 = vector.load %arg1[%c0_25, %c2_26, %c1_27, %c0_28] : memref<1x10x10x32xf32, #tpu.memory_space<vmem>>, vector<1x8x8x32xf32>
    %15 = vector.shape_cast %14 : vector<1x8x8x32xf32> to vector<8x8x32xf32>
    %c0_29 = arith.constant 0 : index
    %c2_30 = arith.constant 2 : index
    %c2_31 = arith.constant 2 : index
    %c0_32 = arith.constant 0 : index
    %16 = vector.load %arg1[%c0_29, %c2_30, %c2_31, %c0_32] : memref<1x10x10x32xf32, #tpu.memory_space<vmem>>, vector<1x8x8x32xf32>
    %17 = vector.shape_cast %16 : vector<1x8x8x32xf32> to vector<8x8x32xf32>
    %18 = tpu.concatenate %1, %3, %5, %7, %9, %11, %13, %15, %17 in 2 : vector<8x8x32xf32>, vector<8x8x32xf32>, vector<8x8x32xf32>, vector<8x8x32xf32>, vector<8x8x32xf32>, vector<8x8x32xf32>, vector<8x8x32xf32>, vector<8x8x32xf32>, vector<8x8x32xf32> -> vector<8x8x288xf32>
    %19 = arith.truncf %18 : vector<8x8x288xf32> to vector<8x8x288xbf16>
    %c0_33 = arith.constant 0 : index
    %c0_34 = arith.constant 0 : index
    %20 = vector.load %arg4[%c0_33, %c0_34] : memref<288x32xbf16, #tpu.memory_space<vmem>>, vector<288x32xbf16>
    %cst = arith.constant dense<0.000000e+00> : vector<8x8x32xf32>
    %21 = tpu.matmul %19, %20, %cst {dimension_numbers = #tpu.dot_dimension_numbers<[2], [0], [0, 1], [1], [0, 0, 0, 1, 1, 1], [], []>} : vector<8x8x288xbf16>, vector<288x32xbf16>, vector<8x8x32xf32> -> vector<8x8x32xf32>
    %c0_35 = arith.constant 0 : index
    %c0_36 = arith.constant 0 : index
    %22 = vector.load %arg5[%c0_35, %c0_36] : memref<1x32xf32, #tpu.memory_space<vmem>>, vector<1x32xf32>
    %23 = vector.shape_cast %22 : vector<1x32xf32> to vector<1x1x32xf32>
    %24 = vector.broadcast %23 : vector<1x1x32xf32> to vector<8x8x32xf32>
    %25 = arith.addf %21, %24 : vector<8x8x32xf32>
    %26 = arith.negf %25 : vector<8x8x32xf32>
    %27 = math.exp %26 : vector<8x8x32xf32>
    %cst_37 = arith.constant 1.000000e+00 : f32
    %28 = vector.broadcast %cst_37 : f32 to vector<8x8x32xf32>
    %29 = arith.addf %28, %27 : vector<8x8x32xf32>
    %30 = arith.divf %28, %29 : vector<8x8x32xf32>
    %31 = arith.mulf %25, %30 : vector<8x8x32xf32>
    %c0_38 = arith.constant 0 : index
    %c1_39 = arith.constant 1 : index
    %c1_40 = arith.constant 1 : index
    %c0_41 = arith.constant 0 : index
    %32 = vector.load %arg1[%c0_38, %c1_39, %c1_40, %c0_41] : memref<1x10x10x32xf32, #tpu.memory_space<vmem>>, vector<1x8x8x32xf32>
    %33 = vector.shape_cast %32 : vector<1x8x8x32xf32> to vector<8x8x32xf32>
    %34 = arith.addf %31, %33 : vector<8x8x32xf32>
    %35 = arith.negf %31 : vector<8x8x32xf32>
    %36 = math.exp %35 : vector<8x8x32xf32>
    %cst_42 = arith.constant 1.000000e+00 : f32
    %37 = vector.broadcast %cst_42 : f32 to vector<8x8x32xf32>
    %38 = arith.addf %37, %36 : vector<8x8x32xf32>
    %39 = arith.divf %37, %38 : vector<8x8x32xf32>
    %cst_43 = arith.constant 5.000000e-01 : f32
    %40 = vector.broadcast %cst_43 : f32 to vector<8x8x32xf32>
    %41 = arith.subf %39, %40 : vector<8x8x32xf32>
    %42 = arith.mulf %34, %41 : vector<8x8x32xf32>
    %c0_44 = arith.constant 0 : index
    %c0_45 = arith.constant 0 : index
    %c0_46 = arith.constant 0 : index
    %c0_47 = arith.constant 0 : index
    %43 = vector.load %arg2[%c0_44, %c0_45, %c0_46, %c0_47] : memref<1x8x8x32xf32, #tpu.memory_space<vmem>>, vector<1x8x8x32xf32>
    %44 = vector.shape_cast %43 : vector<1x8x8x32xf32> to vector<8x8x32xf32>
    %c0_48 = arith.constant 0 : index
    %c0_49 = arith.constant 0 : index
    %45 = vector.load %arg6[%c0_48, %c0_49] : memref<1x32xf32, #tpu.memory_space<vmem>>, vector<1x32xf32>
    %46 = vector.shape_cast %45 : vector<1x32xf32> to vector<1x1x32xf32>
    %47 = vector.broadcast %46 : vector<1x1x32xf32> to vector<8x8x32xf32>
    %48 = arith.mulf %44, %47 : vector<8x8x32xf32>
    %49 = arith.addf %48, %42 : vector<8x8x32xf32>
    %c0_50 = arith.constant 0 : index
    %c0_51 = arith.constant 0 : index
    %c0_52 = arith.constant 0 : index
    %c0_53 = arith.constant 0 : index
    %50 = vector.load %arg3[%c0_50, %c0_51, %c0_52, %c0_53] : memref<1x8x8x32xf32, #tpu.memory_space<vmem>>, vector<1x8x8x32xf32>
    %51 = vector.shape_cast %50 : vector<1x8x8x32xf32> to vector<8x8x32xf32>
    %c0_54 = arith.constant 0 : index
    %c0_55 = arith.constant 0 : index
    %52 = vector.load %arg7[%c0_54, %c0_55] : memref<1x32xf32, #tpu.memory_space<vmem>>, vector<1x32xf32>
    %53 = vector.shape_cast %52 : vector<1x32xf32> to vector<1x1x32xf32>
    %54 = vector.broadcast %53 : vector<1x1x32xf32> to vector<8x8x32xf32>
    %55 = arith.mulf %51, %54 : vector<8x8x32xf32>
    %56 = arith.addf %49, %55 : vector<8x8x32xf32>
    %c0_56 = arith.constant 0 : index
    %c0_57 = arith.constant 0 : index
    %c0_58 = arith.constant 0 : index
    %c0_59 = arith.constant 0 : index
    %57 = vector.load %arg8[%c0_56, %c0_57, %c0_58, %c0_59] : memref<1x8x8x32xf32, #tpu.memory_space<vmem>>, vector<1x8x8x32xf32>
    %58 = vector.shape_cast %57 : vector<1x8x8x32xf32> to vector<8x8x32xf32>
    %59 = vector.shape_cast %56 : vector<8x8x32xf32> to vector<1x8x8x32xf32>
    tpu.vector_store %arg8[%c0_56, %c0_57, %c0_58, %c0_59], %59 {strides = array<i32>} : memref<1x8x8x32xf32, #tpu.memory_space<vmem>>, vector<1x8x8x32xf32>,
    return
  }
  func.func @transform_0(%arg0: i32) -> (i32, i32, i32, i32) {
    %c0_i32 = arith.constant 0 : i32
    %c0_i32_0 = arith.constant 0 : i32
    %c0_i32_1 = arith.constant 0 : i32
    %c0_i32_2 = arith.constant 0 : i32
    return %arg0, %c0_i32, %c0_i32_0, %c0_i32_1 : i32, i32, i32, i32
  }
  func.func @transform_1(%arg0: i32) -> (i32, i32, i32, i32) {
    %c0_i32 = arith.constant 0 : i32
    %c0_i32_0 = arith.constant 0 : i32
    %c0_i32_1 = arith.constant 0 : i32
    %c0_i32_2 = arith.constant 0 : i32
    return %arg0, %c0_i32, %c0_i32_0, %c0_i32_1 : i32, i32, i32, i32
  }
  func.func @transform_2(%arg0: i32) -> (i32, i32, i32, i32) {
    %c0_i32 = arith.constant 0 : i32
    %c0_i32_0 = arith.constant 0 : i32
    %c0_i32_1 = arith.constant 0 : i32
    %c0_i32_2 = arith.constant 0 : i32
    return %arg0, %c0_i32, %c0_i32_0, %c0_i32_1 : i32, i32, i32, i32
  }
  func.func @transform_3(%arg0: i32) -> (i32, i32) {
    %c0_i32 = arith.constant 0 : i32
    %c0_i32_0 = arith.constant 0 : i32
    %c0_i32_1 = arith.constant 0 : i32
    return %c0_i32, %c0_i32_0 : i32, i32
  }
  func.func @transform_4(%arg0: i32) -> (i32, i32) {
    %c0_i32 = arith.constant 0 : i32
    %c0_i32_0 = arith.constant 0 : i32
    %c0_i32_1 = arith.constant 0 : i32
    return %c0_i32, %c0_i32_0 : i32, i32
  }
  func.func @transform_5(%arg0: i32) -> (i32, i32) {
    %c0_i32 = arith.constant 0 : i32
    %c0_i32_0 = arith.constant 0 : i32
    %c0_i32_1 = arith.constant 0 : i32
    return %c0_i32, %c0_i32_0 : i32, i32
  }
  func.func @transform_6(%arg0: i32) -> (i32, i32) {
    %c0_i32 = arith.constant 0 : i32
    %c0_i32_0 = arith.constant 0 : i32
    %c0_i32_1 = arith.constant 0 : i32
    return %c0_i32, %c0_i32_0 : i32, i32
  }
  func.func @transform_7(%arg0: i32) -> (i32, i32, i32, i32) {
    %c0_i32 = arith.constant 0 : i32
    %c0_i32_0 = arith.constant 0 : i32
    %c0_i32_1 = arith.constant 0 : i32
    %c0_i32_2 = arith.constant 0 : i32
    return %arg0, %c0_i32, %c0_i32_0, %c0_i32_1 : i32, i32, i32, i32
  }
}

</mosaic_0001>

<llo_original>
// kernel: _lambda_.11
$region0: #{_lambda_.11}
  #allocation0 [shape = 'u32[]', space=smem, size = 0x4, offset = 0x4, fixed_abs, tag = 'smem constant byte address 0x4 - core index']
  #allocation1 [shape = 'u32[72,128]{1,0:T(1,128)}', space=vmem, size = 0x9000, scoped, tag = 'internal scratch']
  %s0 = inlined_call_operand.vmem [shape: f32[2,10,10,64], index: 0, kind: input, shape index: {}]
  %s1 = inlined_call_operand.vmem [shape: f32[3,3,64], index: 1, kind: input, shape index: {}]
  %s2 = inlined_call_operand.vmem [shape: f32[1,64], index: 2, kind: input, shape index: {}]
  %s3 = inlined_call_operand.vmem [shape: f32[2,8,8,64], index: 3, kind: output, shape index: {}]
  %s4 = sld [smem:[#allocation0]]
  $region45: #{_lambda_.11} parent=0
    _
  %s6 = ssub.s32 1, %s4
  %s7 = scalar_select 0, %s6, %s4
  loop: start=0, step=1, limit=4
  $region2: #{_lambda_.11} parent=0 // loop_pre_header
    _
  $region3: #{_lambda_.11} parent=0 // loop_header
    %s9 = sphi 0, %s13
    %p10 = scmp.ge.s32.totalorder %s9, 4
    %s19 = sphi 0, %s21
    %s22 = sphi 0, %s19
    %s23 = sphi 0, %s22
    %s39 = sphi 0, %s23
    %s43 = sphi 0, %s43
    %s45 = sphi 0, %s43
    %s46 = sphi 0, %s45
    %s60 = sphi 0, %s46
    %s64 = sphi 0, %s64
    %s66 = sphi 0, %s64
    %s67 = sphi 0, %s66
    %s81 = sphi 0, %s67
    %s87 = sphi 0, %s89
    %s90 = sphi 0, %s87
    %s91 = sphi 0, %s90
    %s107 = sphi 0, %s91
  $region4: #{_lambda_.11} parent=0 // loop_header_branch
    %12 = sbr.rel (%p10) target = $region8
  $region5: #{_lambda_.11} parent=0 // loop_body
    %s14 = ssub.s32 %s9, 1
    %s15 = ssub.s32 %s9, 2
    %s16 = sadd.s32 %s9, 1
    %s17 = ssub.s32 %s9, %s16
    %p18 = scmp.eq.s32.totalorder %s17, 0
    %s20 = sadd.s32 %s19, 1
    %s21 = scalar_select %p18, %s19, %s20
    %p24 = pneg %p18
    %p25 = scmp.eq.s32.totalorder %s9, 1
    %p26 = por %p24, %p25
    %p27 = scmp.ne.s32.totalorder %s19, %s22
    %p28 = scmp.eq.s32.totalorder %s9, 0
    %p29 = por %p27, %p28
    %p30 = scmp.ne.s32.totalorder %s19, %s22
    %p31 = scmp.eq.s32.totalorder %s14, 1
    %p32 = por %p30, %p31
    %p33 = scmp.ne.s32.totalorder %s22, %s23
    %p34 = scmp.eq.s32.totalorder %s14, 0
    %p35 = por %p33, %p34
    %p36 = scmp.ne.s32.totalorder %s22, %s23
    %p37 = scmp.eq.s32.totalorder %s15, 1
    %p38 = por %p36, %p37
    %p40 = scmp.ne.s32.totalorder %s23, %s39
    %p41 = scmp.eq.s32.totalorder %s15, 0
    %p42 = por %p40, %p41
    %s44 = sadd.s32 %s43, 1
    %p47 = scmp.eq.s32.totalorder %s9, 1
    %p48 = scmp.ne.s32.totalorder %s43, %s45
    %p49 = scmp.eq.s32.totalorder %s9, 0
    %p50 = por %p48, %p49
    %p51 = scmp.ne.s32.totalorder %s43, %s45
    %p52 = scmp.eq.s32.totalorder %s14, 1
    %p53 = por %p51, %p52
    %p54 = scmp.ne.s32.totalorder %s45, %s46
    %p55 = scmp.eq.s32.totalorder %s14, 0
    %p56 = por %p54, %p55
    %p57 = scmp.ne.s32.totalorder %s45, %s46
    %p58 = scmp.eq.s32.totalorder %s15, 1
    %p59 = por %p57, %p58
    %p61 = scmp.ne.s32.totalorder %s46, %s60
    %p62 = scmp.eq.s32.totalorder %s15, 0
    %p63 = por %p61, %p62
    %s65 = sadd.s32 %s64, 1
    %p68 = scmp.eq.s32.totalorder %s9, 1
    %p69 = scmp.ne.s32.totalorder %s64, %s66
    %p70 = scmp.eq.s32.totalorder %s9, 0
    %p71 = por %p69, %p70
    %p72 = scmp.ne.s32.totalorder %s64, %s66
    %p73 = scmp.eq.s32.totalorder %s14, 1
    %p74 = por %p72, %p73
    %p75 = scmp.ne.s32.totalorder %s66, %s67
    %p76 = scmp.eq.s32.totalorder %s14, 0
    %p77 = por %p75, %p76
    %p78 = scmp.ne.s32.totalorder %s66, %s67
    %p79 = scmp.eq.s32.totalorder %s15, 1
    %p80 = por %p78, %p79
    %p82 = scmp.ne.s32.totalorder %s67, %s81
    %p83 = scmp.eq.s32.totalorder %s15, 0
    %p84 = por %p82, %p83
    %s85 = ssub.s32 %s9, %s16
    %p86 = scmp.eq.s32.totalorder %s85, 0
    %s88 = sadd.s32 %s87, 1
    %s89 = scalar_select %p86, %s87, %s88
    %p92 = pneg %p86
    %p93 = scmp.eq.s32.totalorder %s9, 1
    %p94 = por %p92, %p93
    %p95 = scmp.ne.s32.totalorder %s87, %s90
    %p96 = scmp.eq.s32.totalorder %s9, 0
    %p97 = por %p95, %p96
    %p98 = scmp.ne.s32.totalorder %s87, %s90
    %p99 = scmp.eq.s32.totalorder %s14, 1
    %p100 = por %p98, %p99
    %p101 = scmp.ne.s32.totalorder %s90, %s91
    %p102 = scmp.eq.s32.totalorder %s14, 0
    %p103 = por %p101, %p102
    %p104 = scmp.ne.s32.totalorder %s90, %s91
    %p105 = scmp.eq.s32.totalorder %s15, 1
    %p106 = por %p104, %p105
    %p108 = scmp.ne.s32.totalorder %s91, %s107
    %p109 = scmp.eq.s32.totalorder %s15, 0
    %p110 = por %p108, %p109
    %p111 = scmp.le.s32.totalorder 1, %s9
    %p112 = scmp.lt.s32.totalorder %s9, 3
    %p113 = pnand %p111, %p112
    %p114 = pneg %p113
    // Predicated region
    $region9: #{_lambda_.11} parent=5 // pred_check
      _
    $region10: #{_lambda_.11} parent=5 // pred_check_branch
      %116 = sbr.rel (%p113) target = $region12
    $region11: #{_lambda_.11} parent=5 // pred_region
      %s117 = ssub.s32 %s9, 1
      // Predicated region
      $region13: #{_lambda_.11} parent=11 // pred_check
        %p118 = pneg %p56
      $region14: #{_lambda_.11} parent=11 // pred_check_branch
        %120 = sbr.rel (%p118) target = $region16
      $region15: #{_lambda_.11} parent=11 // pred_region
        _
      $region16: #{_lambda_.11} parent=11 // pred_fallthru
        _
      // Predicated region
      $region17: #{_lambda_.11} parent=11 // pred_check
        %p121 = pneg %p77
      $region18: #{_lambda_.11} parent=11 // pred_check_branch
        %123 = sbr.rel (%p121) target = $region20
      $region19: #{_lambda_.11} parent=11 // pred_region
        _
      $region20: #{_lambda_.11} parent=11 // pred_fallthru
        _
    $region12: #{_lambda_.11} parent=5 // pred_fallthru
      _
    %p124 = scmp.lt.s32.totalorder %s9, 2
    // Predicated region
    $region21: #{_lambda_.11} parent=5 // pred_check
      %p125 = pneg %p124
    $region22: #{_lambda_.11} parent=5 // pred_check_branch
      %127 = sbr.rel (%p125) target = $region24
    $region23: #{_lambda_.11} parent=5 // pred_region
      // Predicated region
      $region25: #{_lambda_.11} parent=23 // pred_check
        %p128 = pneg %p29
      $region26: #{_lambda_.11} parent=23 // pred_check_branch
        %130 = sbr.rel (%p128) target = $region28
      $region27: #{_lambda_.11} parent=23 // pred_region
        %p131 = scmp.lt.s32.totalorder %s9, 1
        %s132 = scalar_select %p131, %s9, 1
        %s133 = smul.addr %s132, 20
        %s134 = smul.addr %s133, 8
        %s135 = scalar_lea.vmem %s0, %s134
      $region28: #{_lambda_.11} parent=23 // pred_fallthru
        _
    $region24: #{_lambda_.11} parent=5 // pred_fallthru
      _
    %p136 = scmp.le.s32.totalorder 1, %s9
    %p137 = scmp.lt.s32.totalorder %s9, 3
    %p138 = pnand %p136, %p137
    %p139 = pneg %p138
    // Predicated region
    $region29: #{_lambda_.11} parent=5 // pred_check
      _
    $region30: #{_lambda_.11} parent=5 // pred_check_branch
      %141 = sbr.rel (%p138) target = $region32
    $region31: #{_lambda_.11} parent=5 // pred_region
      %s142 = ssub.s32 %s9, 1
      %p143 = scmp.lt.s32.totalorder %s14, 1
      %s144 = scalar_select %p143, %s14, 1
      %s145 = smul.addr %s144, 20
      %s146 = smul.addr %s145, 8
      %s147 = scalar_lea.vmem %s0, %s146
      %p148 = pneg %p35
      %p149 = pneg %p32
      %p150 = pneg %p56
      %p151 = pneg %p53
      %p152 = pneg %p77
      %p153 = pneg %p74
      %p154 = pneg %p103
      %p155 = pneg %p100
      %p156 = scmp.lt.s32.totalorder %s14, 1
      %s157 = scalar_select %p156, %s14, 1
      %s158 = smul.addr %s157, 8
      %s159 = smul.addr %s158, 8
      %s160 = scalar_lea.vmem %s3, %s159
      %p161 = scmp.lt.s32.totalorder %s14, 1
      %s162 = scalar_select %p161, %s14, 1
      %s163 = smul.addr %s162, 20
      %s164 = smul.addr %s163, 8
      %s165 = scalar_lea.vmem %s0, %s164
      %p166 = scmp.lt.s32.totalorder %s14, 1
      %s167 = scalar_select %p166, %s14, 1
      %s168 = smul.addr %s167, 8
      %s169 = smul.addr %s168, 8
      %s170 = scalar_lea.vmem %s3, %s169
      %v171 = vld [vmem:[%s165] sm:$0xff]
      %v172 = vld [vmem:[%s165 + $0x8] sm:$0x3]
      %v173 = vld [vmem:[%s165 + $0x10] sm:$0xff]
      %v174 = vld [vmem:[%s165 + $0x18] sm:$0x3]
      %v175 = vld [vmem:[%s165 + $0x20] sm:$0xff]
      %v176 = vld [vmem:[%s165 + $0x28] sm:$0x3]
      %v177 = vld [vmem:[%s165 + $0x30] sm:$0xff]
      %v178 = vld [vmem:[%s165 + $0x38] sm:$0x3]
      %v179 = vld [vmem:[%s165 + $0x40] sm:$0xff]
      %v180 = vld [vmem:[%s165 + $0x48] sm:$0x3]
      %v181 = vld [vmem:[%s165 + $0x50] sm:$0xff]
      %v182 = vld [vmem:[%s165 + $0x58] sm:$0x3]
      %v183 = vld [vmem:[%s165 + $0x60] sm:$0xff]
      %v184 = vld [vmem:[%s165 + $0x68] sm:$0x3]
      %v185 = vld [vmem:[%s165 + $0x70] sm:$0xff]
      %v186 = vld [vmem:[%s165 + $0x78] sm:$0x3]
      %v187 = vld [vmem:[%s165 + $0x80] sm:$0xff]
      %v188 = vld [vmem:[%s165 + $0x88] sm:$0x3]
      %v189 = vld [vmem:[%s165 + $0x90] sm:$0xff]
      %v190 = vld [vmem:[%s165 + $0x98] sm:$0x3]
      %v191 = vld [vmem:[%s1] sm:$0x1]
      %v192 = vperm.slane %v191, 0
      %v193 = vmul.f32 %v171, %v192
      %v194 = vmul.f32 %v173, %v192
      %v195 = vmul.f32 %v175, %v192
      %v196 = vmul.f32 %v177, %v192
      %v197 = vmul.f32 %v179, %v192
      %v198 = vmul.f32 %v181, %v192
      %v199 = vmul.f32 %v183, %v192
      %v200 = vmul.f32 %v185, %v192
      %v201 = vadd.f32 %v193, 0.0
      %v202 = vadd.f32 %v194, 0.0
      %v203 = vadd.f32 %v195, 0.0
      %v204 = vadd.f32 %v196, 0.0
      %v205 = vadd.f32 %v197, 0.0
      %v206 = vadd.f32 %v198, 0.0
      %v207 = vadd.f32 %v199, 0.0
      %v208 = vadd.f32 %v200, 0.0
      %s209 = scalar_lea.vmem %s1, 4
      %v210 = vld [vmem:[%s209] sm:$0x1]
      %v211 = vperm.slane %v210, 0
      %v212 = vmul.f32 %v173, %v211
      %v213 = vmul.f32 %v175, %v211
      %v214 = vmul.f32 %v177, %v211
      %v215 = vmul.f32 %v179, %v211
      %v216 = vmul.f32 %v181, %v211
      %v217 = vmul.f32 %v183, %v211
      %v218 = vmul.f32 %v185, %v211
      %v219 = vmul.f32 %v187, %v211
      %v220 = vadd.f32 %v201, %v212
      %v221 = vadd.f32 %v202, %v213
      %v222 = vadd.f32 %v203, %v214
      %v223 = vadd.f32 %v204, %v215
      %v224 = vadd.f32 %v205, %v216
      %v225 = vadd.f32 %v206, %v217
      %v226 = vadd.f32 %v207, %v218
      %v227 = vadd.f32 %v208, %v219
      %s228 = scalar_lea.vmem %s1, 8
      %v229 = vld [vmem:[%s228] sm:$0x1]
      %v230 = vperm.slane %v229, 0
      %v231 = vmul.f32 %v175, %v230
      %v232 = vmul.f32 %v177, %v230
      %v233 = vmul.f32 %v179, %v230
      %v234 = vmul.f32 %v181, %v230
      %v235 = vmul.f32 %v183, %v230
      %v236 = vmul.f32 %v185, %v230
      %v237 = vmul.f32 %v187, %v230
      %v238 = vmul.f32 %v189, %v230
      %v239 = vadd.f32 %v220, %v231
      %v240 = vadd.f32 %v221, %v232
      %v241 = vadd.f32 %v222, %v233
      %v242 = vadd.f32 %v223, %v234
      %v243 = vadd.f32 %v224, %v235
      %v244 = vadd.f32 %v225, %v236
      %v245 = vadd.f32 %v226, %v237
      %v246 = vadd.f32 %v227, %v238
      %v247 = vld [vmem:[%s1 + $0x1] sm:$0x1]
      %v248 = vperm.slane %v247, 0
      %v249 = vmul.f32 %v171, %v248
      %v250 = vmul.f32 %v172, %v248
      %v251 = vmul.f32 %v173, %v248
      %v252 = vmul.f32 %v174, %v248
      %v253 = vmul.f32 %v175, %v248
      %v254 = vmul.f32 %v176, %v248
      %v255 = vmul.f32 %v177, %v248
      %v256 = vmul.f32 %v178, %v248
      %v257 = vmul.f32 %v179, %v248
      %v258 = vmul.f32 %v180, %v248
      %v259 = vmul.f32 %v181, %v248
      %v260 = vmul.f32 %v182, %v248
      %v261 = vmul.f32 %v183, %v248
      %v262 = vmul.f32 %v184, %v248
      %v263 = vmul.f32 %v185, %v248
      %v264 = vmul.f32 %v186, %v248
      %vm281 = vcmask 1046528
      %v282 = vrot.slane %v249, 1
      %v283 = vrot.slane %v250, 1
      %v284 = vsel %vm281, %v282, %v283
      %v285 = vrot.slane %v251, 1
      %v286 = vrot.slane %v252, 1
      %v287 = vsel %vm281, %v285, %v286
      %v288 = vrot.slane %v253, 1
      %v289 = vrot.slane %v254, 1
      %v290 = vsel %vm281, %v288, %v289
      %v291 = vrot.slane %v255, 1
      %v292 = vrot.slane %v256, 1
      %v293 = vsel %vm281, %v291, %v292
      %v294 = vrot.slane %v257, 1
      %v295 = vrot.slane %v258, 1
      %v296 = vsel %vm281, %v294, %v295
      %v297 = vrot.slane %v259, 1
      %v298 = vrot.slane %v260, 1
      %v299 = vsel %vm281, %v297, %v298
      %v300 = vrot.slane %v261, 1
      %v301 = vrot.slane %v262, 1
      %v302 = vsel %vm281, %v300, %v301
      %v303 = vrot.slane %v263, 1
      %v304 = vrot.slane %v264, 1
      %v305 = vsel %vm281, %v303, %v304
      %v314 = vadd.f32 %v239, %v284
      %v315 = vadd.f32 %v240, %v287
      %v316 = vadd.f32 %v241, %v290
      %v317 = vadd.f32 %v242, %v293
      %v318 = vadd.f32 %v243, %v296
      %v319 = vadd.f32 %v244, %v299
      %v320 = vadd.f32 %v245, %v302
      %v321 = vadd.f32 %v246, %v305
      %v322 = vld [vmem:[%s209 + $0x1] sm:$0x1]
      %v323 = vperm.slane %v322, 0
      %v324 = vmul.f32 %v173, %v323
      %v325 = vmul.f32 %v174, %v323
      %v326 = vmul.f32 %v175, %v323
      %v327 = vmul.f32 %v176, %v323
      %v328 = vmul.f32 %v177, %v323
      %v329 = vmul.f32 %v178, %v323
      %v330 = vmul.f32 %v179, %v323
      %v331 = vmul.f32 %v180, %v323
      %v332 = vmul.f32 %v181, %v323
      %v333 = vmul.f32 %v182, %v323
      %v334 = vmul.f32 %v183, %v323
      %v335 = vmul.f32 %v184, %v323
      %v336 = vmul.f32 %v185, %v323
      %v337 = vmul.f32 %v186, %v323
      %v338 = vmul.f32 %v187, %v323
      %v339 = vmul.f32 %v188, %v323
      %v356 = vrot.slane %v324, 1
      %v357 = vrot.slane %v325, 1
      %v358 = vsel %vm281, %v356, %v357
      %v359 = vrot.slane %v326, 1
      %v360 = vrot.slane %v327, 1
      %v361 = vsel %vm281, %v359, %v360
      %v362 = vrot.slane %v328, 1
      %v363 = vrot.slane %v329, 1
      %v364 = vsel %vm281, %v362, %v363
      %v365 = vrot.slane %v330, 1
      %v366 = vrot.slane %v331, 1
      %v367 = vsel %vm281, %v365, %v366
      %v368 = vrot.slane %v332, 1
      %v369 = vrot.slane %v333, 1
      %v370 = vsel %vm281, %v368, %v369
      %v371 = vrot.slane %v334, 1
      %v372 = vrot.slane %v335, 1
      %v373 = vsel %vm281, %v371, %v372
      %v374 = vrot.slane %v336, 1
      %v375 = vrot.slane %v337, 1
      %v376 = vsel %vm281, %v374, %v375
      %v377 = vrot.slane %v338, 1
      %v378 = vrot.slane %v339, 1
      %v379 = vsel %vm281, %v377, %v378
      %v388 = vadd.f32 %v314, %v358
      %v389 = vadd.f32 %v315, %v361
      %v390 = vadd.f32 %v316, %v364
      %v391 = vadd.f32 %v317, %v367
      %v392 = vadd.f32 %v318, %v370
      %v393 = vadd.f32 %v319, %v373
      %v394 = vadd.f32 %v320, %v376
      %v395 = vadd.f32 %v321, %v379
      %v396 = vld [vmem:[%s228 + $0x1] sm:$0x1]
      %v397 = vperm.slane %v396, 0
      %v398 = vmul.f32 %v175, %v397
      %v399 = vmul.f32 %v176, %v397
      %v400 = vmul.f32 %v177, %v397
      %v401 = vmul.f32 %v178, %v397
      %v402 = vmul.f32 %v179, %v397
      %v403 = vmul.f32 %v180, %v397
      %v404 = vmul.f32 %v181, %v397
      %v405 = vmul.f32 %v182, %v397
      %v406 = vmul.f32 %v183, %v397
      %v407 = vmul.f32 %v184, %v397
      %v408 = vmul.f32 %v185, %v397
      %v409 = vmul.f32 %v186, %v397
      %v410 = vmul.f32 %v187, %v397
      %v411 = vmul.f32 %v188, %v397
      %v412 = vmul.f32 %v189, %v397
      %v413 = vmul.f32 %v190, %v397
      %v430 = vrot.slane %v398, 1
      %v431 = vrot.slane %v399, 1
      %v432 = vsel %vm281, %v430, %v431
      %v433 = vrot.slane %v400, 1
      %v434 = vrot.slane %v401, 1
      %v435 = vsel %vm281, %v433, %v434
      %v436 = vrot.slane %v402, 1
      %v437 = vrot.slane %v403, 1
      %v438 = vsel %vm281, %v436, %v437
      %v439 = vrot.slane %v404, 1
      %v440 = vrot.slane %v405, 1
      %v441 = vsel %vm281, %v439, %v440
      %v442 = vrot.slane %v406, 1
      %v443 = vrot.slane %v407, 1
      %v444 = vsel %vm281, %v442, %v443
      %v445 = vrot.slane %v408, 1
      %v446 = vrot.slane %v409, 1
      %v447 = vsel %vm281, %v445, %v446
      %v448 = vrot.slane %v410, 1
      %v449 = vrot.slane %v411, 1
      %v450 = vsel %vm281, %v448, %v449
      %v451 = vrot.slane %v412, 1
      %v452 = vrot.slane %v413, 1
      %v453 = vsel %vm281, %v451, %v452
      %v462 = vadd.f32 %v388, %v432
      %v463 = vadd.f32 %v389, %v435
      %v464 = vadd.f32 %v390, %v438
      %v465 = vadd.f32 %v391, %v441
      %v466 = vadd.f32 %v392, %v444
      %v467 = vadd.f32 %v393, %v447
      %v468 = vadd.f32 %v394, %v450
      %v469 = vadd.f32 %v395, %v453
      %v470 = vld [vmem:[%s1 + $0x2] sm:$0x1]
      %v471 = vperm.slane %v470, 0
      %v472 = vmul.f32 %v171, %v471
      %v473 = vmul.f32 %v172, %v471
      %v474 = vmul.f32 %v173, %v471
      %v475 = vmul.f32 %v174, %v471
      %v476 = vmul.f32 %v175, %v471
      %v477 = vmul.f32 %v176, %v471
      %v478 = vmul.f32 %v177, %v471
      %v479 = vmul.f32 %v178, %v471
      %v480 = vmul.f32 %v179, %v471
      %v481 = vmul.f32 %v180, %v471
      %v482 = vmul.f32 %v181, %v471
      %v483 = vmul.f32 %v182, %v471
      %v484 = vmul.f32 %v183, %v471
      %v485 = vmul.f32 %v184, %v471
      %v486 = vmul.f32 %v185, %v471
      %v487 = vmul.f32 %v186, %v471
      %vm504 = vcmask 1045504
      %v505 = vrot.slane %v472, 2
      %v506 = vrot.slane %v473, 2
      %v507 = vsel %vm504, %v505, %v506
      %v508 = vrot.slane %v474, 2
      %v509 = vrot.slane %v475, 2
      %v510 = vsel %vm504, %v508, %v509
      %v511 = vrot.slane %v476, 2
      %v512 = vrot.slane %v477, 2
      %v513 = vsel %vm504, %v511, %v512
      %v514 = vrot.slane %v478, 2
      %v515 = vrot.slane %v479, 2
      %v516 = vsel %vm504, %v514, %v515
      %v517 = vrot.slane %v480, 2
      %v518 = vrot.slane %v481, 2
      %v519 = vsel %vm504, %v517, %v518
      %v520 = vrot.slane %v482, 2
      %v521 = vrot.slane %v483, 2
      %v522 = vsel %vm504, %v520, %v521
      %v523 = vrot.slane %v484, 2
      %v524 = vrot.slane %v485, 2
      %v525 = vsel %vm504, %v523, %v524
      %v526 = vrot.slane %v486, 2
      %v527 = vrot.slane %v487, 2
      %v528 = vsel %vm504, %v526, %v527
      %v537 = vadd.f32 %v462, %v507
      %v538 = vadd.f32 %v463, %v510
      %v539 = vadd.f32 %v464, %v513
      %v540 = vadd.f32 %v465, %v516
      %v541 = vadd.f32 %v466, %v519
      %v542 = vadd.f32 %v467, %v522
      %v543 = vadd.f32 %v468, %v525
      %v544 = vadd.f32 %v469, %v528
      %v545 = vld [vmem:[%s209 + $0x2] sm:$0x1]
      %v546 = vperm.slane %v545, 0
      %v547 = vmul.f32 %v173, %v546
      %v548 = vmul.f32 %v174, %v546
      %v549 = vmul.f32 %v175, %v546
      %v550 = vmul.f32 %v176, %v546
      %v551 = vmul.f32 %v177, %v546
      %v552 = vmul.f32 %v178, %v546
      %v553 = vmul.f32 %v179, %v546
      %v554 = vmul.f32 %v180, %v546
      %v555 = vmul.f32 %v181, %v546
      %v556 = vmul.f32 %v182, %v546
      %v557 = vmul.f32 %v183, %v546
      %v558 = vmul.f32 %v184, %v546
      %v559 = vmul.f32 %v185, %v546
      %v560 = vmul.f32 %v186, %v546
      %v561 = vmul.f32 %v187, %v546
      %v562 = vmul.f32 %v188, %v546
      %v579 = vrot.slane %v547, 2
      %v580 = vrot.slane %v548, 2
      %v581 = vsel %vm504, %v579, %v580
      %v582 = vrot.slane %v549, 2
      %v583 = vrot.slane %v550, 2
      %v584 = vsel %vm504, %v582, %v583
      %v585 = vrot.slane %v551, 2
      %v586 = vrot.slane %v552, 2
      %v587 = vsel %vm504, %v585, %v586
      %v588 = vrot.slane %v553, 2
      %v589 = vrot.slane %v554, 2
      %v590 = vsel %vm504, %v588, %v589
      %v591 = vrot.slane %v555, 2
      %v592 = vrot.slane %v556, 2
      %v593 = vsel %vm504, %v591, %v592
      %v594 = vrot.slane %v557, 2
      %v595 = vrot.slane %v558, 2
      %v596 = vsel %vm504, %v594, %v595
      %v597 = vrot.slane %v559, 2
      %v598 = vrot.slane %v560, 2
      %v599 = vsel %vm504, %v597, %v598
      %v600 = vrot.slane %v561, 2
      %v601 = vrot.slane %v562, 2
      %v602 = vsel %vm504, %v600, %v601
      %v611 = vadd.f32 %v537, %v581
      %v612 = vadd.f32 %v538, %v584
      %v613 = vadd.f32 %v539, %v587
      %v614 = vadd.f32 %v540, %v590
      %v615 = vadd.f32 %v541, %v593
      %v616 = vadd.f32 %v542, %v596
      %v617 = vadd.f32 %v543, %v599
      %v618 = vadd.f32 %v544, %v602
      %v619 = vld [vmem:[%s228 + $0x2] sm:$0x1]
      %v620 = vperm.slane %v619, 0
      %v621 = vmul.f32 %v175, %v620
      %v622 = vmul.f32 %v176, %v620
      %v623 = vmul.f32 %v177, %v620
      %v624 = vmul.f32 %v178, %v620
      %v625 = vmul.f32 %v179, %v620
      %v626 = vmul.f32 %v180, %v620
      %v627 = vmul.f32 %v181, %v620
      %v628 = vmul.f32 %v182, %v620
      %v629 = vmul.f32 %v183, %v620
      %v630 = vmul.f32 %v184, %v620
      %v631 = vmul.f32 %v185, %v620
      %v632 = vmul.f32 %v186, %v620
      %v633 = vmul.f32 %v187, %v620
      %v634 = vmul.f32 %v188, %v620
      %v635 = vmul.f32 %v189, %v620
      %v636 = vmul.f32 %v190, %v620
      %v653 = vrot.slane %v621, 2
      %v654 = vrot.slane %v622, 2
      %v655 = vsel %vm504, %v653, %v654
      %v656 = vrot.slane %v623, 2
      %v657 = vrot.slane %v624, 2
      %v658 = vsel %vm504, %v656, %v657
      %v659 = vrot.slane %v625, 2
      %v660 = vrot.slane %v626, 2
      %v661 = vsel %vm504, %v659, %v660
      %v662 = vrot.slane %v627, 2
      %v663 = vrot.slane %v628, 2
      %v664 = vsel %vm504, %v662, %v663
      %v665 = vrot.slane %v629, 2
      %v666 = vrot.slane %v630, 2
      %v667 = vsel %vm504, %v665, %v666
      %v668 = vrot.slane %v631, 2
      %v669 = vrot.slane %v632, 2
      %v670 = vsel %vm504, %v668, %v669
      %v671 = vrot.slane %v633, 2
      %v672 = vrot.slane %v634, 2
      %v673 = vsel %vm504, %v671, %v672
      %v674 = vrot.slane %v635, 2
      %v675 = vrot.slane %v636, 2
      %v676 = vsel %vm504, %v674, %v675
      %v685 = vadd.f32 %v611, %v655
      %v686 = vadd.f32 %v612, %v658
      %v687 = vadd.f32 %v613, %v661
      %v688 = vadd.f32 %v614, %v664
      %v689 = vadd.f32 %v615, %v667
      %v690 = vadd.f32 %v616, %v670
      %v691 = vadd.f32 %v617, %v673
      %v692 = vadd.f32 %v618, %v676
      %v693 = vld [vmem:[%s2] sm:$0x1]
      %v695 = vperm.slane %v693, 0
      %v697 = vadd.f32 %v685, %v695
      %v698 = vadd.f32 %v686, %v695
      %v699 = vadd.f32 %v687, %v695
      %v700 = vadd.f32 %v688, %v695
      %v701 = vadd.f32 %v689, %v695
      %v702 = vadd.f32 %v690, %v695
      %v703 = vadd.f32 %v691, %v695
      %v704 = vadd.f32 %v692, %v695
      %v705 = vxor.u32 %v697, 2147483648
      %v706 = vxor.u32 %v698, 2147483648
      %v707 = vxor.u32 %v699, 2147483648
      %v708 = vxor.u32 %v700, 2147483648
      %v709 = vxor.u32 %v701, 2147483648
      %v710 = vxor.u32 %v702, 2147483648
      %v711 = vxor.u32 %v703, 2147483648
      %v712 = vxor.u32 %v704, 2147483648
      %v713 = vmul.f32 %v705, 1.442695
      %v714 = vpow.pop %v713
      %v715 = vmul.f32 %v706, 1.442695
      %v716 = vpow.pop %v715
      %v717 = vmul.f32 %v707, 1.442695
      %v718 = vpow.pop %v717
      %v719 = vmul.f32 %v708, 1.442695
      %v720 = vpow.pop %v719
      %v721 = vmul.f32 %v709, 1.442695
      %v722 = vpow.pop %v721
      %v723 = vmul.f32 %v710, 1.442695
      %v724 = vpow.pop %v723
      %v725 = vmul.f32 %v711, 1.442695
      %v726 = vpow.pop %v725
      %v727 = vmul.f32 %v712, 1.442695
      %v728 = vpow.pop %v727
      %v729 = vadd.f32 %v714, 1.0
      %v730 = vadd.f32 %v716, 1.0
      %v731 = vadd.f32 %v718, 1.0
      %v732 = vadd.f32 %v720, 1.0
      %v733 = vadd.f32 %v722, 1.0
      %v734 = vadd.f32 %v724, 1.0
      %v735 = vadd.f32 %v726, 1.0
      %v736 = vadd.f32 %v728, 1.0
      %v737 = vrcp.pop %v729
      %v738 = vmul.f32 %v729, %v737
      %v739 = vsub.f32 1.0, %v738
      %v740 = vmul.f32 %v737, %v739
      %v741 = vadd.f32 %v737, %v740
      %vm742 = vweird.f32 %v729
      %vm743 = vweird.f32 %v737
      %vm744 = vmor %vm742, %vm743
      %v745 = vsel %vm744, %v737, %v741
      %v746 = vand.u32 2147483647, %v729
      %vm747 = vcmp.eq.f32.partialorder %v746, 8.507059e+37
      %v748 = vand.u32 %v729, 2147483648
      %v749 = vor.u32 1.1754944e-38, %v748
      %v750 = vsel %vm747, %v749, %v745
      %v751 = vmul.f32 1.0, %v750
      %v752 = vrcp.pop %v730
      %v753 = vmul.f32 %v730, %v752
      %v754 = vsub.f32 1.0, %v753
      %v755 = vmul.f32 %v752, %v754
      %v756 = vadd.f32 %v752, %v755
      %vm757 = vweird.f32 %v730
      %vm758 = vweird.f32 %v752
      %vm759 = vmor %vm757, %vm758
      %v760 = vsel %vm759, %v752, %v756
      %v761 = vand.u32 2147483647, %v730
      %vm762 = vcmp.eq.f32.partialorder %v761, 8.507059e+37
      %v763 = vand.u32 %v730, 2147483648
      %v764 = vor.u32 1.1754944e-38, %v763
      %v765 = vsel %vm762, %v764, %v760
      %v766 = vmul.f32 1.0, %v765
      %v767 = vrcp.pop %v731
      %v768 = vmul.f32 %v731, %v767
      %v769 = vsub.f32 1.0, %v768
      %v770 = vmul.f32 %v767, %v769
      %v771 = vadd.f32 %v767, %v770
      %vm772 = vweird.f32 %v731
      %vm773 = vweird.f32 %v767
      %vm774 = vmor %vm772, %vm773
      %v775 = vsel %vm774, %v767, %v771
      %v776 = vand.u32 2147483647, %v731
      %vm777 = vcmp.eq.f32.partialorder %v776, 8.507059e+37
      %v778 = vand.u32 %v731, 2147483648
      %v779 = vor.u32 1.1754944e-38, %v778
      %v780 = vsel %vm777, %v779, %v775
      %v781 = vmul.f32 1.0, %v780
      %v782 = vrcp.pop %v732
      %v783 = vmul.f32 %v732, %v782
      %v784 = vsub.f32 1.0, %v783
      %v785 = vmul.f32 %v782, %v784
      %v786 = vadd.f32 %v782, %v785
      %vm787 = vweird.f32 %v732
      %vm788 = vweird.f32 %v782
      %vm789 = vmor %vm787, %vm788
      %v790 = vsel %vm789, %v782, %v786
      %v791 = vand.u32 2147483647, %v732
      %vm792 = vcmp.eq.f32.partialorder %v791, 8.507059e+37
      %v793 = vand.u32 %v732, 2147483648
      %v794 = vor.u32 1.1754944e-38, %v793
      %v795 = vsel %vm792, %v794, %v790
      %v796 = vmul.f32 1.0, %v795
      %v797 = vrcp.pop %v733
      %v798 = vmul.f32 %v733, %v797
      %v799 = vsub.f32 1.0, %v798
      %v800 = vmul.f32 %v797, %v799
      %v801 = vadd.f32 %v797, %v800
      %vm802 = vweird.f32 %v733
      %vm803 = vweird.f32 %v797
      %vm804 = vmor %vm802, %vm803
      %v805 = vsel %vm804, %v797, %v801
      %v806 = vand.u32 2147483647, %v733
      %vm807 = vcmp.eq.f32.partialorder %v806, 8.507059e+37
      %v808 = vand.u32 %v733, 2147483648
      %v809 = vor.u32 1.1754944e-38, %v808
      %v810 = vsel %vm807, %v809, %v805
      %v811 = vmul.f32 1.0, %v810
      %v812 = vrcp.pop %v734
      %v813 = vmul.f32 %v734, %v812
      %v814 = vsub.f32 1.0, %v813
      %v815 = vmul.f32 %v812, %v814
      %v816 = vadd.f32 %v812, %v815
      %vm817 = vweird.f32 %v734
      %vm818 = vweird.f32 %v812
      %vm819 = vmor %vm817, %vm818
      %v820 = vsel %vm819, %v812, %v816
      %v821 = vand.u32 2147483647, %v734
      %vm822 = vcmp.eq.f32.partialorder %v821, 8.507059e+37
      %v823 = vand.u32 %v734, 2147483648
      %v824 = vor.u32 1.1754944e-38, %v823
      %v825 = vsel %vm822, %v824, %v820
      %v826 = vmul.f32 1.0, %v825
      %v827 = vrcp.pop %v735
      %v828 = vmul.f32 %v735, %v827
      %v829 = vsub.f32 1.0, %v828
      %v830 = vmul.f32 %v827, %v829
      %v831 = vadd.f32 %v827, %v830
      %vm832 = vweird.f32 %v735
      %vm833 = vweird.f32 %v827
      %vm834 = vmor %vm832, %vm833
      %v835 = vsel %vm834, %v827, %v831
      %v836 = vand.u32 2147483647, %v735
      %vm837 = vcmp.eq.f32.partialorder %v836, 8.507059e+37
      %v838 = vand.u32 %v735, 2147483648
      %v839 = vor.u32 1.1754944e-38, %v838
      %v840 = vsel %vm837, %v839, %v835
      %v841 = vmul.f32 1.0, %v840
      %v842 = vrcp.pop %v736
      %v843 = vmul.f32 %v736, %v842
      %v844 = vsub.f32 1.0, %v843
      %v845 = vmul.f32 %v842, %v844
      %v846 = vadd.f32 %v842, %v845
      %vm847 = vweird.f32 %v736
      %vm848 = vweird.f32 %v842
      %vm849 = vmor %vm847, %vm848
      %v850 = vsel %vm849, %v842, %v846
      %v851 = vand.u32 2147483647, %v736
      %vm852 = vcmp.eq.f32.partialorder %v851, 8.507059e+37
      %v853 = vand.u32 %v736, 2147483648
      %v854 = vor.u32 1.1754944e-38, %v853
      %v855 = vsel %vm852, %v854, %v850
      %v856 = vmul.f32 1.0, %v855
      %v857 = vmul.f32 %v697, %v751
      %v858 = vmul.f32 %v698, %v766
      %v859 = vmul.f32 %v699, %v781
      %v860 = vmul.f32 %v700, %v796
      %v861 = vmul.f32 %v701, %v811
      %v862 = vmul.f32 %v702, %v826
      %v863 = vmul.f32 %v703, %v841
      %v864 = vmul.f32 %v704, %v856
      %vm865 = vcmask 523264
      %866 = vst.msk [vmem:[%s170] sm:$0xff] %vm865, %v857
      %867 = vst.msk [vmem:[%s170 + $0x8] sm:$0xff] %vm865, %v858
      %868 = vst.msk [vmem:[%s170 + $0x10] sm:$0xff] %vm865, %v859
      %869 = vst.msk [vmem:[%s170 + $0x18] sm:$0xff] %vm865, %v860
      %870 = vst.msk [vmem:[%s170 + $0x20] sm:$0xff] %vm865, %v861
      %871 = vst.msk [vmem:[%s170 + $0x28] sm:$0xff] %vm865, %v862
      %872 = vst.msk [vmem:[%s170 + $0x30] sm:$0xff] %vm865, %v863
      %873 = vst.msk [vmem:[%s170 + $0x38] sm:$0xff] %vm865, %v864
      %p874 = scmp.lt.s32.totalorder %s14, 1
      %s875 = scalar_select %p874, %s14, 1
      %s876 = smul.addr %s875, 8
      %s877 = smul.addr %s876, 8
      %s878 = scalar_lea.vmem %s3, %s877
      // Predicated region
      $region33: #{_lambda_.11} parent=31 // pred_check
        %p879 = pneg %p100
      $region34: #{_lambda_.11} parent=31 // pred_check_branch
        %881 = sbr.rel (%p879) target = $region36
      $region35: #{_lambda_.11} parent=31 // pred_region
        _
      $region36: #{_lambda_.11} parent=31 // pred_fallthru
        _
    $region32: #{_lambda_.11} parent=5 // pred_fallthru
      _
    %p882 = scmp.le.s32.totalorder 2, %s9
    // Predicated region
    $region37: #{_lambda_.11} parent=5 // pred_check
      %p883 = pneg %p882
    $region38: #{_lambda_.11} parent=5 // pred_check_branch
      %885 = sbr.rel (%p883) target = $region40
    $region39: #{_lambda_.11} parent=5 // pred_region
      %s886 = ssub.s32 %s9, 2
      // Predicated region
      $region41: #{_lambda_.11} parent=39 // pred_check
        %p887 = pneg %p106
      $region42: #{_lambda_.11} parent=39 // pred_check_branch
        %889 = sbr.rel (%p887) target = $region44
      $region43: #{_lambda_.11} parent=39 // pred_region
        %p890 = scmp.lt.s32.totalorder %s15, 1
        %s891 = scalar_select %p890, %s15, 1
        %s892 = smul.addr %s891, 8
        %s893 = smul.addr %s892, 8
        %s894 = scalar_lea.vmem %s3, %s893
      $region44: #{_lambda_.11} parent=39 // pred_fallthru
        _
    $region40: #{_lambda_.11} parent=5 // pred_fallthru
      _
  $region6: #{_lambda_.11} parent=0 // loop_footer
    %s13 = sadd.s32 1, %s9
  $region7: #{_lambda_.11} parent=0 // loop_footer_branch
    %8 = sbr.rel target = $region3
  $region8: #{_lambda_.11} parent=0 // loop_exit
    _

// kernel: _lambda_.10
$region0: #{_lambda_.10}
  #allocation0 [shape = 'u32[]', space=smem, size = 0x4, offset = 0x4, fixed_abs, tag = 'smem constant byte address 0x4 - core index']
  #allocation1 [shape = 'u32[72,128]{1,0:T(1,128)}', space=vmem, size = 0x9000, scoped, tag = 'internal scratch']
  %s0 = inlined_call_operand.vmem [shape: f32[128,32], index: 0, kind: input, shape index: {}]
  %s1 = inlined_call_operand.vmem [shape: f32[1,32], index: 1, kind: input, shape index: {}]
  %s2 = inlined_call_operand.vmem [shape: f32[1,32], index: 2, kind: input, shape index: {}]
  %s3 = inlined_call_operand.vmem [shape: bf16[32,128], index: 3, kind: input, shape index: {}]
  %s4 = inlined_call_operand.vmem [shape: f32[128,64], index: 4, kind: output, shape index: {0}]
  %s5 = inlined_call_operand.vmem [shape: f32[128,64], index: 5, kind: output, shape index: {1}]
  %6 = xla_tuple %s4, %s5
  %s7 = sld [smem:[#allocation0]]
  $region34: #{_lambda_.10} parent=0
    _
  %s9 = ssub.s32 1, %s7
  %s10 = scalar_select 0, %s9, %s7
  // Predicated region
  $region2: #{_lambda_.10} parent=0 // pred_check
    _
  $region3: #{_lambda_.10} parent=0 // pred_check_branch
    %12 = sbr.rel (0) target = $region5
  $region4: #{_lambda_.10} parent=0 // pred_region
    _
  $region5: #{_lambda_.10} parent=0 // pred_fallthru
    _
  // Predicated region
  $region6: #{_lambda_.10} parent=0 // pred_check
    _
  $region7: #{_lambda_.10} parent=0 // pred_check_branch
    %14 = sbr.rel (0) target = $region9
  $region8: #{_lambda_.10} parent=0 // pred_region
    _
  $region9: #{_lambda_.10} parent=0 // pred_fallthru
    _
  // Predicated region
  $region10: #{_lambda_.10} parent=0 // pred_check
    _
  $region11: #{_lambda_.10} parent=0 // pred_check_branch
    %16 = sbr.rel (0) target = $region13
  $region12: #{_lambda_.10} parent=0 // pred_region
    _
  $region13: #{_lambda_.10} parent=0 // pred_fallthru
    _
  // Predicated region
  $region14: #{_lambda_.10} parent=0 // pred_check
    _
  $region15: #{_lambda_.10} parent=0 // pred_check_branch
    %18 = sbr.rel (0) target = $region17
  $region16: #{_lambda_.10} parent=0 // pred_region
    _
  $region17: #{_lambda_.10} parent=0 // pred_fallthru
    _
  %v20 = vld [vmem:[%s0] sm:$0xff]
  %v21 = vld [vmem:[%s0 + $0x8] sm:$0xff]
  %v22 = vld [vmem:[%s0 + $0x10] sm:$0xff]
  %v23 = vld [vmem:[%s0 + $0x18] sm:$0xff]
  %v24 = vld [vmem:[%s0 + $0x20] sm:$0xff]
  %v25 = vld [vmem:[%s0 + $0x28] sm:$0xff]
  %v26 = vld [vmem:[%s0 + $0x30] sm:$0xff]
  %v27 = vld [vmem:[%s0 + $0x38] sm:$0xff]
  %v28 = vld [vmem:[%s0 + $0x40] sm:$0xff]
  %v29 = vld [vmem:[%s0 + $0x48] sm:$0xff]
  %v30 = vld [vmem:[%s0 + $0x50] sm:$0xff]
  %v31 = vld [vmem:[%s0 + $0x58] sm:$0xff]
  %v32 = vld [vmem:[%s0 + $0x60] sm:$0xff]
  %v33 = vld [vmem:[%s0 + $0x68] sm:$0xff]
  %v34 = vld [vmem:[%s0 + $0x70] sm:$0xff]
  %v35 = vld [vmem:[%s0 + $0x78] sm:$0xff]
  %vm36 = vcmask 261120
  %v37 = vsel %vm36, %v20, 0.0
  %38 = vadd.xlane.f32.xlu0 %v37
  %v39 = vpop.xlane.xlu0 %38
  %v40 = vsel %vm36, %v21, 0.0
  %41 = vadd.xlane.f32.xlu0 %v40
  %v42 = vpop.xlane.xlu0 %41
  %v43 = vsel %vm36, %v22, 0.0
  %44 = vadd.xlane.f32.xlu0 %v43
  %v45 = vpop.xlane.xlu0 %44
  %v46 = vsel %vm36, %v23, 0.0
  %47 = vadd.xlane.f32.xlu0 %v46
  %v48 = vpop.xlane.xlu0 %47
  %v49 = vsel %vm36, %v24, 0.0
  %50 = vadd.xlane.f32.xlu0 %v49
  %v51 = vpop.xlane.xlu0 %50
  %v52 = vsel %vm36, %v25, 0.0
  %53 = vadd.xlane.f32.xlu0 %v52
  %v54 = vpop.xlane.xlu0 %53
  %v55 = vsel %vm36, %v26, 0.0
  %56 = vadd.xlane.f32.xlu0 %v55
  %v57 = vpop.xlane.xlu0 %56
  %v58 = vsel %vm36, %v27, 0.0
  %59 = vadd.xlane.f32.xlu0 %v58
  %v60 = vpop.xlane.xlu0 %59
  %v61 = vsel %vm36, %v28, 0.0
  %62 = vadd.xlane.f32.xlu0 %v61
  %v63 = vpop.xlane.xlu0 %62
  %v64 = vsel %vm36, %v29, 0.0
  %65 = vadd.xlane.f32.xlu0 %v64
  %v66 = vpop.xlane.xlu0 %65
  %v67 = vsel %vm36, %v30, 0.0
  %68 = vadd.xlane.f32.xlu0 %v67
  %v69 = vpop.xlane.xlu0 %68
  %v70 = vsel %vm36, %v31, 0.0
  %71 = vadd.xlane.f32.xlu0 %v70
  %v72 = vpop.xlane.xlu0 %71
  %v73 = vsel %vm36, %v32, 0.0
  %74 = vadd.xlane.f32.xlu0 %v73
  %v75 = vpop.xlane.xlu0 %74
  %v76 = vsel %vm36, %v33, 0.0
  %77 = vadd.xlane.f32.xlu0 %v76
  %v78 = vpop.xlane.xlu0 %77
  %v79 = vsel %vm36, %v34, 0.0
  %80 = vadd.xlane.f32.xlu0 %v79
  %v81 = vpop.xlane.xlu0 %80
  %v82 = vsel %vm36, %v35, 0.0
  %83 = vadd.xlane.f32.xlu0 %v82
  %v84 = vpop.xlane.xlu0 %83
  %v85 = vrcp.pop 32.0
  %v86 = vmul.f32 32.0, %v85
  %v87 = vsub.f32 1.0, %v86
  %v88 = vmul.f32 %v85, %v87
  %v89 = vadd.f32 %v85, %v88
  %vm90 = vweird.f32 %v85
  %v91 = vsel %vm90, %v85, %v89
  %v92 = vmul.f32 %v39, %v91
  %v93 = vmul.f32 %v42, %v91
  %v94 = vmul.f32 %v45, %v91
  %v95 = vmul.f32 %v48, %v91
  %v96 = vmul.f32 %v51, %v91
  %v97 = vmul.f32 %v54, %v91
  %v98 = vmul.f32 %v57, %v91
  %v99 = vmul.f32 %v60, %v91
  %v100 = vmul.f32 %v63, %v91
  %v101 = vmul.f32 %v66, %v91
  %v102 = vmul.f32 %v69, %v91
  %v103 = vmul.f32 %v72, %v91
  %v104 = vmul.f32 %v75, %v91
  %v105 = vmul.f32 %v78, %v91
  %v106 = vmul.f32 %v81, %v91
  %v107 = vmul.f32 %v84, %v91
  %v108 = vsub.f32 %v20, %v92
  %v109 = vsub.f32 %v21, %v93
  %v110 = vsub.f32 %v22, %v94
  %v111 = vsub.f32 %v23, %v95
  %v112 = vsub.f32 %v24, %v96
  %v113 = vsub.f32 %v25, %v97
  %v114 = vsub.f32 %v26, %v98
  %v115 = vsub.f32 %v27, %v99
  %v116 = vsub.f32 %v28, %v100
  %v117 = vsub.f32 %v29, %v101
  %v118 = vsub.f32 %v30, %v102
  %v119 = vsub.f32 %v31, %v103
  %v120 = vsub.f32 %v32, %v104
  %v121 = vsub.f32 %v33, %v105
  %v122 = vsub.f32 %v34, %v106
  %v123 = vsub.f32 %v35, %v107
  %v124 = vmul.f32 %v108, %v108
  %v125 = vmul.f32 %v109, %v109
  %v126 = vmul.f32 %v110, %v110
  %v127 = vmul.f32 %v111, %v111
  %v128 = vmul.f32 %v112, %v112
  %v129 = vmul.f32 %v113, %v113
  %v130 = vmul.f32 %v114, %v114
  %v131 = vmul.f32 %v115, %v115
  %v132 = vmul.f32 %v116, %v116
  %v133 = vmul.f32 %v117, %v117
  %v134 = vmul.f32 %v118, %v118
  %v135 = vmul.f32 %v119, %v119
  %v136 = vmul.f32 %v120, %v120
  %v137 = vmul.f32 %v121, %v121
  %v138 = vmul.f32 %v122, %v122
  %v139 = vmul.f32 %v123, %v123
  %v140 = vsel %vm36, %v124, 0.0
  %141 = vadd.xlane.f32.xlu0 %v140
  %v142 = vpop.xlane.xlu0 %141
  %v143 = vsel %vm36, %v125, 0.0
  %144 = vadd.xlane.f32.xlu0 %v143
  %v145 = vpop.xlane.xlu0 %144
  %v146 = vsel %vm36, %v126, 0.0
  %147 = vadd.xlane.f32.xlu0 %v146
  %v148 = vpop.xlane.xlu0 %147
  %v149 = vsel %vm36, %v127, 0.0
  %150 = vadd.xlane.f32.xlu0 %v149
  %v151 = vpop.xlane.xlu0 %150
  %v152 = vsel %vm36, %v128, 0.0
  %153 = vadd.xlane.f32.xlu0 %v152
  %v154 = vpop.xlane.xlu0 %153
  %v155 = vsel %vm36, %v129, 0.0
  %156 = vadd.xlane.f32.xlu0 %v155
  %v157 = vpop.xlane.xlu0 %156
  %v158 = vsel %vm36, %v130, 0.0
  %159 = vadd.xlane.f32.xlu0 %v158
  %v160 = vpop.xlane.xlu0 %159
  %v161 = vsel %vm36, %v131, 0.0
  %162 = vadd.xlane.f32.xlu0 %v161
  %v163 = vpop.xlane.xlu0 %162
  %v164 = vsel %vm36, %v132, 0.0
  %165 = vadd.xlane.f32.xlu0 %v164
  %v166 = vpop.xlane.xlu0 %165
  %v167 = vsel %vm36, %v133, 0.0
  %168 = vadd.xlane.f32.xlu0 %v167
  %v169 = vpop.xlane.xlu0 %168
  %v170 = vsel %vm36, %v134, 0.0
  %171 = vadd.xlane.f32.xlu0 %v170
  %v172 = vpop.xlane.xlu0 %171
  %v173 = vsel %vm36, %v135, 0.0
  %174 = vadd.xlane.f32.xlu0 %v173
  %v175 = vpop.xlane.xlu0 %174
  %v176 = vsel %vm36, %v136, 0.0
  %177 = vadd.xlane.f32.xlu0 %v176
  %v178 = vpop.xlane.xlu0 %177
  %v179 = vsel %vm36, %v137, 0.0
  %180 = vadd.xlane.f32.xlu0 %v179
  %v181 = vpop.xlane.xlu0 %180
  %v182 = vsel %vm36, %v138, 0.0
  %183 = vadd.xlane.f32.xlu0 %v182
  %v184 = vpop.xlane.xlu0 %183
  %v185 = vsel %vm36, %v139, 0.0
  %186 = vadd.xlane.f32.xlu0 %v185
  %v187 = vpop.xlane.xlu0 %186
  %v188 = vmul.f32 %v142, %v91
  %v189 = vmul.f32 %v145, %v91
  %v190 = vmul.f32 %v148, %v91
  %v191 = vmul.f32 %v151, %v91
  %v192 = vmul.f32 %v154, %v91
  %v193 = vmul.f32 %v157, %v91
  %v194 = vmul.f32 %v160, %v91
  %v195 = vmul.f32 %v163, %v91
  %v196 = vmul.f32 %v166, %v91
  %v197 = vmul.f32 %v169, %v91
  %v198 = vmul.f32 %v172, %v91
  %v199 = vmul.f32 %v175, %v91
  %v200 = vmul.f32 %v178, %v91
  %v201 = vmul.f32 %v181, %v91
  %v202 = vmul.f32 %v184, %v91
  %v203 = vmul.f32 %v187, %v91
  %v204 = vadd.f32 %v188, 1e-05
  %v205 = vadd.f32 %v189, 1e-05
  %v206 = vadd.f32 %v190, 1e-05
  %v207 = vadd.f32 %v191, 1e-05
  %v208 = vadd.f32 %v192, 1e-05
  %v209 = vadd.f32 %v193, 1e-05
  %v210 = vadd.f32 %v194, 1e-05
  %v211 = vadd.f32 %v195, 1e-05
  %v212 = vadd.f32 %v196, 1e-05
  %v213 = vadd.f32 %v197, 1e-05
  %v214 = vadd.f32 %v198, 1e-05
  %v215 = vadd.f32 %v199, 1e-05
  %v216 = vadd.f32 %v200, 1e-05
  %v217 = vadd.f32 %v201, 1e-05
  %v218 = vadd.f32 %v202, 1e-05
  %v219 = vadd.f32 %v203, 1e-05
  %v220 = vrsqrt.pop %v204
  %v221 = vmul.f32 %v220, %v204
  %v222 = vmul.f32 %v221, %v220
  %v223 = vmul.f32 0.5, %v222
  %v224 = vsub.f32 1.5, %v223
  %v225 = vmul.f32 %v220, %v224
  %vm226 = vweird.f32 %v204
  %vm227 = vweird.f32 %v220
  %vm228 = vmor %vm226, %vm227
  %v229 = vsel %vm228, %v220, %v225
  %v230 = vrsqrt.pop %v205
  %v231 = vmul.f32 %v230, %v205
  %v232 = vmul.f32 %v231, %v230
  %v233 = vmul.f32 0.5, %v232
  %v234 = vsub.f32 1.5, %v233
  %v235 = vmul.f32 %v230, %v234
  %vm236 = vweird.f32 %v205
  %vm237 = vweird.f32 %v230
  %vm238 = vmor %vm236, %vm237
  %v239 = vsel %vm238, %v230, %v235
  %v240 = vrsqrt.pop %v206
  %v241 = vmul.f32 %v240, %v206
  %v242 = vmul.f32 %v241, %v240
  %v243 = vmul.f32 0.5, %v242
  %v244 = vsub.f32 1.5, %v243
  %v245 = vmul.f32 %v240, %v244
  %vm246 = vweird.f32 %v206
  %vm247 = vweird.f32 %v240
  %vm248 = vmor %vm246, %vm247
  %v249 = vsel %vm248, %v240, %v245
  %v250 = vrsqrt.pop %v207
  %v251 = vmul.f32 %v250, %v207
  %v252 = vmul.f32 %v251, %v250
  %v253 = vmul.f32 0.5, %v252
  %v254 = vsub.f32 1.5, %v253
  %v255 = vmul.f32 %v250, %v254
  %vm256 = vweird.f32 %v207
  %vm257 = vweird.f32 %v250
  %vm258 = vmor %vm256, %vm257
  %v259 = vsel %vm258, %v250, %v255
  %v260 = vrsqrt.pop %v208
  %v261 = vmul.f32 %v260, %v208
  %v262 = vmul.f32 %v261, %v260
  %v263 = vmul.f32 0.5, %v262
  %v264 = vsub.f32 1.5, %v263
  %v265 = vmul.f32 %v260, %v264
  %vm266 = vweird.f32 %v208
  %vm267 = vweird.f32 %v260
  %vm268 = vmor %vm266, %vm267
  %v269 = vsel %vm268, %v260, %v265
  %v270 = vrsqrt.pop %v209
  %v271 = vmul.f32 %v270, %v209
  %v272 = vmul.f32 %v271, %v270
  %v273 = vmul.f32 0.5, %v272
  %v274 = vsub.f32 1.5, %v273
  %v275 = vmul.f32 %v270, %v274
  %vm276 = vweird.f32 %v209
  %vm277 = vweird.f32 %v270
  %vm278 = vmor %vm276, %vm277
  %v279 = vsel %vm278, %v270, %v275
  %v280 = vrsqrt.pop %v210
  %v281 = vmul.f32 %v280, %v210
  %v282 = vmul.f32 %v281, %v280
  %v283 = vmul.f32 0.5, %v282
  %v284 = vsub.f32 1.5, %v283
  %v285 = vmul.f32 %v280, %v284
  %vm286 = vweird.f32 %v210
  %vm287 = vweird.f32 %v280
  %vm288 = vmor %vm286, %vm287
  %v289 = vsel %vm288, %v280, %v285
  %v290 = vrsqrt.pop %v211
  %v291 = vmul.f32 %v290, %v211
  %v292 = vmul.f32 %v291, %v290
  %v293 = vmul.f32 0.5, %v292
  %v294 = vsub.f32 1.5, %v293
  %v295 = vmul.f32 %v290, %v294
  %vm296 = vweird.f32 %v211
  %vm297 = vweird.f32 %v290
  %vm298 = vmor %vm296, %vm297
  %v299 = vsel %vm298, %v290, %v295
  %v300 = vrsqrt.pop %v212
  %v301 = vmul.f32 %v300, %v212
  %v302 = vmul.f32 %v301, %v300
  %v303 = vmul.f32 0.5, %v302
  %v304 = vsub.f32 1.5, %v303
  %v305 = vmul.f32 %v300, %v304
  %vm306 = vweird.f32 %v212
  %vm307 = vweird.f32 %v300
  %vm308 = vmor %vm306, %vm307
  %v309 = vsel %vm308, %v300, %v305
  %v310 = vrsqrt.pop %v213
  %v311 = vmul.f32 %v310, %v213
  %v312 = vmul.f32 %v311, %v310
  %v313 = vmul.f32 0.5, %v312
  %v314 = vsub.f32 1.5, %v313
  %v315 = vmul.f32 %v310, %v314
  %vm316 = vweird.f32 %v213
  %vm317 = vweird.f32 %v310
  %vm318 = vmor %vm316, %vm317
  %v319 = vsel %vm318, %v310, %v315
  %v320 = vrsqrt.pop %v214
  %v321 = vmul.f32 %v320, %v214
  %v322 = vmul.f32 %v321, %v320
  %v323 = vmul.f32 0.5, %v322
  %v324 = vsub.f32 1.5, %v323
  %v325 = vmul.f32 %v320, %v324
  %vm326 = vweird.f32 %v214
  %vm327 = vweird.f32 %v320
  %vm328 = vmor %vm326, %vm327
  %v329 = vsel %vm328, %v320, %v325
  %v330 = vrsqrt.pop %v215
  %v331 = vmul.f32 %v330, %v215
  %v332 = vmul.f32 %v331, %v330
  %v333 = vmul.f32 0.5, %v332
  %v334 = vsub.f32 1.5, %v333
  %v335 = vmul.f32 %v330, %v334
  %vm336 = vweird.f32 %v215
  %vm337 = vweird.f32 %v330
  %vm338 = vmor %vm336, %vm337
  %v339 = vsel %vm338, %v330, %v335
  %v340 = vrsqrt.pop %v216
  %v341 = vmul.f32 %v340, %v216
  %v342 = vmul.f32 %v341, %v340
  %v343 = vmul.f32 0.5, %v342
  %v344 = vsub.f32 1.5, %v343
  %v345 = vmul.f32 %v340, %v344
  %vm346 = vweird.f32 %v216
  %vm347 = vweird.f32 %v340
  %vm348 = vmor %vm346, %vm347
  %v349 = vsel %vm348, %v340, %v345
  %v350 = vrsqrt.pop %v217
  %v351 = vmul.f32 %v350, %v217
  %v352 = vmul.f32 %v351, %v350
  %v353 = vmul.f32 0.5, %v352
  %v354 = vsub.f32 1.5, %v353
  %v355 = vmul.f32 %v350, %v354
  %vm356 = vweird.f32 %v217
  %vm357 = vweird.f32 %v350
  %vm358 = vmor %vm356, %vm357
  %v359 = vsel %vm358, %v350, %v355
  %v360 = vrsqrt.pop %v218
  %v361 = vmul.f32 %v360, %v218
  %v362 = vmul.f32 %v361, %v360
  %v363 = vmul.f32 0.5, %v362
  %v364 = vsub.f32 1.5, %v363
  %v365 = vmul.f32 %v360, %v364
  %vm366 = vweird.f32 %v218
  %vm367 = vweird.f32 %v360
  %vm368 = vmor %vm366, %vm367
  %v369 = vsel %vm368, %v360, %v365
  %v370 = vrsqrt.pop %v219
  %v371 = vmul.f32 %v370, %v219
  %v372 = vmul.f32 %v371, %v370
  %v373 = vmul.f32 0.5, %v372
  %v374 = vsub.f32 1.5, %v373
  %v375 = vmul.f32 %v370, %v374
  %vm376 = vweird.f32 %v219
  %vm377 = vweird.f32 %v370
  %vm378 = vmor %vm376, %vm377
  %v379 = vsel %vm378, %v370, %v375
  %v380 = vmul.f32 %v108, %v229
  %v381 = vmul.f32 %v109, %v239
  %v382 = vmul.f32 %v110, %v249
  %v383 = vmul.f32 %v111, %v259
  %v384 = vmul.f32 %v112, %v269
  %v385 = vmul.f32 %v113, %v279
  %v386 = vmul.f32 %v114, %v289
  %v387 = vmul.f32 %v115, %v299
  %v388 = vmul.f32 %v116, %v309
  %v389 = vmul.f32 %v117, %v319
  %v390 = vmul.f32 %v118, %v329
  %v391 = vmul.f32 %v119, %v339
  %v392 = vmul.f32 %v120, %v349
  %v393 = vmul.f32 %v121, %v359
  %v394 = vmul.f32 %v122, %v369
  %v395 = vmul.f32 %v123, %v379
  %v396 = vld [vmem:[%s1] sm:$0x1]
  %v398 = vperm.slane %v396, 0
  %v400 = vmul.f32 %v380, %v398
  %v401 = vmul.f32 %v381, %v398
  %v402 = vmul.f32 %v382, %v398
  %v403 = vmul.f32 %v383, %v398
  %v404 = vmul.f32 %v384, %v398
  %v405 = vmul.f32 %v385, %v398
  %v406 = vmul.f32 %v386, %v398
  %v407 = vmul.f32 %v387, %v398
  %v408 = vmul.f32 %v388, %v398
  %v409 = vmul.f32 %v389, %v398
  %v410 = vmul.f32 %v390, %v398
  %v411 = vmul.f32 %v391, %v398
  %v412 = vmul.f32 %v392, %v398
  %v413 = vmul.f32 %v393, %v398
  %v414 = vmul.f32 %v394, %v398
  %v415 = vmul.f32 %v395, %v398
  %v416 = vld [vmem:[%s2] sm:$0x1]
  %v418 = vperm.slane %v416, 0
  %v420 = vadd.f32 %v400, %v418
  %v421 = vadd.f32 %v401, %v418
  %v422 = vadd.f32 %v402, %v418
  %v423 = vadd.f32 %v403, %v418
  %v424 = vadd.f32 %v404, %v418
  %v425 = vadd.f32 %v405, %v418
  %v426 = vadd.f32 %v406, %v418
  %v427 = vadd.f32 %v407, %v418
  %v428 = vadd.f32 %v408, %v418
  %v429 = vadd.f32 %v409, %v418
  %v430 = vadd.f32 %v410, %v418
  %v431 = vadd.f32 %v411, %v418
  %v432 = vadd.f32 %v412, %v418
  %v433 = vadd.f32 %v413, %v418
  %v434 = vadd.f32 %v414, %v418
  %v435 = vadd.f32 %v415, %v418
  %v436 = vpack.c.bf16 %v421, %v420
  %v437 = vpack.c.bf16 %v423, %v422
  %v438 = vpack.c.bf16 %v425, %v424
  %v439 = vpack.c.bf16 %v427, %v426
  %v440 = vpack.c.bf16 %v429, %v428
  %v441 = vpack.c.bf16 %v431, %v430
  %v442 = vpack.c.bf16 %v433, %v432
  %v443 = vpack.c.bf16 %v435, %v434
  %v444 = vld [vmem:[%s3] sm:$0xf]
  %v445 = vld [vmem:[%s3 + $0x4] sm:$0xf]
  %v446 = vld [vmem:[%s3 + $0x8] sm:$0xf]
  %v447 = vld [vmem:[%s3 + $0xc] sm:$0xf]
  %v452 = vunpack.c.l.b16 %v444
  %v453 = vunpack.c.l.b16 %v445
  %v454 = vunpack.c.l.b16 %v446
  %v455 = vunpack.c.l.b16 %v447
  %v456 = vpack.c.b16 %v453, %v452
  %v457 = vpack.c.b16 %v455, %v454
  %v461 = vsel %vm36, %v436, 0
  %v464 = vsel %vm36, %v437, 0
  %v467 = vsel %vm36, %v438, 0
  %v470 = vsel %vm36, %v439, 0
  %v473 = vsel %vm36, %v440, 0
  %v476 = vsel %vm36, %v441, 0
  %v479 = vsel %vm36, %v442, 0
  %v482 = vsel %vm36, %v443, 0
  %484 = vmatpush.bf16.msra.mxu0 0
  %485 = vmatpush.bf16.msra.mxu0 0
  %486 = vmatpush.bf16.msra.mxu0 0
  %487 = vmatpush.bf16.msra.mxu0 0
  %488 = vmatpush.bf16.msra.mxu0 0
  %489 = vmatpush.bf16.msra.mxu0 0
  %490 = vmatpush.bf16.msra.mxu0 %v457
  %491 = vmatpush.bf16.msra.mxu0 %v456
  %492 = vmatmul.bf16.gmra.mxu0 %v461
  %v493 = vpop.f32.mrf.mxu0
  %v494 = vadd.f32 0.0, %v493
  %v495 = vpop.f32.mrf.mxu0
  %v496 = vadd.f32 0.0, %v495
  %497 = vmatmul.bf16.gmra.mxu0 %v464
  %v498 = vpop.f32.mrf.mxu0
  %v499 = vadd.f32 0.0, %v498
  %v500 = vpop.f32.mrf.mxu0
  %v501 = vadd.f32 0.0, %v500
  %502 = vmatmul.bf16.gmra.mxu0 %v467
  %v503 = vpop.f32.mrf.mxu0
  %v504 = vadd.f32 0.0, %v503
  %v505 = vpop.f32.mrf.mxu0
  %v506 = vadd.f32 0.0, %v505
  %507 = vmatmul.bf16.gmra.mxu0 %v470
  %v508 = vpop.f32.mrf.mxu0
  %v509 = vadd.f32 0.0, %v508
  %v510 = vpop.f32.mrf.mxu0
  %v511 = vadd.f32 0.0, %v510
  %512 = vmatmul.bf16.gmra.mxu0 %v473
  %v513 = vpop.f32.mrf.mxu0
  %v514 = vadd.f32 0.0, %v513
  %v515 = vpop.f32.mrf.mxu0
  %v516 = vadd.f32 0.0, %v515
  %517 = vmatmul.bf16.gmra.mxu0 %v476
  %v518 = vpop.f32.mrf.mxu0
  %v519 = vadd.f32 0.0, %v518
  %v520 = vpop.f32.mrf.mxu0
  %v521 = vadd.f32 0.0, %v520
  %522 = vmatmul.bf16.gmra.mxu0 %v479
  %v523 = vpop.f32.mrf.mxu0
  %v524 = vadd.f32 0.0, %v523
  %v525 = vpop.f32.mrf.mxu0
  %v526 = vadd.f32 0.0, %v525
  %527 = vmatmul.bf16.gmra.mxu0 %v482
  %v528 = vpop.f32.mrf.mxu0
  %v529 = vadd.f32 0.0, %v528
  %v530 = vpop.f32.mrf.mxu0
  %v531 = vadd.f32 0.0, %v530
  %532 = vdwg.mxu0
  %vm533 = vcmask 523264
  %534 = vst.msk [vmem:[%s4] sm:$0xff] %vm533, %v494
  %535 = vst.msk [vmem:[%s4 + $0x8] sm:$0xff] %vm533, %v496
  %536 = vst.msk [vmem:[%s4 + $0x10] sm:$0xff] %vm533, %v499
  %537 = vst.msk [vmem:[%s4 + $0x18] sm:$0xff] %vm533, %v501
  %538 = vst.msk [vmem:[%s4 + $0x20] sm:$0xff] %vm533, %v504
  %539 = vst.msk [vmem:[%s4 + $0x28] sm:$0xff] %vm533, %v506
  %540 = vst.msk [vmem:[%s4 + $0x30] sm:$0xff] %vm533, %v509
  %541 = vst.msk [vmem:[%s4 + $0x38] sm:$0xff] %vm533, %v511
  %542 = vst.msk [vmem:[%s4 + $0x40] sm:$0xff] %vm533, %v514
  %543 = vst.msk [vmem:[%s4 + $0x48] sm:$0xff] %vm533, %v516
  %544 = vst.msk [vmem:[%s4 + $0x50] sm:$0xff] %vm533, %v519
  %545 = vst.msk [vmem:[%s4 + $0x58] sm:$0xff] %vm533, %v521
  %546 = vst.msk [vmem:[%s4 + $0x60] sm:$0xff] %vm533, %v524
  %547 = vst.msk [vmem:[%s4 + $0x68] sm:$0xff] %vm533, %v526
  %548 = vst.msk [vmem:[%s4 + $0x70] sm:$0xff] %vm533, %v529
  %549 = vst.msk [vmem:[%s4 + $0x78] sm:$0xff] %vm533, %v531
  %566 = vrot.lane.b32.xlu0 %v494, 64
  %v567 = vpop.permute.xlu0 %566
  %568 = vrot.lane.b32.xlu0 %v496, 64
  %v569 = vpop.permute.xlu0 %568
  %570 = vrot.lane.b32.xlu0 %v499, 64
  %v571 = vpop.permute.xlu0 %570
  %572 = vrot.lane.b32.xlu0 %v501, 64
  %v573 = vpop.permute.xlu0 %572
  %574 = vrot.lane.b32.xlu0 %v504, 64
  %v575 = vpop.permute.xlu0 %574
  %576 = vrot.lane.b32.xlu0 %v506, 64
  %v577 = vpop.permute.xlu0 %576
  %578 = vrot.lane.b32.xlu0 %v509, 64
  %v579 = vpop.permute.xlu0 %578
  %580 = vrot.lane.b32.xlu0 %v511, 64
  %v581 = vpop.permute.xlu0 %580
  %582 = vrot.lane.b32.xlu0 %v514, 64
  %v583 = vpop.permute.xlu0 %582
  %584 = vrot.lane.b32.xlu0 %v516, 64
  %v585 = vpop.permute.xlu0 %584
  %586 = vrot.lane.b32.xlu0 %v519, 64
  %v587 = vpop.permute.xlu0 %586
  %588 = vrot.lane.b32.xlu0 %v521, 64
  %v589 = vpop.permute.xlu0 %588
  %590 = vrot.lane.b32.xlu0 %v524, 64
  %v591 = vpop.permute.xlu0 %590
  %592 = vrot.lane.b32.xlu0 %v526, 64
  %v593 = vpop.permute.xlu0 %592
  %594 = vrot.lane.b32.xlu0 %v529, 64
  %v595 = vpop.permute.xlu0 %594
  %596 = vrot.lane.b32.xlu0 %v531, 64
  %v597 = vpop.permute.xlu0 %596
  %614 = vst.msk [vmem:[%s5] sm:$0xff] %vm533, %v567
  %615 = vst.msk [vmem:[%s5 + $0x8] sm:$0xff] %vm533, %v569
  %616 = vst.msk [vmem:[%s5 + $0x10] sm:$0xff] %vm533, %v571
  %617 = vst.msk [vmem:[%s5 + $0x18] sm:$0xff] %vm533, %v573
  %618 = vst.msk [vmem:[%s5 + $0x20] sm:$0xff] %vm533, %v575
  %619 = vst.msk [vmem:[%s5 + $0x28] sm:$0xff] %vm533, %v577
  %620 = vst.msk [vmem:[%s5 + $0x30] sm:$0xff] %vm533, %v579
  %621 = vst.msk [vmem:[%s5 + $0x38] sm:$0xff] %vm533, %v581
  %622 = vst.msk [vmem:[%s5 + $0x40] sm:$0xff] %vm533, %v583
  %623 = vst.msk [vmem:[%s5 + $0x48] sm:$0xff] %vm533, %v585
  %624 = vst.msk [vmem:[%s5 + $0x50] sm:$0xff] %vm533, %v587
  %625 = vst.msk [vmem:[%s5 + $0x58] sm:$0xff] %vm533, %v589
  %626 = vst.msk [vmem:[%s5 + $0x60] sm:$0xff] %vm533, %v591
  %627 = vst.msk [vmem:[%s5 + $0x68] sm:$0xff] %vm533, %v593
  %628 = vst.msk [vmem:[%s5 + $0x70] sm:$0xff] %vm533, %v595
  %629 = vst.msk [vmem:[%s5 + $0x78] sm:$0xff] %vm533, %v597
  // Predicated region
  $region18: #{_lambda_.10} parent=0 // pred_check
    _
  $region19: #{_lambda_.10} parent=0 // pred_check_branch
    %631 = sbr.rel (0) target = $region21
  $region20: #{_lambda_.10} parent=0 // pred_region
    _
  $region21: #{_lambda_.10} parent=0 // pred_fallthru
    _
  // Predicated region
  $region22: #{_lambda_.10} parent=0 // pred_check
    _
  $region23: #{_lambda_.10} parent=0 // pred_check_branch
    %633 = sbr.rel (0) target = $region25
  $region24: #{_lambda_.10} parent=0 // pred_region
    _
  $region25: #{_lambda_.10} parent=0 // pred_fallthru
    _
  // Predicated region
  $region26: #{_lambda_.10} parent=0 // pred_check
    _
  $region27: #{_lambda_.10} parent=0 // pred_check_branch
    %635 = sbr.rel (0) target = $region29
  $region28: #{_lambda_.10} parent=0 // pred_region
    _
  $region29: #{_lambda_.10} parent=0 // pred_fallthru
    _
  // Predicated region
  $region30: #{_lambda_.10} parent=0 // pred_check
    _
  $region31: #{_lambda_.10} parent=0 // pred_check_branch
    %637 = sbr.rel (0) target = $region33
  $region32: #{_lambda_.10} parent=0 // pred_region
    _
  $region33: #{_lambda_.10} parent=0 // pred_fallthru
    _

// kernel: _lambda_.13
$region0: #{_lambda_.13}
  #allocation0 [shape = 'u32[]', space=smem, size = 0x4, offset = 0x4, fixed_abs, tag = 'smem constant byte address 0x4 - core index']
  #allocation1 [shape = 'u32[72,128]{1,0:T(1,128)}', space=vmem, size = 0x9000, scoped, tag = 'internal scratch']
  %s0 = inlined_call_operand.vmem [shape: f32[128,64], index: 0, kind: input, shape index: {}]
  %s1 = inlined_call_operand.vmem [shape: f32[128,64], index: 1, kind: input, shape index: {}]
  %s2 = inlined_call_operand.vmem [shape: f32[128,32], index: 2, kind: input, shape index: {}]
  %s3 = inlined_call_operand.vmem [shape: f32[1,64], index: 3, kind: input, shape index: {}]
  %s4 = inlined_call_operand.vmem [shape: f32[1,64], index: 4, kind: input, shape index: {}]
  %s5 = inlined_call_operand.vmem [shape: bf16[64,32], index: 5, kind: input, shape index: {}]
  %s6 = inlined_call_operand.vmem [shape: f32[1,32], index: 6, kind: input, shape index: {}, may-alias: {6,7}]
  %s7 = inlined_call_operand.vmem [shape: f32[1,32], index: 7, kind: input, shape index: {}, may-alias: {6,7}]
  %s8 = inlined_call_operand.vmem [shape: f32[1,32], index: 8, kind: input, shape index: {}]
  %s9 = inlined_call_operand.vmem [shape: f32[128,32], index: 9, kind: output, shape index: {0}]
  %s10 = inlined_call_operand.vmem [shape: f32[128,32], index: 10, kind: output, shape index: {1}]
  %11 = xla_tuple %s9, %s10
  %s12 = sld [smem:[#allocation0]]
  $region54: #{_lambda_.13} parent=0
    _
  %s14 = ssub.s32 1, %s12
  %s15 = scalar_select 0, %s14, %s12
  // Predicated region
  $region2: #{_lambda_.13} parent=0 // pred_check
    _
  $region3: #{_lambda_.13} parent=0 // pred_check_branch
    %17 = sbr.rel (0) target = $region5
  $region4: #{_lambda_.13} parent=0 // pred_region
    _
  $region5: #{_lambda_.13} parent=0 // pred_fallthru
    _
  // Predicated region
  $region6: #{_lambda_.13} parent=0 // pred_check
    _
  $region7: #{_lambda_.13} parent=0 // pred_check_branch
    %19 = sbr.rel (0) target = $region9
  $region8: #{_lambda_.13} parent=0 // pred_region
    _
  $region9: #{_lambda_.13} parent=0 // pred_fallthru
    _
  // Predicated region
  $region10: #{_lambda_.13} parent=0 // pred_check
    _
  $region11: #{_lambda_.13} parent=0 // pred_check_branch
    %21 = sbr.rel (0) target = $region13
  $region12: #{_lambda_.13} parent=0 // pred_region
    _
  $region13: #{_lambda_.13} parent=0 // pred_fallthru
    _
  // Predicated region
  $region14: #{_lambda_.13} parent=0 // pred_check
    _
  $region15: #{_lambda_.13} parent=0 // pred_check_branch
    %23 = sbr.rel (0) target = $region17
  $region16: #{_lambda_.13} parent=0 // pred_region
    _
  $region17: #{_lambda_.13} parent=0 // pred_fallthru
    _
  // Predicated region
  $region18: #{_lambda_.13} parent=0 // pred_check
    _
  $region19: #{_lambda_.13} parent=0 // pred_check_branch
    %25 = sbr.rel (0) target = $region21
  $region20: #{_lambda_.13} parent=0 // pred_region
    _
  $region21: #{_lambda_.13} parent=0 // pred_fallthru
    _
  // Predicated region
  $region22: #{_lambda_.13} parent=0 // pred_check
    _
  $region23: #{_lambda_.13} parent=0 // pred_check_branch
    %27 = sbr.rel (0) target = $region25
  $region24: #{_lambda_.13} parent=0 // pred_region
    _
  $region25: #{_lambda_.13} parent=0 // pred_fallthru
    _
  // Predicated region
  $region26: #{_lambda_.13} parent=0 // pred_check
    _
  $region27: #{_lambda_.13} parent=0 // pred_check_branch
    %29 = sbr.rel (0) target = $region29
  $region28: #{_lambda_.13} parent=0 // pred_region
    _
  $region29: #{_lambda_.13} parent=0 // pred_fallthru
    _
  // Predicated region
  $region30: #{_lambda_.13} parent=0 // pred_check
    _
  $region31: #{_lambda_.13} parent=0 // pred_check_branch
    %31 = sbr.rel (0) target = $region33
  $region32: #{_lambda_.13} parent=0 // pred_region
    _
  $region33: #{_lambda_.13} parent=0 // pred_fallthru
    _
  // Predicated region
  $region34: #{_lambda_.13} parent=0 // pred_check
    _
  $region35: #{_lambda_.13} parent=0 // pred_check_branch
    %33 = sbr.rel (0) target = $region37
  $region36: #{_lambda_.13} parent=0 // pred_region
    _
  $region37: #{_lambda_.13} parent=0 // pred_fallthru
    _
  %v35 = vld [vmem:[%s0] sm:$0xff]
  %v36 = vld [vmem:[%s0 + $0x8] sm:$0xff]
  %v37 = vld [vmem:[%s0 + $0x10] sm:$0xff]
  %v38 = vld [vmem:[%s0 + $0x18] sm:$0xff]
  %v39 = vld [vmem:[%s0 + $0x20] sm:$0xff]
  %v40 = vld [vmem:[%s0 + $0x28] sm:$0xff]
  %v41 = vld [vmem:[%s0 + $0x30] sm:$0xff]
  %v42 = vld [vmem:[%s0 + $0x38] sm:$0xff]
  %v43 = vld [vmem:[%s0 + $0x40] sm:$0xff]
  %v44 = vld [vmem:[%s0 + $0x48] sm:$0xff]
  %v45 = vld [vmem:[%s0 + $0x50] sm:$0xff]
  %v46 = vld [vmem:[%s0 + $0x58] sm:$0xff]
  %v47 = vld [vmem:[%s0 + $0x60] sm:$0xff]
  %v48 = vld [vmem:[%s0 + $0x68] sm:$0xff]
  %v49 = vld [vmem:[%s0 + $0x70] sm:$0xff]
  %v50 = vld [vmem:[%s0 + $0x78] sm:$0xff]
  %vm51 = vcmask 523264
  %v52 = vsel %vm51, %v35, 0.0
  %53 = vadd.xlane.f32.xlu0 %v52
  %v54 = vpop.xlane.xlu0 %53
  %v55 = vsel %vm51, %v36, 0.0
  %56 = vadd.xlane.f32.xlu0 %v55
  %v57 = vpop.xlane.xlu0 %56
  %v58 = vsel %vm51, %v37, 0.0
  %59 = vadd.xlane.f32.xlu0 %v58
  %v60 = vpop.xlane.xlu0 %59
  %v61 = vsel %vm51, %v38, 0.0
  %62 = vadd.xlane.f32.xlu0 %v61
  %v63 = vpop.xlane.xlu0 %62
  %v64 = vsel %vm51, %v39, 0.0
  %65 = vadd.xlane.f32.xlu0 %v64
  %v66 = vpop.xlane.xlu0 %65
  %v67 = vsel %vm51, %v40, 0.0
  %68 = vadd.xlane.f32.xlu0 %v67
  %v69 = vpop.xlane.xlu0 %68
  %v70 = vsel %vm51, %v41, 0.0
  %71 = vadd.xlane.f32.xlu0 %v70
  %v72 = vpop.xlane.xlu0 %71
  %v73 = vsel %vm51, %v42, 0.0
  %74 = vadd.xlane.f32.xlu0 %v73
  %v75 = vpop.xlane.xlu0 %74
  %v76 = vsel %vm51, %v43, 0.0
  %77 = vadd.xlane.f32.xlu0 %v76
  %v78 = vpop.xlane.xlu0 %77
  %v79 = vsel %vm51, %v44, 0.0
  %80 = vadd.xlane.f32.xlu0 %v79
  %v81 = vpop.xlane.xlu0 %80
  %v82 = vsel %vm51, %v45, 0.0
  %83 = vadd.xlane.f32.xlu0 %v82
  %v84 = vpop.xlane.xlu0 %83
  %v85 = vsel %vm51, %v46, 0.0
  %86 = vadd.xlane.f32.xlu0 %v85
  %v87 = vpop.xlane.xlu0 %86
  %v88 = vsel %vm51, %v47, 0.0
  %89 = vadd.xlane.f32.xlu0 %v88
  %v90 = vpop.xlane.xlu0 %89
  %v91 = vsel %vm51, %v48, 0.0
  %92 = vadd.xlane.f32.xlu0 %v91
  %v93 = vpop.xlane.xlu0 %92
  %v94 = vsel %vm51, %v49, 0.0
  %95 = vadd.xlane.f32.xlu0 %v94
  %v96 = vpop.xlane.xlu0 %95
  %v97 = vsel %vm51, %v50, 0.0
  %98 = vadd.xlane.f32.xlu0 %v97
  %v99 = vpop.xlane.xlu0 %98
  %v100 = vrcp.pop 64.0
  %v101 = vmul.f32 64.0, %v100
  %v102 = vsub.f32 1.0, %v101
  %v103 = vmul.f32 %v100, %v102
  %v104 = vadd.f32 %v100, %v103
  %vm105 = vweird.f32 %v100
  %v106 = vsel %vm105, %v100, %v104
  %v107 = vmul.f32 %v54, %v106
  %v108 = vmul.f32 %v57, %v106
  %v109 = vmul.f32 %v60, %v106
  %v110 = vmul.f32 %v63, %v106
  %v111 = vmul.f32 %v66, %v106
  %v112 = vmul.f32 %v69, %v106
  %v113 = vmul.f32 %v72, %v106
  %v114 = vmul.f32 %v75, %v106
  %v115 = vmul.f32 %v78, %v106
  %v116 = vmul.f32 %v81, %v106
  %v117 = vmul.f32 %v84, %v106
  %v118 = vmul.f32 %v87, %v106
  %v119 = vmul.f32 %v90, %v106
  %v120 = vmul.f32 %v93, %v106
  %v121 = vmul.f32 %v96, %v106
  %v122 = vmul.f32 %v99, %v106
  %v123 = vsub.f32 %v35, %v107
  %v124 = vsub.f32 %v36, %v108
  %v125 = vsub.f32 %v37, %v109
  %v126 = vsub.f32 %v38, %v110
  %v127 = vsub.f32 %v39, %v111
  %v128 = vsub.f32 %v40, %v112
  %v129 = vsub.f32 %v41, %v113
  %v130 = vsub.f32 %v42, %v114
  %v131 = vsub.f32 %v43, %v115
  %v132 = vsub.f32 %v44, %v116
  %v133 = vsub.f32 %v45, %v117
  %v134 = vsub.f32 %v46, %v118
  %v135 = vsub.f32 %v47, %v119
  %v136 = vsub.f32 %v48, %v120
  %v137 = vsub.f32 %v49, %v121
  %v138 = vsub.f32 %v50, %v122
  %v139 = vmul.f32 %v123, %v123
  %v140 = vmul.f32 %v124, %v124
  %v141 = vmul.f32 %v125, %v125
  %v142 = vmul.f32 %v126, %v126
  %v143 = vmul.f32 %v127, %v127
  %v144 = vmul.f32 %v128, %v128
  %v145 = vmul.f32 %v129, %v129
  %v146 = vmul.f32 %v130, %v130
  %v147 = vmul.f32 %v131, %v131
  %v148 = vmul.f32 %v132, %v132
  %v149 = vmul.f32 %v133, %v133
  %v150 = vmul.f32 %v134, %v134
  %v151 = vmul.f32 %v135, %v135
  %v152 = vmul.f32 %v136, %v136
  %v153 = vmul.f32 %v137, %v137
  %v154 = vmul.f32 %v138, %v138
  %v155 = vsel %vm51, %v139, 0.0
  %156 = vadd.xlane.f32.xlu0 %v155
  %v157 = vpop.xlane.xlu0 %156
  %v158 = vsel %vm51, %v140, 0.0
  %159 = vadd.xlane.f32.xlu0 %v158
  %v160 = vpop.xlane.xlu0 %159
  %v161 = vsel %vm51, %v141, 0.0
  %162 = vadd.xlane.f32.xlu0 %v161
  %v163 = vpop.xlane.xlu0 %162
  %v164 = vsel %vm51, %v142, 0.0
  %165 = vadd.xlane.f32.xlu0 %v164
  %v166 = vpop.xlane.xlu0 %165
  %v167 = vsel %vm51, %v143, 0.0
  %168 = vadd.xlane.f32.xlu0 %v167
  %v169 = vpop.xlane.xlu0 %168
  %v170 = vsel %vm51, %v144, 0.0
  %171 = vadd.xlane.f32.xlu0 %v170
  %v172 = vpop.xlane.xlu0 %171
  %v173 = vsel %vm51, %v145, 0.0
  %174 = vadd.xlane.f32.xlu0 %v173
  %v175 = vpop.xlane.xlu0 %174
  %v176 = vsel %vm51, %v146, 0.0
  %177 = vadd.xlane.f32.xlu0 %v176
  %v178 = vpop.xlane.xlu0 %177
  %v179 = vsel %vm51, %v147, 0.0
  %180 = vadd.xlane.f32.xlu0 %v179
  %v181 = vpop.xlane.xlu0 %180
  %v182 = vsel %vm51, %v148, 0.0
  %183 = vadd.xlane.f32.xlu0 %v182
  %v184 = vpop.xlane.xlu0 %183
  %v185 = vsel %vm51, %v149, 0.0
  %186 = vadd.xlane.f32.xlu0 %v185
  %v187 = vpop.xlane.xlu0 %186
  %v188 = vsel %vm51, %v150, 0.0
  %189 = vadd.xlane.f32.xlu0 %v188
  %v190 = vpop.xlane.xlu0 %189
  %v191 = vsel %vm51, %v151, 0.0
  %192 = vadd.xlane.f32.xlu0 %v191
  %v193 = vpop.xlane.xlu0 %192
  %v194 = vsel %vm51, %v152, 0.0
  %195 = vadd.xlane.f32.xlu0 %v194
  %v196 = vpop.xlane.xlu0 %195
  %v197 = vsel %vm51, %v153, 0.0
  %198 = vadd.xlane.f32.xlu0 %v197
  %v199 = vpop.xlane.xlu0 %198
  %v200 = vsel %vm51, %v154, 0.0
  %201 = vadd.xlane.f32.xlu0 %v200
  %v202 = vpop.xlane.xlu0 %201
  %v203 = vmul.f32 %v157, %v106
  %v204 = vmul.f32 %v160, %v106
  %v205 = vmul.f32 %v163, %v106
  %v206 = vmul.f32 %v166, %v106
  %v207 = vmul.f32 %v169, %v106
  %v208 = vmul.f32 %v172, %v106
  %v209 = vmul.f32 %v175, %v106
  %v210 = vmul.f32 %v178, %v106
  %v211 = vmul.f32 %v181, %v106
  %v212 = vmul.f32 %v184, %v106
  %v213 = vmul.f32 %v187, %v106
  %v214 = vmul.f32 %v190, %v106
  %v215 = vmul.f32 %v193, %v106
  %v216 = vmul.f32 %v196, %v106
  %v217 = vmul.f32 %v199, %v106
  %v218 = vmul.f32 %v202, %v106
  %v219 = vadd.f32 %v203, 1e-05
  %v220 = vadd.f32 %v204, 1e-05
  %v221 = vadd.f32 %v205, 1e-05
  %v222 = vadd.f32 %v206, 1e-05
  %v223 = vadd.f32 %v207, 1e-05
  %v224 = vadd.f32 %v208, 1e-05
  %v225 = vadd.f32 %v209, 1e-05
  %v226 = vadd.f32 %v210, 1e-05
  %v227 = vadd.f32 %v211, 1e-05
  %v228 = vadd.f32 %v212, 1e-05
  %v229 = vadd.f32 %v213, 1e-05
  %v230 = vadd.f32 %v214, 1e-05
  %v231 = vadd.f32 %v215, 1e-05
  %v232 = vadd.f32 %v216, 1e-05
  %v233 = vadd.f32 %v217, 1e-05
  %v234 = vadd.f32 %v218, 1e-05
  %v235 = vrsqrt.pop %v219
  %v236 = vmul.f32 %v235, %v219
  %v237 = vmul.f32 %v236, %v235
  %v238 = vmul.f32 0.5, %v237
  %v239 = vsub.f32 1.5, %v238
  %v240 = vmul.f32 %v235, %v239
  %vm241 = vweird.f32 %v219
  %vm242 = vweird.f32 %v235
  %vm243 = vmor %vm241, %vm242
  %v244 = vsel %vm243, %v235, %v240
  %v245 = vrsqrt.pop %v220
  %v246 = vmul.f32 %v245, %v220
  %v247 = vmul.f32 %v246, %v245
  %v248 = vmul.f32 0.5, %v247
  %v249 = vsub.f32 1.5, %v248
  %v250 = vmul.f32 %v245, %v249
  %vm251 = vweird.f32 %v220
  %vm252 = vweird.f32 %v245
  %vm253 = vmor %vm251, %vm252
  %v254 = vsel %vm253, %v245, %v250
  %v255 = vrsqrt.pop %v221
  %v256 = vmul.f32 %v255, %v221
  %v257 = vmul.f32 %v256, %v255
  %v258 = vmul.f32 0.5, %v257
  %v259 = vsub.f32 1.5, %v258
  %v260 = vmul.f32 %v255, %v259
  %vm261 = vweird.f32 %v221
  %vm262 = vweird.f32 %v255
  %vm263 = vmor %vm261, %vm262
  %v264 = vsel %vm263, %v255, %v260
  %v265 = vrsqrt.pop %v222
  %v266 = vmul.f32 %v265, %v222
  %v267 = vmul.f32 %v266, %v265
  %v268 = vmul.f32 0.5, %v267
  %v269 = vsub.f32 1.5, %v268
  %v270 = vmul.f32 %v265, %v269
  %vm271 = vweird.f32 %v222
  %vm272 = vweird.f32 %v265
  %vm273 = vmor %vm271, %vm272
  %v274 = vsel %vm273, %v265, %v270
  %v275 = vrsqrt.pop %v223
  %v276 = vmul.f32 %v275, %v223
  %v277 = vmul.f32 %v276, %v275
  %v278 = vmul.f32 0.5, %v277
  %v279 = vsub.f32 1.5, %v278
  %v280 = vmul.f32 %v275, %v279
  %vm281 = vweird.f32 %v223
  %vm282 = vweird.f32 %v275
  %vm283 = vmor %vm281, %vm282
  %v284 = vsel %vm283, %v275, %v280
  %v285 = vrsqrt.pop %v224
  %v286 = vmul.f32 %v285, %v224
  %v287 = vmul.f32 %v286, %v285
  %v288 = vmul.f32 0.5, %v287
  %v289 = vsub.f32 1.5, %v288
  %v290 = vmul.f32 %v285, %v289
  %vm291 = vweird.f32 %v224
  %vm292 = vweird.f32 %v285
  %vm293 = vmor %vm291, %vm292
  %v294 = vsel %vm293, %v285, %v290
  %v295 = vrsqrt.pop %v225
  %v296 = vmul.f32 %v295, %v225
  %v297 = vmul.f32 %v296, %v295
  %v298 = vmul.f32 0.5, %v297
  %v299 = vsub.f32 1.5, %v298
  %v300 = vmul.f32 %v295, %v299
  %vm301 = vweird.f32 %v225
  %vm302 = vweird.f32 %v295
  %vm303 = vmor %vm301, %vm302
  %v304 = vsel %vm303, %v295, %v300
  %v305 = vrsqrt.pop %v226
  %v306 = vmul.f32 %v305, %v226
  %v307 = vmul.f32 %v306, %v305
  %v308 = vmul.f32 0.5, %v307
  %v309 = vsub.f32 1.5, %v308
  %v310 = vmul.f32 %v305, %v309
  %vm311 = vweird.f32 %v226
  %vm312 = vweird.f32 %v305
  %vm313 = vmor %vm311, %vm312
  %v314 = vsel %vm313, %v305, %v310
  %v315 = vrsqrt.pop %v227
  %v316 = vmul.f32 %v315, %v227
  %v317 = vmul.f32 %v316, %v315
  %v318 = vmul.f32 0.5, %v317
  %v319 = vsub.f32 1.5, %v318
  %v320 = vmul.f32 %v315, %v319
  %vm321 = vweird.f32 %v227
  %vm322 = vweird.f32 %v315
  %vm323 = vmor %vm321, %vm322
  %v324 = vsel %vm323, %v315, %v320
  %v325 = vrsqrt.pop %v228
  %v326 = vmul.f32 %v325, %v228
  %v327 = vmul.f32 %v326, %v325
  %v328 = vmul.f32 0.5, %v327
  %v329 = vsub.f32 1.5, %v328
  %v330 = vmul.f32 %v325, %v329
  %vm331 = vweird.f32 %v228
  %vm332 = vweird.f32 %v325
  %vm333 = vmor %vm331, %vm332
  %v334 = vsel %vm333, %v325, %v330
  %v335 = vrsqrt.pop %v229
  %v336 = vmul.f32 %v335, %v229
  %v337 = vmul.f32 %v336, %v335
  %v338 = vmul.f32 0.5, %v337
  %v339 = vsub.f32 1.5, %v338
  %v340 = vmul.f32 %v335, %v339
  %vm341 = vweird.f32 %v229
  %vm342 = vweird.f32 %v335
  %vm343 = vmor %vm341, %vm342
  %v344 = vsel %vm343, %v335, %v340
  %v345 = vrsqrt.pop %v230
  %v346 = vmul.f32 %v345, %v230
  %v347 = vmul.f32 %v346, %v345
  %v348 = vmul.f32 0.5, %v347
  %v349 = vsub.f32 1.5, %v348
  %v350 = vmul.f32 %v345, %v349
  %vm351 = vweird.f32 %v230
  %vm352 = vweird.f32 %v345
  %vm353 = vmor %vm351, %vm352
  %v354 = vsel %vm353, %v345, %v350
  %v355 = vrsqrt.pop %v231
  %v356 = vmul.f32 %v355, %v231
  %v357 = vmul.f32 %v356, %v355
  %v358 = vmul.f32 0.5, %v357
  %v359 = vsub.f32 1.5, %v358
  %v360 = vmul.f32 %v355, %v359
  %vm361 = vweird.f32 %v231
  %vm362 = vweird.f32 %v355
  %vm363 = vmor %vm361, %vm362
  %v364 = vsel %vm363, %v355, %v360
  %v365 = vrsqrt.pop %v232
  %v366 = vmul.f32 %v365, %v232
  %v367 = vmul.f32 %v366, %v365
  %v368 = vmul.f32 0.5, %v367
  %v369 = vsub.f32 1.5, %v368
  %v370 = vmul.f32 %v365, %v369
  %vm371 = vweird.f32 %v232
  %vm372 = vweird.f32 %v365
  %vm373 = vmor %vm371, %vm372
  %v374 = vsel %vm373, %v365, %v370
  %v375 = vrsqrt.pop %v233
  %v376 = vmul.f32 %v375, %v233
  %v377 = vmul.f32 %v376, %v375
  %v378 = vmul.f32 0.5, %v377
  %v379 = vsub.f32 1.5, %v378
  %v380 = vmul.f32 %v375, %v379
  %vm381 = vweird.f32 %v233
  %vm382 = vweird.f32 %v375
  %vm383 = vmor %vm381, %vm382
  %v384 = vsel %vm383, %v375, %v380
  %v385 = vrsqrt.pop %v234
  %v386 = vmul.f32 %v385, %v234
  %v387 = vmul.f32 %v386, %v385
  %v388 = vmul.f32 0.5, %v387
  %v389 = vsub.f32 1.5, %v388
  %v390 = vmul.f32 %v385, %v389
  %vm391 = vweird.f32 %v234
  %vm392 = vweird.f32 %v385
  %vm393 = vmor %vm391, %vm392
  %v394 = vsel %vm393, %v385, %v390
  %v395 = vmul.f32 %v123, %v244
  %v396 = vmul.f32 %v124, %v254
  %v397 = vmul.f32 %v125, %v264
  %v398 = vmul.f32 %v126, %v274
  %v399 = vmul.f32 %v127, %v284
  %v400 = vmul.f32 %v128, %v294
  %v401 = vmul.f32 %v129, %v304
  %v402 = vmul.f32 %v130, %v314
  %v403 = vmul.f32 %v131, %v324
  %v404 = vmul.f32 %v132, %v334
  %v405 = vmul.f32 %v133, %v344
  %v406 = vmul.f32 %v134, %v354
  %v407 = vmul.f32 %v135, %v364
  %v408 = vmul.f32 %v136, %v374
  %v409 = vmul.f32 %v137, %v384
  %v410 = vmul.f32 %v138, %v394
  %v411 = vld [vmem:[%s3] sm:$0x1]
  %v413 = vperm.slane %v411, 0
  %v415 = vmul.f32 %v395, %v413
  %v416 = vmul.f32 %v396, %v413
  %v417 = vmul.f32 %v397, %v413
  %v418 = vmul.f32 %v398, %v413
  %v419 = vmul.f32 %v399, %v413
  %v420 = vmul.f32 %v400, %v413
  %v421 = vmul.f32 %v401, %v413
  %v422 = vmul.f32 %v402, %v413
  %v423 = vmul.f32 %v403, %v413
  %v424 = vmul.f32 %v404, %v413
  %v425 = vmul.f32 %v405, %v413
  %v426 = vmul.f32 %v406, %v413
  %v427 = vmul.f32 %v407, %v413
  %v428 = vmul.f32 %v408, %v413
  %v429 = vmul.f32 %v409, %v413
  %v430 = vmul.f32 %v410, %v413
  %v431 = vld [vmem:[%s4] sm:$0x1]
  %v433 = vperm.slane %v431, 0
  %v435 = vadd.f32 %v415, %v433
  %v436 = vadd.f32 %v416, %v433
  %v437 = vadd.f32 %v417, %v433
  %v438 = vadd.f32 %v418, %v433
  %v439 = vadd.f32 %v419, %v433
  %v440 = vadd.f32 %v420, %v433
  %v441 = vadd.f32 %v421, %v433
  %v442 = vadd.f32 %v422, %v433
  %v443 = vadd.f32 %v423, %v433
  %v444 = vadd.f32 %v424, %v433
  %v445 = vadd.f32 %v425, %v433
  %v446 = vadd.f32 %v426, %v433
  %v447 = vadd.f32 %v427, %v433
  %v448 = vadd.f32 %v428, %v433
  %v449 = vadd.f32 %v429, %v433
  %v450 = vadd.f32 %v430, %v433
  %v451 = vld [vmem:[%s1] sm:$0xff]
  %v452 = vld [vmem:[%s1 + $0x8] sm:$0xff]
  %v453 = vld [vmem:[%s1 + $0x10] sm:$0xff]
  %v454 = vld [vmem:[%s1 + $0x18] sm:$0xff]
  %v455 = vld [vmem:[%s1 + $0x20] sm:$0xff]
  %v456 = vld [vmem:[%s1 + $0x28] sm:$0xff]
  %v457 = vld [vmem:[%s1 + $0x30] sm:$0xff]
  %v458 = vld [vmem:[%s1 + $0x38] sm:$0xff]
  %v459 = vld [vmem:[%s1 + $0x40] sm:$0xff]
  %v460 = vld [vmem:[%s1 + $0x48] sm:$0xff]
  %v461 = vld [vmem:[%s1 + $0x50] sm:$0xff]
  %v462 = vld [vmem:[%s1 + $0x58] sm:$0xff]
  %v463 = vld [vmem:[%s1 + $0x60] sm:$0xff]
  %v464 = vld [vmem:[%s1 + $0x68] sm:$0xff]
  %v465 = vld [vmem:[%s1 + $0x70] sm:$0xff]
  %v466 = vld [vmem:[%s1 + $0x78] sm:$0xff]
  %v467 = vxor.u32 %v451, 2147483648
  %v468 = vxor.u32 %v452, 2147483648
  %v469 = vxor.u32 %v453, 2147483648
  %v470 = vxor.u32 %v454, 2147483648
  %v471 = vxor.u32 %v455, 2147483648
  %v472 = vxor.u32 %v456, 2147483648
  %v473 = vxor.u32 %v457, 2147483648
  %v474 = vxor.u32 %v458, 2147483648
  %v475 = vxor.u32 %v459, 2147483648
  %v476 = vxor.u32 %v460, 2147483648
  %v477 = vxor.u32 %v461, 2147483648
  %v478 = vxor.u32 %v462, 2147483648
  %v479 = vxor.u32 %v463, 2147483648
  %v480 = vxor.u32 %v464, 2147483648
  %v481 = vxor.u32 %v465, 2147483648
  %v482 = vxor.u32 %v466, 2147483648
  %v483 = vmul.f32 %v467, 1.442695
  %v484 = vpow.pop %v483
  %v485 = vmul.f32 %v468, 1.442695
  %v486 = vpow.pop %v485
  %v487 = vmul.f32 %v469, 1.442695
  %v488 = vpow.pop %v487
  %v489 = vmul.f32 %v470, 1.442695
  %v490 = vpow.pop %v489
  %v491 = vmul.f32 %v471, 1.442695
  %v492 = vpow.pop %v491
  %v493 = vmul.f32 %v472, 1.442695
  %v494 = vpow.pop %v493
  %v495 = vmul.f32 %v473, 1.442695
  %v496 = vpow.pop %v495
  %v497 = vmul.f32 %v474, 1.442695
  %v498 = vpow.pop %v497
  %v499 = vmul.f32 %v475, 1.442695
  %v500 = vpow.pop %v499
  %v501 = vmul.f32 %v476, 1.442695
  %v502 = vpow.pop %v501
  %v503 = vmul.f32 %v477, 1.442695
  %v504 = vpow.pop %v503
  %v505 = vmul.f32 %v478, 1.442695
  %v506 = vpow.pop %v505
  %v507 = vmul.f32 %v479, 1.442695
  %v508 = vpow.pop %v507
  %v509 = vmul.f32 %v480, 1.442695
  %v510 = vpow.pop %v509
  %v511 = vmul.f32 %v481, 1.442695
  %v512 = vpow.pop %v511
  %v513 = vmul.f32 %v482, 1.442695
  %v514 = vpow.pop %v513
  %v515 = vadd.f32 %v484, 1.0
  %v516 = vadd.f32 %v486, 1.0
  %v517 = vadd.f32 %v488, 1.0
  %v518 = vadd.f32 %v490, 1.0
  %v519 = vadd.f32 %v492, 1.0
  %v520 = vadd.f32 %v494, 1.0
  %v521 = vadd.f32 %v496, 1.0
  %v522 = vadd.f32 %v498, 1.0
  %v523 = vadd.f32 %v500, 1.0
  %v524 = vadd.f32 %v502, 1.0
  %v525 = vadd.f32 %v504, 1.0
  %v526 = vadd.f32 %v506, 1.0
  %v527 = vadd.f32 %v508, 1.0
  %v528 = vadd.f32 %v510, 1.0
  %v529 = vadd.f32 %v512, 1.0
  %v530 = vadd.f32 %v514, 1.0
  %v531 = vrcp.pop %v515
  %v532 = vmul.f32 %v515, %v531
  %v533 = vsub.f32 1.0, %v532
  %v534 = vmul.f32 %v531, %v533
  %v535 = vadd.f32 %v531, %v534
  %vm536 = vweird.f32 %v515
  %vm537 = vweird.f32 %v531
  %vm538 = vmor %vm536, %vm537
  %v539 = vsel %vm538, %v531, %v535
  %v540 = vand.u32 2147483647, %v515
  %vm541 = vcmp.eq.f32.partialorder %v540, 8.507059e+37
  %v542 = vand.u32 %v515, 2147483648
  %v543 = vor.u32 1.1754944e-38, %v542
  %v544 = vsel %vm541, %v543, %v539
  %v545 = vmul.f32 1.0, %v544
  %v546 = vrcp.pop %v516
  %v547 = vmul.f32 %v516, %v546
  %v548 = vsub.f32 1.0, %v547
  %v549 = vmul.f32 %v546, %v548
  %v550 = vadd.f32 %v546, %v549
  %vm551 = vweird.f32 %v516
  %vm552 = vweird.f32 %v546
  %vm553 = vmor %vm551, %vm552
  %v554 = vsel %vm553, %v546, %v550
  %v555 = vand.u32 2147483647, %v516
  %vm556 = vcmp.eq.f32.partialorder %v555, 8.507059e+37
  %v557 = vand.u32 %v516, 2147483648
  %v558 = vor.u32 1.1754944e-38, %v557
  %v559 = vsel %vm556, %v558, %v554
  %v560 = vmul.f32 1.0, %v559
  %v561 = vrcp.pop %v517
  %v562 = vmul.f32 %v517, %v561
  %v563 = vsub.f32 1.0, %v562
  %v564 = vmul.f32 %v561, %v563
  %v565 = vadd.f32 %v561, %v564
  %vm566 = vweird.f32 %v517
  %vm567 = vweird.f32 %v561
  %vm568 = vmor %vm566, %vm567
  %v569 = vsel %vm568, %v561, %v565
  %v570 = vand.u32 2147483647, %v517
  %vm571 = vcmp.eq.f32.partialorder %v570, 8.507059e+37
  %v572 = vand.u32 %v517, 2147483648
  %v573 = vor.u32 1.1754944e-38, %v572
  %v574 = vsel %vm571, %v573, %v569
  %v575 = vmul.f32 1.0, %v574
  %v576 = vrcp.pop %v518
  %v577 = vmul.f32 %v518, %v576
  %v578 = vsub.f32 1.0, %v577
  %v579 = vmul.f32 %v576, %v578
  %v580 = vadd.f32 %v576, %v579
  %vm581 = vweird.f32 %v518
  %vm582 = vweird.f32 %v576
  %vm583 = vmor %vm581, %vm582
  %v584 = vsel %vm583, %v576, %v580
  %v585 = vand.u32 2147483647, %v518
  %vm586 = vcmp.eq.f32.partialorder %v585, 8.507059e+37
  %v587 = vand.u32 %v518, 2147483648
  %v588 = vor.u32 1.1754944e-38, %v587
  %v589 = vsel %vm586, %v588, %v584
  %v590 = vmul.f32 1.0, %v589
  %v591 = vrcp.pop %v519
  %v592 = vmul.f32 %v519, %v591
  %v593 = vsub.f32 1.0, %v592
  %v594 = vmul.f32 %v591, %v593
  %v595 = vadd.f32 %v591, %v594
  %vm596 = vweird.f32 %v519
  %vm597 = vweird.f32 %v591
  %vm598 = vmor %vm596, %vm597
  %v599 = vsel %vm598, %v591, %v595
  %v600 = vand.u32 2147483647, %v519
  %vm601 = vcmp.eq.f32.partialorder %v600, 8.507059e+37
  %v602 = vand.u32 %v519, 2147483648
  %v603 = vor.u32 1.1754944e-38, %v602
  %v604 = vsel %vm601, %v603, %v599
  %v605 = vmul.f32 1.0, %v604
  %v606 = vrcp.pop %v520
  %v607 = vmul.f32 %v520, %v606
  %v608 = vsub.f32 1.0, %v607
  %v609 = vmul.f32 %v606, %v608
  %v610 = vadd.f32 %v606, %v609
  %vm611 = vweird.f32 %v520
  %vm612 = vweird.f32 %v606
  %vm613 = vmor %vm611, %vm612
  %v614 = vsel %vm613, %v606, %v610
  %v615 = vand.u32 2147483647, %v520
  %vm616 = vcmp.eq.f32.partialorder %v615, 8.507059e+37
  %v617 = vand.u32 %v520, 2147483648
  %v618 = vor.u32 1.1754944e-38, %v617
  %v619 = vsel %vm616, %v618, %v614
  %v620 = vmul.f32 1.0, %v619
  %v621 = vrcp.pop %v521
  %v622 = vmul.f32 %v521, %v621
  %v623 = vsub.f32 1.0, %v622
  %v624 = vmul.f32 %v621, %v623
  %v625 = vadd.f32 %v621, %v624
  %vm626 = vweird.f32 %v521
  %vm627 = vweird.f32 %v621
  %vm628 = vmor %vm626, %vm627
  %v629 = vsel %vm628, %v621, %v625
  %v630 = vand.u32 2147483647, %v521
  %vm631 = vcmp.eq.f32.partialorder %v630, 8.507059e+37
  %v632 = vand.u32 %v521, 2147483648
  %v633 = vor.u32 1.1754944e-38, %v632
  %v634 = vsel %vm631, %v633, %v629
  %v635 = vmul.f32 1.0, %v634
  %v636 = vrcp.pop %v522
  %v637 = vmul.f32 %v522, %v636
  %v638 = vsub.f32 1.0, %v637
  %v639 = vmul.f32 %v636, %v638
  %v640 = vadd.f32 %v636, %v639
  %vm641 = vweird.f32 %v522
  %vm642 = vweird.f32 %v636
  %vm643 = vmor %vm641, %vm642
  %v644 = vsel %vm643, %v636, %v640
  %v645 = vand.u32 2147483647, %v522
  %vm646 = vcmp.eq.f32.partialorder %v645, 8.507059e+37
  %v647 = vand.u32 %v522, 2147483648
  %v648 = vor.u32 1.1754944e-38, %v647
  %v649 = vsel %vm646, %v648, %v644
  %v650 = vmul.f32 1.0, %v649
  %v651 = vrcp.pop %v523
  %v652 = vmul.f32 %v523, %v651
  %v653 = vsub.f32 1.0, %v652
  %v654 = vmul.f32 %v651, %v653
  %v655 = vadd.f32 %v651, %v654
  %vm656 = vweird.f32 %v523
  %vm657 = vweird.f32 %v651
  %vm658 = vmor %vm656, %vm657
  %v659 = vsel %vm658, %v651, %v655
  %v660 = vand.u32 2147483647, %v523
  %vm661 = vcmp.eq.f32.partialorder %v660, 8.507059e+37
  %v662 = vand.u32 %v523, 2147483648
  %v663 = vor.u32 1.1754944e-38, %v662
  %v664 = vsel %vm661, %v663, %v659
  %v665 = vmul.f32 1.0, %v664
  %v666 = vrcp.pop %v524
  %v667 = vmul.f32 %v524, %v666
  %v668 = vsub.f32 1.0, %v667
  %v669 = vmul.f32 %v666, %v668
  %v670 = vadd.f32 %v666, %v669
  %vm671 = vweird.f32 %v524
  %vm672 = vweird.f32 %v666
  %vm673 = vmor %vm671, %vm672
  %v674 = vsel %vm673, %v666, %v670
  %v675 = vand.u32 2147483647, %v524
  %vm676 = vcmp.eq.f32.partialorder %v675, 8.507059e+37
  %v677 = vand.u32 %v524, 2147483648
  %v678 = vor.u32 1.1754944e-38, %v677
  %v679 = vsel %vm676, %v678, %v674
  %v680 = vmul.f32 1.0, %v679
  %v681 = vrcp.pop %v525
  %v682 = vmul.f32 %v525, %v681
  %v683 = vsub.f32 1.0, %v682
  %v684 = vmul.f32 %v681, %v683
  %v685 = vadd.f32 %v681, %v684
  %vm686 = vweird.f32 %v525
  %vm687 = vweird.f32 %v681
  %vm688 = vmor %vm686, %vm687
  %v689 = vsel %vm688, %v681, %v685
  %v690 = vand.u32 2147483647, %v525
  %vm691 = vcmp.eq.f32.partialorder %v690, 8.507059e+37
  %v692 = vand.u32 %v525, 2147483648
  %v693 = vor.u32 1.1754944e-38, %v692
  %v694 = vsel %vm691, %v693, %v689
  %v695 = vmul.f32 1.0, %v694
  %v696 = vrcp.pop %v526
  %v697 = vmul.f32 %v526, %v696
  %v698 = vsub.f32 1.0, %v697
  %v699 = vmul.f32 %v696, %v698
  %v700 = vadd.f32 %v696, %v699
  %vm701 = vweird.f32 %v526
  %vm702 = vweird.f32 %v696
  %vm703 = vmor %vm701, %vm702
  %v704 = vsel %vm703, %v696, %v700
  %v705 = vand.u32 2147483647, %v526
  %vm706 = vcmp.eq.f32.partialorder %v705, 8.507059e+37
  %v707 = vand.u32 %v526, 2147483648
  %v708 = vor.u32 1.1754944e-38, %v707
  %v709 = vsel %vm706, %v708, %v704
  %v710 = vmul.f32 1.0, %v709
  %v711 = vrcp.pop %v527
  %v712 = vmul.f32 %v527, %v711
  %v713 = vsub.f32 1.0, %v712
  %v714 = vmul.f32 %v711, %v713
  %v715 = vadd.f32 %v711, %v714
  %vm716 = vweird.f32 %v527
  %vm717 = vweird.f32 %v711
  %vm718 = vmor %vm716, %vm717
  %v719 = vsel %vm718, %v711, %v715
  %v720 = vand.u32 2147483647, %v527
  %vm721 = vcmp.eq.f32.partialorder %v720, 8.507059e+37
  %v722 = vand.u32 %v527, 2147483648
  %v723 = vor.u32 1.1754944e-38, %v722
  %v724 = vsel %vm721, %v723, %v719
  %v725 = vmul.f32 1.0, %v724
  %v726 = vrcp.pop %v528
  %v727 = vmul.f32 %v528, %v726
  %v728 = vsub.f32 1.0, %v727
  %v729 = vmul.f32 %v726, %v728
  %v730 = vadd.f32 %v726, %v729
  %vm731 = vweird.f32 %v528
  %vm732 = vweird.f32 %v726
  %vm733 = vmor %vm731, %vm732
  %v734 = vsel %vm733, %v726, %v730
  %v735 = vand.u32 2147483647, %v528
  %vm736 = vcmp.eq.f32.partialorder %v735, 8.507059e+37
  %v737 = vand.u32 %v528, 2147483648
  %v738 = vor.u32 1.1754944e-38, %v737
  %v739 = vsel %vm736, %v738, %v734
  %v740 = vmul.f32 1.0, %v739
  %v741 = vrcp.pop %v529
  %v742 = vmul.f32 %v529, %v741
  %v743 = vsub.f32 1.0, %v742
  %v744 = vmul.f32 %v741, %v743
  %v745 = vadd.f32 %v741, %v744
  %vm746 = vweird.f32 %v529
  %vm747 = vweird.f32 %v741
  %vm748 = vmor %vm746, %vm747
  %v749 = vsel %vm748, %v741, %v745
  %v750 = vand.u32 2147483647, %v529
  %vm751 = vcmp.eq.f32.partialorder %v750, 8.507059e+37
  %v752 = vand.u32 %v529, 2147483648
  %v753 = vor.u32 1.1754944e-38, %v752
  %v754 = vsel %vm751, %v753, %v749
  %v755 = vmul.f32 1.0, %v754
  %v756 = vrcp.pop %v530
  %v757 = vmul.f32 %v530, %v756
  %v758 = vsub.f32 1.0, %v757
  %v759 = vmul.f32 %v756, %v758
  %v760 = vadd.f32 %v756, %v759
  %vm761 = vweird.f32 %v530
  %vm762 = vweird.f32 %v756
  %vm763 = vmor %vm761, %vm762
  %v764 = vsel %vm763, %v756, %v760
  %v765 = vand.u32 2147483647, %v530
  %vm766 = vcmp.eq.f32.partialorder %v765, 8.507059e+37
  %v767 = vand.u32 %v530, 2147483648
  %v768 = vor.u32 1.1754944e-38, %v767
  %v769 = vsel %vm766, %v768, %v764
  %v770 = vmul.f32 1.0, %v769
  %v771 = vmul.f32 %v451, %v545
  %v772 = vmul.f32 %v452, %v560
  %v773 = vmul.f32 %v453, %v575
  %v774 = vmul.f32 %v454, %v590
  %v775 = vmul.f32 %v455, %v605
  %v776 = vmul.f32 %v456, %v620
  %v777 = vmul.f32 %v457, %v635
  %v778 = vmul.f32 %v458, %v650
  %v779 = vmul.f32 %v459, %v665
  %v780 = vmul.f32 %v460, %v680
  %v781 = vmul.f32 %v461, %v695
  %v782 = vmul.f32 %v462, %v710
  %v783 = vmul.f32 %v463, %v725
  %v784 = vmul.f32 %v464, %v740
  %v785 = vmul.f32 %v465, %v755
  %v786 = vmul.f32 %v466, %v770
  %v787 = vmul.f32 %v435, %v771
  %v788 = vmul.f32 %v436, %v772
  %v789 = vmul.f32 %v437, %v773
  %v790 = vmul.f32 %v438, %v774
  %v791 = vmul.f32 %v439, %v775
  %v792 = vmul.f32 %v440, %v776
  %v793 = vmul.f32 %v441, %v777
  %v794 = vmul.f32 %v442, %v778
  %v795 = vmul.f32 %v443, %v779
  %v796 = vmul.f32 %v444, %v780
  %v797 = vmul.f32 %v445, %v781
  %v798 = vmul.f32 %v446, %v782
  %v799 = vmul.f32 %v447, %v783
  %v800 = vmul.f32 %v448, %v784
  %v801 = vmul.f32 %v449, %v785
  %v802 = vmul.f32 %v450, %v786
  %v803 = vpack.c.bf16 %v788, %v787
  %v804 = vpack.c.bf16 %v790, %v789
  %v805 = vpack.c.bf16 %v792, %v791
  %v806 = vpack.c.bf16 %v794, %v793
  %v807 = vpack.c.bf16 %v796, %v795
  %v808 = vpack.c.bf16 %v798, %v797
  %v809 = vpack.c.bf16 %v800, %v799
  %v810 = vpack.c.bf16 %v802, %v801
  %v811 = vld [vmem:[%s5] sm:$0xf]
  %v812 = vld [vmem:[%s5 + $0x4] sm:$0xf]
  %v813 = vld [vmem:[%s5 + $0x8] sm:$0xf]
  %v814 = vld [vmem:[%s5 + $0xc] sm:$0xf]
  %v815 = vld [vmem:[%s5 + $0x10] sm:$0xf]
  %v816 = vld [vmem:[%s5 + $0x14] sm:$0xf]
  %v817 = vld [vmem:[%s5 + $0x18] sm:$0xf]
  %v818 = vld [vmem:[%s5 + $0x1c] sm:$0xf]
  %v827 = vunpack.c.l.b16 %v811
  %v828 = vunpack.c.l.b16 %v812
  %v829 = vunpack.c.l.b16 %v813
  %v830 = vunpack.c.l.b16 %v814
  %v831 = vunpack.c.l.b16 %v815
  %v832 = vunpack.c.l.b16 %v816
  %v833 = vunpack.c.l.b16 %v817
  %v834 = vunpack.c.l.b16 %v818
  %v835 = vpack.c.b16 %v828, %v827
  %v836 = vpack.c.b16 %v830, %v829
  %v837 = vpack.c.b16 %v832, %v831
  %v838 = vpack.c.b16 %v834, %v833
  %v844 = vsel %vm51, %v803, 0
  %v847 = vsel %vm51, %v804, 0
  %v850 = vsel %vm51, %v805, 0
  %v853 = vsel %vm51, %v806, 0
  %v856 = vsel %vm51, %v807, 0
  %v859 = vsel %vm51, %v808, 0
  %v862 = vsel %vm51, %v809, 0
  %v865 = vsel %vm51, %v810, 0
  %867 = vmatpush.bf16.msra.mxu0 0
  %868 = vmatpush.bf16.msra.mxu0 0
  %869 = vmatpush.bf16.msra.mxu0 0
  %870 = vmatpush.bf16.msra.mxu0 0
  %871 = vmatpush.bf16.msra.mxu0 %v838
  %872 = vmatpush.bf16.msra.mxu0 %v837
  %873 = vmatpush.bf16.msra.mxu0 %v836
  %874 = vmatpush.bf16.msra.mxu0 %v835
  %875 = vmatmul.bf16.gmra.mxu0 %v844
  %v876 = vpop.f32.mrf.mxu0
  %v877 = vadd.f32 0.0, %v876
  %v878 = vpop.f32.mrf.mxu0
  %v879 = vadd.f32 0.0, %v878
  %880 = vmatmul.bf16.gmra.mxu0 %v847
  %v881 = vpop.f32.mrf.mxu0
  %v882 = vadd.f32 0.0, %v881
  %v883 = vpop.f32.mrf.mxu0
  %v884 = vadd.f32 0.0, %v883
  %885 = vmatmul.bf16.gmra.mxu0 %v850
  %v886 = vpop.f32.mrf.mxu0
  %v887 = vadd.f32 0.0, %v886
  %v888 = vpop.f32.mrf.mxu0
  %v889 = vadd.f32 0.0, %v888
  %890 = vmatmul.bf16.gmra.mxu0 %v853
  %v891 = vpop.f32.mrf.mxu0
  %v892 = vadd.f32 0.0, %v891
  %v893 = vpop.f32.mrf.mxu0
  %v894 = vadd.f32 0.0, %v893
  %895 = vmatmul.bf16.gmra.mxu0 %v856
  %v896 = vpop.f32.mrf.mxu0
  %v897 = vadd.f32 0.0, %v896
  %v898 = vpop.f32.mrf.mxu0
  %v899 = vadd.f32 0.0, %v898
  %900 = vmatmul.bf16.gmra.mxu0 %v859
  %v901 = vpop.f32.mrf.mxu0
  %v902 = vadd.f32 0.0, %v901
  %v903 = vpop.f32.mrf.mxu0
  %v904 = vadd.f32 0.0, %v903
  %905 = vmatmul.bf16.gmra.mxu0 %v862
  %v906 = vpop.f32.mrf.mxu0
  %v907 = vadd.f32 0.0, %v906
  %v908 = vpop.f32.mrf.mxu0
  %v909 = vadd.f32 0.0, %v908
  %910 = vmatmul.bf16.gmra.mxu0 %v865
  %v911 = vpop.f32.mrf.mxu0
  %v912 = vadd.f32 0.0, %v911
  %v913 = vpop.f32.mrf.mxu0
  %v914 = vadd.f32 0.0, %v913
  %915 = vdwg.mxu0
  %v916 = vld [vmem:[%s2] sm:$0xff]
  %v917 = vld [vmem:[%s2 + $0x8] sm:$0xff]
  %v918 = vld [vmem:[%s2 + $0x10] sm:$0xff]
  %v919 = vld [vmem:[%s2 + $0x18] sm:$0xff]
  %v920 = vld [vmem:[%s2 + $0x20] sm:$0xff]
  %v921 = vld [vmem:[%s2 + $0x28] sm:$0xff]
  %v922 = vld [vmem:[%s2 + $0x30] sm:$0xff]
  %v923 = vld [vmem:[%s2 + $0x38] sm:$0xff]
  %v924 = vld [vmem:[%s2 + $0x40] sm:$0xff]
  %v925 = vld [vmem:[%s2 + $0x48] sm:$0xff]
  %v926 = vld [vmem:[%s2 + $0x50] sm:$0xff]
  %v927 = vld [vmem:[%s2 + $0x58] sm:$0xff]
  %v928 = vld [vmem:[%s2 + $0x60] sm:$0xff]
  %v929 = vld [vmem:[%s2 + $0x68] sm:$0xff]
  %v930 = vld [vmem:[%s2 + $0x70] sm:$0xff]
  %v931 = vld [vmem:[%s2 + $0x78] sm:$0xff]
  %v932 = vld [vmem:[%s6] sm:$0x1]
  %v934 = vperm.slane %v932, 0
  %v936 = vmul.f32 %v916, %v934
  %v937 = vmul.f32 %v917, %v934
  %v938 = vmul.f32 %v918, %v934
  %v939 = vmul.f32 %v919, %v934
  %v940 = vmul.f32 %v920, %v934
  %v941 = vmul.f32 %v921, %v934
  %v942 = vmul.f32 %v922, %v934
  %v943 = vmul.f32 %v923, %v934
  %v944 = vmul.f32 %v924, %v934
  %v945 = vmul.f32 %v925, %v934
  %v946 = vmul.f32 %v926, %v934
  %v947 = vmul.f32 %v927, %v934
  %v948 = vmul.f32 %v928, %v934
  %v949 = vmul.f32 %v929, %v934
  %v950 = vmul.f32 %v930, %v934
  %v951 = vmul.f32 %v931, %v934
  %v952 = vadd.f32 %v936, %v877
  %v953 = vadd.f32 %v937, %v879
  %v954 = vadd.f32 %v938, %v882
  %v955 = vadd.f32 %v939, %v884
  %v956 = vadd.f32 %v940, %v887
  %v957 = vadd.f32 %v941, %v889
  %v958 = vadd.f32 %v942, %v892
  %v959 = vadd.f32 %v943, %v894
  %v960 = vadd.f32 %v944, %v897
  %v961 = vadd.f32 %v945, %v899
  %v962 = vadd.f32 %v946, %v902
  %v963 = vadd.f32 %v947, %v904
  %v964 = vadd.f32 %v948, %v907
  %v965 = vadd.f32 %v949, %v909
  %v966 = vadd.f32 %v950, %v912
  %v967 = vadd.f32 %v951, %v914
  %vm968 = vcmask 261120
  %969 = vst.msk [vmem:[%s9] sm:$0xff] %vm968, %v952
  %970 = vst.msk [vmem:[%s9 + $0x8] sm:$0xff] %vm968, %v953
  %971 = vst.msk [vmem:[%s9 + $0x10] sm:$0xff] %vm968, %v954
  %972 = vst.msk [vmem:[%s9 + $0x18] sm:$0xff] %vm968, %v955
  %973 = vst.msk [vmem:[%s9 + $0x20] sm:$0xff] %vm968, %v956
  %974 = vst.msk [vmem:[%s9 + $0x28] sm:$0xff] %vm968, %v957
  %975 = vst.msk [vmem:[%s9 + $0x30] sm:$0xff] %vm968, %v958
  %976 = vst.msk [vmem:[%s9 + $0x38] sm:$0xff] %vm968, %v959
  %977 = vst.msk [vmem:[%s9 + $0x40] sm:$0xff] %vm968, %v960
  %978 = vst.msk [vmem:[%s9 + $0x48] sm:$0xff] %vm968, %v961
  %979 = vst.msk [vmem:[%s9 + $0x50] sm:$0xff] %vm968, %v962
  %980 = vst.msk [vmem:[%s9 + $0x58] sm:$0xff] %vm968, %v963
  %981 = vst.msk [vmem:[%s9 + $0x60] sm:$0xff] %vm968, %v964
  %982 = vst.msk [vmem:[%s9 + $0x68] sm:$0xff] %vm968, %v965
  %983 = vst.msk [vmem:[%s9 + $0x70] sm:$0xff] %vm968, %v966
  %984 = vst.msk [vmem:[%s9 + $0x78] sm:$0xff] %vm968, %v967
  %v985 = vsel %vm968, %v952, 0.0
  %986 = vadd.xlane.f32.xlu0 %v985
  %v987 = vpop.xlane.xlu0 %986
  %v988 = vsel %vm968, %v953, 0.0
  %989 = vadd.xlane.f32.xlu0 %v988
  %v990 = vpop.xlane.xlu0 %989
  %v991 = vsel %vm968, %v954, 0.0
  %992 = vadd.xlane.f32.xlu0 %v991
  %v993 = vpop.xlane.xlu0 %992
  %v994 = vsel %vm968, %v955, 0.0
  %995 = vadd.xlane.f32.xlu0 %v994
  %v996 = vpop.xlane.xlu0 %995
  %v997 = vsel %vm968, %v956, 0.0
  %998 = vadd.xlane.f32.xlu0 %v997
  %v999 = vpop.xlane.xlu0 %998
  %v1000 = vsel %vm968, %v957, 0.0
  %1001 = vadd.xlane.f32.xlu0 %v1000
  %v1002 = vpop.xlane.xlu0 %1001
  %v1003 = vsel %vm968, %v958, 0.0
  %1004 = vadd.xlane.f32.xlu0 %v1003
  %v1005 = vpop.xlane.xlu0 %1004
  %v1006 = vsel %vm968, %v959, 0.0
  %1007 = vadd.xlane.f32.xlu0 %v1006
  %v1008 = vpop.xlane.xlu0 %1007
  %v1009 = vsel %vm968, %v960, 0.0
  %1010 = vadd.xlane.f32.xlu0 %v1009
  %v1011 = vpop.xlane.xlu0 %1010
  %v1012 = vsel %vm968, %v961, 0.0
  %1013 = vadd.xlane.f32.xlu0 %v1012
  %v1014 = vpop.xlane.xlu0 %1013
  %v1015 = vsel %vm968, %v962, 0.0
  %1016 = vadd.xlane.f32.xlu0 %v1015
  %v1017 = vpop.xlane.xlu0 %1016
  %v1018 = vsel %vm968, %v963, 0.0
  %1019 = vadd.xlane.f32.xlu0 %v1018
  %v1020 = vpop.xlane.xlu0 %1019
  %v1021 = vsel %vm968, %v964, 0.0
  %1022 = vadd.xlane.f32.xlu0 %v1021
  %v1023 = vpop.xlane.xlu0 %1022
  %v1024 = vsel %vm968, %v965, 0.0
  %1025 = vadd.xlane.f32.xlu0 %v1024
  %v1026 = vpop.xlane.xlu0 %1025
  %v1027 = vsel %vm968, %v966, 0.0
  %1028 = vadd.xlane.f32.xlu0 %v1027
  %v1029 = vpop.xlane.xlu0 %1028
  %v1030 = vsel %vm968, %v967, 0.0
  %1031 = vadd.xlane.f32.xlu0 %v1030
  %v1032 = vpop.xlane.xlu0 %1031
  %v1033 = vrcp.pop 32.0
  %v1034 = vmul.f32 32.0, %v1033
  %v1035 = vsub.f32 1.0, %v1034
  %v1036 = vmul.f32 %v1033, %v1035
  %v1037 = vadd.f32 %v1033, %v1036
  %vm1038 = vweird.f32 %v1033
  %v1039 = vsel %vm1038, %v1033, %v1037
  %v1040 = vmul.f32 %v987, %v1039
  %v1041 = vmul.f32 %v990, %v1039
  %v1042 = vmul.f32 %v993, %v1039
  %v1043 = vmul.f32 %v996, %v1039
  %v1044 = vmul.f32 %v999, %v1039
  %v1045 = vmul.f32 %v1002, %v1039
  %v1046 = vmul.f32 %v1005, %v1039
  %v1047 = vmul.f32 %v1008, %v1039
  %v1048 = vmul.f32 %v1011, %v1039
  %v1049 = vmul.f32 %v1014, %v1039
  %v1050 = vmul.f32 %v1017, %v1039
  %v1051 = vmul.f32 %v1020, %v1039
  %v1052 = vmul.f32 %v1023, %v1039
  %v1053 = vmul.f32 %v1026, %v1039
  %v1054 = vmul.f32 %v1029, %v1039
  %v1055 = vmul.f32 %v1032, %v1039
  %v1056 = vsub.f32 %v952, %v1040
  %v1057 = vsub.f32 %v953, %v1041
  %v1058 = vsub.f32 %v954, %v1042
  %v1059 = vsub.f32 %v955, %v1043
  %v1060 = vsub.f32 %v956, %v1044
  %v1061 = vsub.f32 %v957, %v1045
  %v1062 = vsub.f32 %v958, %v1046
  %v1063 = vsub.f32 %v959, %v1047
  %v1064 = vsub.f32 %v960, %v1048
  %v1065 = vsub.f32 %v961, %v1049
  %v1066 = vsub.f32 %v962, %v1050
  %v1067 = vsub.f32 %v963, %v1051
  %v1068 = vsub.f32 %v964, %v1052
  %v1069 = vsub.f32 %v965, %v1053
  %v1070 = vsub.f32 %v966, %v1054
  %v1071 = vsub.f32 %v967, %v1055
  %v1072 = vmul.f32 %v1056, %v1056
  %v1073 = vmul.f32 %v1057, %v1057
  %v1074 = vmul.f32 %v1058, %v1058
  %v1075 = vmul.f32 %v1059, %v1059
  %v1076 = vmul.f32 %v1060, %v1060
  %v1077 = vmul.f32 %v1061, %v1061
  %v1078 = vmul.f32 %v1062, %v1062
  %v1079 = vmul.f32 %v1063, %v1063
  %v1080 = vmul.f32 %v1064, %v1064
  %v1081 = vmul.f32 %v1065, %v1065
  %v1082 = vmul.f32 %v1066, %v1066
  %v1083 = vmul.f32 %v1067, %v1067
  %v1084 = vmul.f32 %v1068, %v1068
  %v1085 = vmul.f32 %v1069, %v1069
  %v1086 = vmul.f32 %v1070, %v1070
  %v1087 = vmul.f32 %v1071, %v1071
  %v1088 = vsel %vm968, %v1072, 0.0
  %1089 = vadd.xlane.f32.xlu0 %v1088
  %v1090 = vpop.xlane.xlu0 %1089
  %v1091 = vsel %vm968, %v1073, 0.0
  %1092 = vadd.xlane.f32.xlu0 %v1091
  %v1093 = vpop.xlane.xlu0 %1092
  %v1094 = vsel %vm968, %v1074, 0.0
  %1095 = vadd.xlane.f32.xlu0 %v1094
  %v1096 = vpop.xlane.xlu0 %1095
  %v1097 = vsel %vm968, %v1075, 0.0
  %1098 = vadd.xlane.f32.xlu0 %v1097
  %v1099 = vpop.xlane.xlu0 %1098
  %v1100 = vsel %vm968, %v1076, 0.0
  %1101 = vadd.xlane.f32.xlu0 %v1100
  %v1102 = vpop.xlane.xlu0 %1101
  %v1103 = vsel %vm968, %v1077, 0.0
  %1104 = vadd.xlane.f32.xlu0 %v1103
  %v1105 = vpop.xlane.xlu0 %1104
  %v1106 = vsel %vm968, %v1078, 0.0
  %1107 = vadd.xlane.f32.xlu0 %v1106
  %v1108 = vpop.xlane.xlu0 %1107
  %v1109 = vsel %vm968, %v1079, 0.0
  %1110 = vadd.xlane.f32.xlu0 %v1109
  %v1111 = vpop.xlane.xlu0 %1110
  %v1112 = vsel %vm968, %v1080, 0.0
  %1113 = vadd.xlane.f32.xlu0 %v1112
  %v1114 = vpop.xlane.xlu0 %1113
  %v1115 = vsel %vm968, %v1081, 0.0
  %1116 = vadd.xlane.f32.xlu0 %v1115
  %v1117 = vpop.xlane.xlu0 %1116
  %v1118 = vsel %vm968, %v1082, 0.0
  %1119 = vadd.xlane.f32.xlu0 %v1118
  %v1120 = vpop.xlane.xlu0 %1119
  %v1121 = vsel %vm968, %v1083, 0.0
  %1122 = vadd.xlane.f32.xlu0 %v1121
  %v1123 = vpop.xlane.xlu0 %1122
  %v1124 = vsel %vm968, %v1084, 0.0
  %1125 = vadd.xlane.f32.xlu0 %v1124
  %v1126 = vpop.xlane.xlu0 %1125
  %v1127 = vsel %vm968, %v1085, 0.0
  %1128 = vadd.xlane.f32.xlu0 %v1127
  %v1129 = vpop.xlane.xlu0 %1128
  %v1130 = vsel %vm968, %v1086, 0.0
  %1131 = vadd.xlane.f32.xlu0 %v1130
  %v1132 = vpop.xlane.xlu0 %1131
  %v1133 = vsel %vm968, %v1087, 0.0
  %1134 = vadd.xlane.f32.xlu0 %v1133
  %v1135 = vpop.xlane.xlu0 %1134
  %v1136 = vmul.f32 %v1090, %v1039
  %v1137 = vmul.f32 %v1093, %v1039
  %v1138 = vmul.f32 %v1096, %v1039
  %v1139 = vmul.f32 %v1099, %v1039
  %v1140 = vmul.f32 %v1102, %v1039
  %v1141 = vmul.f32 %v1105, %v1039
  %v1142 = vmul.f32 %v1108, %v1039
  %v1143 = vmul.f32 %v1111, %v1039
  %v1144 = vmul.f32 %v1114, %v1039
  %v1145 = vmul.f32 %v1117, %v1039
  %v1146 = vmul.f32 %v1120, %v1039
  %v1147 = vmul.f32 %v1123, %v1039
  %v1148 = vmul.f32 %v1126, %v1039
  %v1149 = vmul.f32 %v1129, %v1039
  %v1150 = vmul.f32 %v1132, %v1039
  %v1151 = vmul.f32 %v1135, %v1039
  %v1152 = vadd.f32 %v1136, 1e-05
  %v1153 = vadd.f32 %v1137, 1e-05
  %v1154 = vadd.f32 %v1138, 1e-05
  %v1155 = vadd.f32 %v1139, 1e-05
  %v1156 = vadd.f32 %v1140, 1e-05
  %v1157 = vadd.f32 %v1141, 1e-05
  %v1158 = vadd.f32 %v1142, 1e-05
  %v1159 = vadd.f32 %v1143, 1e-05
  %v1160 = vadd.f32 %v1144, 1e-05
  %v1161 = vadd.f32 %v1145, 1e-05
  %v1162 = vadd.f32 %v1146, 1e-05
  %v1163 = vadd.f32 %v1147, 1e-05
  %v1164 = vadd.f32 %v1148, 1e-05
  %v1165 = vadd.f32 %v1149, 1e-05
  %v1166 = vadd.f32 %v1150, 1e-05
  %v1167 = vadd.f32 %v1151, 1e-05
  %v1168 = vrsqrt.pop %v1152
  %v1169 = vmul.f32 %v1168, %v1152
  %v1170 = vmul.f32 %v1169, %v1168
  %v1171 = vmul.f32 0.5, %v1170
  %v1172 = vsub.f32 1.5, %v1171
  %v1173 = vmul.f32 %v1168, %v1172
  %vm1174 = vweird.f32 %v1152
  %vm1175 = vweird.f32 %v1168
  %vm1176 = vmor %vm1174, %vm1175
  %v1177 = vsel %vm1176, %v1168, %v1173
  %v1178 = vrsqrt.pop %v1153
  %v1179 = vmul.f32 %v1178, %v1153
  %v1180 = vmul.f32 %v1179, %v1178
  %v1181 = vmul.f32 0.5, %v1180
  %v1182 = vsub.f32 1.5, %v1181
  %v1183 = vmul.f32 %v1178, %v1182
  %vm1184 = vweird.f32 %v1153
  %vm1185 = vweird.f32 %v1178
  %vm1186 = vmor %vm1184, %vm1185
  %v1187 = vsel %vm1186, %v1178, %v1183
  %v1188 = vrsqrt.pop %v1154
  %v1189 = vmul.f32 %v1188, %v1154
  %v1190 = vmul.f32 %v1189, %v1188
  %v1191 = vmul.f32 0.5, %v1190
  %v1192 = vsub.f32 1.5, %v1191
  %v1193 = vmul.f32 %v1188, %v1192
  %vm1194 = vweird.f32 %v1154
  %vm1195 = vweird.f32 %v1188
  %vm1196 = vmor %vm1194, %vm1195
  %v1197 = vsel %vm1196, %v1188, %v1193
  %v1198 = vrsqrt.pop %v1155
  %v1199 = vmul.f32 %v1198, %v1155
  %v1200 = vmul.f32 %v1199, %v1198
  %v1201 = vmul.f32 0.5, %v1200
  %v1202 = vsub.f32 1.5, %v1201
  %v1203 = vmul.f32 %v1198, %v1202
  %vm1204 = vweird.f32 %v1155
  %vm1205 = vweird.f32 %v1198
  %vm1206 = vmor %vm1204, %vm1205
  %v1207 = vsel %vm1206, %v1198, %v1203
  %v1208 = vrsqrt.pop %v1156
  %v1209 = vmul.f32 %v1208, %v1156
  %v1210 = vmul.f32 %v1209, %v1208
  %v1211 = vmul.f32 0.5, %v1210
  %v1212 = vsub.f32 1.5, %v1211
  %v1213 = vmul.f32 %v1208, %v1212
  %vm1214 = vweird.f32 %v1156
  %vm1215 = vweird.f32 %v1208
  %vm1216 = vmor %vm1214, %vm1215
  %v1217 = vsel %vm1216, %v1208, %v1213
  %v1218 = vrsqrt.pop %v1157
  %v1219 = vmul.f32 %v1218, %v1157
  %v1220 = vmul.f32 %v1219, %v1218
  %v1221 = vmul.f32 0.5, %v1220
  %v1222 = vsub.f32 1.5, %v1221
  %v1223 = vmul.f32 %v1218, %v1222
  %vm1224 = vweird.f32 %v1157
  %vm1225 = vweird.f32 %v1218
  %vm1226 = vmor %vm1224, %vm1225
  %v1227 = vsel %vm1226, %v1218, %v1223
  %v1228 = vrsqrt.pop %v1158
  %v1229 = vmul.f32 %v1228, %v1158
  %v1230 = vmul.f32 %v1229, %v1228
  %v1231 = vmul.f32 0.5, %v1230
  %v1232 = vsub.f32 1.5, %v1231
  %v1233 = vmul.f32 %v1228, %v1232
  %vm1234 = vweird.f32 %v1158
  %vm1235 = vweird.f32 %v1228
  %vm1236 = vmor %vm1234, %vm1235
  %v1237 = vsel %vm1236, %v1228, %v1233
  %v1238 = vrsqrt.pop %v1159
  %v1239 = vmul.f32 %v1238, %v1159
  %v1240 = vmul.f32 %v1239, %v1238
  %v1241 = vmul.f32 0.5, %v1240
  %v1242 = vsub.f32 1.5, %v1241
  %v1243 = vmul.f32 %v1238, %v1242
  %vm1244 = vweird.f32 %v1159
  %vm1245 = vweird.f32 %v1238
  %vm1246 = vmor %vm1244, %vm1245
  %v1247 = vsel %vm1246, %v1238, %v1243
  %v1248 = vrsqrt.pop %v1160
  %v1249 = vmul.f32 %v1248, %v1160
  %v1250 = vmul.f32 %v1249, %v1248
  %v1251 = vmul.f32 0.5, %v1250
  %v1252 = vsub.f32 1.5, %v1251
  %v1253 = vmul.f32 %v1248, %v1252
  %vm1254 = vweird.f32 %v1160
  %vm1255 = vweird.f32 %v1248
  %vm1256 = vmor %vm1254, %vm1255
  %v1257 = vsel %vm1256, %v1248, %v1253
  %v1258 = vrsqrt.pop %v1161
  %v1259 = vmul.f32 %v1258, %v1161
  %v1260 = vmul.f32 %v1259, %v1258
  %v1261 = vmul.f32 0.5, %v1260
  %v1262 = vsub.f32 1.5, %v1261
  %v1263 = vmul.f32 %v1258, %v1262
  %vm1264 = vweird.f32 %v1161
  %vm1265 = vweird.f32 %v1258
  %vm1266 = vmor %vm1264, %vm1265
  %v1267 = vsel %vm1266, %v1258, %v1263
  %v1268 = vrsqrt.pop %v1162
  %v1269 = vmul.f32 %v1268, %v1162
  %v1270 = vmul.f32 %v1269, %v1268
  %v1271 = vmul.f32 0.5, %v1270
  %v1272 = vsub.f32 1.5, %v1271
  %v1273 = vmul.f32 %v1268, %v1272
  %vm1274 = vweird.f32 %v1162
  %vm1275 = vweird.f32 %v1268
  %vm1276 = vmor %vm1274, %vm1275
  %v1277 = vsel %vm1276, %v1268, %v1273
  %v1278 = vrsqrt.pop %v1163
  %v1279 = vmul.f32 %v1278, %v1163
  %v1280 = vmul.f32 %v1279, %v1278
  %v1281 = vmul.f32 0.5, %v1280
  %v1282 = vsub.f32 1.5, %v1281
  %v1283 = vmul.f32 %v1278, %v1282
  %vm1284 = vweird.f32 %v1163
  %vm1285 = vweird.f32 %v1278
  %vm1286 = vmor %vm1284, %vm1285
  %v1287 = vsel %vm1286, %v1278, %v1283
  %v1288 = vrsqrt.pop %v1164
  %v1289 = vmul.f32 %v1288, %v1164
  %v1290 = vmul.f32 %v1289, %v1288
  %v1291 = vmul.f32 0.5, %v1290
  %v1292 = vsub.f32 1.5, %v1291
  %v1293 = vmul.f32 %v1288, %v1292
  %vm1294 = vweird.f32 %v1164
  %vm1295 = vweird.f32 %v1288
  %vm1296 = vmor %vm1294, %vm1295
  %v1297 = vsel %vm1296, %v1288, %v1293
  %v1298 = vrsqrt.pop %v1165
  %v1299 = vmul.f32 %v1298, %v1165
  %v1300 = vmul.f32 %v1299, %v1298
  %v1301 = vmul.f32 0.5, %v1300
  %v1302 = vsub.f32 1.5, %v1301
  %v1303 = vmul.f32 %v1298, %v1302
  %vm1304 = vweird.f32 %v1165
  %vm1305 = vweird.f32 %v1298
  %vm1306 = vmor %vm1304, %vm1305
  %v1307 = vsel %vm1306, %v1298, %v1303
  %v1308 = vrsqrt.pop %v1166
  %v1309 = vmul.f32 %v1308, %v1166
  %v1310 = vmul.f32 %v1309, %v1308
  %v1311 = vmul.f32 0.5, %v1310
  %v1312 = vsub.f32 1.5, %v1311
  %v1313 = vmul.f32 %v1308, %v1312
  %vm1314 = vweird.f32 %v1166
  %vm1315 = vweird.f32 %v1308
  %vm1316 = vmor %vm1314, %vm1315
  %v1317 = vsel %vm1316, %v1308, %v1313
  %v1318 = vrsqrt.pop %v1167
  %v1319 = vmul.f32 %v1318, %v1167
  %v1320 = vmul.f32 %v1319, %v1318
  %v1321 = vmul.f32 0.5, %v1320
  %v1322 = vsub.f32 1.5, %v1321
  %v1323 = vmul.f32 %v1318, %v1322
  %vm1324 = vweird.f32 %v1167
  %vm1325 = vweird.f32 %v1318
  %vm1326 = vmor %vm1324, %vm1325
  %v1327 = vsel %vm1326, %v1318, %v1323
  %v1328 = vmul.f32 %v1056, %v1177
  %v1329 = vmul.f32 %v1057, %v1187
  %v1330 = vmul.f32 %v1058, %v1197
  %v1331 = vmul.f32 %v1059, %v1207
  %v1332 = vmul.f32 %v1060, %v1217
  %v1333 = vmul.f32 %v1061, %v1227
  %v1334 = vmul.f32 %v1062, %v1237
  %v1335 = vmul.f32 %v1063, %v1247
  %v1336 = vmul.f32 %v1064, %v1257
  %v1337 = vmul.f32 %v1065, %v1267
  %v1338 = vmul.f32 %v1066, %v1277
  %v1339 = vmul.f32 %v1067, %v1287
  %v1340 = vmul.f32 %v1068, %v1297
  %v1341 = vmul.f32 %v1069, %v1307
  %v1342 = vmul.f32 %v1070, %v1317
  %v1343 = vmul.f32 %v1071, %v1327
  %v1344 = vld [vmem:[%s7] sm:$0x1]
  %v1346 = vperm.slane %v1344, 0
  %v1348 = vmul.f32 %v1328, %v1346
  %v1349 = vmul.f32 %v1329, %v1346
  %v1350 = vmul.f32 %v1330, %v1346
  %v1351 = vmul.f32 %v1331, %v1346
  %v1352 = vmul.f32 %v1332, %v1346
  %v1353 = vmul.f32 %v1333, %v1346
  %v1354 = vmul.f32 %v1334, %v1346
  %v1355 = vmul.f32 %v1335, %v1346
  %v1356 = vmul.f32 %v1336, %v1346
  %v1357 = vmul.f32 %v1337, %v1346
  %v1358 = vmul.f32 %v1338, %v1346
  %v1359 = vmul.f32 %v1339, %v1346
  %v1360 = vmul.f32 %v1340, %v1346
  %v1361 = vmul.f32 %v1341, %v1346
  %v1362 = vmul.f32 %v1342, %v1346
  %v1363 = vmul.f32 %v1343, %v1346
  %v1364 = vld [vmem:[%s8] sm:$0x1]
  %v1366 = vperm.slane %v1364, 0
  %v1368 = vadd.f32 %v1348, %v1366
  %v1369 = vadd.f32 %v1349, %v1366
  %v1370 = vadd.f32 %v1350, %v1366
  %v1371 = vadd.f32 %v1351, %v1366
  %v1372 = vadd.f32 %v1352, %v1366
  %v1373 = vadd.f32 %v1353, %v1366
  %v1374 = vadd.f32 %v1354, %v1366
  %v1375 = vadd.f32 %v1355, %v1366
  %v1376 = vadd.f32 %v1356, %v1366
  %v1377 = vadd.f32 %v1357, %v1366
  %v1378 = vadd.f32 %v1358, %v1366
  %v1379 = vadd.f32 %v1359, %v1366
  %v1380 = vadd.f32 %v1360, %v1366
  %v1381 = vadd.f32 %v1361, %v1366
  %v1382 = vadd.f32 %v1362, %v1366
  %v1383 = vadd.f32 %v1363, %v1366
  %1384 = vst.msk [vmem:[%s10] sm:$0xff] %vm968, %v1368
  %1385 = vst.msk [vmem:[%s10 + $0x8] sm:$0xff] %vm968, %v1369
  %1386 = vst.msk [vmem:[%s10 + $0x10] sm:$0xff] %vm968, %v1370
  %1387 = vst.msk [vmem:[%s10 + $0x18] sm:$0xff] %vm968, %v1371
  %1388 = vst.msk [vmem:[%s10 + $0x20] sm:$0xff] %vm968, %v1372
  %1389 = vst.msk [vmem:[%s10 + $0x28] sm:$0xff] %vm968, %v1373
  %1390 = vst.msk [vmem:[%s10 + $0x30] sm:$0xff] %vm968, %v1374
  %1391 = vst.msk [vmem:[%s10 + $0x38] sm:$0xff] %vm968, %v1375
  %1392 = vst.msk [vmem:[%s10 + $0x40] sm:$0xff] %vm968, %v1376
  %1393 = vst.msk [vmem:[%s10 + $0x48] sm:$0xff] %vm968, %v1377
  %1394 = vst.msk [vmem:[%s10 + $0x50] sm:$0xff] %vm968, %v1378
  %1395 = vst.msk [vmem:[%s10 + $0x58] sm:$0xff] %vm968, %v1379
  %1396 = vst.msk [vmem:[%s10 + $0x60] sm:$0xff] %vm968, %v1380
  %1397 = vst.msk [vmem:[%s10 + $0x68] sm:$0xff] %vm968, %v1381
  %1398 = vst.msk [vmem:[%s10 + $0x70] sm:$0xff] %vm968, %v1382
  %1399 = vst.msk [vmem:[%s10 + $0x78] sm:$0xff] %vm968, %v1383
  // Predicated region
  $region38: #{_lambda_.13} parent=0 // pred_check
    _
  $region39: #{_lambda_.13} parent=0 // pred_check_branch
    %1401 = sbr.rel (0) target = $region41
  $region40: #{_lambda_.13} parent=0 // pred_region
    _
  $region41: #{_lambda_.13} parent=0 // pred_fallthru
    _
  // Predicated region
  $region42: #{_lambda_.13} parent=0 // pred_check
    _
  $region43: #{_lambda_.13} parent=0 // pred_check_branch
    %1403 = sbr.rel (0) target = $region45
  $region44: #{_lambda_.13} parent=0 // pred_region
    _
  $region45: #{_lambda_.13} parent=0 // pred_fallthru
    _
  // Predicated region
  $region46: #{_lambda_.13} parent=0 // pred_check
    _
  $region47: #{_lambda_.13} parent=0 // pred_check_branch
    %1405 = sbr.rel (0) target = $region49
  $region48: #{_lambda_.13} parent=0 // pred_region
    _
  $region49: #{_lambda_.13} parent=0 // pred_fallthru
    _
  // Predicated region
  $region50: #{_lambda_.13} parent=0 // pred_check
    _
  $region51: #{_lambda_.13} parent=0 // pred_check_branch
    %1407 = sbr.rel (0) target = $region53
  $region52: #{_lambda_.13} parent=0 // pred_region
    _
  $region53: #{_lambda_.13} parent=0 // pred_fallthru
    _

// kernel: _lambda_.14
$region0: #{_lambda_.14}
  #allocation0 [shape = 'u32[]', space=smem, size = 0x4, offset = 0x4, fixed_abs, tag = 'smem constant byte address 0x4 - core index']
  #allocation1 [shape = 'u32[72,128]{1,0:T(1,128)}', space=vmem, size = 0x9000, scoped, tag = 'internal scratch']
  %s0 = inlined_call_operand.vmem [shape: f32[2,10,10,32], index: 0, kind: input, shape index: {}]
  %s1 = inlined_call_operand.vmem [shape: f32[2,8,8,32], index: 1, kind: input, shape index: {}]
  %s2 = inlined_call_operand.vmem [shape: f32[2,8,8,32], index: 2, kind: input, shape index: {}]
  %s3 = inlined_call_operand.vmem [shape: bf16[288,32], index: 3, kind: input, shape index: {}]
  %s4 = inlined_call_operand.vmem [shape: f32[1,32], index: 4, kind: input, shape index: {}]
  %s5 = inlined_call_operand.vmem [shape: f32[1,32], index: 5, kind: input, shape index: {}, may-alias: {5,6}]
  %s6 = inlined_call_operand.vmem [shape: f32[1,32], index: 6, kind: input, shape index: {}, may-alias: {5,6}]
  %s7 = inlined_call_operand.vmem [shape: f32[2,8,8,32], index: 7, kind: output, shape index: {}]
  %s8 = sld [smem:[#allocation0]]
  $region61: #{_lambda_.14} parent=0
    _
  %s10 = ssub.s32 1, %s8
  %s11 = scalar_select 0, %s10, %s8
  loop: start=0, step=1, limit=4
  $region2: #{_lambda_.14} parent=0 // loop_pre_header
    _
  $region3: #{_lambda_.14} parent=0 // loop_header
    %s13 = sphi 0, %s17
    %p14 = scmp.ge.s32.totalorder %s13, 4
    %s23 = sphi 0, %s25
    %s26 = sphi 0, %s23
    %s27 = sphi 0, %s26
    %s43 = sphi 0, %s27
    %s49 = sphi 0, %s51
    %s52 = sphi 0, %s49
    %s53 = sphi 0, %s52
    %s69 = sphi 0, %s53
    %s75 = sphi 0, %s77
    %s78 = sphi 0, %s75
    %s79 = sphi 0, %s78
    %s95 = sphi 0, %s79
    %s99 = sphi 0, %s99
    %s101 = sphi 0, %s99
    %s102 = sphi 0, %s101
    %s116 = sphi 0, %s102
    %s120 = sphi 0, %s120
    %s122 = sphi 0, %s120
    %s123 = sphi 0, %s122
    %s137 = sphi 0, %s123
    %s141 = sphi 0, %s141
    %s143 = sphi 0, %s141
    %s144 = sphi 0, %s143
    %s158 = sphi 0, %s144
    %s162 = sphi 0, %s162
    %s164 = sphi 0, %s162
    %s165 = sphi 0, %s164
    %s179 = sphi 0, %s165
    %s185 = sphi 0, %s187
    %s188 = sphi 0, %s185
    %s189 = sphi 0, %s188
    %s205 = sphi 0, %s189
  $region4: #{_lambda_.14} parent=0 // loop_header_branch
    %16 = sbr.rel (%p14) target = $region8
  $region5: #{_lambda_.14} parent=0 // loop_body
    %s18 = ssub.s32 %s13, 1
    %s19 = ssub.s32 %s13, 2
    %s20 = sadd.s32 %s13, 1
    %s21 = ssub.s32 %s13, %s20
    %p22 = scmp.eq.s32.totalorder %s21, 0
    %s24 = sadd.s32 %s23, 1
    %s25 = scalar_select %p22, %s23, %s24
    %p28 = pneg %p22
    %p29 = scmp.eq.s32.totalorder %s13, 1
    %p30 = por %p28, %p29
    %p31 = scmp.ne.s32.totalorder %s23, %s26
    %p32 = scmp.eq.s32.totalorder %s13, 0
    %p33 = por %p31, %p32
    %p34 = scmp.ne.s32.totalorder %s23, %s26
    %p35 = scmp.eq.s32.totalorder %s18, 1
    %p36 = por %p34, %p35
    %p37 = scmp.ne.s32.totalorder %s26, %s27
    %p38 = scmp.eq.s32.totalorder %s18, 0
    %p39 = por %p37, %p38
    %p40 = scmp.ne.s32.totalorder %s26, %s27
    %p41 = scmp.eq.s32.totalorder %s19, 1
    %p42 = por %p40, %p41
    %p44 = scmp.ne.s32.totalorder %s27, %s43
    %p45 = scmp.eq.s32.totalorder %s19, 0
    %p46 = por %p44, %p45
    %s47 = ssub.s32 %s13, %s20
    %p48 = scmp.eq.s32.totalorder %s47, 0
    %s50 = sadd.s32 %s49, 1
    %s51 = scalar_select %p48, %s49, %s50
    %p54 = pneg %p48
    %p55 = scmp.eq.s32.totalorder %s13, 1
    %p56 = por %p54, %p55
    %p57 = scmp.ne.s32.totalorder %s49, %s52
    %p58 = scmp.eq.s32.totalorder %s13, 0
    %p59 = por %p57, %p58
    %p60 = scmp.ne.s32.totalorder %s49, %s52
    %p61 = scmp.eq.s32.totalorder %s18, 1
    %p62 = por %p60, %p61
    %p63 = scmp.ne.s32.totalorder %s52, %s53
    %p64 = scmp.eq.s32.totalorder %s18, 0
    %p65 = por %p63, %p64
    %p66 = scmp.ne.s32.totalorder %s52, %s53
    %p67 = scmp.eq.s32.totalorder %s19, 1
    %p68 = por %p66, %p67
    %p70 = scmp.ne.s32.totalorder %s53, %s69
    %p71 = scmp.eq.s32.totalorder %s19, 0
    %p72 = por %p70, %p71
    %s73 = ssub.s32 %s13, %s20
    %p74 = scmp.eq.s32.totalorder %s73, 0
    %s76 = sadd.s32 %s75, 1
    %s77 = scalar_select %p74, %s75, %s76
    %p80 = pneg %p74
    %p81 = scmp.eq.s32.totalorder %s13, 1
    %p82 = por %p80, %p81
    %p83 = scmp.ne.s32.totalorder %s75, %s78
    %p84 = scmp.eq.s32.totalorder %s13, 0
    %p85 = por %p83, %p84
    %p86 = scmp.ne.s32.totalorder %s75, %s78
    %p87 = scmp.eq.s32.totalorder %s18, 1
    %p88 = por %p86, %p87
    %p89 = scmp.ne.s32.totalorder %s78, %s79
    %p90 = scmp.eq.s32.totalorder %s18, 0
    %p91 = por %p89, %p90
    %p92 = scmp.ne.s32.totalorder %s78, %s79
    %p93 = scmp.eq.s32.totalorder %s19, 1
    %p94 = por %p92, %p93
    %p96 = scmp.ne.s32.totalorder %s79, %s95
    %p97 = scmp.eq.s32.totalorder %s19, 0
    %p98 = por %p96, %p97
    %s100 = sadd.s32 %s99, 1
    %p103 = scmp.eq.s32.totalorder %s13, 1
    %p104 = scmp.ne.s32.totalorder %s99, %s101
    %p105 = scmp.eq.s32.totalorder %s13, 0
    %p106 = por %p104, %p105
    %p107 = scmp.ne.s32.totalorder %s99, %s101
    %p108 = scmp.eq.s32.totalorder %s18, 1
    %p109 = por %p107, %p108
    %p110 = scmp.ne.s32.totalorder %s101, %s102
    %p111 = scmp.eq.s32.totalorder %s18, 0
    %p112 = por %p110, %p111
    %p113 = scmp.ne.s32.totalorder %s101, %s102
    %p114 = scmp.eq.s32.totalorder %s19, 1
    %p115 = por %p113, %p114
    %p117 = scmp.ne.s32.totalorder %s102, %s116
    %p118 = scmp.eq.s32.totalorder %s19, 0
    %p119 = por %p117, %p118
    %s121 = sadd.s32 %s120, 1
    %p124 = scmp.eq.s32.totalorder %s13, 1
    %p125 = scmp.ne.s32.totalorder %s120, %s122
    %p126 = scmp.eq.s32.totalorder %s13, 0
    %p127 = por %p125, %p126
    %p128 = scmp.ne.s32.totalorder %s120, %s122
    %p129 = scmp.eq.s32.totalorder %s18, 1
    %p130 = por %p128, %p129
    %p131 = scmp.ne.s32.totalorder %s122, %s123
    %p132 = scmp.eq.s32.totalorder %s18, 0
    %p133 = por %p131, %p132
    %p134 = scmp.ne.s32.totalorder %s122, %s123
    %p135 = scmp.eq.s32.totalorder %s19, 1
    %p136 = por %p134, %p135
    %p138 = scmp.ne.s32.totalorder %s123, %s137
    %p139 = scmp.eq.s32.totalorder %s19, 0
    %p140 = por %p138, %p139
    %s142 = sadd.s32 %s141, 1
    %p145 = scmp.eq.s32.totalorder %s13, 1
    %p146 = scmp.ne.s32.totalorder %s141, %s143
    %p147 = scmp.eq.s32.totalorder %s13, 0
    %p148 = por %p146, %p147
    %p149 = scmp.ne.s32.totalorder %s141, %s143
    %p150 = scmp.eq.s32.totalorder %s18, 1
    %p151 = por %p149, %p150
    %p152 = scmp.ne.s32.totalorder %s143, %s144
    %p153 = scmp.eq.s32.totalorder %s18, 0
    %p154 = por %p152, %p153
    %p155 = scmp.ne.s32.totalorder %s143, %s144
    %p156 = scmp.eq.s32.totalorder %s19, 1
    %p157 = por %p155, %p156
    %p159 = scmp.ne.s32.totalorder %s144, %s158
    %p160 = scmp.eq.s32.totalorder %s19, 0
    %p161 = por %p159, %p160
    %s163 = sadd.s32 %s162, 1
    %p166 = scmp.eq.s32.totalorder %s13, 1
    %p167 = scmp.ne.s32.totalorder %s162, %s164
    %p168 = scmp.eq.s32.totalorder %s13, 0
    %p169 = por %p167, %p168
    %p170 = scmp.ne.s32.totalorder %s162, %s164
    %p171 = scmp.eq.s32.totalorder %s18, 1
    %p172 = por %p170, %p171
    %p173 = scmp.ne.s32.totalorder %s164, %s165
    %p174 = scmp.eq.s32.totalorder %s18, 0
    %p175 = por %p173, %p174
    %p176 = scmp.ne.s32.totalorder %s164, %s165
    %p177 = scmp.eq.s32.totalorder %s19, 1
    %p178 = por %p176, %p177
    %p180 = scmp.ne.s32.totalorder %s165, %s179
    %p181 = scmp.eq.s32.totalorder %s19, 0
    %p182 = por %p180, %p181
    %s183 = ssub.s32 %s13, %s20
    %p184 = scmp.eq.s32.totalorder %s183, 0
    %s186 = sadd.s32 %s185, 1
    %s187 = scalar_select %p184, %s185, %s186
    %p190 = pneg %p184
    %p191 = scmp.eq.s32.totalorder %s13, 1
    %p192 = por %p190, %p191
    %p193 = scmp.ne.s32.totalorder %s185, %s188
    %p194 = scmp.eq.s32.totalorder %s13, 0
    %p195 = por %p193, %p194
    %p196 = scmp.ne.s32.totalorder %s185, %s188
    %p197 = scmp.eq.s32.totalorder %s18, 1
    %p198 = por %p196, %p197
    %p199 = scmp.ne.s32.totalorder %s188, %s189
    %p200 = scmp.eq.s32.totalorder %s18, 0
    %p201 = por %p199, %p200
    %p202 = scmp.ne.s32.totalorder %s188, %s189
    %p203 = scmp.eq.s32.totalorder %s19, 1
    %p204 = por %p202, %p203
    %p206 = scmp.ne.s32.totalorder %s189, %s205
    %p207 = scmp.eq.s32.totalorder %s19, 0
    %p208 = por %p206, %p207
    %p209 = scmp.le.s32.totalorder 1, %s13
    %p210 = scmp.lt.s32.totalorder %s13, 3
    %p211 = pnand %p209, %p210
    %p212 = pneg %p211
    // Predicated region
    $region9: #{_lambda_.14} parent=5 // pred_check
      _
    $region10: #{_lambda_.14} parent=5 // pred_check_branch
      %214 = sbr.rel (%p211) target = $region12
    $region11: #{_lambda_.14} parent=5 // pred_region
      %s215 = ssub.s32 %s13, 1
      // Predicated region
      $region13: #{_lambda_.14} parent=11 // pred_check
        %p216 = pneg %p112
      $region14: #{_lambda_.14} parent=11 // pred_check_branch
        %218 = sbr.rel (%p216) target = $region16
      $region15: #{_lambda_.14} parent=11 // pred_region
        _
      $region16: #{_lambda_.14} parent=11 // pred_fallthru
        _
      // Predicated region
      $region17: #{_lambda_.14} parent=11 // pred_check
        %p219 = pneg %p133
      $region18: #{_lambda_.14} parent=11 // pred_check_branch
        %221 = sbr.rel (%p219) target = $region20
      $region19: #{_lambda_.14} parent=11 // pred_region
        _
      $region20: #{_lambda_.14} parent=11 // pred_fallthru
        _
      // Predicated region
      $region21: #{_lambda_.14} parent=11 // pred_check
        %p222 = pneg %p154
      $region22: #{_lambda_.14} parent=11 // pred_check_branch
        %224 = sbr.rel (%p222) target = $region24
      $region23: #{_lambda_.14} parent=11 // pred_region
        _
      $region24: #{_lambda_.14} parent=11 // pred_fallthru
        _
      // Predicated region
      $region25: #{_lambda_.14} parent=11 // pred_check
        %p225 = pneg %p175
      $region26: #{_lambda_.14} parent=11 // pred_check_branch
        %227 = sbr.rel (%p225) target = $region28
      $region27: #{_lambda_.14} parent=11 // pred_region
        _
      $region28: #{_lambda_.14} parent=11 // pred_fallthru
        _
    $region12: #{_lambda_.14} parent=5 // pred_fallthru
      _
    %p228 = scmp.lt.s32.totalorder %s13, 2
    // Predicated region
    $region29: #{_lambda_.14} parent=5 // pred_check
      %p229 = pneg %p228
    $region30: #{_lambda_.14} parent=5 // pred_check_branch
      %231 = sbr.rel (%p229) target = $region32
    $region31: #{_lambda_.14} parent=5 // pred_region
      // Predicated region
      $region33: #{_lambda_.14} parent=31 // pred_check
        %p232 = pneg %p33
      $region34: #{_lambda_.14} parent=31 // pred_check_branch
        %234 = sbr.rel (%p232) target = $region36
      $region35: #{_lambda_.14} parent=31 // pred_region
        %p235 = scmp.lt.s32.totalorder %s13, 1
        %s236 = scalar_select %p235, %s13, 1
        %s237 = smul.addr %s236, 20
        %s238 = smul.addr %s237, 8
        %s239 = scalar_lea.vmem %s0, %s238
      $region36: #{_lambda_.14} parent=31 // pred_fallthru
        _
      // Predicated region
      $region37: #{_lambda_.14} parent=31 // pred_check
        %p240 = pneg %p59
      $region38: #{_lambda_.14} parent=31 // pred_check_branch
        %242 = sbr.rel (%p240) target = $region40
      $region39: #{_lambda_.14} parent=31 // pred_region
        %p243 = scmp.lt.s32.totalorder %s13, 1
        %s244 = scalar_select %p243, %s13, 1
        %s245 = smul.addr %s244, 8
        %s246 = smul.addr %s245, 8
        %s247 = scalar_lea.vmem %s1, %s246
      $region40: #{_lambda_.14} parent=31 // pred_fallthru
        _
      // Predicated region
      $region41: #{_lambda_.14} parent=31 // pred_check
        %p248 = pneg %p85
      $region42: #{_lambda_.14} parent=31 // pred_check_branch
        %250 = sbr.rel (%p248) target = $region44
      $region43: #{_lambda_.14} parent=31 // pred_region
        %p251 = scmp.lt.s32.totalorder %s13, 1
        %s252 = scalar_select %p251, %s13, 1
        %s253 = smul.addr %s252, 8
        %s254 = smul.addr %s253, 8
        %s255 = scalar_lea.vmem %s2, %s254
      $region44: #{_lambda_.14} parent=31 // pred_fallthru
        _
    $region32: #{_lambda_.14} parent=5 // pred_fallthru
      _
    %p256 = scmp.le.s32.totalorder 1, %s13
    %p257 = scmp.lt.s32.totalorder %s13, 3
    %p258 = pnand %p256, %p257
    %p259 = pneg %p258
    // Predicated region
    $region45: #{_lambda_.14} parent=5 // pred_check
      _
    $region46: #{_lambda_.14} parent=5 // pred_check_branch
      %261 = sbr.rel (%p258) target = $region48
    $region47: #{_lambda_.14} parent=5 // pred_region
      %s262 = ssub.s32 %s13, 1
      %p263 = scmp.lt.s32.totalorder %s18, 1
      %s264 = scalar_select %p263, %s18, 1
      %s265 = smul.addr %s264, 20
      %s266 = smul.addr %s265, 8
      %s267 = scalar_lea.vmem %s0, %s266
      %p268 = pneg %p39
      %p269 = pneg %p36
      %p270 = scmp.lt.s32.totalorder %s18, 1
      %s271 = scalar_select %p270, %s18, 1
      %s272 = smul.addr %s271, 8
      %s273 = smul.addr %s272, 8
      %s274 = scalar_lea.vmem %s1, %s273
      %p275 = pneg %p65
      %p276 = pneg %p62
      %p277 = scmp.lt.s32.totalorder %s18, 1
      %s278 = scalar_select %p277, %s18, 1
      %s279 = smul.addr %s278, 8
      %s280 = smul.addr %s279, 8
      %s281 = scalar_lea.vmem %s2, %s280
      %p282 = pneg %p91
      %p283 = pneg %p88
      %p284 = pneg %p112
      %p285 = pneg %p109
      %p286 = pneg %p133
      %p287 = pneg %p130
      %p288 = pneg %p154
      %p289 = pneg %p151
      %p290 = pneg %p175
      %p291 = pneg %p172
      %p292 = pneg %p201
      %p293 = pneg %p198
      %p294 = scmp.lt.s32.totalorder %s18, 1
      %s295 = scalar_select %p294, %s18, 1
      %s296 = smul.addr %s295, 8
      %s297 = smul.addr %s296, 8
      %s298 = scalar_lea.vmem %s7, %s297
      %p299 = scmp.lt.s32.totalorder %s18, 1
      %s300 = scalar_select %p299, %s18, 1
      %s301 = smul.addr %s300, 20
      %s302 = smul.addr %s301, 8
      %s303 = scalar_lea.vmem %s0, %s302
      %p304 = scmp.lt.s32.totalorder %s18, 1
      %s305 = scalar_select %p304, %s18, 1
      %s306 = smul.addr %s305, 8
      %s307 = smul.addr %s306, 8
      %s308 = scalar_lea.vmem %s1, %s307
      %p309 = scmp.lt.s32.totalorder %s18, 1
      %s310 = scalar_select %p309, %s18, 1
      %s311 = smul.addr %s310, 8
      %s312 = smul.addr %s311, 8
      %s313 = scalar_lea.vmem %s2, %s312
      %p314 = scmp.lt.s32.totalorder %s18, 1
      %s315 = scalar_select %p314, %s18, 1
      %s316 = smul.addr %s315, 8
      %s317 = smul.addr %s316, 8
      %s318 = scalar_lea.vmem %s7, %s317
      %v320 = vld [vmem:[%s303] sm:$0xff]
      %v321 = vld [vmem:[%s303 + $0x10] sm:$0xff]
      %v322 = vld [vmem:[%s303 + $0x20] sm:$0xff]
      %v323 = vld [vmem:[%s303 + $0x30] sm:$0xff]
      %v324 = vld [vmem:[%s303 + $0x40] sm:$0xff]
      %v325 = vld [vmem:[%s303 + $0x50] sm:$0xff]
      %v326 = vld [vmem:[%s303 + $0x60] sm:$0xff]
      %v327 = vld [vmem:[%s303 + $0x70] sm:$0xff]
      %v328 = vld [vmem:[%s303 + $0x1] sm:$0xff]
      %v329 = vld [vmem:[%s303 + $0x11] sm:$0xff]
      %v330 = vld [vmem:[%s303 + $0x21] sm:$0xff]
      %v331 = vld [vmem:[%s303 + $0x31] sm:$0xff]
      %v332 = vld [vmem:[%s303 + $0x41] sm:$0xff]
      %v333 = vld [vmem:[%s303 + $0x51] sm:$0xff]
      %v334 = vld [vmem:[%s303 + $0x61] sm:$0xff]
      %v335 = vld [vmem:[%s303 + $0x71] sm:$0xff]
      %v336 = vld [vmem:[%s303 + $0x2] sm:$0xff]
      %v337 = vld [vmem:[%s303 + $0x12] sm:$0xff]
      %v338 = vld [vmem:[%s303 + $0x22] sm:$0xff]
      %v339 = vld [vmem:[%s303 + $0x32] sm:$0xff]
      %v340 = vld [vmem:[%s303 + $0x42] sm:$0xff]
      %v341 = vld [vmem:[%s303 + $0x52] sm:$0xff]
      %v342 = vld [vmem:[%s303 + $0x62] sm:$0xff]
      %v343 = vld [vmem:[%s303 + $0x72] sm:$0xff]
      %s344 = scalar_lea.vmem %s303, 16
      %v345 = vld [vmem:[%s344] sm:$0xff]
      %v346 = vld [vmem:[%s344 + $0x10] sm:$0xff]
      %v347 = vld [vmem:[%s344 + $0x20] sm:$0xff]
      %v348 = vld [vmem:[%s344 + $0x30] sm:$0xff]
      %v349 = vld [vmem:[%s344 + $0x40] sm:$0xff]
      %v350 = vld [vmem:[%s344 + $0x50] sm:$0xff]
      %v351 = vld [vmem:[%s344 + $0x60] sm:$0xff]
      %v352 = vld [vmem:[%s344 + $0x70] sm:$0xff]
      %v353 = vld [vmem:[%s344 + $0x1] sm:$0xff]
      %v354 = vld [vmem:[%s344 + $0x11] sm:$0xff]
      %v355 = vld [vmem:[%s344 + $0x21] sm:$0xff]
      %v356 = vld [vmem:[%s344 + $0x31] sm:$0xff]
      %v357 = vld [vmem:[%s344 + $0x41] sm:$0xff]
      %v358 = vld [vmem:[%s344 + $0x51] sm:$0xff]
      %v359 = vld [vmem:[%s344 + $0x61] sm:$0xff]
      %v360 = vld [vmem:[%s344 + $0x71] sm:$0xff]
      %v361 = vld [vmem:[%s344 + $0x2] sm:$0xff]
      %v362 = vld [vmem:[%s344 + $0x12] sm:$0xff]
      %v363 = vld [vmem:[%s344 + $0x22] sm:$0xff]
      %v364 = vld [vmem:[%s344 + $0x32] sm:$0xff]
      %v365 = vld [vmem:[%s344 + $0x42] sm:$0xff]
      %v366 = vld [vmem:[%s344 + $0x52] sm:$0xff]
      %v367 = vld [vmem:[%s344 + $0x62] sm:$0xff]
      %v368 = vld [vmem:[%s344 + $0x72] sm:$0xff]
      %s369 = scalar_lea.vmem %s303, 32
      %v370 = vld [vmem:[%s369] sm:$0xff]
      %v371 = vld [vmem:[%s369 + $0x10] sm:$0xff]
      %v372 = vld [vmem:[%s369 + $0x20] sm:$0xff]
      %v373 = vld [vmem:[%s369 + $0x30] sm:$0xff]
      %v374 = vld [vmem:[%s369 + $0x40] sm:$0xff]
      %v375 = vld [vmem:[%s369 + $0x50] sm:$0xff]
      %v376 = vld [vmem:[%s369 + $0x60] sm:$0xff]
      %v377 = vld [vmem:[%s369 + $0x70] sm:$0xff]
      %v378 = vld [vmem:[%s369 + $0x1] sm:$0xff]
      %v379 = vld [vmem:[%s369 + $0x11] sm:$0xff]
      %v380 = vld [vmem:[%s369 + $0x21] sm:$0xff]
      %v381 = vld [vmem:[%s369 + $0x31] sm:$0xff]
      %v382 = vld [vmem:[%s369 + $0x41] sm:$0xff]
      %v383 = vld [vmem:[%s369 + $0x51] sm:$0xff]
      %v384 = vld [vmem:[%s369 + $0x61] sm:$0xff]
      %v385 = vld [vmem:[%s369 + $0x71] sm:$0xff]
      %v386 = vld [vmem:[%s369 + $0x2] sm:$0xff]
      %v387 = vld [vmem:[%s369 + $0x12] sm:$0xff]
      %v388 = vld [vmem:[%s369 + $0x22] sm:$0xff]
      %v389 = vld [vmem:[%s369 + $0x32] sm:$0xff]
      %v390 = vld [vmem:[%s369 + $0x42] sm:$0xff]
      %v391 = vld [vmem:[%s369 + $0x52] sm:$0xff]
      %v392 = vld [vmem:[%s369 + $0x62] sm:$0xff]
      %v393 = vld [vmem:[%s369 + $0x72] sm:$0xff]
      %402 = vrot.lane.b32.xlu0 %v328, 32
      %v403 = vpop.permute.xlu0 %402
      %404 = vrot.lane.b32.xlu0 %v329, 32
      %v405 = vpop.permute.xlu0 %404
      %406 = vrot.lane.b32.xlu0 %v330, 32
      %v407 = vpop.permute.xlu0 %406
      %408 = vrot.lane.b32.xlu0 %v331, 32
      %v409 = vpop.permute.xlu0 %408
      %410 = vrot.lane.b32.xlu0 %v332, 32
      %v411 = vpop.permute.xlu0 %410
      %412 = vrot.lane.b32.xlu0 %v333, 32
      %v413 = vpop.permute.xlu0 %412
      %414 = vrot.lane.b32.xlu0 %v334, 32
      %v415 = vpop.permute.xlu0 %414
      %416 = vrot.lane.b32.xlu0 %v335, 32
      %v417 = vpop.permute.xlu0 %416
      %434 = vrot.lane.b32.xlu0 %v336, 64
      %v435 = vpop.permute.xlu0 %434
      %436 = vrot.lane.b32.xlu0 %v337, 64
      %v437 = vpop.permute.xlu0 %436
      %438 = vrot.lane.b32.xlu0 %v338, 64
      %v439 = vpop.permute.xlu0 %438
      %440 = vrot.lane.b32.xlu0 %v339, 64
      %v441 = vpop.permute.xlu0 %440
      %442 = vrot.lane.b32.xlu0 %v340, 64
      %v443 = vpop.permute.xlu0 %442
      %444 = vrot.lane.b32.xlu0 %v341, 64
      %v445 = vpop.permute.xlu0 %444
      %446 = vrot.lane.b32.xlu0 %v342, 64
      %v447 = vpop.permute.xlu0 %446
      %448 = vrot.lane.b32.xlu0 %v343, 64
      %v449 = vpop.permute.xlu0 %448
      %466 = vrot.lane.b32.xlu0 %v345, 96
      %v467 = vpop.permute.xlu0 %466
      %468 = vrot.lane.b32.xlu0 %v346, 96
      %v469 = vpop.permute.xlu0 %468
      %470 = vrot.lane.b32.xlu0 %v347, 96
      %v471 = vpop.permute.xlu0 %470
      %472 = vrot.lane.b32.xlu0 %v348, 96
      %v473 = vpop.permute.xlu0 %472
      %474 = vrot.lane.b32.xlu0 %v349, 96
      %v475 = vpop.permute.xlu0 %474
      %476 = vrot.lane.b32.xlu0 %v350, 96
      %v477 = vpop.permute.xlu0 %476
      %478 = vrot.lane.b32.xlu0 %v351, 96
      %v479 = vpop.permute.xlu0 %478
      %480 = vrot.lane.b32.xlu0 %v352, 96
      %v481 = vpop.permute.xlu0 %480
      %498 = vrot.lane.b32.xlu0 %v361, 32
      %v499 = vpop.permute.xlu0 %498
      %500 = vrot.lane.b32.xlu0 %v362, 32
      %v501 = vpop.permute.xlu0 %500
      %502 = vrot.lane.b32.xlu0 %v363, 32
      %v503 = vpop.permute.xlu0 %502
      %504 = vrot.lane.b32.xlu0 %v364, 32
      %v505 = vpop.permute.xlu0 %504
      %506 = vrot.lane.b32.xlu0 %v365, 32
      %v507 = vpop.permute.xlu0 %506
      %508 = vrot.lane.b32.xlu0 %v366, 32
      %v509 = vpop.permute.xlu0 %508
      %510 = vrot.lane.b32.xlu0 %v367, 32
      %v511 = vpop.permute.xlu0 %510
      %512 = vrot.lane.b32.xlu0 %v368, 32
      %v513 = vpop.permute.xlu0 %512
      %530 = vrot.lane.b32.xlu0 %v370, 64
      %v531 = vpop.permute.xlu0 %530
      %532 = vrot.lane.b32.xlu0 %v371, 64
      %v533 = vpop.permute.xlu0 %532
      %534 = vrot.lane.b32.xlu0 %v372, 64
      %v535 = vpop.permute.xlu0 %534
      %536 = vrot.lane.b32.xlu0 %v373, 64
      %v537 = vpop.permute.xlu0 %536
      %538 = vrot.lane.b32.xlu0 %v374, 64
      %v539 = vpop.permute.xlu0 %538
      %540 = vrot.lane.b32.xlu0 %v375, 64
      %v541 = vpop.permute.xlu0 %540
      %542 = vrot.lane.b32.xlu0 %v376, 64
      %v543 = vpop.permute.xlu0 %542
      %544 = vrot.lane.b32.xlu0 %v377, 64
      %v545 = vpop.permute.xlu0 %544
      %562 = vrot.lane.b32.xlu0 %v378, 96
      %v563 = vpop.permute.xlu0 %562
      %564 = vrot.lane.b32.xlu0 %v379, 96
      %v565 = vpop.permute.xlu0 %564
      %566 = vrot.lane.b32.xlu0 %v380, 96
      %v567 = vpop.permute.xlu0 %566
      %568 = vrot.lane.b32.xlu0 %v381, 96
      %v569 = vpop.permute.xlu0 %568
      %570 = vrot.lane.b32.xlu0 %v382, 96
      %v571 = vpop.permute.xlu0 %570
      %572 = vrot.lane.b32.xlu0 %v383, 96
      %v573 = vpop.permute.xlu0 %572
      %574 = vrot.lane.b32.xlu0 %v384, 96
      %v575 = vpop.permute.xlu0 %574
      %576 = vrot.lane.b32.xlu0 %v385, 96
      %v577 = vpop.permute.xlu0 %576
      %vm586 = vcmask 261120
      %v587 = vsel %vm586, %v320, %v403
      %v588 = vsel %vm586, %v321, %v405
      %v589 = vsel %vm586, %v322, %v407
      %v590 = vsel %vm586, %v323, %v409
      %v591 = vsel %vm586, %v324, %v411
      %v592 = vsel %vm586, %v325, %v413
      %v593 = vsel %vm586, %v326, %v415
      %v594 = vsel %vm586, %v327, %v417
      %vm595 = vcmask 523264
      %v596 = vsel %vm595, %v587, %v435
      %v597 = vsel %vm595, %v588, %v437
      %v598 = vsel %vm595, %v589, %v439
      %v599 = vsel %vm595, %v590, %v441
      %v600 = vsel %vm595, %v591, %v443
      %v601 = vsel %vm595, %v592, %v445
      %v602 = vsel %vm595, %v593, %v447
      %v603 = vsel %vm595, %v594, %v449
      %vm604 = vcmask 785408
      %v605 = vsel %vm604, %v596, %v467
      %v606 = vsel %vm604, %v597, %v469
      %v607 = vsel %vm604, %v598, %v471
      %v608 = vsel %vm604, %v599, %v473
      %v609 = vsel %vm604, %v600, %v475
      %v610 = vsel %vm604, %v601, %v477
      %v611 = vsel %vm604, %v602, %v479
      %v612 = vsel %vm604, %v603, %v481
      %v613 = vsel %vm586, %v353, %v499
      %v614 = vsel %vm586, %v354, %v501
      %v615 = vsel %vm586, %v355, %v503
      %v616 = vsel %vm586, %v356, %v505
      %v617 = vsel %vm586, %v357, %v507
      %v618 = vsel %vm586, %v358, %v509
      %v619 = vsel %vm586, %v359, %v511
      %v620 = vsel %vm586, %v360, %v513
      %v621 = vsel %vm595, %v613, %v531
      %v622 = vsel %vm595, %v614, %v533
      %v623 = vsel %vm595, %v615, %v535
      %v624 = vsel %vm595, %v616, %v537
      %v625 = vsel %vm595, %v617, %v539
      %v626 = vsel %vm595, %v618, %v541
      %v627 = vsel %vm595, %v619, %v543
      %v628 = vsel %vm595, %v620, %v545
      %v629 = vsel %vm604, %v621, %v563
      %v630 = vsel %vm604, %v622, %v565
      %v631 = vsel %vm604, %v623, %v567
      %v632 = vsel %vm604, %v624, %v569
      %v633 = vsel %vm604, %v625, %v571
      %v634 = vsel %vm604, %v626, %v573
      %v635 = vsel %vm604, %v627, %v575
      %v636 = vsel %vm604, %v628, %v577
      %v637 = vpack.c.bf16 %v629, %v605
      %v638 = vpack.c.bf16 %v386, %v386
      %v639 = vpack.c.bf16 %v630, %v606
      %v640 = vpack.c.bf16 %v387, %v387
      %v641 = vpack.c.bf16 %v631, %v607
      %v642 = vpack.c.bf16 %v388, %v388
      %v643 = vpack.c.bf16 %v632, %v608
      %v644 = vpack.c.bf16 %v389, %v389
      %v645 = vpack.c.bf16 %v633, %v609
      %v646 = vpack.c.bf16 %v390, %v390
      %v647 = vpack.c.bf16 %v634, %v610
      %v648 = vpack.c.bf16 %v391, %v391
      %v649 = vpack.c.bf16 %v635, %v611
      %v650 = vpack.c.bf16 %v392, %v392
      %v651 = vpack.c.bf16 %v636, %v612
      %v652 = vpack.c.bf16 %v393, %v393
      %v653 = vld [vmem:[%s3] sm:$0xf]
      %v654 = vld [vmem:[%s3 + $0x4] sm:$0xf]
      %v655 = vld [vmem:[%s3 + $0x8] sm:$0xf]
      %v656 = vld [vmem:[%s3 + $0xc] sm:$0xf]
      %v657 = vld [vmem:[%s3 + $0x10] sm:$0xf]
      %v658 = vld [vmem:[%s3 + $0x14] sm:$0xf]
      %v659 = vld [vmem:[%s3 + $0x18] sm:$0xf]
      %v660 = vld [vmem:[%s3 + $0x1c] sm:$0xf]
      %v661 = vld [vmem:[%s3 + $0x20] sm:$0xf]
      %v662 = vld [vmem:[%s3 + $0x24] sm:$0xf]
      %v663 = vld [vmem:[%s3 + $0x28] sm:$0xf]
      %v664 = vld [vmem:[%s3 + $0x2c] sm:$0xf]
      %v665 = vld [vmem:[%s3 + $0x30] sm:$0xf]
      %v666 = vld [vmem:[%s3 + $0x34] sm:$0xf]
      %v667 = vld [vmem:[%s3 + $0x38] sm:$0xf]
      %v668 = vld [vmem:[%s3 + $0x3c] sm:$0xf]
      %v669 = vld [vmem:[%s3 + $0x40] sm:$0xf]
      %v670 = vld [vmem:[%s3 + $0x44] sm:$0xf]
      %v671 = vld [vmem:[%s3 + $0x48] sm:$0xf]
      %v672 = vld [vmem:[%s3 + $0x4c] sm:$0xf]
      %v673 = vld [vmem:[%s3 + $0x50] sm:$0xf]
      %v674 = vld [vmem:[%s3 + $0x54] sm:$0xf]
      %v675 = vld [vmem:[%s3 + $0x58] sm:$0xf]
      %v676 = vld [vmem:[%s3 + $0x5c] sm:$0xf]
      %v677 = vld [vmem:[%s3 + $0x60] sm:$0xf]
      %v678 = vld [vmem:[%s3 + $0x64] sm:$0xf]
      %v679 = vld [vmem:[%s3 + $0x68] sm:$0xf]
      %v680 = vld [vmem:[%s3 + $0x6c] sm:$0xf]
      %v681 = vld [vmem:[%s3 + $0x70] sm:$0xf]
      %v682 = vld [vmem:[%s3 + $0x74] sm:$0xf]
      %v683 = vld [vmem:[%s3 + $0x78] sm:$0xf]
      %v684 = vld [vmem:[%s3 + $0x7c] sm:$0xf]
      %v685 = vld [vmem:[%s3 + $0x80] sm:$0xf]
      %v686 = vld [vmem:[%s3 + $0x84] sm:$0xf]
      %v687 = vld [vmem:[%s3 + $0x88] sm:$0xf]
      %v688 = vld [vmem:[%s3 + $0x8c] sm:$0xf]
      %v689 = vld [vmem:[%s4] sm:$0x1]
      %v691 = vperm.slane %v689, 0
      %v709 = vunpack.c.l.b16 %v637
      %v710 = vunpack.c.h.b16 %v637
      %v711 = vunpack.c.l.b16 %v638
      %v712 = vunpack.c.l.b16 %v639
      %v713 = vunpack.c.h.b16 %v639
      %v714 = vunpack.c.l.b16 %v640
      %v715 = vunpack.c.l.b16 %v641
      %v716 = vunpack.c.h.b16 %v641
      %v717 = vunpack.c.l.b16 %v642
      %v718 = vunpack.c.l.b16 %v643
      %v719 = vunpack.c.h.b16 %v643
      %v720 = vunpack.c.l.b16 %v644
      %v721 = vunpack.c.l.b16 %v645
      %v722 = vunpack.c.h.b16 %v645
      %v723 = vunpack.c.l.b16 %v646
      %v724 = vunpack.c.l.b16 %v647
      %v725 = vunpack.c.h.b16 %v647
      %v726 = vunpack.c.l.b16 %v648
      %v727 = vunpack.c.l.b16 %v649
      %v728 = vunpack.c.h.b16 %v649
      %v729 = vunpack.c.l.b16 %v650
      %v730 = vunpack.c.l.b16 %v651
      %v731 = vunpack.c.h.b16 %v651
      %v732 = vunpack.c.l.b16 %v652
      %v733 = vpack.c.b16 %v712, %v709
      %v734 = vpack.c.b16 %v713, %v710
      %v735 = vpack.c.b16 %v714, %v711
      %v736 = vpack.c.b16 %v718, %v715
      %v737 = vpack.c.b16 %v719, %v716
      %v738 = vpack.c.b16 %v720, %v717
      %v739 = vpack.c.b16 %v724, %v721
      %v740 = vpack.c.b16 %v725, %v722
      %v741 = vpack.c.b16 %v726, %v723
      %v742 = vpack.c.b16 %v730, %v727
      %v743 = vpack.c.b16 %v731, %v728
      %v744 = vpack.c.b16 %v732, %v729
      %v789 = vunpack.c.l.b16 %v653
      %v790 = vunpack.c.l.b16 %v654
      %v791 = vunpack.c.l.b16 %v655
      %v792 = vunpack.c.l.b16 %v656
      %v793 = vunpack.c.l.b16 %v657
      %v794 = vunpack.c.l.b16 %v658
      %v795 = vunpack.c.l.b16 %v659
      %v796 = vunpack.c.l.b16 %v660
      %v797 = vunpack.c.l.b16 %v661
      %v798 = vunpack.c.l.b16 %v662
      %v799 = vunpack.c.l.b16 %v663
      %v800 = vunpack.c.l.b16 %v664
      %v801 = vunpack.c.l.b16 %v665
      %v802 = vunpack.c.l.b16 %v666
      %v803 = vunpack.c.l.b16 %v667
      %v804 = vunpack.c.l.b16 %v668
      %v805 = vunpack.c.l.b16 %v669
      %v806 = vunpack.c.l.b16 %v670
      %v807 = vunpack.c.l.b16 %v671
      %v808 = vunpack.c.l.b16 %v672
      %v809 = vunpack.c.l.b16 %v673
      %v810 = vunpack.c.l.b16 %v674
      %v811 = vunpack.c.l.b16 %v675
      %v812 = vunpack.c.l.b16 %v676
      %v813 = vunpack.c.l.b16 %v677
      %v814 = vunpack.c.l.b16 %v678
      %v815 = vunpack.c.l.b16 %v679
      %v816 = vunpack.c.l.b16 %v680
      %v817 = vunpack.c.l.b16 %v681
      %v818 = vunpack.c.l.b16 %v682
      %v819 = vunpack.c.l.b16 %v683
      %v820 = vunpack.c.l.b16 %v684
      %v821 = vunpack.c.l.b16 %v685
      %v822 = vunpack.c.l.b16 %v686
      %v823 = vunpack.c.l.b16 %v687
      %v824 = vunpack.c.l.b16 %v688
      %v825 = vpack.c.b16 %v790, %v789
      %v826 = vpack.c.b16 %v792, %v791
      %v827 = vpack.c.b16 %v794, %v793
      %v828 = vpack.c.b16 %v796, %v795
      %v829 = vpack.c.b16 %v798, %v797
      %v830 = vpack.c.b16 %v800, %v799
      %v831 = vpack.c.b16 %v802, %v801
      %v832 = vpack.c.b16 %v804, %v803
      %v833 = vpack.c.b16 %v806, %v805
      %v834 = vpack.c.b16 %v808, %v807
      %v835 = vpack.c.b16 %v810, %v809
      %v836 = vpack.c.b16 %v812, %v811
      %v837 = vpack.c.b16 %v814, %v813
      %v838 = vpack.c.b16 %v816, %v815
      %v839 = vpack.c.b16 %v818, %v817
      %v840 = vpack.c.b16 %v820, %v819
      %v841 = vpack.c.b16 %v822, %v821
      %v842 = vpack.c.b16 %v824, %v823
      %v862 = vsel %vm586, %v735, 0
      %v865 = vsel %vm586, %v738, 0
      %v868 = vsel %vm586, %v741, 0
      %v871 = vsel %vm586, %v744, 0
      %873 = vmatpush.bf16.msra.mxu0 %v832
      %874 = vmatpush.bf16.msra.mxu0 %v831
      %875 = vmatpush.bf16.msra.mxu0 %v830
      %876 = vmatpush.bf16.msra.mxu0 %v829
      %877 = vmatpush.bf16.msra.mxu0 %v828
      %878 = vmatpush.bf16.msra.mxu0 %v827
      %879 = vmatpush.bf16.msra.mxu0 %v826
      %880 = vmatpush.bf16.msra.mxu0 %v825
      %881 = vmatmul.bf16.gmra.mxu0 %v733
      %v882 = vpop.f32.mrf.mxu0
      %v883 = vadd.f32 %v691, %v882
      %v884 = vpop.f32.mrf.mxu0
      %v885 = vadd.f32 %v691, %v884
      %886 = vmatmul.bf16.gmra.mxu0 %v736
      %v887 = vpop.f32.mrf.mxu0
      %v888 = vadd.f32 %v691, %v887
      %v889 = vpop.f32.mrf.mxu0
      %v890 = vadd.f32 %v691, %v889
      %891 = vmatmul.bf16.gmra.mxu0 %v739
      %v892 = vpop.f32.mrf.mxu0
      %v893 = vadd.f32 %v691, %v892
      %v894 = vpop.f32.mrf.mxu0
      %v895 = vadd.f32 %v691, %v894
      %896 = vmatmul.bf16.gmra.mxu0 %v742
      %v897 = vpop.f32.mrf.mxu0
      %v898 = vadd.f32 %v691, %v897
      %v899 = vpop.f32.mrf.mxu0
      %v900 = vadd.f32 %v691, %v899
      %901 = vdwg.mxu0
      %902 = vmatpush.bf16.msra.mxu0 %v840
      %903 = vmatpush.bf16.msra.mxu0 %v839
      %904 = vmatpush.bf16.msra.mxu0 %v838
      %905 = vmatpush.bf16.msra.mxu0 %v837
      %906 = vmatpush.bf16.msra.mxu0 %v836
      %907 = vmatpush.bf16.msra.mxu0 %v835
      %908 = vmatpush.bf16.msra.mxu0 %v834
      %909 = vmatpush.bf16.msra.mxu0 %v833
      %910 = vmatmul.bf16.gmra.mxu0 %v734
      %v911 = vpop.f32.mrf.mxu0
      %v912 = vadd.f32 %v883, %v911
      %v913 = vpop.f32.mrf.mxu0
      %v914 = vadd.f32 %v885, %v913
      %915 = vmatmul.bf16.gmra.mxu0 %v737
      %v916 = vpop.f32.mrf.mxu0
      %v917 = vadd.f32 %v888, %v916
      %v918 = vpop.f32.mrf.mxu0
      %v919 = vadd.f32 %v890, %v918
      %920 = vmatmul.bf16.gmra.mxu0 %v740
      %v921 = vpop.f32.mrf.mxu0
      %v922 = vadd.f32 %v893, %v921
      %v923 = vpop.f32.mrf.mxu0
      %v924 = vadd.f32 %v895, %v923
      %925 = vmatmul.bf16.gmra.mxu0 %v743
      %v926 = vpop.f32.mrf.mxu0
      %v927 = vadd.f32 %v898, %v926
      %v928 = vpop.f32.mrf.mxu0
      %v929 = vadd.f32 %v900, %v928
      %930 = vdwg.mxu0
      %931 = vmatpush.bf16.msra.mxu0 0
      %932 = vmatpush.bf16.msra.mxu0 0
      %933 = vmatpush.bf16.msra.mxu0 0
      %934 = vmatpush.bf16.msra.mxu0 0
      %935 = vmatpush.bf16.msra.mxu0 0
      %936 = vmatpush.bf16.msra.mxu0 0
      %937 = vmatpush.bf16.msra.mxu0 %v842
      %938 = vmatpush.bf16.msra.mxu0 %v841
      %939 = vmatmul.bf16.gmra.mxu0 %v862
      %v940 = vpop.f32.mrf.mxu0
      %v941 = vadd.f32 %v912, %v940
      %v942 = vpop.f32.mrf.mxu0
      %v943 = vadd.f32 %v914, %v942
      %944 = vmatmul.bf16.gmra.mxu0 %v865
      %v945 = vpop.f32.mrf.mxu0
      %v946 = vadd.f32 %v917, %v945
      %v947 = vpop.f32.mrf.mxu0
      %v948 = vadd.f32 %v919, %v947
      %949 = vmatmul.bf16.gmra.mxu0 %v868
      %v950 = vpop.f32.mrf.mxu0
      %v951 = vadd.f32 %v922, %v950
      %v952 = vpop.f32.mrf.mxu0
      %v953 = vadd.f32 %v924, %v952
      %954 = vmatmul.bf16.gmra.mxu0 %v871
      %v955 = vpop.f32.mrf.mxu0
      %v956 = vadd.f32 %v927, %v955
      %v957 = vpop.f32.mrf.mxu0
      %v958 = vadd.f32 %v929, %v957
      %959 = vdwg.mxu0
      %v960 = vxor.u32 %v941, 2147483648
      %v961 = vxor.u32 %v943, 2147483648
      %v962 = vxor.u32 %v946, 2147483648
      %v963 = vxor.u32 %v948, 2147483648
      %v964 = vxor.u32 %v951, 2147483648
      %v965 = vxor.u32 %v953, 2147483648
      %v966 = vxor.u32 %v956, 2147483648
      %v967 = vxor.u32 %v958, 2147483648
      %v968 = vmul.f32 %v960, 1.442695
      %v969 = vpow.pop %v968
      %v970 = vmul.f32 %v961, 1.442695
      %v971 = vpow.pop %v970
      %v972 = vmul.f32 %v962, 1.442695
      %v973 = vpow.pop %v972
      %v974 = vmul.f32 %v963, 1.442695
      %v975 = vpow.pop %v974
      %v976 = vmul.f32 %v964, 1.442695
      %v977 = vpow.pop %v976
      %v978 = vmul.f32 %v965, 1.442695
      %v979 = vpow.pop %v978
      %v980 = vmul.f32 %v966, 1.442695
      %v981 = vpow.pop %v980
      %v982 = vmul.f32 %v967, 1.442695
      %v983 = vpow.pop %v982
      %v984 = vadd.f32 %v969, 1.0
      %v985 = vadd.f32 %v971, 1.0
      %v986 = vadd.f32 %v973, 1.0
      %v987 = vadd.f32 %v975, 1.0
      %v988 = vadd.f32 %v977, 1.0
      %v989 = vadd.f32 %v979, 1.0
      %v990 = vadd.f32 %v981, 1.0
      %v991 = vadd.f32 %v983, 1.0
      %v992 = vrcp.pop %v984
      %v993 = vmul.f32 %v984, %v992
      %v994 = vsub.f32 1.0, %v993
      %v995 = vmul.f32 %v992, %v994
      %v996 = vadd.f32 %v992, %v995
      %vm997 = vweird.f32 %v984
      %vm998 = vweird.f32 %v992
      %vm999 = vmor %vm997, %vm998
      %v1000 = vsel %vm999, %v992, %v996
      %v1001 = vand.u32 2147483647, %v984
      %vm1002 = vcmp.eq.f32.partialorder %v1001, 8.507059e+37
      %v1003 = vand.u32 %v984, 2147483648
      %v1004 = vor.u32 1.1754944e-38, %v1003
      %v1005 = vsel %vm1002, %v1004, %v1000
      %v1006 = vmul.f32 1.0, %v1005
      %v1007 = vrcp.pop %v985
      %v1008 = vmul.f32 %v985, %v1007
      %v1009 = vsub.f32 1.0, %v1008
      %v1010 = vmul.f32 %v1007, %v1009
      %v1011 = vadd.f32 %v1007, %v1010
      %vm1012 = vweird.f32 %v985
      %vm1013 = vweird.f32 %v1007
      %vm1014 = vmor %vm1012, %vm1013
      %v1015 = vsel %vm1014, %v1007, %v1011
      %v1016 = vand.u32 2147483647, %v985
      %vm1017 = vcmp.eq.f32.partialorder %v1016, 8.507059e+37
      %v1018 = vand.u32 %v985, 2147483648
      %v1019 = vor.u32 1.1754944e-38, %v1018
      %v1020 = vsel %vm1017, %v1019, %v1015
      %v1021 = vmul.f32 1.0, %v1020
      %v1022 = vrcp.pop %v986
      %v1023 = vmul.f32 %v986, %v1022
      %v1024 = vsub.f32 1.0, %v1023
      %v1025 = vmul.f32 %v1022, %v1024
      %v1026 = vadd.f32 %v1022, %v1025
      %vm1027 = vweird.f32 %v986
      %vm1028 = vweird.f32 %v1022
      %vm1029 = vmor %vm1027, %vm1028
      %v1030 = vsel %vm1029, %v1022, %v1026
      %v1031 = vand.u32 2147483647, %v986
      %vm1032 = vcmp.eq.f32.partialorder %v1031, 8.507059e+37
      %v1033 = vand.u32 %v986, 2147483648
      %v1034 = vor.u32 1.1754944e-38, %v1033
      %v1035 = vsel %vm1032, %v1034, %v1030
      %v1036 = vmul.f32 1.0, %v1035
      %v1037 = vrcp.pop %v987
      %v1038 = vmul.f32 %v987, %v1037
      %v1039 = vsub.f32 1.0, %v1038
      %v1040 = vmul.f32 %v1037, %v1039
      %v1041 = vadd.f32 %v1037, %v1040
      %vm1042 = vweird.f32 %v987
      %vm1043 = vweird.f32 %v1037
      %vm1044 = vmor %vm1042, %vm1043
      %v1045 = vsel %vm1044, %v1037, %v1041
      %v1046 = vand.u32 2147483647, %v987
      %vm1047 = vcmp.eq.f32.partialorder %v1046, 8.507059e+37
      %v1048 = vand.u32 %v987, 2147483648
      %v1049 = vor.u32 1.1754944e-38, %v1048
      %v1050 = vsel %vm1047, %v1049, %v1045
      %v1051 = vmul.f32 1.0, %v1050
      %v1052 = vrcp.pop %v988
      %v1053 = vmul.f32 %v988, %v1052
      %v1054 = vsub.f32 1.0, %v1053
      %v1055 = vmul.f32 %v1052, %v1054
      %v1056 = vadd.f32 %v1052, %v1055
      %vm1057 = vweird.f32 %v988
      %vm1058 = vweird.f32 %v1052
      %vm1059 = vmor %vm1057, %vm1058
      %v1060 = vsel %vm1059, %v1052, %v1056
      %v1061 = vand.u32 2147483647, %v988
      %vm1062 = vcmp.eq.f32.partialorder %v1061, 8.507059e+37
      %v1063 = vand.u32 %v988, 2147483648
      %v1064 = vor.u32 1.1754944e-38, %v1063
      %v1065 = vsel %vm1062, %v1064, %v1060
      %v1066 = vmul.f32 1.0, %v1065
      %v1067 = vrcp.pop %v989
      %v1068 = vmul.f32 %v989, %v1067
      %v1069 = vsub.f32 1.0, %v1068
      %v1070 = vmul.f32 %v1067, %v1069
      %v1071 = vadd.f32 %v1067, %v1070
      %vm1072 = vweird.f32 %v989
      %vm1073 = vweird.f32 %v1067
      %vm1074 = vmor %vm1072, %vm1073
      %v1075 = vsel %vm1074, %v1067, %v1071
      %v1076 = vand.u32 2147483647, %v989
      %vm1077 = vcmp.eq.f32.partialorder %v1076, 8.507059e+37
      %v1078 = vand.u32 %v989, 2147483648
      %v1079 = vor.u32 1.1754944e-38, %v1078
      %v1080 = vsel %vm1077, %v1079, %v1075
      %v1081 = vmul.f32 1.0, %v1080
      %v1082 = vrcp.pop %v990
      %v1083 = vmul.f32 %v990, %v1082
      %v1084 = vsub.f32 1.0, %v1083
      %v1085 = vmul.f32 %v1082, %v1084
      %v1086 = vadd.f32 %v1082, %v1085
      %vm1087 = vweird.f32 %v990
      %vm1088 = vweird.f32 %v1082
      %vm1089 = vmor %vm1087, %vm1088
      %v1090 = vsel %vm1089, %v1082, %v1086
      %v1091 = vand.u32 2147483647, %v990
      %vm1092 = vcmp.eq.f32.partialorder %v1091, 8.507059e+37
      %v1093 = vand.u32 %v990, 2147483648
      %v1094 = vor.u32 1.1754944e-38, %v1093
      %v1095 = vsel %vm1092, %v1094, %v1090
      %v1096 = vmul.f32 1.0, %v1095
      %v1097 = vrcp.pop %v991
      %v1098 = vmul.f32 %v991, %v1097
      %v1099 = vsub.f32 1.0, %v1098
      %v1100 = vmul.f32 %v1097, %v1099
      %v1101 = vadd.f32 %v1097, %v1100
      %vm1102 = vweird.f32 %v991
      %vm1103 = vweird.f32 %v1097
      %vm1104 = vmor %vm1102, %vm1103
      %v1105 = vsel %vm1104, %v1097, %v1101
      %v1106 = vand.u32 2147483647, %v991
      %vm1107 = vcmp.eq.f32.partialorder %v1106, 8.507059e+37
      %v1108 = vand.u32 %v991, 2147483648
      %v1109 = vor.u32 1.1754944e-38, %v1108
      %v1110 = vsel %vm1107, %v1109, %v1105
      %v1111 = vmul.f32 1.0, %v1110
      %v1112 = vmul.f32 %v941, %v1006
      %v1113 = vmul.f32 %v943, %v1021
      %v1114 = vmul.f32 %v946, %v1036
      %v1115 = vmul.f32 %v948, %v1051
      %v1116 = vmul.f32 %v951, %v1066
      %v1117 = vmul.f32 %v953, %v1081
      %v1118 = vmul.f32 %v956, %v1096
      %v1119 = vmul.f32 %v958, %v1111
      %v1120 = vadd.f32 %v1112, %v353
      %v1121 = vadd.f32 %v1113, %v354
      %v1122 = vadd.f32 %v1114, %v355
      %v1123 = vadd.f32 %v1115, %v356
      %v1124 = vadd.f32 %v1116, %v357
      %v1125 = vadd.f32 %v1117, %v358
      %v1126 = vadd.f32 %v1118, %v359
      %v1127 = vadd.f32 %v1119, %v360
      %v1128 = vxor.u32 %v1112, 2147483648
      %v1129 = vxor.u32 %v1113, 2147483648
      %v1130 = vxor.u32 %v1114, 2147483648
      %v1131 = vxor.u32 %v1115, 2147483648
      %v1132 = vxor.u32 %v1116, 2147483648
      %v1133 = vxor.u32 %v1117, 2147483648
      %v1134 = vxor.u32 %v1118, 2147483648
      %v1135 = vxor.u32 %v1119, 2147483648
      %v1136 = vmul.f32 %v1128, 1.442695
      %v1137 = vpow.pop %v1136
      %v1138 = vmul.f32 %v1129, 1.442695
      %v1139 = vpow.pop %v1138
      %v1140 = vmul.f32 %v1130, 1.442695
      %v1141 = vpow.pop %v1140
      %v1142 = vmul.f32 %v1131, 1.442695
      %v1143 = vpow.pop %v1142
      %v1144 = vmul.f32 %v1132, 1.442695
      %v1145 = vpow.pop %v1144
      %v1146 = vmul.f32 %v1133, 1.442695
      %v1147 = vpow.pop %v1146
      %v1148 = vmul.f32 %v1134, 1.442695
      %v1149 = vpow.pop %v1148
      %v1150 = vmul.f32 %v1135, 1.442695
      %v1151 = vpow.pop %v1150
      %v1152 = vadd.f32 %v1137, 1.0
      %v1153 = vadd.f32 %v1139, 1.0
      %v1154 = vadd.f32 %v1141, 1.0
      %v1155 = vadd.f32 %v1143, 1.0
      %v1156 = vadd.f32 %v1145, 1.0
      %v1157 = vadd.f32 %v1147, 1.0
      %v1158 = vadd.f32 %v1149, 1.0
      %v1159 = vadd.f32 %v1151, 1.0
      %v1160 = vrcp.pop %v1152
      %v1161 = vmul.f32 %v1152, %v1160
      %v1162 = vsub.f32 1.0, %v1161
      %v1163 = vmul.f32 %v1160, %v1162
      %v1164 = vadd.f32 %v1160, %v1163
      %vm1165 = vweird.f32 %v1152
      %vm1166 = vweird.f32 %v1160
      %vm1167 = vmor %vm1165, %vm1166
      %v1168 = vsel %vm1167, %v1160, %v1164
      %v1169 = vand.u32 2147483647, %v1152
      %vm1170 = vcmp.eq.f32.partialorder %v1169, 8.507059e+37
      %v1171 = vand.u32 %v1152, 2147483648
      %v1172 = vor.u32 1.1754944e-38, %v1171
      %v1173 = vsel %vm1170, %v1172, %v1168
      %v1174 = vmul.f32 1.0, %v1173
      %v1175 = vrcp.pop %v1153
      %v1176 = vmul.f32 %v1153, %v1175
      %v1177 = vsub.f32 1.0, %v1176
      %v1178 = vmul.f32 %v1175, %v1177
      %v1179 = vadd.f32 %v1175, %v1178
      %vm1180 = vweird.f32 %v1153
      %vm1181 = vweird.f32 %v1175
      %vm1182 = vmor %vm1180, %vm1181
      %v1183 = vsel %vm1182, %v1175, %v1179
      %v1184 = vand.u32 2147483647, %v1153
      %vm1185 = vcmp.eq.f32.partialorder %v1184, 8.507059e+37
      %v1186 = vand.u32 %v1153, 2147483648
      %v1187 = vor.u32 1.1754944e-38, %v1186
      %v1188 = vsel %vm1185, %v1187, %v1183
      %v1189 = vmul.f32 1.0, %v1188
      %v1190 = vrcp.pop %v1154
      %v1191 = vmul.f32 %v1154, %v1190
      %v1192 = vsub.f32 1.0, %v1191
      %v1193 = vmul.f32 %v1190, %v1192
      %v1194 = vadd.f32 %v1190, %v1193
      %vm1195 = vweird.f32 %v1154
      %vm1196 = vweird.f32 %v1190
      %vm1197 = vmor %vm1195, %vm1196
      %v1198 = vsel %vm1197, %v1190, %v1194
      %v1199 = vand.u32 2147483647, %v1154
      %vm1200 = vcmp.eq.f32.partialorder %v1199, 8.507059e+37
      %v1201 = vand.u32 %v1154, 2147483648
      %v1202 = vor.u32 1.1754944e-38, %v1201
      %v1203 = vsel %vm1200, %v1202, %v1198
      %v1204 = vmul.f32 1.0, %v1203
      %v1205 = vrcp.pop %v1155
      %v1206 = vmul.f32 %v1155, %v1205
      %v1207 = vsub.f32 1.0, %v1206
      %v1208 = vmul.f32 %v1205, %v1207
      %v1209 = vadd.f32 %v1205, %v1208
      %vm1210 = vweird.f32 %v1155
      %vm1211 = vweird.f32 %v1205
      %vm1212 = vmor %vm1210, %vm1211
      %v1213 = vsel %vm1212, %v1205, %v1209
      %v1214 = vand.u32 2147483647, %v1155
      %vm1215 = vcmp.eq.f32.partialorder %v1214, 8.507059e+37
      %v1216 = vand.u32 %v1155, 2147483648
      %v1217 = vor.u32 1.1754944e-38, %v1216
      %v1218 = vsel %vm1215, %v1217, %v1213
      %v1219 = vmul.f32 1.0, %v1218
      %v1220 = vrcp.pop %v1156
      %v1221 = vmul.f32 %v1156, %v1220
      %v1222 = vsub.f32 1.0, %v1221
      %v1223 = vmul.f32 %v1220, %v1222
      %v1224 = vadd.f32 %v1220, %v1223
      %vm1225 = vweird.f32 %v1156
      %vm1226 = vweird.f32 %v1220
      %vm1227 = vmor %vm1225, %vm1226
      %v1228 = vsel %vm1227, %v1220, %v1224
      %v1229 = vand.u32 2147483647, %v1156
      %vm1230 = vcmp.eq.f32.partialorder %v1229, 8.507059e+37
      %v1231 = vand.u32 %v1156, 2147483648
      %v1232 = vor.u32 1.1754944e-38, %v1231
      %v1233 = vsel %vm1230, %v1232, %v1228
      %v1234 = vmul.f32 1.0, %v1233
      %v1235 = vrcp.pop %v1157
      %v1236 = vmul.f32 %v1157, %v1235
      %v1237 = vsub.f32 1.0, %v1236
      %v1238 = vmul.f32 %v1235, %v1237
      %v1239 = vadd.f32 %v1235, %v1238
      %vm1240 = vweird.f32 %v1157
      %vm1241 = vweird.f32 %v1235
      %vm1242 = vmor %vm1240, %vm1241
      %v1243 = vsel %vm1242, %v1235, %v1239
      %v1244 = vand.u32 2147483647, %v1157
      %vm1245 = vcmp.eq.f32.partialorder %v1244, 8.507059e+37
      %v1246 = vand.u32 %v1157, 2147483648
      %v1247 = vor.u32 1.1754944e-38, %v1246
      %v1248 = vsel %vm1245, %v1247, %v1243
      %v1249 = vmul.f32 1.0, %v1248
      %v1250 = vrcp.pop %v1158
      %v1251 = vmul.f32 %v1158, %v1250
      %v1252 = vsub.f32 1.0, %v1251
      %v1253 = vmul.f32 %v1250, %v1252
      %v1254 = vadd.f32 %v1250, %v1253
      %vm1255 = vweird.f32 %v1158
      %vm1256 = vweird.f32 %v1250
      %vm1257 = vmor %vm1255, %vm1256
      %v1258 = vsel %vm1257, %v1250, %v1254
      %v1259 = vand.u32 2147483647, %v1158
      %vm1260 = vcmp.eq.f32.partialorder %v1259, 8.507059e+37
      %v1261 = vand.u32 %v1158, 2147483648
      %v1262 = vor.u32 1.1754944e-38, %v1261
      %v1263 = vsel %vm1260, %v1262, %v1258
      %v1264 = vmul.f32 1.0, %v1263
      %v1265 = vrcp.pop %v1159
      %v1266 = vmul.f32 %v1159, %v1265
      %v1267 = vsub.f32 1.0, %v1266
      %v1268 = vmul.f32 %v1265, %v1267
      %v1269 = vadd.f32 %v1265, %v1268
      %vm1270 = vweird.f32 %v1159
      %vm1271 = vweird.f32 %v1265
      %vm1272 = vmor %vm1270, %vm1271
      %v1273 = vsel %vm1272, %v1265, %v1269
      %v1274 = vand.u32 2147483647, %v1159
      %vm1275 = vcmp.eq.f32.partialorder %v1274, 8.507059e+37
      %v1276 = vand.u32 %v1159, 2147483648
      %v1277 = vor.u32 1.1754944e-38, %v1276
      %v1278 = vsel %vm1275, %v1277, %v1273
      %v1279 = vmul.f32 1.0, %v1278
      %v1280 = vsub.f32 %v1174, 0.5
      %v1281 = vsub.f32 %v1189, 0.5
      %v1282 = vsub.f32 %v1204, 0.5
      %v1283 = vsub.f32 %v1219, 0.5
      %v1284 = vsub.f32 %v1234, 0.5
      %v1285 = vsub.f32 %v1249, 0.5
      %v1286 = vsub.f32 %v1264, 0.5
      %v1287 = vsub.f32 %v1279, 0.5
      %v1288 = vmul.f32 %v1120, %v1280
      %v1289 = vmul.f32 %v1121, %v1281
      %v1290 = vmul.f32 %v1122, %v1282
      %v1291 = vmul.f32 %v1123, %v1283
      %v1292 = vmul.f32 %v1124, %v1284
      %v1293 = vmul.f32 %v1125, %v1285
      %v1294 = vmul.f32 %v1126, %v1286
      %v1295 = vmul.f32 %v1127, %v1287
      %v1296 = vld [vmem:[%s308] sm:$0xff]
      %v1297 = vld [vmem:[%s308 + $0x8] sm:$0xff]
      %v1298 = vld [vmem:[%s308 + $0x10] sm:$0xff]
      %v1299 = vld [vmem:[%s308 + $0x18] sm:$0xff]
      %v1300 = vld [vmem:[%s308 + $0x20] sm:$0xff]
      %v1301 = vld [vmem:[%s308 + $0x28] sm:$0xff]
      %v1302 = vld [vmem:[%s308 + $0x30] sm:$0xff]
      %v1303 = vld [vmem:[%s308 + $0x38] sm:$0xff]
      %v1304 = vld [vmem:[%s5] sm:$0x1]
      %v1306 = vperm.slane %v1304, 0
      %v1308 = vmul.f32 %v1296, %v1306
      %v1309 = vmul.f32 %v1297, %v1306
      %v1310 = vmul.f32 %v1298, %v1306
      %v1311 = vmul.f32 %v1299, %v1306
      %v1312 = vmul.f32 %v1300, %v1306
      %v1313 = vmul.f32 %v1301, %v1306
      %v1314 = vmul.f32 %v1302, %v1306
      %v1315 = vmul.f32 %v1303, %v1306
      %v1316 = vadd.f32 %v1308, %v1288
      %v1317 = vadd.f32 %v1309, %v1289
      %v1318 = vadd.f32 %v1310, %v1290
      %v1319 = vadd.f32 %v1311, %v1291
      %v1320 = vadd.f32 %v1312, %v1292
      %v1321 = vadd.f32 %v1313, %v1293
      %v1322 = vadd.f32 %v1314, %v1294
      %v1323 = vadd.f32 %v1315, %v1295
      %v1324 = vld [vmem:[%s313] sm:$0xff]
      %v1325 = vld [vmem:[%s313 + $0x8] sm:$0xff]
      %v1326 = vld [vmem:[%s313 + $0x10] sm:$0xff]
      %v1327 = vld [vmem:[%s313 + $0x18] sm:$0xff]
      %v1328 = vld [vmem:[%s313 + $0x20] sm:$0xff]
      %v1329 = vld [vmem:[%s313 + $0x28] sm:$0xff]
      %v1330 = vld [vmem:[%s313 + $0x30] sm:$0xff]
      %v1331 = vld [vmem:[%s313 + $0x38] sm:$0xff]
      %v1332 = vld [vmem:[%s6] sm:$0x1]
      %v1334 = vperm.slane %v1332, 0
      %v1336 = vmul.f32 %v1324, %v1334
      %v1337 = vmul.f32 %v1325, %v1334
      %v1338 = vmul.f32 %v1326, %v1334
      %v1339 = vmul.f32 %v1327, %v1334
      %v1340 = vmul.f32 %v1328, %v1334
      %v1341 = vmul.f32 %v1329, %v1334
      %v1342 = vmul.f32 %v1330, %v1334
      %v1343 = vmul.f32 %v1331, %v1334
      %v1344 = vadd.f32 %v1316, %v1336
      %v1345 = vadd.f32 %v1317, %v1337
      %v1346 = vadd.f32 %v1318, %v1338
      %v1347 = vadd.f32 %v1319, %v1339
      %v1348 = vadd.f32 %v1320, %v1340
      %v1349 = vadd.f32 %v1321, %v1341
      %v1350 = vadd.f32 %v1322, %v1342
      %v1351 = vadd.f32 %v1323, %v1343
      %1352 = vst.msk [vmem:[%s318] sm:$0xff] %vm586, %v1344
      %1353 = vst.msk [vmem:[%s318 + $0x8] sm:$0xff] %vm586, %v1345
      %1354 = vst.msk [vmem:[%s318 + $0x10] sm:$0xff] %vm586, %v1346
      %1355 = vst.msk [vmem:[%s318 + $0x18] sm:$0xff] %vm586, %v1347
      %1356 = vst.msk [vmem:[%s318 + $0x20] sm:$0xff] %vm586, %v1348
      %1357 = vst.msk [vmem:[%s318 + $0x28] sm:$0xff] %vm586, %v1349
      %1358 = vst.msk [vmem:[%s318 + $0x30] sm:$0xff] %vm586, %v1350
      %1359 = vst.msk [vmem:[%s318 + $0x38] sm:$0xff] %vm586, %v1351
      %p1360 = scmp.lt.s32.totalorder %s18, 1
      %s1361 = scalar_select %p1360, %s18, 1
      %s1362 = smul.addr %s1361, 8
      %s1363 = smul.addr %s1362, 8
      %s1364 = scalar_lea.vmem %s7, %s1363
      // Predicated region
      $region49: #{_lambda_.14} parent=47 // pred_check
        %p1365 = pneg %p198
      $region50: #{_lambda_.14} parent=47 // pred_check_branch
        %1367 = sbr.rel (%p1365) target = $region52
      $region51: #{_lambda_.14} parent=47 // pred_region
        _
      $region52: #{_lambda_.14} parent=47 // pred_fallthru
        _
    $region48: #{_lambda_.14} parent=5 // pred_fallthru
      _
    %p1368 = scmp.le.s32.totalorder 2, %s13
    // Predicated region
    $region53: #{_lambda_.14} parent=5 // pred_check
      %p1369 = pneg %p1368
    $region54: #{_lambda_.14} parent=5 // pred_check_branch
      %1371 = sbr.rel (%p1369) target = $region56
    $region55: #{_lambda_.14} parent=5 // pred_region
      %s1372 = ssub.s32 %s13, 2
      // Predicated region
      $region57: #{_lambda_.14} parent=55 // pred_check
        %p1373 = pneg %p204
      $region58: #{_lambda_.14} parent=55 // pred_check_branch
        %1375 = sbr.rel (%p1373) target = $region60
      $region59: #{_lambda_.14} parent=55 // pred_region
        %p1376 = scmp.lt.s32.totalorder %s19, 1
        %s1377 = scalar_select %p1376, %s19, 1
        %s1378 = smul.addr %s1377, 8
        %s1379 = smul.addr %s1378, 8
        %s1380 = scalar_lea.vmem %s7, %s1379
      $region60: #{_lambda_.14} parent=55 // pred_fallthru
        _
    $region56: #{_lambda_.14} parent=5 // pred_fallthru
      _
  $region6: #{_lambda_.14} parent=0 // loop_footer
    %s17 = sadd.s32 1, %s13
  $region7: #{_lambda_.14} parent=0 // loop_footer_branch
    %12 = sbr.rel target = $region3
  $region8: #{_lambda_.14} parent=0 // loop_exit
    _

// kernel: _lambda_.12
$region0: #{_lambda_.12}
  #allocation0 [shape = 'u32[]', space=smem, size = 0x4, offset = 0x4, fixed_abs, tag = 'smem constant byte address 0x4 - core index']
  #allocation1 [shape = 'u32[72,128]{1,0:T(1,128)}', space=vmem, size = 0x9000, scoped, tag = 'internal scratch']
  #allocation2 [shape = 'f32[64,128]{1,0:T(8,128)}', space=vmem, size = 0x8000, scoped, tag = 'scratch operand']
  #allocation3 [shape = 'f32[64,8,128]{2,1,0:T(8,128)}', space=vmem, size = 0x40000, scoped, tag = 'scratch operand']
  #allocation4 [shape = 'f32[64,8,128]{2,1,0:T(8,128)}', space=vmem, size = 0x40000, scoped, tag = 'scratch operand']
  #allocation5 [shape = 'f32[64,8,128]{2,1,0:T(8,128)}', space=vmem, size = 0x40000, scoped, tag = 'scratch operand']
  #allocation6 [shape = 'f32[64,8,128]{2,1,0:T(8,128)}', space=vmem, size = 0x40000, scoped, tag = 'scratch operand']
  #allocation7 [shape = 'f32[64,8,128]{2,1,0:T(8,128)}', space=vmem, size = 0x40000, scoped, tag = 'scratch operand']
  #allocation8 [shape = 'f32[64,8,128]{2,1,0:T(8,128)}', space=vmem, size = 0x40000, scoped, tag = 'scratch operand']
  %s0 = inlined_call_operand.vmem [shape: f32[2,64,64], index: 0, kind: input, shape index: {}]
  %s1 = inlined_call_operand.vmem [shape: f32[2,64,64], index: 1, kind: input, shape index: {}]
  %s2 = inlined_call_operand.vmem [shape: bf16[128,160], index: 2, kind: input, shape index: {}]
  %s3 = inlined_call_operand.vmem [shape: f32[1,160], index: 3, kind: input, shape index: {}]
  %s4 = inlined_call_operand.vmem [shape: f32[8,128], index: 4, kind: input, shape index: {}, may-alias: {4,7}]
  %s5 = inlined_call_operand.vmem [shape: bf16[128,160], index: 5, kind: input, shape index: {}]
  %s6 = inlined_call_operand.vmem [shape: f32[1,160], index: 6, kind: input, shape index: {}]
  %s7 = inlined_call_operand.vmem [shape: f32[8,128], index: 7, kind: input, shape index: {}, may-alias: {4,7}]
  %s8 = inlined_call_operand.vmem [shape: f32[1,128], index: 8, kind: input, shape index: {}]
  %s9 = inlined_call_operand.vmem [shape: f32[2,64,128], index: 9, kind: output, shape index: {}]
  %s10 = sld [smem:[#allocation0]]
  $region76: #{_lambda_.12} parent=0
    _
  %s12 = ssub.s32 1, %s10
  %s13 = scalar_select 0, %s12, %s10
  loop: start=0, step=1, limit=4
  $region2: #{_lambda_.12} parent=0 // loop_pre_header
    _
  $region3: #{_lambda_.12} parent=0 // loop_header
    %s15 = sphi 0, %s19
    %p16 = scmp.ge.s32.totalorder %s15, 4
    %s25 = sphi 0, %s27
    %s28 = sphi 0, %s25
    %s29 = sphi 0, %s28
    %s45 = sphi 0, %s29
    %s51 = sphi 0, %s53
    %s54 = sphi 0, %s51
    %s55 = sphi 0, %s54
    %s71 = sphi 0, %s55
    %s75 = sphi 0, %s75
    %s77 = sphi 0, %s75
    %s78 = sphi 0, %s77
    %s92 = sphi 0, %s78
    %s96 = sphi 0, %s96
    %s98 = sphi 0, %s96
    %s99 = sphi 0, %s98
    %s113 = sphi 0, %s99
    %s117 = sphi 0, %s117
    %s119 = sphi 0, %s117
    %s120 = sphi 0, %s119
    %s134 = sphi 0, %s120
    %s138 = sphi 0, %s138
    %s140 = sphi 0, %s138
    %s141 = sphi 0, %s140
    %s155 = sphi 0, %s141
    %s159 = sphi 0, %s159
    %s161 = sphi 0, %s159
    %s162 = sphi 0, %s161
    %s176 = sphi 0, %s162
    %s180 = sphi 0, %s180
    %s182 = sphi 0, %s180
    %s183 = sphi 0, %s182
    %s197 = sphi 0, %s183
    %s201 = sphi 0, %s201
    %s203 = sphi 0, %s201
    %s204 = sphi 0, %s203
    %s218 = sphi 0, %s204
    %s224 = sphi 0, %s226
    %s227 = sphi 0, %s224
    %s228 = sphi 0, %s227
    %s244 = sphi 0, %s228
  $region4: #{_lambda_.12} parent=0 // loop_header_branch
    %18 = sbr.rel (%p16) target = $region8
  $region5: #{_lambda_.12} parent=0 // loop_body
    %s20 = ssub.s32 %s15, 1
    %s21 = ssub.s32 %s15, 2
    %s22 = sadd.s32 %s15, 1
    %s23 = ssub.s32 %s15, %s22
    %p24 = scmp.eq.s32.totalorder %s23, 0
    %s26 = sadd.s32 %s25, 1
    %s27 = scalar_select %p24, %s25, %s26
    %p30 = pneg %p24
    %p31 = scmp.eq.s32.totalorder %s15, 1
    %p32 = por %p30, %p31
    %p33 = scmp.ne.s32.totalorder %s25, %s28
    %p34 = scmp.eq.s32.totalorder %s15, 0
    %p35 = por %p33, %p34
    %p36 = scmp.ne.s32.totalorder %s25, %s28
    %p37 = scmp.eq.s32.totalorder %s20, 1
    %p38 = por %p36, %p37
    %p39 = scmp.ne.s32.totalorder %s28, %s29
    %p40 = scmp.eq.s32.totalorder %s20, 0
    %p41 = por %p39, %p40
    %p42 = scmp.ne.s32.totalorder %s28, %s29
    %p43 = scmp.eq.s32.totalorder %s21, 1
    %p44 = por %p42, %p43
    %p46 = scmp.ne.s32.totalorder %s29, %s45
    %p47 = scmp.eq.s32.totalorder %s21, 0
    %p48 = por %p46, %p47
    %s49 = ssub.s32 %s15, %s22
    %p50 = scmp.eq.s32.totalorder %s49, 0
    %s52 = sadd.s32 %s51, 1
    %s53 = scalar_select %p50, %s51, %s52
    %p56 = pneg %p50
    %p57 = scmp.eq.s32.totalorder %s15, 1
    %p58 = por %p56, %p57
    %p59 = scmp.ne.s32.totalorder %s51, %s54
    %p60 = scmp.eq.s32.totalorder %s15, 0
    %p61 = por %p59, %p60
    %p62 = scmp.ne.s32.totalorder %s51, %s54
    %p63 = scmp.eq.s32.totalorder %s20, 1
    %p64 = por %p62, %p63
    %p65 = scmp.ne.s32.totalorder %s54, %s55
    %p66 = scmp.eq.s32.totalorder %s20, 0
    %p67 = por %p65, %p66
    %p68 = scmp.ne.s32.totalorder %s54, %s55
    %p69 = scmp.eq.s32.totalorder %s21, 1
    %p70 = por %p68, %p69
    %p72 = scmp.ne.s32.totalorder %s55, %s71
    %p73 = scmp.eq.s32.totalorder %s21, 0
    %p74 = por %p72, %p73
    %s76 = sadd.s32 %s75, 1
    %p79 = scmp.eq.s32.totalorder %s15, 1
    %p80 = scmp.ne.s32.totalorder %s75, %s77
    %p81 = scmp.eq.s32.totalorder %s15, 0
    %p82 = por %p80, %p81
    %p83 = scmp.ne.s32.totalorder %s75, %s77
    %p84 = scmp.eq.s32.totalorder %s20, 1
    %p85 = por %p83, %p84
    %p86 = scmp.ne.s32.totalorder %s77, %s78
    %p87 = scmp.eq.s32.totalorder %s20, 0
    %p88 = por %p86, %p87
    %p89 = scmp.ne.s32.totalorder %s77, %s78
    %p90 = scmp.eq.s32.totalorder %s21, 1
    %p91 = por %p89, %p90
    %p93 = scmp.ne.s32.totalorder %s78, %s92
    %p94 = scmp.eq.s32.totalorder %s21, 0
    %p95 = por %p93, %p94
    %s97 = sadd.s32 %s96, 1
    %p100 = scmp.eq.s32.totalorder %s15, 1
    %p101 = scmp.ne.s32.totalorder %s96, %s98
    %p102 = scmp.eq.s32.totalorder %s15, 0
    %p103 = por %p101, %p102
    %p104 = scmp.ne.s32.totalorder %s96, %s98
    %p105 = scmp.eq.s32.totalorder %s20, 1
    %p106 = por %p104, %p105
    %p107 = scmp.ne.s32.totalorder %s98, %s99
    %p108 = scmp.eq.s32.totalorder %s20, 0
    %p109 = por %p107, %p108
    %p110 = scmp.ne.s32.totalorder %s98, %s99
    %p111 = scmp.eq.s32.totalorder %s21, 1
    %p112 = por %p110, %p111
    %p114 = scmp.ne.s32.totalorder %s99, %s113
    %p115 = scmp.eq.s32.totalorder %s21, 0
    %p116 = por %p114, %p115
    %s118 = sadd.s32 %s117, 1
    %p121 = scmp.eq.s32.totalorder %s15, 1
    %p122 = scmp.ne.s32.totalorder %s117, %s119
    %p123 = scmp.eq.s32.totalorder %s15, 0
    %p124 = por %p122, %p123
    %p125 = scmp.ne.s32.totalorder %s117, %s119
    %p126 = scmp.eq.s32.totalorder %s20, 1
    %p127 = por %p125, %p126
    %p128 = scmp.ne.s32.totalorder %s119, %s120
    %p129 = scmp.eq.s32.totalorder %s20, 0
    %p130 = por %p128, %p129
    %p131 = scmp.ne.s32.totalorder %s119, %s120
    %p132 = scmp.eq.s32.totalorder %s21, 1
    %p133 = por %p131, %p132
    %p135 = scmp.ne.s32.totalorder %s120, %s134
    %p136 = scmp.eq.s32.totalorder %s21, 0
    %p137 = por %p135, %p136
    %s139 = sadd.s32 %s138, 1
    %p142 = scmp.eq.s32.totalorder %s15, 1
    %p143 = scmp.ne.s32.totalorder %s138, %s140
    %p144 = scmp.eq.s32.totalorder %s15, 0
    %p145 = por %p143, %p144
    %p146 = scmp.ne.s32.totalorder %s138, %s140
    %p147 = scmp.eq.s32.totalorder %s20, 1
    %p148 = por %p146, %p147
    %p149 = scmp.ne.s32.totalorder %s140, %s141
    %p150 = scmp.eq.s32.totalorder %s20, 0
    %p151 = por %p149, %p150
    %p152 = scmp.ne.s32.totalorder %s140, %s141
    %p153 = scmp.eq.s32.totalorder %s21, 1
    %p154 = por %p152, %p153
    %p156 = scmp.ne.s32.totalorder %s141, %s155
    %p157 = scmp.eq.s32.totalorder %s21, 0
    %p158 = por %p156, %p157
    %s160 = sadd.s32 %s159, 1
    %p163 = scmp.eq.s32.totalorder %s15, 1
    %p164 = scmp.ne.s32.totalorder %s159, %s161
    %p165 = scmp.eq.s32.totalorder %s15, 0
    %p166 = por %p164, %p165
    %p167 = scmp.ne.s32.totalorder %s159, %s161
    %p168 = scmp.eq.s32.totalorder %s20, 1
    %p169 = por %p167, %p168
    %p170 = scmp.ne.s32.totalorder %s161, %s162
    %p171 = scmp.eq.s32.totalorder %s20, 0
    %p172 = por %p170, %p171
    %p173 = scmp.ne.s32.totalorder %s161, %s162
    %p174 = scmp.eq.s32.totalorder %s21, 1
    %p175 = por %p173, %p174
    %p177 = scmp.ne.s32.totalorder %s162, %s176
    %p178 = scmp.eq.s32.totalorder %s21, 0
    %p179 = por %p177, %p178
    %s181 = sadd.s32 %s180, 1
    %p184 = scmp.eq.s32.totalorder %s15, 1
    %p185 = scmp.ne.s32.totalorder %s180, %s182
    %p186 = scmp.eq.s32.totalorder %s15, 0
    %p187 = por %p185, %p186
    %p188 = scmp.ne.s32.totalorder %s180, %s182
    %p189 = scmp.eq.s32.totalorder %s20, 1
    %p190 = por %p188, %p189
    %p191 = scmp.ne.s32.totalorder %s182, %s183
    %p192 = scmp.eq.s32.totalorder %s20, 0
    %p193 = por %p191, %p192
    %p194 = scmp.ne.s32.totalorder %s182, %s183
    %p195 = scmp.eq.s32.totalorder %s21, 1
    %p196 = por %p194, %p195
    %p198 = scmp.ne.s32.totalorder %s183, %s197
    %p199 = scmp.eq.s32.totalorder %s21, 0
    %p200 = por %p198, %p199
    %s202 = sadd.s32 %s201, 1
    %p205 = scmp.eq.s32.totalorder %s15, 1
    %p206 = scmp.ne.s32.totalorder %s201, %s203
    %p207 = scmp.eq.s32.totalorder %s15, 0
    %p208 = por %p206, %p207
    %p209 = scmp.ne.s32.totalorder %s201, %s203
    %p210 = scmp.eq.s32.totalorder %s20, 1
    %p211 = por %p209, %p210
    %p212 = scmp.ne.s32.totalorder %s203, %s204
    %p213 = scmp.eq.s32.totalorder %s20, 0
    %p214 = por %p212, %p213
    %p215 = scmp.ne.s32.totalorder %s203, %s204
    %p216 = scmp.eq.s32.totalorder %s21, 1
    %p217 = por %p215, %p216
    %p219 = scmp.ne.s32.totalorder %s204, %s218
    %p220 = scmp.eq.s32.totalorder %s21, 0
    %p221 = por %p219, %p220
    %s222 = ssub.s32 %s15, %s22
    %p223 = scmp.eq.s32.totalorder %s222, 0
    %s225 = sadd.s32 %s224, 1
    %s226 = scalar_select %p223, %s224, %s225
    %p229 = pneg %p223
    %p230 = scmp.eq.s32.totalorder %s15, 1
    %p231 = por %p229, %p230
    %p232 = scmp.ne.s32.totalorder %s224, %s227
    %p233 = scmp.eq.s32.totalorder %s15, 0
    %p234 = por %p232, %p233
    %p235 = scmp.ne.s32.totalorder %s224, %s227
    %p236 = scmp.eq.s32.totalorder %s20, 1
    %p237 = por %p235, %p236
    %p238 = scmp.ne.s32.totalorder %s227, %s228
    %p239 = scmp.eq.s32.totalorder %s20, 0
    %p240 = por %p238, %p239
    %p241 = scmp.ne.s32.totalorder %s227, %s228
    %p242 = scmp.eq.s32.totalorder %s21, 1
    %p243 = por %p241, %p242
    %p245 = scmp.ne.s32.totalorder %s228, %s244
    %p246 = scmp.eq.s32.totalorder %s21, 0
    %p247 = por %p245, %p246
    %p248 = scmp.le.s32.totalorder 1, %s15
    %p249 = scmp.lt.s32.totalorder %s15, 3
    %p250 = pnand %p248, %p249
    %p251 = pneg %p250
    // Predicated region
    $region9: #{_lambda_.12} parent=5 // pred_check
      _
    $region10: #{_lambda_.12} parent=5 // pred_check_branch
      %253 = sbr.rel (%p250) target = $region12
    $region11: #{_lambda_.12} parent=5 // pred_region
      %s254 = ssub.s32 %s15, 1
      // Predicated region
      $region13: #{_lambda_.12} parent=11 // pred_check
        %p255 = pneg %p88
      $region14: #{_lambda_.12} parent=11 // pred_check_branch
        %257 = sbr.rel (%p255) target = $region16
      $region15: #{_lambda_.12} parent=11 // pred_region
        _
      $region16: #{_lambda_.12} parent=11 // pred_fallthru
        _
      // Predicated region
      $region17: #{_lambda_.12} parent=11 // pred_check
        %p258 = pneg %p109
      $region18: #{_lambda_.12} parent=11 // pred_check_branch
        %260 = sbr.rel (%p258) target = $region20
      $region19: #{_lambda_.12} parent=11 // pred_region
        _
      $region20: #{_lambda_.12} parent=11 // pred_fallthru
        _
      // Predicated region
      $region21: #{_lambda_.12} parent=11 // pred_check
        %p261 = pneg %p130
      $region22: #{_lambda_.12} parent=11 // pred_check_branch
        %263 = sbr.rel (%p261) target = $region24
      $region23: #{_lambda_.12} parent=11 // pred_region
        _
      $region24: #{_lambda_.12} parent=11 // pred_fallthru
        _
      // Predicated region
      $region25: #{_lambda_.12} parent=11 // pred_check
        %p264 = pneg %p151
      $region26: #{_lambda_.12} parent=11 // pred_check_branch
        %266 = sbr.rel (%p264) target = $region28
      $region27: #{_lambda_.12} parent=11 // pred_region
        _
      $region28: #{_lambda_.12} parent=11 // pred_fallthru
        _
      // Predicated region
      $region29: #{_lambda_.12} parent=11 // pred_check
        %p267 = pneg %p172
      $region30: #{_lambda_.12} parent=11 // pred_check_branch
        %269 = sbr.rel (%p267) target = $region32
      $region31: #{_lambda_.12} parent=11 // pred_region
        _
      $region32: #{_lambda_.12} parent=11 // pred_fallthru
        _
      // Predicated region
      $region33: #{_lambda_.12} parent=11 // pred_check
        %p270 = pneg %p193
      $region34: #{_lambda_.12} parent=11 // pred_check_branch
        %272 = sbr.rel (%p270) target = $region36
      $region35: #{_lambda_.12} parent=11 // pred_region
        _
      $region36: #{_lambda_.12} parent=11 // pred_fallthru
        _
      // Predicated region
      $region37: #{_lambda_.12} parent=11 // pred_check
        %p273 = pneg %p214
      $region38: #{_lambda_.12} parent=11 // pred_check_branch
        %275 = sbr.rel (%p273) target = $region40
      $region39: #{_lambda_.12} parent=11 // pred_region
        _
      $region40: #{_lambda_.12} parent=11 // pred_fallthru
        _
    $region12: #{_lambda_.12} parent=5 // pred_fallthru
      _
    %p276 = scmp.lt.s32.totalorder %s15, 2
    // Predicated region
    $region41: #{_lambda_.12} parent=5 // pred_check
      %p277 = pneg %p276
    $region42: #{_lambda_.12} parent=5 // pred_check_branch
      %279 = sbr.rel (%p277) target = $region44
    $region43: #{_lambda_.12} parent=5 // pred_region
      // Predicated region
      $region45: #{_lambda_.12} parent=43 // pred_check
        %p280 = pneg %p35
      $region46: #{_lambda_.12} parent=43 // pred_check_branch
        %282 = sbr.rel (%p280) target = $region48
      $region47: #{_lambda_.12} parent=43 // pred_region
        %p283 = scmp.lt.s32.totalorder %s15, 1
        %s284 = scalar_select %p283, %s15, 1
        %s285 = smul.addr %s284, 8
        %s286 = smul.addr %s285, 8
        %s287 = scalar_lea.vmem %s0, %s286
      $region48: #{_lambda_.12} parent=43 // pred_fallthru
        _
      // Predicated region
      $region49: #{_lambda_.12} parent=43 // pred_check
        %p288 = pneg %p61
      $region50: #{_lambda_.12} parent=43 // pred_check_branch
        %290 = sbr.rel (%p288) target = $region52
      $region51: #{_lambda_.12} parent=43 // pred_region
        %p291 = scmp.lt.s32.totalorder %s15, 1
        %s292 = scalar_select %p291, %s15, 1
        %s293 = smul.addr %s292, 8
        %s294 = smul.addr %s293, 8
        %s295 = scalar_lea.vmem %s1, %s294
      $region52: #{_lambda_.12} parent=43 // pred_fallthru
        _
    $region44: #{_lambda_.12} parent=5 // pred_fallthru
      _
    %p296 = scmp.le.s32.totalorder 1, %s15
    %p297 = scmp.lt.s32.totalorder %s15, 3
    %p298 = pnand %p296, %p297
    %p299 = pneg %p298
    // Predicated region
    $region53: #{_lambda_.12} parent=5 // pred_check
      _
    $region54: #{_lambda_.12} parent=5 // pred_check_branch
      %301 = sbr.rel (%p298) target = $region56
    $region55: #{_lambda_.12} parent=5 // pred_region
      %s302 = ssub.s32 %s15, 1
      %p303 = scmp.lt.s32.totalorder %s20, 1
      %s304 = scalar_select %p303, %s20, 1
      %s305 = smul.addr %s304, 8
      %s306 = smul.addr %s305, 8
      %s307 = scalar_lea.vmem %s0, %s306
      %p308 = pneg %p41
      %p309 = pneg %p38
      %p310 = scmp.lt.s32.totalorder %s20, 1
      %s311 = scalar_select %p310, %s20, 1
      %s312 = smul.addr %s311, 8
      %s313 = smul.addr %s312, 8
      %s314 = scalar_lea.vmem %s1, %s313
      %p315 = pneg %p67
      %p316 = pneg %p64
      %p317 = pneg %p88
      %p318 = pneg %p85
      %p319 = pneg %p109
      %p320 = pneg %p106
      %p321 = pneg %p130
      %p322 = pneg %p127
      %p323 = pneg %p151
      %p324 = pneg %p148
      %p325 = pneg %p172
      %p326 = pneg %p169
      %p327 = pneg %p193
      %p328 = pneg %p190
      %p329 = pneg %p214
      %p330 = pneg %p211
      %p331 = pneg %p240
      %p332 = pneg %p237
      %p333 = scmp.lt.s32.totalorder %s20, 1
      %s334 = scalar_select %p333, %s20, 1
      %s335 = smul.addr %s334, 8
      %s336 = smul.addr %s335, 8
      %s337 = scalar_lea.vmem %s9, %s336
      %p338 = scmp.lt.s32.totalorder %s20, 1
      %s339 = scalar_select %p338, %s20, 1
      %s340 = smul.addr %s339, 8
      %s341 = smul.addr %s340, 8
      %s342 = scalar_lea.vmem %s0, %s341
      %p343 = scmp.lt.s32.totalorder %s20, 1
      %s344 = scalar_select %p343, %s20, 1
      %s345 = smul.addr %s344, 8
      %s346 = smul.addr %s345, 8
      %s347 = scalar_lea.vmem %s1, %s346
      %p348 = scmp.lt.s32.totalorder %s20, 1
      %s349 = scalar_select %p348, %s20, 1
      %s350 = smul.addr %s349, 8
      %s351 = smul.addr %s350, 8
      %s352 = scalar_lea.vmem %s9, %s351
      %v353 = vld [vmem:[%s342] sm:$0xff]
      %v354 = vld [vmem:[%s342 + $0x8] sm:$0xff]
      %v355 = vld [vmem:[%s342 + $0x10] sm:$0xff]
      %v356 = vld [vmem:[%s342 + $0x18] sm:$0xff]
      %v357 = vld [vmem:[%s342 + $0x20] sm:$0xff]
      %v358 = vld [vmem:[%s342 + $0x28] sm:$0xff]
      %v359 = vld [vmem:[%s342 + $0x30] sm:$0xff]
      %v360 = vld [vmem:[%s342 + $0x38] sm:$0xff]
      %v361 = vld [vmem:[%s347] sm:$0xff]
      %v362 = vld [vmem:[%s347 + $0x8] sm:$0xff]
      %v363 = vld [vmem:[%s347 + $0x10] sm:$0xff]
      %v364 = vld [vmem:[%s347 + $0x18] sm:$0xff]
      %v365 = vld [vmem:[%s347 + $0x20] sm:$0xff]
      %v366 = vld [vmem:[%s347 + $0x28] sm:$0xff]
      %v367 = vld [vmem:[%s347 + $0x30] sm:$0xff]
      %v368 = vld [vmem:[%s347 + $0x38] sm:$0xff]
      %377 = vrot.lane.b32.xlu0 %v361, 64
      %v378 = vpop.permute.xlu0 %377
      %379 = vrot.lane.b32.xlu0 %v362, 64
      %v380 = vpop.permute.xlu0 %379
      %381 = vrot.lane.b32.xlu0 %v363, 64
      %v382 = vpop.permute.xlu0 %381
      %383 = vrot.lane.b32.xlu0 %v364, 64
      %v384 = vpop.permute.xlu0 %383
      %385 = vrot.lane.b32.xlu0 %v365, 64
      %v386 = vpop.permute.xlu0 %385
      %387 = vrot.lane.b32.xlu0 %v366, 64
      %v388 = vpop.permute.xlu0 %387
      %389 = vrot.lane.b32.xlu0 %v367, 64
      %v390 = vpop.permute.xlu0 %389
      %391 = vrot.lane.b32.xlu0 %v368, 64
      %v392 = vpop.permute.xlu0 %391
      %vm401 = vcmask 523264
      %v402 = vsel %vm401, %v353, %v378
      %v403 = vsel %vm401, %v354, %v380
      %v404 = vsel %vm401, %v355, %v382
      %v405 = vsel %vm401, %v356, %v384
      %v406 = vsel %vm401, %v357, %v386
      %v407 = vsel %vm401, %v358, %v388
      %v408 = vsel %vm401, %v359, %v390
      %v409 = vsel %vm401, %v360, %v392
      %410 = vst [vmem:[#allocation2] sm:$0xff] %v402
      %411 = vst [vmem:[#allocation2 + $0x8] sm:$0xff] %v403
      %412 = vst [vmem:[#allocation2 + $0x10] sm:$0xff] %v404
      %413 = vst [vmem:[#allocation2 + $0x18] sm:$0xff] %v405
      %414 = vst [vmem:[#allocation2 + $0x20] sm:$0xff] %v406
      %415 = vst [vmem:[#allocation2 + $0x28] sm:$0xff] %v407
      %416 = vst [vmem:[#allocation2 + $0x30] sm:$0xff] %v408
      %417 = vst [vmem:[#allocation2 + $0x38] sm:$0xff] %v409
      %v418 = vld [vmem:[%s8] sm:$0x1]
      %v420 = vperm.slane %v418, 0
      %v422 = vmul.f32 %v402, %v420
      %v423 = vmul.f32 %v403, %v420
      %v424 = vmul.f32 %v404, %v420
      %v425 = vmul.f32 %v405, %v420
      %v426 = vmul.f32 %v406, %v420
      %v427 = vmul.f32 %v407, %v420
      %v428 = vmul.f32 %v408, %v420
      %v429 = vmul.f32 %v409, %v420
      %430 = vst [vmem:[%s352] sm:$0xff] %v422
      %431 = vst [vmem:[%s352 + $0x8] sm:$0xff] %v423
      %432 = vst [vmem:[%s352 + $0x10] sm:$0xff] %v424
      %433 = vst [vmem:[%s352 + $0x18] sm:$0xff] %v425
      %434 = vst [vmem:[%s352 + $0x20] sm:$0xff] %v426
      %435 = vst [vmem:[%s352 + $0x28] sm:$0xff] %v427
      %436 = vst [vmem:[%s352 + $0x30] sm:$0xff] %v428
      %437 = vst [vmem:[%s352 + $0x38] sm:$0xff] %v429
      %v438 = vld [vmem:[#allocation2] sm:$0xff]
      %v439 = vld [vmem:[#allocation2 + $0x8] sm:$0xff]
      %v440 = vld [vmem:[#allocation2 + $0x10] sm:$0xff]
      %v441 = vld [vmem:[#allocation2 + $0x18] sm:$0xff]
      %v442 = vld [vmem:[#allocation2 + $0x20] sm:$0xff]
      %v443 = vld [vmem:[#allocation2 + $0x28] sm:$0xff]
      %v444 = vld [vmem:[#allocation2 + $0x30] sm:$0xff]
      %v445 = vld [vmem:[#allocation2 + $0x38] sm:$0xff]
      %v446 = vpack.c.bf16 %v439, %v438
      %v447 = vpack.c.bf16 %v441, %v440
      %v448 = vpack.c.bf16 %v443, %v442
      %v449 = vpack.c.bf16 %v445, %v444
      %v450 = vld [vmem:[%s2] sm:$0xff]
      %v451 = vld [vmem:[%s2 + $0x8] sm:$0xff]
      %v452 = vld [vmem:[%s2 + $0x10] sm:$0xff]
      %v453 = vld [vmem:[%s2 + $0x18] sm:$0xff]
      %v454 = vld [vmem:[%s2 + $0x20] sm:$0xff]
      %v455 = vld [vmem:[%s2 + $0x28] sm:$0xff]
      %v456 = vld [vmem:[%s2 + $0x30] sm:$0xff]
      %v457 = vld [vmem:[%s2 + $0x38] sm:$0xff]
      %v458 = vld [vmem:[%s2 + $0x40] sm:$0xff]
      %v459 = vld [vmem:[%s2 + $0x48] sm:$0xff]
      %v460 = vld [vmem:[%s2 + $0x50] sm:$0xff]
      %v461 = vld [vmem:[%s2 + $0x58] sm:$0xff]
      %v462 = vld [vmem:[%s2 + $0x60] sm:$0xff]
      %v463 = vld [vmem:[%s2 + $0x68] sm:$0xff]
      %v464 = vld [vmem:[%s2 + $0x70] sm:$0xff]
      %v465 = vld [vmem:[%s2 + $0x78] sm:$0xff]
      %v466 = vld [vmem:[%s3] sm:$0x3]
      %v468 = vperm.slane %v466, 0
      %v469 = vperm.slane %v466, 1
      %v488 = vunpack.c.l.b16 %v450
      %v489 = vunpack.c.h.b16 %v450
      %v490 = vunpack.c.l.b16 %v451
      %v491 = vunpack.c.h.b16 %v451
      %v492 = vunpack.c.l.b16 %v452
      %v493 = vunpack.c.h.b16 %v452
      %v494 = vunpack.c.l.b16 %v453
      %v495 = vunpack.c.h.b16 %v453
      %v496 = vunpack.c.l.b16 %v454
      %v497 = vunpack.c.h.b16 %v454
      %v498 = vunpack.c.l.b16 %v455
      %v499 = vunpack.c.h.b16 %v455
      %v500 = vunpack.c.l.b16 %v456
      %v501 = vunpack.c.h.b16 %v456
      %v502 = vunpack.c.l.b16 %v457
      %v503 = vunpack.c.h.b16 %v457
      %v504 = vunpack.c.l.b16 %v458
      %v505 = vunpack.c.h.b16 %v458
      %v506 = vunpack.c.l.b16 %v459
      %v507 = vunpack.c.h.b16 %v459
      %v508 = vunpack.c.l.b16 %v460
      %v509 = vunpack.c.h.b16 %v460
      %v510 = vunpack.c.l.b16 %v461
      %v511 = vunpack.c.h.b16 %v461
      %v512 = vunpack.c.l.b16 %v462
      %v513 = vunpack.c.h.b16 %v462
      %v514 = vunpack.c.l.b16 %v463
      %v515 = vunpack.c.h.b16 %v463
      %v516 = vunpack.c.l.b16 %v464
      %v517 = vunpack.c.h.b16 %v464
      %v518 = vunpack.c.l.b16 %v465
      %v519 = vunpack.c.h.b16 %v465
      %v520 = vpack.c.b16 %v490, %v488
      %v521 = vpack.c.b16 %v491, %v489
      %v522 = vpack.c.b16 %v494, %v492
      %v523 = vpack.c.b16 %v495, %v493
      %v524 = vpack.c.b16 %v498, %v496
      %v525 = vpack.c.b16 %v499, %v497
      %v526 = vpack.c.b16 %v502, %v500
      %v527 = vpack.c.b16 %v503, %v501
      %v528 = vpack.c.b16 %v506, %v504
      %v529 = vpack.c.b16 %v507, %v505
      %v530 = vpack.c.b16 %v510, %v508
      %v531 = vpack.c.b16 %v511, %v509
      %v532 = vpack.c.b16 %v514, %v512
      %v533 = vpack.c.b16 %v515, %v513
      %v534 = vpack.c.b16 %v518, %v516
      %v535 = vpack.c.b16 %v519, %v517
      %552 = vmatpush.bf16.msra.mxu0 %v534
      %553 = vmatpush.bf16.msra.mxu0 %v532
      %554 = vmatpush.bf16.msra.mxu0 %v530
      %555 = vmatpush.bf16.msra.mxu0 %v528
      %556 = vmatpush.bf16.msra.mxu0 %v526
      %557 = vmatpush.bf16.msra.mxu0 %v524
      %558 = vmatpush.bf16.msra.mxu0 %v522
      %559 = vmatpush.bf16.msra.mxu0 %v520
      %560 = vmatmul.bf16.gmra.mxu0 %v446
      %v561 = vpop.f32.mrf.mxu0
      %v562 = vadd.f32 %v468, %v561
      %v563 = vpop.f32.mrf.mxu0
      %v564 = vadd.f32 %v468, %v563
      %565 = vmatmul.bf16.gmra.mxu0 %v447
      %v566 = vpop.f32.mrf.mxu0
      %v567 = vadd.f32 %v468, %v566
      %v568 = vpop.f32.mrf.mxu0
      %v569 = vadd.f32 %v468, %v568
      %570 = vmatmul.bf16.gmra.mxu0 %v448
      %v571 = vpop.f32.mrf.mxu0
      %v572 = vadd.f32 %v468, %v571
      %v573 = vpop.f32.mrf.mxu0
      %v574 = vadd.f32 %v468, %v573
      %575 = vmatmul.bf16.gmra.mxu0 %v449
      %v576 = vpop.f32.mrf.mxu0
      %v577 = vadd.f32 %v468, %v576
      %v578 = vpop.f32.mrf.mxu0
      %v579 = vadd.f32 %v468, %v578
      %580 = vdwg.mxu0
      %581 = vmatpush.bf16.msra.mxu0 %v535
      %582 = vmatpush.bf16.msra.mxu0 %v533
      %583 = vmatpush.bf16.msra.mxu0 %v531
      %584 = vmatpush.bf16.msra.mxu0 %v529
      %585 = vmatpush.bf16.msra.mxu0 %v527
      %586 = vmatpush.bf16.msra.mxu0 %v525
      %587 = vmatpush.bf16.msra.mxu0 %v523
      %588 = vmatpush.bf16.msra.mxu0 %v521
      %589 = vmatmul.bf16.gmra.mxu0 %v446
      %v590 = vpop.f32.mrf.mxu0
      %v591 = vadd.f32 %v469, %v590
      %v592 = vpop.f32.mrf.mxu0
      %v593 = vadd.f32 %v469, %v592
      %594 = vmatmul.bf16.gmra.mxu0 %v447
      %v595 = vpop.f32.mrf.mxu0
      %v596 = vadd.f32 %v469, %v595
      %v597 = vpop.f32.mrf.mxu0
      %v598 = vadd.f32 %v469, %v597
      %599 = vmatmul.bf16.gmra.mxu0 %v448
      %v600 = vpop.f32.mrf.mxu0
      %v601 = vadd.f32 %v469, %v600
      %v602 = vpop.f32.mrf.mxu0
      %v603 = vadd.f32 %v469, %v602
      %604 = vmatmul.bf16.gmra.mxu0 %v449
      %v605 = vpop.f32.mrf.mxu0
      %v606 = vadd.f32 %v469, %v605
      %v607 = vpop.f32.mrf.mxu0
      %v608 = vadd.f32 %v469, %v607
      %609 = vdwg.mxu0
      %v610 = vmax.f32 %v562, 0.0
      %v611 = vmax.f32 %v564, 0.0
      %v612 = vmax.f32 %v567, 0.0
      %v613 = vmax.f32 %v569, 0.0
      %v614 = vmax.f32 %v572, 0.0
      %v615 = vmax.f32 %v574, 0.0
      %v616 = vmax.f32 %v577, 0.0
      %v617 = vmax.f32 %v579, 0.0
      %v618 = vand.u32 2147483647, %v562
      %v619 = vand.u32 2147483647, %v564
      %v620 = vand.u32 2147483647, %v567
      %v621 = vand.u32 2147483647, %v569
      %v622 = vand.u32 2147483647, %v572
      %v623 = vand.u32 2147483647, %v574
      %v624 = vand.u32 2147483647, %v577
      %v625 = vand.u32 2147483647, %v579
      %v626 = vsub.f32 0.0, %v618
      %v627 = vsub.f32 0.0, %v619
      %v628 = vsub.f32 0.0, %v620
      %v629 = vsub.f32 0.0, %v621
      %v630 = vsub.f32 0.0, %v622
      %v631 = vsub.f32 0.0, %v623
      %v632 = vsub.f32 0.0, %v624
      %v633 = vsub.f32 0.0, %v625
      %v634 = vmul.f32 %v626, 1.442695
      %v635 = vpow.pop %v634
      %v636 = vmul.f32 %v627, 1.442695
      %v637 = vpow.pop %v636
      %v638 = vmul.f32 %v628, 1.442695
      %v639 = vpow.pop %v638
      %v640 = vmul.f32 %v629, 1.442695
      %v641 = vpow.pop %v640
      %v642 = vmul.f32 %v630, 1.442695
      %v643 = vpow.pop %v642
      %v644 = vmul.f32 %v631, 1.442695
      %v645 = vpow.pop %v644
      %v646 = vmul.f32 %v632, 1.442695
      %v647 = vpow.pop %v646
      %v648 = vmul.f32 %v633, 1.442695
      %v649 = vpow.pop %v648
      %v650 = vadd.f32 %v635, 1.0
      %v651 = vadd.f32 %v637, 1.0
      %v652 = vadd.f32 %v639, 1.0
      %v653 = vadd.f32 %v641, 1.0
      %v654 = vadd.f32 %v643, 1.0
      %v655 = vadd.f32 %v645, 1.0
      %v656 = vadd.f32 %v647, 1.0
      %v657 = vadd.f32 %v649, 1.0
      %v658 = vlog2.pop %v650
      %v659 = vmul.f32 %v658, 0.6931472
      %v660 = vlog2.pop %v651
      %v661 = vmul.f32 %v660, 0.6931472
      %v662 = vlog2.pop %v652
      %v663 = vmul.f32 %v662, 0.6931472
      %v664 = vlog2.pop %v653
      %v665 = vmul.f32 %v664, 0.6931472
      %v666 = vlog2.pop %v654
      %v667 = vmul.f32 %v666, 0.6931472
      %v668 = vlog2.pop %v655
      %v669 = vmul.f32 %v668, 0.6931472
      %v670 = vlog2.pop %v656
      %v671 = vmul.f32 %v670, 0.6931472
      %v672 = vlog2.pop %v657
      %v673 = vmul.f32 %v672, 0.6931472
      %v674 = vadd.f32 %v610, %v659
      %v675 = vadd.f32 %v611, %v661
      %v676 = vadd.f32 %v612, %v663
      %v677 = vadd.f32 %v613, %v665
      %v678 = vadd.f32 %v614, %v667
      %v679 = vadd.f32 %v615, %v669
      %v680 = vadd.f32 %v616, %v671
      %v681 = vadd.f32 %v617, %v673
      %v682 = vmul.f32 %v674, %v438
      %v683 = vmul.f32 %v675, %v439
      %v684 = vmul.f32 %v676, %v440
      %v685 = vmul.f32 %v677, %v441
      %v686 = vmul.f32 %v678, %v442
      %v687 = vmul.f32 %v679, %v443
      %v688 = vmul.f32 %v680, %v444
      %v689 = vmul.f32 %v681, %v445
      %v698 = vrot.slane %v674, 1
      %v699 = vrot.slane %v674, 2
      %v700 = vrot.slane %v674, 3
      %v701 = vrot.slane %v674, 4
      %v702 = vrot.slane %v674, 5
      %v703 = vrot.slane %v674, 6
      %v704 = vrot.slane %v674, 7
      %v705 = vrot.slane %v675, 1
      %v706 = vrot.slane %v675, 2
      %v707 = vrot.slane %v675, 3
      %v708 = vrot.slane %v675, 4
      %v709 = vrot.slane %v675, 5
      %v710 = vrot.slane %v675, 6
      %v711 = vrot.slane %v675, 7
      %v712 = vrot.slane %v676, 1
      %v713 = vrot.slane %v676, 2
      %v714 = vrot.slane %v676, 3
      %v715 = vrot.slane %v676, 4
      %v716 = vrot.slane %v676, 5
      %v717 = vrot.slane %v676, 6
      %v718 = vrot.slane %v676, 7
      %v719 = vrot.slane %v677, 1
      %v720 = vrot.slane %v677, 2
      %v721 = vrot.slane %v677, 3
      %v722 = vrot.slane %v677, 4
      %v723 = vrot.slane %v677, 5
      %v724 = vrot.slane %v677, 6
      %v725 = vrot.slane %v677, 7
      %v726 = vrot.slane %v678, 1
      %v727 = vrot.slane %v678, 2
      %v728 = vrot.slane %v678, 3
      %v729 = vrot.slane %v678, 4
      %v730 = vrot.slane %v678, 5
      %v731 = vrot.slane %v678, 6
      %v732 = vrot.slane %v678, 7
      %v733 = vrot.slane %v679, 1
      %v734 = vrot.slane %v679, 2
      %v735 = vrot.slane %v679, 3
      %v736 = vrot.slane %v679, 4
      %v737 = vrot.slane %v679, 5
      %v738 = vrot.slane %v679, 6
      %v739 = vrot.slane %v679, 7
      %v740 = vrot.slane %v680, 1
      %v741 = vrot.slane %v680, 2
      %v742 = vrot.slane %v680, 3
      %v743 = vrot.slane %v680, 4
      %v744 = vrot.slane %v680, 5
      %v745 = vrot.slane %v680, 6
      %v746 = vrot.slane %v680, 7
      %v747 = vrot.slane %v681, 1
      %v748 = vrot.slane %v681, 2
      %v749 = vrot.slane %v681, 3
      %v750 = vrot.slane %v681, 4
      %v751 = vrot.slane %v681, 5
      %v752 = vrot.slane %v681, 6
      %v753 = vrot.slane %v681, 7
      %v754 = vld [vmem:[%s4] sm:$0xff]
      %v755 = vperm.slane %v674, 0
      %v756 = vperm.slane %v698, 0
      %v757 = vperm.slane %v699, 0
      %v758 = vperm.slane %v700, 0
      %v759 = vperm.slane %v701, 0
      %v760 = vperm.slane %v702, 0
      %v761 = vperm.slane %v703, 0
      %v762 = vperm.slane %v704, 0
      %v763 = vperm.slane %v675, 0
      %v764 = vperm.slane %v705, 0
      %v765 = vperm.slane %v706, 0
      %v766 = vperm.slane %v707, 0
      %v767 = vperm.slane %v708, 0
      %v768 = vperm.slane %v709, 0
      %v769 = vperm.slane %v710, 0
      %v770 = vperm.slane %v711, 0
      %v771 = vperm.slane %v676, 0
      %v772 = vperm.slane %v712, 0
      %v773 = vperm.slane %v713, 0
      %v774 = vperm.slane %v714, 0
      %v775 = vperm.slane %v715, 0
      %v776 = vperm.slane %v716, 0
      %v777 = vperm.slane %v717, 0
      %v778 = vperm.slane %v718, 0
      %v779 = vperm.slane %v677, 0
      %v780 = vperm.slane %v719, 0
      %v781 = vperm.slane %v720, 0
      %v782 = vperm.slane %v721, 0
      %v783 = vperm.slane %v722, 0
      %v784 = vperm.slane %v723, 0
      %v785 = vperm.slane %v724, 0
      %v786 = vperm.slane %v725, 0
      %v787 = vperm.slane %v678, 0
      %v788 = vperm.slane %v726, 0
      %v789 = vperm.slane %v727, 0
      %v790 = vperm.slane %v728, 0
      %v791 = vperm.slane %v729, 0
      %v792 = vperm.slane %v730, 0
      %v793 = vperm.slane %v731, 0
      %v794 = vperm.slane %v732, 0
      %v795 = vperm.slane %v679, 0
      %v796 = vperm.slane %v733, 0
      %v797 = vperm.slane %v734, 0
      %v798 = vperm.slane %v735, 0
      %v799 = vperm.slane %v736, 0
      %v800 = vperm.slane %v737, 0
      %v801 = vperm.slane %v738, 0
      %v802 = vperm.slane %v739, 0
      %v803 = vperm.slane %v680, 0
      %v804 = vperm.slane %v740, 0
      %v805 = vperm.slane %v741, 0
      %v806 = vperm.slane %v742, 0
      %v807 = vperm.slane %v743, 0
      %v808 = vperm.slane %v744, 0
      %v809 = vperm.slane %v745, 0
      %v810 = vperm.slane %v746, 0
      %v811 = vperm.slane %v681, 0
      %v812 = vperm.slane %v747, 0
      %v813 = vperm.slane %v748, 0
      %v814 = vperm.slane %v749, 0
      %v815 = vperm.slane %v750, 0
      %v816 = vperm.slane %v751, 0
      %v817 = vperm.slane %v752, 0
      %v818 = vperm.slane %v753, 0
      %v883 = vmul.f32 %v755, %v754
      %v884 = vmul.f32 %v756, %v754
      %v885 = vmul.f32 %v757, %v754
      %v886 = vmul.f32 %v758, %v754
      %v887 = vmul.f32 %v759, %v754
      %v888 = vmul.f32 %v760, %v754
      %v889 = vmul.f32 %v761, %v754
      %v890 = vmul.f32 %v762, %v754
      %v891 = vmul.f32 %v763, %v754
      %v892 = vmul.f32 %v764, %v754
      %v893 = vmul.f32 %v765, %v754
      %v894 = vmul.f32 %v766, %v754
      %v895 = vmul.f32 %v767, %v754
      %v896 = vmul.f32 %v768, %v754
      %v897 = vmul.f32 %v769, %v754
      %v898 = vmul.f32 %v770, %v754
      %v899 = vmul.f32 %v771, %v754
      %v900 = vmul.f32 %v772, %v754
      %v901 = vmul.f32 %v773, %v754
      %v902 = vmul.f32 %v774, %v754
      %v903 = vmul.f32 %v775, %v754
      %v904 = vmul.f32 %v776, %v754
      %v905 = vmul.f32 %v777, %v754
      %v906 = vmul.f32 %v778, %v754
      %v907 = vmul.f32 %v779, %v754
      %v908 = vmul.f32 %v780, %v754
      %v909 = vmul.f32 %v781, %v754
      %v910 = vmul.f32 %v782, %v754
      %v911 = vmul.f32 %v783, %v754
      %v912 = vmul.f32 %v784, %v754
      %v913 = vmul.f32 %v785, %v754
      %v914 = vmul.f32 %v786, %v754
      %v915 = vmul.f32 %v787, %v754
      %v916 = vmul.f32 %v788, %v754
      %v917 = vmul.f32 %v789, %v754
      %v918 = vmul.f32 %v790, %v754
      %v919 = vmul.f32 %v791, %v754
      %v920 = vmul.f32 %v792, %v754
      %v921 = vmul.f32 %v793, %v754
      %v922 = vmul.f32 %v794, %v754
      %v923 = vmul.f32 %v795, %v754
      %v924 = vmul.f32 %v796, %v754
      %v925 = vmul.f32 %v797, %v754
      %v926 = vmul.f32 %v798, %v754
      %v927 = vmul.f32 %v799, %v754
      %v928 = vmul.f32 %v800, %v754
      %v929 = vmul.f32 %v801, %v754
      %v930 = vmul.f32 %v802, %v754
      %v931 = vmul.f32 %v803, %v754
      %v932 = vmul.f32 %v804, %v754
      %v933 = vmul.f32 %v805, %v754
      %v934 = vmul.f32 %v806, %v754
      %v935 = vmul.f32 %v807, %v754
      %v936 = vmul.f32 %v808, %v754
      %v937 = vmul.f32 %v809, %v754
      %v938 = vmul.f32 %v810, %v754
      %v939 = vmul.f32 %v811, %v754
      %v940 = vmul.f32 %v812, %v754
      %v941 = vmul.f32 %v813, %v754
      %v942 = vmul.f32 %v814, %v754
      %v943 = vmul.f32 %v815, %v754
      %v944 = vmul.f32 %v816, %v754
      %v945 = vmul.f32 %v817, %v754
      %v946 = vmul.f32 %v818, %v754
      %v947 = vmul.f32 %v883, 1.442695
      %v948 = vpow.pop %v947
      %v949 = vmul.f32 %v884, 1.442695
      %v950 = vpow.pop %v949
      %v951 = vmul.f32 %v885, 1.442695
      %v952 = vpow.pop %v951
      %v953 = vmul.f32 %v886, 1.442695
      %v954 = vpow.pop %v953
      %v955 = vmul.f32 %v887, 1.442695
      %v956 = vpow.pop %v955
      %v957 = vmul.f32 %v888, 1.442695
      %v958 = vpow.pop %v957
      %v959 = vmul.f32 %v889, 1.442695
      %v960 = vpow.pop %v959
      %v961 = vmul.f32 %v890, 1.442695
      %v962 = vpow.pop %v961
      %v963 = vmul.f32 %v891, 1.442695
      %v964 = vpow.pop %v963
      %v965 = vmul.f32 %v892, 1.442695
      %v966 = vpow.pop %v965
      %v967 = vmul.f32 %v893, 1.442695
      %v968 = vpow.pop %v967
      %v969 = vmul.f32 %v894, 1.442695
      %v970 = vpow.pop %v969
      %v971 = vmul.f32 %v895, 1.442695
      %v972 = vpow.pop %v971
      %v973 = vmul.f32 %v896, 1.442695
      %v974 = vpow.pop %v973
      %v975 = vmul.f32 %v897, 1.442695
      %v976 = vpow.pop %v975
      %v977 = vmul.f32 %v898, 1.442695
      %v978 = vpow.pop %v977
      %v979 = vmul.f32 %v899, 1.442695
      %v980 = vpow.pop %v979
      %v981 = vmul.f32 %v900, 1.442695
      %v982 = vpow.pop %v981
      %v983 = vmul.f32 %v901, 1.442695
      %v984 = vpow.pop %v983
      %v985 = vmul.f32 %v902, 1.442695
      %v986 = vpow.pop %v985
      %v987 = vmul.f32 %v903, 1.442695
      %v988 = vpow.pop %v987
      %v989 = vmul.f32 %v904, 1.442695
      %v990 = vpow.pop %v989
      %v991 = vmul.f32 %v905, 1.442695
      %v992 = vpow.pop %v991
      %v993 = vmul.f32 %v906, 1.442695
      %v994 = vpow.pop %v993
      %v995 = vmul.f32 %v907, 1.442695
      %v996 = vpow.pop %v995
      %v997 = vmul.f32 %v908, 1.442695
      %v998 = vpow.pop %v997
      %v999 = vmul.f32 %v909, 1.442695
      %v1000 = vpow.pop %v999
      %v1001 = vmul.f32 %v910, 1.442695
      %v1002 = vpow.pop %v1001
      %v1003 = vmul.f32 %v911, 1.442695
      %v1004 = vpow.pop %v1003
      %v1005 = vmul.f32 %v912, 1.442695
      %v1006 = vpow.pop %v1005
      %v1007 = vmul.f32 %v913, 1.442695
      %v1008 = vpow.pop %v1007
      %v1009 = vmul.f32 %v914, 1.442695
      %v1010 = vpow.pop %v1009
      %v1011 = vmul.f32 %v915, 1.442695
      %v1012 = vpow.pop %v1011
      %v1013 = vmul.f32 %v916, 1.442695
      %v1014 = vpow.pop %v1013
      %v1015 = vmul.f32 %v917, 1.442695
      %v1016 = vpow.pop %v1015
      %v1017 = vmul.f32 %v918, 1.442695
      %v1018 = vpow.pop %v1017
      %v1019 = vmul.f32 %v919, 1.442695
      %v1020 = vpow.pop %v1019
      %v1021 = vmul.f32 %v920, 1.442695
      %v1022 = vpow.pop %v1021
      %v1023 = vmul.f32 %v921, 1.442695
      %v1024 = vpow.pop %v1023
      %v1025 = vmul.f32 %v922, 1.442695
      %v1026 = vpow.pop %v1025
      %v1027 = vmul.f32 %v923, 1.442695
      %v1028 = vpow.pop %v1027
      %v1029 = vmul.f32 %v924, 1.442695
      %v1030 = vpow.pop %v1029
      %v1031 = vmul.f32 %v925, 1.442695
      %v1032 = vpow.pop %v1031
      %v1033 = vmul.f32 %v926, 1.442695
      %v1034 = vpow.pop %v1033
      %v1035 = vmul.f32 %v927, 1.442695
      %v1036 = vpow.pop %v1035
      %v1037 = vmul.f32 %v928, 1.442695
      %v1038 = vpow.pop %v1037
      %v1039 = vmul.f32 %v929, 1.442695
      %v1040 = vpow.pop %v1039
      %v1041 = vmul.f32 %v930, 1.442695
      %v1042 = vpow.pop %v1041
      %v1043 = vmul.f32 %v931, 1.442695
      %v1044 = vpow.pop %v1043
      %v1045 = vmul.f32 %v932, 1.442695
      %v1046 = vpow.pop %v1045
      %v1047 = vmul.f32 %v933, 1.442695
      %v1048 = vpow.pop %v1047
      %v1049 = vmul.f32 %v934, 1.442695
      %v1050 = vpow.pop %v1049
      %v1051 = vmul.f32 %v935, 1.442695
      %v1052 = vpow.pop %v1051
      %v1053 = vmul.f32 %v936, 1.442695
      %v1054 = vpow.pop %v1053
      %v1055 = vmul.f32 %v937, 1.442695
      %v1056 = vpow.pop %v1055
      %v1057 = vmul.f32 %v938, 1.442695
      %v1058 = vpow.pop %v1057
      %v1059 = vmul.f32 %v939, 1.442695
      %v1060 = vpow.pop %v1059
      %v1061 = vmul.f32 %v940, 1.442695
      %v1062 = vpow.pop %v1061
      %v1063 = vmul.f32 %v941, 1.442695
      %v1064 = vpow.pop %v1063
      %v1065 = vmul.f32 %v942, 1.442695
      %v1066 = vpow.pop %v1065
      %v1067 = vmul.f32 %v943, 1.442695
      %v1068 = vpow.pop %v1067
      %v1069 = vmul.f32 %v944, 1.442695
      %v1070 = vpow.pop %v1069
      %v1071 = vmul.f32 %v945, 1.442695
      %v1072 = vpow.pop %v1071
      %v1073 = vmul.f32 %v946, 1.442695
      %v1074 = vpow.pop %v1073
      %1075 = vst [vmem:[#allocation3] sm:$0xff] %v948
      %1076 = vst [vmem:[#allocation3 + $0x8] sm:$0xff] %v950
      %1077 = vst [vmem:[#allocation3 + $0x10] sm:$0xff] %v952
      %1078 = vst [vmem:[#allocation3 + $0x18] sm:$0xff] %v954
      %1079 = vst [vmem:[#allocation3 + $0x20] sm:$0xff] %v956
      %1080 = vst [vmem:[#allocation3 + $0x28] sm:$0xff] %v958
      %1081 = vst [vmem:[#allocation3 + $0x30] sm:$0xff] %v960
      %1082 = vst [vmem:[#allocation3 + $0x38] sm:$0xff] %v962
      %1083 = vst [vmem:[#allocation3 + $0x40] sm:$0xff] %v964
      %1084 = vst [vmem:[#allocation3 + $0x48] sm:$0xff] %v966
      %1085 = vst [vmem:[#allocation3 + $0x50] sm:$0xff] %v968
      %1086 = vst [vmem:[#allocation3 + $0x58] sm:$0xff] %v970
      %1087 = vst [vmem:[#allocation3 + $0x60] sm:$0xff] %v972
      %1088 = vst [vmem:[#allocation3 + $0x68] sm:$0xff] %v974
      %1089 = vst [vmem:[#allocation3 + $0x70] sm:$0xff] %v976
      %1090 = vst [vmem:[#allocation3 + $0x78] sm:$0xff] %v978
      %1091 = vst [vmem:[#allocation3 + $0x80] sm:$0xff] %v980
      %1092 = vst [vmem:[#allocation3 + $0x88] sm:$0xff] %v982
      %1093 = vst [vmem:[#allocation3 + $0x90] sm:$0xff] %v984
      %1094 = vst [vmem:[#allocation3 + $0x98] sm:$0xff] %v986
      %1095 = vst [vmem:[#allocation3 + $0xa0] sm:$0xff] %v988
      %1096 = vst [vmem:[#allocation3 + $0xa8] sm:$0xff] %v990
      %1097 = vst [vmem:[#allocation3 + $0xb0] sm:$0xff] %v992
      %1098 = vst [vmem:[#allocation3 + $0xb8] sm:$0xff] %v994
      %1099 = vst [vmem:[#allocation3 + $0xc0] sm:$0xff] %v996
      %1100 = vst [vmem:[#allocation3 + $0xc8] sm:$0xff] %v998
      %1101 = vst [vmem:[#allocation3 + $0xd0] sm:$0xff] %v1000
      %1102 = vst [vmem:[#allocation3 + $0xd8] sm:$0xff] %v1002
      %1103 = vst [vmem:[#allocation3 + $0xe0] sm:$0xff] %v1004
      %1104 = vst [vmem:[#allocation3 + $0xe8] sm:$0xff] %v1006
      %1105 = vst [vmem:[#allocation3 + $0xf0] sm:$0xff] %v1008
      %1106 = vst [vmem:[#allocation3 + $0xf8] sm:$0xff] %v1010
      %1107 = vst [vmem:[#allocation3 + $0x100] sm:$0xff] %v1012
      %1108 = vst [vmem:[#allocation3 + $0x108] sm:$0xff] %v1014
      %1109 = vst [vmem:[#allocation3 + $0x110] sm:$0xff] %v1016
      %1110 = vst [vmem:[#allocation3 + $0x118] sm:$0xff] %v1018
      %1111 = vst [vmem:[#allocation3 + $0x120] sm:$0xff] %v1020
      %1112 = vst [vmem:[#allocation3 + $0x128] sm:$0xff] %v1022
      %1113 = vst [vmem:[#allocation3 + $0x130] sm:$0xff] %v1024
      %1114 = vst [vmem:[#allocation3 + $0x138] sm:$0xff] %v1026
      %1115 = vst [vmem:[#allocation3 + $0x140] sm:$0xff] %v1028
      %1116 = vst [vmem:[#allocation3 + $0x148] sm:$0xff] %v1030
      %1117 = vst [vmem:[#allocation3 + $0x150] sm:$0xff] %v1032
      %1118 = vst [vmem:[#allocation3 + $0x158] sm:$0xff] %v1034
      %1119 = vst [vmem:[#allocation3 + $0x160] sm:$0xff] %v1036
      %1120 = vst [vmem:[#allocation3 + $0x168] sm:$0xff] %v1038
      %1121 = vst [vmem:[#allocation3 + $0x170] sm:$0xff] %v1040
      %1122 = vst [vmem:[#allocation3 + $0x178] sm:$0xff] %v1042
      %1123 = vst [vmem:[#allocation3 + $0x180] sm:$0xff] %v1044
      %1124 = vst [vmem:[#allocation3 + $0x188] sm:$0xff] %v1046
      %1125 = vst [vmem:[#allocation3 + $0x190] sm:$0xff] %v1048
      %1126 = vst [vmem:[#allocation3 + $0x198] sm:$0xff] %v1050
      %1127 = vst [vmem:[#allocation3 + $0x1a0] sm:$0xff] %v1052
      %1128 = vst [vmem:[#allocation3 + $0x1a8] sm:$0xff] %v1054
      %1129 = vst [vmem:[#allocation3 + $0x1b0] sm:$0xff] %v1056
      %1130 = vst [vmem:[#allocation3 + $0x1b8] sm:$0xff] %v1058
      %1131 = vst [vmem:[#allocation3 + $0x1c0] sm:$0xff] %v1060
      %1132 = vst [vmem:[#allocation3 + $0x1c8] sm:$0xff] %v1062
      %1133 = vst [vmem:[#allocation3 + $0x1d0] sm:$0xff] %v1064
      %1134 = vst [vmem:[#allocation3 + $0x1d8] sm:$0xff] %v1066
      %1135 = vst [vmem:[#allocation3 + $0x1e0] sm:$0xff] %v1068
      %1136 = vst [vmem:[#allocation3 + $0x1e8] sm:$0xff] %v1070
      %1137 = vst [vmem:[#allocation3 + $0x1f0] sm:$0xff] %v1072
      %1138 = vst [vmem:[#allocation3 + $0x1f8] sm:$0xff] %v1074
      %v1139 = vperm.slane %v591, 0
      %v1140 = vlaneseq
      %v1141 = vshrl.u32 %v1140, 7
      %1143 = vset.pattern.permute.xlu0 %v1141
      %1144 = vperm.xlu0 %1143, %v1139
      %v1145 = vpop.permute.xlu0 %1144
      %v1146 = vperm.slane %v591, 1
      %v1147 = vlaneseq
      %v1148 = vshrl.u32 %v1147, 7
      %1150 = vset.pattern.permute.xlu0 %v1148
      %1151 = vperm.xlu0 %1150, %v1146
      %v1152 = vpop.permute.xlu0 %1151
      %v1153 = vperm.slane %v591, 2
      %v1154 = vlaneseq
      %v1155 = vshrl.u32 %v1154, 7
      %1157 = vset.pattern.permute.xlu0 %v1155
      %1158 = vperm.xlu0 %1157, %v1153
      %v1159 = vpop.permute.xlu0 %1158
      %v1160 = vperm.slane %v591, 3
      %v1161 = vlaneseq
      %v1162 = vshrl.u32 %v1161, 7
      %1164 = vset.pattern.permute.xlu0 %v1162
      %1165 = vperm.xlu0 %1164, %v1160
      %v1166 = vpop.permute.xlu0 %1165
      %v1167 = vperm.slane %v591, 4
      %v1168 = vlaneseq
      %v1169 = vshrl.u32 %v1168, 7
      %1171 = vset.pattern.permute.xlu0 %v1169
      %1172 = vperm.xlu0 %1171, %v1167
      %v1173 = vpop.permute.xlu0 %1172
      %v1174 = vperm.slane %v591, 5
      %v1175 = vlaneseq
      %v1176 = vshrl.u32 %v1175, 7
      %1178 = vset.pattern.permute.xlu0 %v1176
      %1179 = vperm.xlu0 %1178, %v1174
      %v1180 = vpop.permute.xlu0 %1179
      %v1181 = vperm.slane %v591, 6
      %v1182 = vlaneseq
      %v1183 = vshrl.u32 %v1182, 7
      %1185 = vset.pattern.permute.xlu0 %v1183
      %1186 = vperm.xlu0 %1185, %v1181
      %v1187 = vpop.permute.xlu0 %1186
      %v1188 = vperm.slane %v591, 7
      %v1189 = vlaneseq
      %v1190 = vshrl.u32 %v1189, 7
      %1192 = vset.pattern.permute.xlu0 %v1190
      %1193 = vperm.xlu0 %1192, %v1188
      %v1194 = vpop.permute.xlu0 %1193
      %v1195 = vperm.slane %v593, 0
      %v1196 = vlaneseq
      %v1197 = vshrl.u32 %v1196, 7
      %1199 = vset.pattern.permute.xlu0 %v1197
      %1200 = vperm.xlu0 %1199, %v1195
      %v1201 = vpop.permute.xlu0 %1200
      %v1202 = vperm.slane %v593, 1
      %v1203 = vlaneseq
      %v1204 = vshrl.u32 %v1203, 7
      %1206 = vset.pattern.permute.xlu0 %v1204
      %1207 = vperm.xlu0 %1206, %v1202
      %v1208 = vpop.permute.xlu0 %1207
      %v1209 = vperm.slane %v593, 2
      %v1210 = vlaneseq
      %v1211 = vshrl.u32 %v1210, 7
      %1213 = vset.pattern.permute.xlu0 %v1211
      %1214 = vperm.xlu0 %1213, %v1209
      %v1215 = vpop.permute.xlu0 %1214
      %v1216 = vperm.slane %v593, 3
      %v1217 = vlaneseq
      %v1218 = vshrl.u32 %v1217, 7
      %1220 = vset.pattern.permute.xlu0 %v1218
      %1221 = vperm.xlu0 %1220, %v1216
      %v1222 = vpop.permute.xlu0 %1221
      %v1223 = vperm.slane %v593, 4
      %v1224 = vlaneseq
      %v1225 = vshrl.u32 %v1224, 7
      %1227 = vset.pattern.permute.xlu0 %v1225
      %1228 = vperm.xlu0 %1227, %v1223
      %v1229 = vpop.permute.xlu0 %1228
      %v1230 = vperm.slane %v593, 5
      %v1231 = vlaneseq
      %v1232 = vshrl.u32 %v1231, 7
      %1234 = vset.pattern.permute.xlu0 %v1232
      %1235 = vperm.xlu0 %1234, %v1230
      %v1236 = vpop.permute.xlu0 %1235
      %v1237 = vperm.slane %v593, 6
      %v1238 = vlaneseq
      %v1239 = vshrl.u32 %v1238, 7
      %1241 = vset.pattern.permute.xlu0 %v1239
      %1242 = vperm.xlu0 %1241, %v1237
      %v1243 = vpop.permute.xlu0 %1242
      %v1244 = vperm.slane %v593, 7
      %v1245 = vlaneseq
      %v1246 = vshrl.u32 %v1245, 7
      %1248 = vset.pattern.permute.xlu0 %v1246
      %1249 = vperm.xlu0 %1248, %v1244
      %v1250 = vpop.permute.xlu0 %1249
      %v1251 = vperm.slane %v596, 0
      %v1252 = vlaneseq
      %v1253 = vshrl.u32 %v1252, 7
      %1255 = vset.pattern.permute.xlu0 %v1253
      %1256 = vperm.xlu0 %1255, %v1251
      %v1257 = vpop.permute.xlu0 %1256
      %v1258 = vperm.slane %v596, 1
      %v1259 = vlaneseq
      %v1260 = vshrl.u32 %v1259, 7
      %1262 = vset.pattern.permute.xlu0 %v1260
      %1263 = vperm.xlu0 %1262, %v1258
      %v1264 = vpop.permute.xlu0 %1263
      %v1265 = vperm.slane %v596, 2
      %v1266 = vlaneseq
      %v1267 = vshrl.u32 %v1266, 7
      %1269 = vset.pattern.permute.xlu0 %v1267
      %1270 = vperm.xlu0 %1269, %v1265
      %v1271 = vpop.permute.xlu0 %1270
      %v1272 = vperm.slane %v596, 3
      %v1273 = vlaneseq
      %v1274 = vshrl.u32 %v1273, 7
      %1276 = vset.pattern.permute.xlu0 %v1274
      %1277 = vperm.xlu0 %1276, %v1272
      %v1278 = vpop.permute.xlu0 %1277
      %v1279 = vperm.slane %v596, 4
      %v1280 = vlaneseq
      %v1281 = vshrl.u32 %v1280, 7
      %1283 = vset.pattern.permute.xlu0 %v1281
      %1284 = vperm.xlu0 %1283, %v1279
      %v1285 = vpop.permute.xlu0 %1284
      %v1286 = vperm.slane %v596, 5
      %v1287 = vlaneseq
      %v1288 = vshrl.u32 %v1287, 7
      %1290 = vset.pattern.permute.xlu0 %v1288
      %1291 = vperm.xlu0 %1290, %v1286
      %v1292 = vpop.permute.xlu0 %1291
      %v1293 = vperm.slane %v596, 6
      %v1294 = vlaneseq
      %v1295 = vshrl.u32 %v1294, 7
      %1297 = vset.pattern.permute.xlu0 %v1295
      %1298 = vperm.xlu0 %1297, %v1293
      %v1299 = vpop.permute.xlu0 %1298
      %v1300 = vperm.slane %v596, 7
      %v1301 = vlaneseq
      %v1302 = vshrl.u32 %v1301, 7
      %1304 = vset.pattern.permute.xlu0 %v1302
      %1305 = vperm.xlu0 %1304, %v1300
      %v1306 = vpop.permute.xlu0 %1305
      %v1307 = vperm.slane %v598, 0
      %v1308 = vlaneseq
      %v1309 = vshrl.u32 %v1308, 7
      %1311 = vset.pattern.permute.xlu0 %v1309
      %1312 = vperm.xlu0 %1311, %v1307
      %v1313 = vpop.permute.xlu0 %1312
      %v1314 = vperm.slane %v598, 1
      %v1315 = vlaneseq
      %v1316 = vshrl.u32 %v1315, 7
      %1318 = vset.pattern.permute.xlu0 %v1316
      %1319 = vperm.xlu0 %1318, %v1314
      %v1320 = vpop.permute.xlu0 %1319
      %v1321 = vperm.slane %v598, 2
      %v1322 = vlaneseq
      %v1323 = vshrl.u32 %v1322, 7
      %1325 = vset.pattern.permute.xlu0 %v1323
      %1326 = vperm.xlu0 %1325, %v1321
      %v1327 = vpop.permute.xlu0 %1326
      %v1328 = vperm.slane %v598, 3
      %v1329 = vlaneseq
      %v1330 = vshrl.u32 %v1329, 7
      %1332 = vset.pattern.permute.xlu0 %v1330
      %1333 = vperm.xlu0 %1332, %v1328
      %v1334 = vpop.permute.xlu0 %1333
      %v1335 = vperm.slane %v598, 4
      %v1336 = vlaneseq
      %v1337 = vshrl.u32 %v1336, 7
      %1339 = vset.pattern.permute.xlu0 %v1337
      %1340 = vperm.xlu0 %1339, %v1335
      %v1341 = vpop.permute.xlu0 %1340
      %v1342 = vperm.slane %v598, 5
      %v1343 = vlaneseq
      %v1344 = vshrl.u32 %v1343, 7
      %1346 = vset.pattern.permute.xlu0 %v1344
      %1347 = vperm.xlu0 %1346, %v1342
      %v1348 = vpop.permute.xlu0 %1347
      %v1349 = vperm.slane %v598, 6
      %v1350 = vlaneseq
      %v1351 = vshrl.u32 %v1350, 7
      %1353 = vset.pattern.permute.xlu0 %v1351
      %1354 = vperm.xlu0 %1353, %v1349
      %v1355 = vpop.permute.xlu0 %1354
      %v1356 = vperm.slane %v598, 7
      %v1357 = vlaneseq
      %v1358 = vshrl.u32 %v1357, 7
      %1360 = vset.pattern.permute.xlu0 %v1358
      %1361 = vperm.xlu0 %1360, %v1356
      %v1362 = vpop.permute.xlu0 %1361
      %v1363 = vperm.slane %v601, 0
      %v1364 = vlaneseq
      %v1365 = vshrl.u32 %v1364, 7
      %1367 = vset.pattern.permute.xlu0 %v1365
      %1368 = vperm.xlu0 %1367, %v1363
      %v1369 = vpop.permute.xlu0 %1368
      %v1370 = vperm.slane %v601, 1
      %v1371 = vlaneseq
      %v1372 = vshrl.u32 %v1371, 7
      %1374 = vset.pattern.permute.xlu0 %v1372
      %1375 = vperm.xlu0 %1374, %v1370
      %v1376 = vpop.permute.xlu0 %1375
      %v1377 = vperm.slane %v601, 2
      %v1378 = vlaneseq
      %v1379 = vshrl.u32 %v1378, 7
      %1381 = vset.pattern.permute.xlu0 %v1379
      %1382 = vperm.xlu0 %1381, %v1377
      %v1383 = vpop.permute.xlu0 %1382
      %v1384 = vperm.slane %v601, 3
      %v1385 = vlaneseq
      %v1386 = vshrl.u32 %v1385, 7
      %1388 = vset.pattern.permute.xlu0 %v1386
      %1389 = vperm.xlu0 %1388, %v1384
      %v1390 = vpop.permute.xlu0 %1389
      %v1391 = vperm.slane %v601, 4
      %v1392 = vlaneseq
      %v1393 = vshrl.u32 %v1392, 7
      %1395 = vset.pattern.permute.xlu0 %v1393
      %1396 = vperm.xlu0 %1395, %v1391
      %v1397 = vpop.permute.xlu0 %1396
      %v1398 = vperm.slane %v601, 5
      %v1399 = vlaneseq
      %v1400 = vshrl.u32 %v1399, 7
      %1402 = vset.pattern.permute.xlu0 %v1400
      %1403 = vperm.xlu0 %1402, %v1398
      %v1404 = vpop.permute.xlu0 %1403
      %v1405 = vperm.slane %v601, 6
      %v1406 = vlaneseq
      %v1407 = vshrl.u32 %v1406, 7
      %1409 = vset.pattern.permute.xlu0 %v1407
      %1410 = vperm.xlu0 %1409, %v1405
      %v1411 = vpop.permute.xlu0 %1410
      %v1412 = vperm.slane %v601, 7
      %v1413 = vlaneseq
      %v1414 = vshrl.u32 %v1413, 7
      %1416 = vset.pattern.permute.xlu0 %v1414
      %1417 = vperm.xlu0 %1416, %v1412
      %v1418 = vpop.permute.xlu0 %1417
      %v1419 = vperm.slane %v603, 0
      %v1420 = vlaneseq
      %v1421 = vshrl.u32 %v1420, 7
      %1423 = vset.pattern.permute.xlu0 %v1421
      %1424 = vperm.xlu0 %1423, %v1419
      %v1425 = vpop.permute.xlu0 %1424
      %v1426 = vperm.slane %v603, 1
      %v1427 = vlaneseq
      %v1428 = vshrl.u32 %v1427, 7
      %1430 = vset.pattern.permute.xlu0 %v1428
      %1431 = vperm.xlu0 %1430, %v1426
      %v1432 = vpop.permute.xlu0 %1431
      %v1433 = vperm.slane %v603, 2
      %v1434 = vlaneseq
      %v1435 = vshrl.u32 %v1434, 7
      %1437 = vset.pattern.permute.xlu0 %v1435
      %1438 = vperm.xlu0 %1437, %v1433
      %v1439 = vpop.permute.xlu0 %1438
      %v1440 = vperm.slane %v603, 3
      %v1441 = vlaneseq
      %v1442 = vshrl.u32 %v1441, 7
      %1444 = vset.pattern.permute.xlu0 %v1442
      %1445 = vperm.xlu0 %1444, %v1440
      %v1446 = vpop.permute.xlu0 %1445
      %v1447 = vperm.slane %v603, 4
      %v1448 = vlaneseq
      %v1449 = vshrl.u32 %v1448, 7
      %1451 = vset.pattern.permute.xlu0 %v1449
      %1452 = vperm.xlu0 %1451, %v1447
      %v1453 = vpop.permute.xlu0 %1452
      %v1454 = vperm.slane %v603, 5
      %v1455 = vlaneseq
      %v1456 = vshrl.u32 %v1455, 7
      %1458 = vset.pattern.permute.xlu0 %v1456
      %1459 = vperm.xlu0 %1458, %v1454
      %v1460 = vpop.permute.xlu0 %1459
      %v1461 = vperm.slane %v603, 6
      %v1462 = vlaneseq
      %v1463 = vshrl.u32 %v1462, 7
      %1465 = vset.pattern.permute.xlu0 %v1463
      %1466 = vperm.xlu0 %1465, %v1461
      %v1467 = vpop.permute.xlu0 %1466
      %v1468 = vperm.slane %v603, 7
      %v1469 = vlaneseq
      %v1470 = vshrl.u32 %v1469, 7
      %1472 = vset.pattern.permute.xlu0 %v1470
      %1473 = vperm.xlu0 %1472, %v1468
      %v1474 = vpop.permute.xlu0 %1473
      %v1475 = vperm.slane %v606, 0
      %v1476 = vlaneseq
      %v1477 = vshrl.u32 %v1476, 7
      %1479 = vset.pattern.permute.xlu0 %v1477
      %1480 = vperm.xlu0 %1479, %v1475
      %v1481 = vpop.permute.xlu0 %1480
      %v1482 = vperm.slane %v606, 1
      %v1483 = vlaneseq
      %v1484 = vshrl.u32 %v1483, 7
      %1486 = vset.pattern.permute.xlu0 %v1484
      %1487 = vperm.xlu0 %1486, %v1482
      %v1488 = vpop.permute.xlu0 %1487
      %v1489 = vperm.slane %v606, 2
      %v1490 = vlaneseq
      %v1491 = vshrl.u32 %v1490, 7
      %1493 = vset.pattern.permute.xlu0 %v1491
      %1494 = vperm.xlu0 %1493, %v1489
      %v1495 = vpop.permute.xlu0 %1494
      %v1496 = vperm.slane %v606, 3
      %v1497 = vlaneseq
      %v1498 = vshrl.u32 %v1497, 7
      %1500 = vset.pattern.permute.xlu0 %v1498
      %1501 = vperm.xlu0 %1500, %v1496
      %v1502 = vpop.permute.xlu0 %1501
      %v1503 = vperm.slane %v606, 4
      %v1504 = vlaneseq
      %v1505 = vshrl.u32 %v1504, 7
      %1507 = vset.pattern.permute.xlu0 %v1505
      %1508 = vperm.xlu0 %1507, %v1503
      %v1509 = vpop.permute.xlu0 %1508
      %v1510 = vperm.slane %v606, 5
      %v1511 = vlaneseq
      %v1512 = vshrl.u32 %v1511, 7
      %1514 = vset.pattern.permute.xlu0 %v1512
      %1515 = vperm.xlu0 %1514, %v1510
      %v1516 = vpop.permute.xlu0 %1515
      %v1517 = vperm.slane %v606, 6
      %v1518 = vlaneseq
      %v1519 = vshrl.u32 %v1518, 7
      %1521 = vset.pattern.permute.xlu0 %v1519
      %1522 = vperm.xlu0 %1521, %v1517
      %v1523 = vpop.permute.xlu0 %1522
      %v1524 = vperm.slane %v606, 7
      %v1525 = vlaneseq
      %v1526 = vshrl.u32 %v1525, 7
      %1528 = vset.pattern.permute.xlu0 %v1526
      %1529 = vperm.xlu0 %1528, %v1524
      %v1530 = vpop.permute.xlu0 %1529
      %v1531 = vperm.slane %v608, 0
      %v1532 = vlaneseq
      %v1533 = vshrl.u32 %v1532, 7
      %1535 = vset.pattern.permute.xlu0 %v1533
      %1536 = vperm.xlu0 %1535, %v1531
      %v1537 = vpop.permute.xlu0 %1536
      %v1538 = vperm.slane %v608, 1
      %v1539 = vlaneseq
      %v1540 = vshrl.u32 %v1539, 7
      %1542 = vset.pattern.permute.xlu0 %v1540
      %1543 = vperm.xlu0 %1542, %v1538
      %v1544 = vpop.permute.xlu0 %1543
      %v1545 = vperm.slane %v608, 2
      %v1546 = vlaneseq
      %v1547 = vshrl.u32 %v1546, 7
      %1549 = vset.pattern.permute.xlu0 %v1547
      %1550 = vperm.xlu0 %1549, %v1545
      %v1551 = vpop.permute.xlu0 %1550
      %v1552 = vperm.slane %v608, 3
      %v1553 = vlaneseq
      %v1554 = vshrl.u32 %v1553, 7
      %1556 = vset.pattern.permute.xlu0 %v1554
      %1557 = vperm.xlu0 %1556, %v1552
      %v1558 = vpop.permute.xlu0 %1557
      %v1559 = vperm.slane %v608, 4
      %v1560 = vlaneseq
      %v1561 = vshrl.u32 %v1560, 7
      %1563 = vset.pattern.permute.xlu0 %v1561
      %1564 = vperm.xlu0 %1563, %v1559
      %v1565 = vpop.permute.xlu0 %1564
      %v1566 = vperm.slane %v608, 5
      %v1567 = vlaneseq
      %v1568 = vshrl.u32 %v1567, 7
      %1570 = vset.pattern.permute.xlu0 %v1568
      %1571 = vperm.xlu0 %1570, %v1566
      %v1572 = vpop.permute.xlu0 %1571
      %v1573 = vperm.slane %v608, 6
      %v1574 = vlaneseq
      %v1575 = vshrl.u32 %v1574, 7
      %1577 = vset.pattern.permute.xlu0 %v1575
      %1578 = vperm.xlu0 %1577, %v1573
      %v1579 = vpop.permute.xlu0 %1578
      %v1580 = vperm.slane %v608, 7
      %v1581 = vlaneseq
      %v1582 = vshrl.u32 %v1581, 7
      %1584 = vset.pattern.permute.xlu0 %v1582
      %1585 = vperm.xlu0 %1584, %v1580
      %v1586 = vpop.permute.xlu0 %1585
      %v1595 = vrot.slane %v682, 1
      %v1596 = vrot.slane %v682, 2
      %v1597 = vrot.slane %v682, 3
      %v1598 = vrot.slane %v682, 4
      %v1599 = vrot.slane %v682, 5
      %v1600 = vrot.slane %v682, 6
      %v1601 = vrot.slane %v682, 7
      %v1602 = vrot.slane %v683, 1
      %v1603 = vrot.slane %v683, 2
      %v1604 = vrot.slane %v683, 3
      %v1605 = vrot.slane %v683, 4
      %v1606 = vrot.slane %v683, 5
      %v1607 = vrot.slane %v683, 6
      %v1608 = vrot.slane %v683, 7
      %v1609 = vrot.slane %v684, 1
      %v1610 = vrot.slane %v684, 2
      %v1611 = vrot.slane %v684, 3
      %v1612 = vrot.slane %v684, 4
      %v1613 = vrot.slane %v684, 5
      %v1614 = vrot.slane %v684, 6
      %v1615 = vrot.slane %v684, 7
      %v1616 = vrot.slane %v685, 1
      %v1617 = vrot.slane %v685, 2
      %v1618 = vrot.slane %v685, 3
      %v1619 = vrot.slane %v685, 4
      %v1620 = vrot.slane %v685, 5
      %v1621 = vrot.slane %v685, 6
      %v1622 = vrot.slane %v685, 7
      %v1623 = vrot.slane %v686, 1
      %v1624 = vrot.slane %v686, 2
      %v1625 = vrot.slane %v686, 3
      %v1626 = vrot.slane %v686, 4
      %v1627 = vrot.slane %v686, 5
      %v1628 = vrot.slane %v686, 6
      %v1629 = vrot.slane %v686, 7
      %v1630 = vrot.slane %v687, 1
      %v1631 = vrot.slane %v687, 2
      %v1632 = vrot.slane %v687, 3
      %v1633 = vrot.slane %v687, 4
      %v1634 = vrot.slane %v687, 5
      %v1635 = vrot.slane %v687, 6
      %v1636 = vrot.slane %v687, 7
      %v1637 = vrot.slane %v688, 1
      %v1638 = vrot.slane %v688, 2
      %v1639 = vrot.slane %v688, 3
      %v1640 = vrot.slane %v688, 4
      %v1641 = vrot.slane %v688, 5
      %v1642 = vrot.slane %v688, 6
      %v1643 = vrot.slane %v688, 7
      %v1644 = vrot.slane %v689, 1
      %v1645 = vrot.slane %v689, 2
      %v1646 = vrot.slane %v689, 3
      %v1647 = vrot.slane %v689, 4
      %v1648 = vrot.slane %v689, 5
      %v1649 = vrot.slane %v689, 6
      %v1650 = vrot.slane %v689, 7
      %v1651 = vperm.slane %v682, 0
      %v1652 = vperm.slane %v1595, 0
      %v1653 = vperm.slane %v1596, 0
      %v1654 = vperm.slane %v1597, 0
      %v1655 = vperm.slane %v1598, 0
      %v1656 = vperm.slane %v1599, 0
      %v1657 = vperm.slane %v1600, 0
      %v1658 = vperm.slane %v1601, 0
      %v1659 = vperm.slane %v683, 0
      %v1660 = vperm.slane %v1602, 0
      %v1661 = vperm.slane %v1603, 0
      %v1662 = vperm.slane %v1604, 0
      %v1663 = vperm.slane %v1605, 0
      %v1664 = vperm.slane %v1606, 0
      %v1665 = vperm.slane %v1607, 0
      %v1666 = vperm.slane %v1608, 0
      %v1667 = vperm.slane %v684, 0
      %v1668 = vperm.slane %v1609, 0
      %v1669 = vperm.slane %v1610, 0
      %v1670 = vperm.slane %v1611, 0
      %v1671 = vperm.slane %v1612, 0
      %v1672 = vperm.slane %v1613, 0
      %v1673 = vperm.slane %v1614, 0
      %v1674 = vperm.slane %v1615, 0
      %v1675 = vperm.slane %v685, 0
      %v1676 = vperm.slane %v1616, 0
      %v1677 = vperm.slane %v1617, 0
      %v1678 = vperm.slane %v1618, 0
      %v1679 = vperm.slane %v1619, 0
      %v1680 = vperm.slane %v1620, 0
      %v1681 = vperm.slane %v1621, 0
      %v1682 = vperm.slane %v1622, 0
      %v1683 = vperm.slane %v686, 0
      %v1684 = vperm.slane %v1623, 0
      %v1685 = vperm.slane %v1624, 0
      %v1686 = vperm.slane %v1625, 0
      %v1687 = vperm.slane %v1626, 0
      %v1688 = vperm.slane %v1627, 0
      %v1689 = vperm.slane %v1628, 0
      %v1690 = vperm.slane %v1629, 0
      %v1691 = vperm.slane %v687, 0
      %v1692 = vperm.slane %v1630, 0
      %v1693 = vperm.slane %v1631, 0
      %v1694 = vperm.slane %v1632, 0
      %v1695 = vperm.slane %v1633, 0
      %v1696 = vperm.slane %v1634, 0
      %v1697 = vperm.slane %v1635, 0
      %v1698 = vperm.slane %v1636, 0
      %v1699 = vperm.slane %v688, 0
      %v1700 = vperm.slane %v1637, 0
      %v1701 = vperm.slane %v1638, 0
      %v1702 = vperm.slane %v1639, 0
      %v1703 = vperm.slane %v1640, 0
      %v1704 = vperm.slane %v1641, 0
      %v1705 = vperm.slane %v1642, 0
      %v1706 = vperm.slane %v1643, 0
      %v1707 = vperm.slane %v689, 0
      %v1708 = vperm.slane %v1644, 0
      %v1709 = vperm.slane %v1645, 0
      %v1710 = vperm.slane %v1646, 0
      %v1711 = vperm.slane %v1647, 0
      %v1712 = vperm.slane %v1648, 0
      %v1713 = vperm.slane %v1649, 0
      %v1714 = vperm.slane %v1650, 0
      %v1779 = vmul.f32 %v1145, %v1651
      %v1780 = vmul.f32 %v1152, %v1652
      %v1781 = vmul.f32 %v1159, %v1653
      %v1782 = vmul.f32 %v1166, %v1654
      %v1783 = vmul.f32 %v1173, %v1655
      %v1784 = vmul.f32 %v1180, %v1656
      %v1785 = vmul.f32 %v1187, %v1657
      %v1786 = vmul.f32 %v1194, %v1658
      %v1787 = vmul.f32 %v1201, %v1659
      %v1788 = vmul.f32 %v1208, %v1660
      %v1789 = vmul.f32 %v1215, %v1661
      %v1790 = vmul.f32 %v1222, %v1662
      %v1791 = vmul.f32 %v1229, %v1663
      %v1792 = vmul.f32 %v1236, %v1664
      %v1793 = vmul.f32 %v1243, %v1665
      %v1794 = vmul.f32 %v1250, %v1666
      %v1795 = vmul.f32 %v1257, %v1667
      %v1796 = vmul.f32 %v1264, %v1668
      %v1797 = vmul.f32 %v1271, %v1669
      %v1798 = vmul.f32 %v1278, %v1670
      %v1799 = vmul.f32 %v1285, %v1671
      %v1800 = vmul.f32 %v1292, %v1672
      %v1801 = vmul.f32 %v1299, %v1673
      %v1802 = vmul.f32 %v1306, %v1674
      %v1803 = vmul.f32 %v1313, %v1675
      %v1804 = vmul.f32 %v1320, %v1676
      %v1805 = vmul.f32 %v1327, %v1677
      %v1806 = vmul.f32 %v1334, %v1678
      %v1807 = vmul.f32 %v1341, %v1679
      %v1808 = vmul.f32 %v1348, %v1680
      %v1809 = vmul.f32 %v1355, %v1681
      %v1810 = vmul.f32 %v1362, %v1682
      %v1811 = vmul.f32 %v1369, %v1683
      %v1812 = vmul.f32 %v1376, %v1684
      %v1813 = vmul.f32 %v1383, %v1685
      %v1814 = vmul.f32 %v1390, %v1686
      %v1815 = vmul.f32 %v1397, %v1687
      %v1816 = vmul.f32 %v1404, %v1688
      %v1817 = vmul.f32 %v1411, %v1689
      %v1818 = vmul.f32 %v1418, %v1690
      %v1819 = vmul.f32 %v1425, %v1691
      %v1820 = vmul.f32 %v1432, %v1692
      %v1821 = vmul.f32 %v1439, %v1693
      %v1822 = vmul.f32 %v1446, %v1694
      %v1823 = vmul.f32 %v1453, %v1695
      %v1824 = vmul.f32 %v1460, %v1696
      %v1825 = vmul.f32 %v1467, %v1697
      %v1826 = vmul.f32 %v1474, %v1698
      %v1827 = vmul.f32 %v1481, %v1699
      %v1828 = vmul.f32 %v1488, %v1700
      %v1829 = vmul.f32 %v1495, %v1701
      %v1830 = vmul.f32 %v1502, %v1702
      %v1831 = vmul.f32 %v1509, %v1703
      %v1832 = vmul.f32 %v1516, %v1704
      %v1833 = vmul.f32 %v1523, %v1705
      %v1834 = vmul.f32 %v1530, %v1706
      %v1835 = vmul.f32 %v1537, %v1707
      %v1836 = vmul.f32 %v1544, %v1708
      %v1837 = vmul.f32 %v1551, %v1709
      %v1838 = vmul.f32 %v1558, %v1710
      %v1839 = vmul.f32 %v1565, %v1711
      %v1840 = vmul.f32 %v1572, %v1712
      %v1841 = vmul.f32 %v1579, %v1713
      %v1842 = vmul.f32 %v1586, %v1714
      %v1843 = vlaneseq
      %v1844 = vshrl.u32 %v1843, 7
      %v1845 = vadd.s32 %v1844, 8
      %1846 = vset.pattern.permute.xlu0 %v1845
      %1847 = vperm.xlu0 %1846, %v1139
      %v1848 = vpop.permute.xlu0 %1847
      %v1849 = vlaneseq
      %v1850 = vshrl.u32 %v1849, 7
      %v1851 = vadd.s32 %v1850, 8
      %1852 = vset.pattern.permute.xlu0 %v1851
      %1853 = vperm.xlu0 %1852, %v1146
      %v1854 = vpop.permute.xlu0 %1853
      %v1855 = vlaneseq
      %v1856 = vshrl.u32 %v1855, 7
      %v1857 = vadd.s32 %v1856, 8
      %1858 = vset.pattern.permute.xlu0 %v1857
      %1859 = vperm.xlu0 %1858, %v1153
      %v1860 = vpop.permute.xlu0 %1859
      %v1861 = vlaneseq
      %v1862 = vshrl.u32 %v1861, 7
      %v1863 = vadd.s32 %v1862, 8
      %1864 = vset.pattern.permute.xlu0 %v1863
      %1865 = vperm.xlu0 %1864, %v1160
      %v1866 = vpop.permute.xlu0 %1865
      %v1867 = vlaneseq
      %v1868 = vshrl.u32 %v1867, 7
      %v1869 = vadd.s32 %v1868, 8
      %1870 = vset.pattern.permute.xlu0 %v1869
      %1871 = vperm.xlu0 %1870, %v1167
      %v1872 = vpop.permute.xlu0 %1871
      %v1873 = vlaneseq
      %v1874 = vshrl.u32 %v1873, 7
      %v1875 = vadd.s32 %v1874, 8
      %1876 = vset.pattern.permute.xlu0 %v1875
      %1877 = vperm.xlu0 %1876, %v1174
      %v1878 = vpop.permute.xlu0 %1877
      %v1879 = vlaneseq
      %v1880 = vshrl.u32 %v1879, 7
      %v1881 = vadd.s32 %v1880, 8
      %1882 = vset.pattern.permute.xlu0 %v1881
      %1883 = vperm.xlu0 %1882, %v1181
      %v1884 = vpop.permute.xlu0 %1883
      %v1885 = vlaneseq
      %v1886 = vshrl.u32 %v1885, 7
      %v1887 = vadd.s32 %v1886, 8
      %1888 = vset.pattern.permute.xlu0 %v1887
      %1889 = vperm.xlu0 %1888, %v1188
      %v1890 = vpop.permute.xlu0 %1889
      %v1891 = vlaneseq
      %v1892 = vshrl.u32 %v1891, 7
      %v1893 = vadd.s32 %v1892, 8
      %1894 = vset.pattern.permute.xlu0 %v1893
      %1895 = vperm.xlu0 %1894, %v1195
      %v1896 = vpop.permute.xlu0 %1895
      %v1897 = vlaneseq
      %v1898 = vshrl.u32 %v1897, 7
      %v1899 = vadd.s32 %v1898, 8
      %1900 = vset.pattern.permute.xlu0 %v1899
      %1901 = vperm.xlu0 %1900, %v1202
      %v1902 = vpop.permute.xlu0 %1901
      %v1903 = vlaneseq
      %v1904 = vshrl.u32 %v1903, 7
      %v1905 = vadd.s32 %v1904, 8
      %1906 = vset.pattern.permute.xlu0 %v1905
      %1907 = vperm.xlu0 %1906, %v1209
      %v1908 = vpop.permute.xlu0 %1907
      %v1909 = vlaneseq
      %v1910 = vshrl.u32 %v1909, 7
      %v1911 = vadd.s32 %v1910, 8
      %1912 = vset.pattern.permute.xlu0 %v1911
      %1913 = vperm.xlu0 %1912, %v1216
      %v1914 = vpop.permute.xlu0 %1913
      %v1915 = vlaneseq
      %v1916 = vshrl.u32 %v1915, 7
      %v1917 = vadd.s32 %v1916, 8
      %1918 = vset.pattern.permute.xlu0 %v1917
      %1919 = vperm.xlu0 %1918, %v1223
      %v1920 = vpop.permute.xlu0 %1919
      %v1921 = vlaneseq
      %v1922 = vshrl.u32 %v1921, 7
      %v1923 = vadd.s32 %v1922, 8
      %1924 = vset.pattern.permute.xlu0 %v1923
      %1925 = vperm.xlu0 %1924, %v1230
      %v1926 = vpop.permute.xlu0 %1925
      %v1927 = vlaneseq
      %v1928 = vshrl.u32 %v1927, 7
      %v1929 = vadd.s32 %v1928, 8
      %1930 = vset.pattern.permute.xlu0 %v1929
      %1931 = vperm.xlu0 %1930, %v1237
      %v1932 = vpop.permute.xlu0 %1931
      %v1933 = vlaneseq
      %v1934 = vshrl.u32 %v1933, 7
      %v1935 = vadd.s32 %v1934, 8
      %1936 = vset.pattern.permute.xlu0 %v1935
      %1937 = vperm.xlu0 %1936, %v1244
      %v1938 = vpop.permute.xlu0 %1937
      %v1939 = vlaneseq
      %v1940 = vshrl.u32 %v1939, 7
      %v1941 = vadd.s32 %v1940, 8
      %1942 = vset.pattern.permute.xlu0 %v1941
      %1943 = vperm.xlu0 %1942, %v1251
      %v1944 = vpop.permute.xlu0 %1943
      %v1945 = vlaneseq
      %v1946 = vshrl.u32 %v1945, 7
      %v1947 = vadd.s32 %v1946, 8
      %1948 = vset.pattern.permute.xlu0 %v1947
      %1949 = vperm.xlu0 %1948, %v1258
      %v1950 = vpop.permute.xlu0 %1949
      %v1951 = vlaneseq
      %v1952 = vshrl.u32 %v1951, 7
      %v1953 = vadd.s32 %v1952, 8
      %1954 = vset.pattern.permute.xlu0 %v1953
      %1955 = vperm.xlu0 %1954, %v1265
      %v1956 = vpop.permute.xlu0 %1955
      %v1957 = vlaneseq
      %v1958 = vshrl.u32 %v1957, 7
      %v1959 = vadd.s32 %v1958, 8
      %1960 = vset.pattern.permute.xlu0 %v1959
      %1961 = vperm.xlu0 %1960, %v1272
      %v1962 = vpop.permute.xlu0 %1961
      %v1963 = vlaneseq
      %v1964 = vshrl.u32 %v1963, 7
      %v1965 = vadd.s32 %v1964, 8
      %1966 = vset.pattern.permute.xlu0 %v1965
      %1967 = vperm.xlu0 %1966, %v1279
      %v1968 = vpop.permute.xlu0 %1967
      %v1969 = vlaneseq
      %v1970 = vshrl.u32 %v1969, 7
      %v1971 = vadd.s32 %v1970, 8
      %1972 = vset.pattern.permute.xlu0 %v1971
      %1973 = vperm.xlu0 %1972, %v1286
      %v1974 = vpop.permute.xlu0 %1973
      %v1975 = vlaneseq
      %v1976 = vshrl.u32 %v1975, 7
      %v1977 = vadd.s32 %v1976, 8
      %1978 = vset.pattern.permute.xlu0 %v1977
      %1979 = vperm.xlu0 %1978, %v1293
      %v1980 = vpop.permute.xlu0 %1979
      %v1981 = vlaneseq
      %v1982 = vshrl.u32 %v1981, 7
      %v1983 = vadd.s32 %v1982, 8
      %1984 = vset.pattern.permute.xlu0 %v1983
      %1985 = vperm.xlu0 %1984, %v1300
      %v1986 = vpop.permute.xlu0 %1985
      %v1987 = vlaneseq
      %v1988 = vshrl.u32 %v1987, 7
      %v1989 = vadd.s32 %v1988, 8
      %1990 = vset.pattern.permute.xlu0 %v1989
      %1991 = vperm.xlu0 %1990, %v1307
      %v1992 = vpop.permute.xlu0 %1991
      %v1993 = vlaneseq
      %v1994 = vshrl.u32 %v1993, 7
      %v1995 = vadd.s32 %v1994, 8
      %1996 = vset.pattern.permute.xlu0 %v1995
      %1997 = vperm.xlu0 %1996, %v1314
      %v1998 = vpop.permute.xlu0 %1997
      %v1999 = vlaneseq
      %v2000 = vshrl.u32 %v1999, 7
      %v2001 = vadd.s32 %v2000, 8
      %2002 = vset.pattern.permute.xlu0 %v2001
      %2003 = vperm.xlu0 %2002, %v1321
      %v2004 = vpop.permute.xlu0 %2003
      %v2005 = vlaneseq
      %v2006 = vshrl.u32 %v2005, 7
      %v2007 = vadd.s32 %v2006, 8
      %2008 = vset.pattern.permute.xlu0 %v2007
      %2009 = vperm.xlu0 %2008, %v1328
      %v2010 = vpop.permute.xlu0 %2009
      %v2011 = vlaneseq
      %v2012 = vshrl.u32 %v2011, 7
      %v2013 = vadd.s32 %v2012, 8
      %2014 = vset.pattern.permute.xlu0 %v2013
      %2015 = vperm.xlu0 %2014, %v1335
      %v2016 = vpop.permute.xlu0 %2015
      %v2017 = vlaneseq
      %v2018 = vshrl.u32 %v2017, 7
      %v2019 = vadd.s32 %v2018, 8
      %2020 = vset.pattern.permute.xlu0 %v2019
      %2021 = vperm.xlu0 %2020, %v1342
      %v2022 = vpop.permute.xlu0 %2021
      %v2023 = vlaneseq
      %v2024 = vshrl.u32 %v2023, 7
      %v2025 = vadd.s32 %v2024, 8
      %2026 = vset.pattern.permute.xlu0 %v2025
      %2027 = vperm.xlu0 %2026, %v1349
      %v2028 = vpop.permute.xlu0 %2027
      %v2029 = vlaneseq
      %v2030 = vshrl.u32 %v2029, 7
      %v2031 = vadd.s32 %v2030, 8
      %2032 = vset.pattern.permute.xlu0 %v2031
      %2033 = vperm.xlu0 %2032, %v1356
      %v2034 = vpop.permute.xlu0 %2033
      %v2035 = vlaneseq
      %v2036 = vshrl.u32 %v2035, 7
      %v2037 = vadd.s32 %v2036, 8
      %2038 = vset.pattern.permute.xlu0 %v2037
      %2039 = vperm.xlu0 %2038, %v1363
      %v2040 = vpop.permute.xlu0 %2039
      %v2041 = vlaneseq
      %v2042 = vshrl.u32 %v2041, 7
      %v2043 = vadd.s32 %v2042, 8
      %2044 = vset.pattern.permute.xlu0 %v2043
      %2045 = vperm.xlu0 %2044, %v1370
      %v2046 = vpop.permute.xlu0 %2045
      %v2047 = vlaneseq
      %v2048 = vshrl.u32 %v2047, 7
      %v2049 = vadd.s32 %v2048, 8
      %2050 = vset.pattern.permute.xlu0 %v2049
      %2051 = vperm.xlu0 %2050, %v1377
      %v2052 = vpop.permute.xlu0 %2051
      %v2053 = vlaneseq
      %v2054 = vshrl.u32 %v2053, 7
      %v2055 = vadd.s32 %v2054, 8
      %2056 = vset.pattern.permute.xlu0 %v2055
      %2057 = vperm.xlu0 %2056, %v1384
      %v2058 = vpop.permute.xlu0 %2057
      %v2059 = vlaneseq
      %v2060 = vshrl.u32 %v2059, 7
      %v2061 = vadd.s32 %v2060, 8
      %2062 = vset.pattern.permute.xlu0 %v2061
      %2063 = vperm.xlu0 %2062, %v1391
      %v2064 = vpop.permute.xlu0 %2063
      %v2065 = vlaneseq
      %v2066 = vshrl.u32 %v2065, 7
      %v2067 = vadd.s32 %v2066, 8
      %2068 = vset.pattern.permute.xlu0 %v2067
      %2069 = vperm.xlu0 %2068, %v1398
      %v2070 = vpop.permute.xlu0 %2069
      %v2071 = vlaneseq
      %v2072 = vshrl.u32 %v2071, 7
      %v2073 = vadd.s32 %v2072, 8
      %2074 = vset.pattern.permute.xlu0 %v2073
      %2075 = vperm.xlu0 %2074, %v1405
      %v2076 = vpop.permute.xlu0 %2075
      %v2077 = vlaneseq
      %v2078 = vshrl.u32 %v2077, 7
      %v2079 = vadd.s32 %v2078, 8
      %2080 = vset.pattern.permute.xlu0 %v2079
      %2081 = vperm.xlu0 %2080, %v1412
      %v2082 = vpop.permute.xlu0 %2081
      %v2083 = vlaneseq
      %v2084 = vshrl.u32 %v2083, 7
      %v2085 = vadd.s32 %v2084, 8
      %2086 = vset.pattern.permute.xlu0 %v2085
      %2087 = vperm.xlu0 %2086, %v1419
      %v2088 = vpop.permute.xlu0 %2087
      %v2089 = vlaneseq
      %v2090 = vshrl.u32 %v2089, 7
      %v2091 = vadd.s32 %v2090, 8
      %2092 = vset.pattern.permute.xlu0 %v2091
      %2093 = vperm.xlu0 %2092, %v1426
      %v2094 = vpop.permute.xlu0 %2093
      %v2095 = vlaneseq
      %v2096 = vshrl.u32 %v2095, 7
      %v2097 = vadd.s32 %v2096, 8
      %2098 = vset.pattern.permute.xlu0 %v2097
      %2099 = vperm.xlu0 %2098, %v1433
      %v2100 = vpop.permute.xlu0 %2099
      %v2101 = vlaneseq
      %v2102 = vshrl.u32 %v2101, 7
      %v2103 = vadd.s32 %v2102, 8
      %2104 = vset.pattern.permute.xlu0 %v2103
      %2105 = vperm.xlu0 %2104, %v1440
      %v2106 = vpop.permute.xlu0 %2105
      %v2107 = vlaneseq
      %v2108 = vshrl.u32 %v2107, 7
      %v2109 = vadd.s32 %v2108, 8
      %2110 = vset.pattern.permute.xlu0 %v2109
      %2111 = vperm.xlu0 %2110, %v1447
      %v2112 = vpop.permute.xlu0 %2111
      %v2113 = vlaneseq
      %v2114 = vshrl.u32 %v2113, 7
      %v2115 = vadd.s32 %v2114, 8
      %2116 = vset.pattern.permute.xlu0 %v2115
      %2117 = vperm.xlu0 %2116, %v1454
      %v2118 = vpop.permute.xlu0 %2117
      %v2119 = vlaneseq
      %v2120 = vshrl.u32 %v2119, 7
      %v2121 = vadd.s32 %v2120, 8
      %2122 = vset.pattern.permute.xlu0 %v2121
      %2123 = vperm.xlu0 %2122, %v1461
      %v2124 = vpop.permute.xlu0 %2123
      %v2125 = vlaneseq
      %v2126 = vshrl.u32 %v2125, 7
      %v2127 = vadd.s32 %v2126, 8
      %2128 = vset.pattern.permute.xlu0 %v2127
      %2129 = vperm.xlu0 %2128, %v1468
      %v2130 = vpop.permute.xlu0 %2129
      %v2131 = vlaneseq
      %v2132 = vshrl.u32 %v2131, 7
      %v2133 = vadd.s32 %v2132, 8
      %2134 = vset.pattern.permute.xlu0 %v2133
      %2135 = vperm.xlu0 %2134, %v1475
      %v2136 = vpop.permute.xlu0 %2135
      %v2137 = vlaneseq
      %v2138 = vshrl.u32 %v2137, 7
      %v2139 = vadd.s32 %v2138, 8
      %2140 = vset.pattern.permute.xlu0 %v2139
      %2141 = vperm.xlu0 %2140, %v1482
      %v2142 = vpop.permute.xlu0 %2141
      %v2143 = vlaneseq
      %v2144 = vshrl.u32 %v2143, 7
      %v2145 = vadd.s32 %v2144, 8
      %2146 = vset.pattern.permute.xlu0 %v2145
      %2147 = vperm.xlu0 %2146, %v1489
      %v2148 = vpop.permute.xlu0 %2147
      %v2149 = vlaneseq
      %v2150 = vshrl.u32 %v2149, 7
      %v2151 = vadd.s32 %v2150, 8
      %2152 = vset.pattern.permute.xlu0 %v2151
      %2153 = vperm.xlu0 %2152, %v1496
      %v2154 = vpop.permute.xlu0 %2153
      %v2155 = vlaneseq
      %v2156 = vshrl.u32 %v2155, 7
      %v2157 = vadd.s32 %v2156, 8
      %2158 = vset.pattern.permute.xlu0 %v2157
      %2159 = vperm.xlu0 %2158, %v1503
      %v2160 = vpop.permute.xlu0 %2159
      %v2161 = vlaneseq
      %v2162 = vshrl.u32 %v2161, 7
      %v2163 = vadd.s32 %v2162, 8
      %2164 = vset.pattern.permute.xlu0 %v2163
      %2165 = vperm.xlu0 %2164, %v1510
      %v2166 = vpop.permute.xlu0 %2165
      %v2167 = vlaneseq
      %v2168 = vshrl.u32 %v2167, 7
      %v2169 = vadd.s32 %v2168, 8
      %2170 = vset.pattern.permute.xlu0 %v2169
      %2171 = vperm.xlu0 %2170, %v1517
      %v2172 = vpop.permute.xlu0 %2171
      %v2173 = vlaneseq
      %v2174 = vshrl.u32 %v2173, 7
      %v2175 = vadd.s32 %v2174, 8
      %2176 = vset.pattern.permute.xlu0 %v2175
      %2177 = vperm.xlu0 %2176, %v1524
      %v2178 = vpop.permute.xlu0 %2177
      %v2179 = vlaneseq
      %v2180 = vshrl.u32 %v2179, 7
      %v2181 = vadd.s32 %v2180, 8
      %2182 = vset.pattern.permute.xlu0 %v2181
      %2183 = vperm.xlu0 %2182, %v1531
      %v2184 = vpop.permute.xlu0 %2183
      %v2185 = vlaneseq
      %v2186 = vshrl.u32 %v2185, 7
      %v2187 = vadd.s32 %v2186, 8
      %2188 = vset.pattern.permute.xlu0 %v2187
      %2189 = vperm.xlu0 %2188, %v1538
      %v2190 = vpop.permute.xlu0 %2189
      %v2191 = vlaneseq
      %v2192 = vshrl.u32 %v2191, 7
      %v2193 = vadd.s32 %v2192, 8
      %2194 = vset.pattern.permute.xlu0 %v2193
      %2195 = vperm.xlu0 %2194, %v1545
      %v2196 = vpop.permute.xlu0 %2195
      %v2197 = vlaneseq
      %v2198 = vshrl.u32 %v2197, 7
      %v2199 = vadd.s32 %v2198, 8
      %2200 = vset.pattern.permute.xlu0 %v2199
      %2201 = vperm.xlu0 %2200, %v1552
      %v2202 = vpop.permute.xlu0 %2201
      %v2203 = vlaneseq
      %v2204 = vshrl.u32 %v2203, 7
      %v2205 = vadd.s32 %v2204, 8
      %2206 = vset.pattern.permute.xlu0 %v2205
      %2207 = vperm.xlu0 %2206, %v1559
      %v2208 = vpop.permute.xlu0 %2207
      %v2209 = vlaneseq
      %v2210 = vshrl.u32 %v2209, 7
      %v2211 = vadd.s32 %v2210, 8
      %2212 = vset.pattern.permute.xlu0 %v2211
      %2213 = vperm.xlu0 %2212, %v1566
      %v2214 = vpop.permute.xlu0 %2213
      %v2215 = vlaneseq
      %v2216 = vshrl.u32 %v2215, 7
      %v2217 = vadd.s32 %v2216, 8
      %2218 = vset.pattern.permute.xlu0 %v2217
      %2219 = vperm.xlu0 %2218, %v1573
      %v2220 = vpop.permute.xlu0 %2219
      %v2221 = vlaneseq
      %v2222 = vshrl.u32 %v2221, 7
      %v2223 = vadd.s32 %v2222, 8
      %2224 = vset.pattern.permute.xlu0 %v2223
      %2225 = vperm.xlu0 %2224, %v1580
      %v2226 = vpop.permute.xlu0 %2225
      %v2227 = vmul.f32 %v1848, %v1651
      %v2228 = vmul.f32 %v1854, %v1652
      %v2229 = vmul.f32 %v1860, %v1653
      %v2230 = vmul.f32 %v1866, %v1654
      %v2231 = vmul.f32 %v1872, %v1655
      %v2232 = vmul.f32 %v1878, %v1656
      %v2233 = vmul.f32 %v1884, %v1657
      %v2234 = vmul.f32 %v1890, %v1658
      %v2235 = vmul.f32 %v1896, %v1659
      %v2236 = vmul.f32 %v1902, %v1660
      %v2237 = vmul.f32 %v1908, %v1661
      %v2238 = vmul.f32 %v1914, %v1662
      %v2239 = vmul.f32 %v1920, %v1663
      %v2240 = vmul.f32 %v1926, %v1664
      %v2241 = vmul.f32 %v1932, %v1665
      %v2242 = vmul.f32 %v1938, %v1666
      %v2243 = vmul.f32 %v1944, %v1667
      %v2244 = vmul.f32 %v1950, %v1668
      %v2245 = vmul.f32 %v1956, %v1669
      %v2246 = vmul.f32 %v1962, %v1670
      %v2247 = vmul.f32 %v1968, %v1671
      %v2248 = vmul.f32 %v1974, %v1672
      %v2249 = vmul.f32 %v1980, %v1673
      %v2250 = vmul.f32 %v1986, %v1674
      %v2251 = vmul.f32 %v1992, %v1675
      %v2252 = vmul.f32 %v1998, %v1676
      %v2253 = vmul.f32 %v2004, %v1677
      %v2254 = vmul.f32 %v2010, %v1678
      %v2255 = vmul.f32 %v2016, %v1679
      %v2256 = vmul.f32 %v2022, %v1680
      %v2257 = vmul.f32 %v2028, %v1681
      %v2258 = vmul.f32 %v2034, %v1682
      %v2259 = vmul.f32 %v2040, %v1683
      %v2260 = vmul.f32 %v2046, %v1684
      %v2261 = vmul.f32 %v2052, %v1685
      %v2262 = vmul.f32 %v2058, %v1686
      %v2263 = vmul.f32 %v2064, %v1687
      %v2264 = vmul.f32 %v2070, %v1688
      %v2265 = vmul.f32 %v2076, %v1689
      %v2266 = vmul.f32 %v2082, %v1690
      %v2267 = vmul.f32 %v2088, %v1691
      %v2268 = vmul.f32 %v2094, %v1692
      %v2269 = vmul.f32 %v2100, %v1693
      %v2270 = vmul.f32 %v2106, %v1694
      %v2271 = vmul.f32 %v2112, %v1695
      %v2272 = vmul.f32 %v2118, %v1696
      %v2273 = vmul.f32 %v2124, %v1697
      %v2274 = vmul.f32 %v2130, %v1698
      %v2275 = vmul.f32 %v2136, %v1699
      %v2276 = vmul.f32 %v2142, %v1700
      %v2277 = vmul.f32 %v2148, %v1701
      %v2278 = vmul.f32 %v2154, %v1702
      %v2279 = vmul.f32 %v2160, %v1703
      %v2280 = vmul.f32 %v2166, %v1704
      %v2281 = vmul.f32 %v2172, %v1705
      %v2282 = vmul.f32 %v2178, %v1706
      %v2283 = vmul.f32 %v2184, %v1707
      %v2284 = vmul.f32 %v2190, %v1708
      %v2285 = vmul.f32 %v2196, %v1709
      %v2286 = vmul.f32 %v2202, %v1710
      %v2287 = vmul.f32 %v2208, %v1711
      %v2288 = vmul.f32 %v2214, %v1712
      %v2289 = vmul.f32 %v2220, %v1713
      %v2290 = vmul.f32 %v2226, %v1714
      %v2291 = vsel %vm401, %v1779, %v2227
      %v2292 = vsel %vm401, %v1780, %v2228
      %v2293 = vsel %vm401, %v1781, %v2229
      %v2294 = vsel %vm401, %v1782, %v2230
      %v2295 = vsel %vm401, %v1783, %v2231
      %v2296 = vsel %vm401, %v1784, %v2232
      %v2297 = vsel %vm401, %v1785, %v2233
      %v2298 = vsel %vm401, %v1786, %v2234
      %v2299 = vsel %vm401, %v1787, %v2235
      %v2300 = vsel %vm401, %v1788, %v2236
      %v2301 = vsel %vm401, %v1789, %v2237
      %v2302 = vsel %vm401, %v1790, %v2238
      %v2303 = vsel %vm401, %v1791, %v2239
      %v2304 = vsel %vm401, %v1792, %v2240
      %v2305 = vsel %vm401, %v1793, %v2241
      %v2306 = vsel %vm401, %v1794, %v2242
      %v2307 = vsel %vm401, %v1795, %v2243
      %v2308 = vsel %vm401, %v1796, %v2244
      %v2309 = vsel %vm401, %v1797, %v2245
      %v2310 = vsel %vm401, %v1798, %v2246
      %v2311 = vsel %vm401, %v1799, %v2247
      %v2312 = vsel %vm401, %v1800, %v2248
      %v2313 = vsel %vm401, %v1801, %v2249
      %v2314 = vsel %vm401, %v1802, %v2250
      %v2315 = vsel %vm401, %v1803, %v2251
      %v2316 = vsel %vm401, %v1804, %v2252
      %v2317 = vsel %vm401, %v1805, %v2253
      %v2318 = vsel %vm401, %v1806, %v2254
      %v2319 = vsel %vm401, %v1807, %v2255
      %v2320 = vsel %vm401, %v1808, %v2256
      %v2321 = vsel %vm401, %v1809, %v2257
      %v2322 = vsel %vm401, %v1810, %v2258
      %v2323 = vsel %vm401, %v1811, %v2259
      %v2324 = vsel %vm401, %v1812, %v2260
      %v2325 = vsel %vm401, %v1813, %v2261
      %v2326 = vsel %vm401, %v1814, %v2262
      %v2327 = vsel %vm401, %v1815, %v2263
      %v2328 = vsel %vm401, %v1816, %v2264
      %v2329 = vsel %vm401, %v1817, %v2265
      %v2330 = vsel %vm401, %v1818, %v2266
      %v2331 = vsel %vm401, %v1819, %v2267
      %v2332 = vsel %vm401, %v1820, %v2268
      %v2333 = vsel %vm401, %v1821, %v2269
      %v2334 = vsel %vm401, %v1822, %v2270
      %v2335 = vsel %vm401, %v1823, %v2271
      %v2336 = vsel %vm401, %v1824, %v2272
      %v2337 = vsel %vm401, %v1825, %v2273
      %v2338 = vsel %vm401, %v1826, %v2274
      %v2339 = vsel %vm401, %v1827, %v2275
      %v2340 = vsel %vm401, %v1828, %v2276
      %v2341 = vsel %vm401, %v1829, %v2277
      %v2342 = vsel %vm401, %v1830, %v2278
      %v2343 = vsel %vm401, %v1831, %v2279
      %v2344 = vsel %vm401, %v1832, %v2280
      %v2345 = vsel %vm401, %v1833, %v2281
      %v2346 = vsel %vm401, %v1834, %v2282
      %v2347 = vsel %vm401, %v1835, %v2283
      %v2348 = vsel %vm401, %v1836, %v2284
      %v2349 = vsel %vm401, %v1837, %v2285
      %v2350 = vsel %vm401, %v1838, %v2286
      %v2351 = vsel %vm401, %v1839, %v2287
      %v2352 = vsel %vm401, %v1840, %v2288
      %v2353 = vsel %vm401, %v1841, %v2289
      %v2354 = vsel %vm401, %v1842, %v2290
      %2355 = vst [vmem:[#allocation4] sm:$0xff] %v2291
      %2356 = vst [vmem:[#allocation4 + $0x8] sm:$0xff] %v2292
      %2357 = vst [vmem:[#allocation4 + $0x10] sm:$0xff] %v2293
      %2358 = vst [vmem:[#allocation4 + $0x18] sm:$0xff] %v2294
      %2359 = vst [vmem:[#allocation4 + $0x20] sm:$0xff] %v2295
      %2360 = vst [vmem:[#allocation4 + $0x28] sm:$0xff] %v2296
      %2361 = vst [vmem:[#allocation4 + $0x30] sm:$0xff] %v2297
      %2362 = vst [vmem:[#allocation4 + $0x38] sm:$0xff] %v2298
      %2363 = vst [vmem:[#allocation4 + $0x40] sm:$0xff] %v2299
      %2364 = vst [vmem:[#allocation4 + $0x48] sm:$0xff] %v2300
      %2365 = vst [vmem:[#allocation4 + $0x50] sm:$0xff] %v2301
      %2366 = vst [vmem:[#allocation4 + $0x58] sm:$0xff] %v2302
      %2367 = vst [vmem:[#allocation4 + $0x60] sm:$0xff] %v2303
      %2368 = vst [vmem:[#allocation4 + $0x68] sm:$0xff] %v2304
      %2369 = vst [vmem:[#allocation4 + $0x70] sm:$0xff] %v2305
      %2370 = vst [vmem:[#allocation4 + $0x78] sm:$0xff] %v2306
      %2371 = vst [vmem:[#allocation4 + $0x80] sm:$0xff] %v2307
      %2372 = vst [vmem:[#allocation4 + $0x88] sm:$0xff] %v2308
      %2373 = vst [vmem:[#allocation4 + $0x90] sm:$0xff] %v2309
      %2374 = vst [vmem:[#allocation4 + $0x98] sm:$0xff] %v2310
      %2375 = vst [vmem:[#allocation4 + $0xa0] sm:$0xff] %v2311
      %2376 = vst [vmem:[#allocation4 + $0xa8] sm:$0xff] %v2312
      %2377 = vst [vmem:[#allocation4 + $0xb0] sm:$0xff] %v2313
      %2378 = vst [vmem:[#allocation4 + $0xb8] sm:$0xff] %v2314
      %2379 = vst [vmem:[#allocation4 + $0xc0] sm:$0xff] %v2315
      %2380 = vst [vmem:[#allocation4 + $0xc8] sm:$0xff] %v2316
      %2381 = vst [vmem:[#allocation4 + $0xd0] sm:$0xff] %v2317
      %2382 = vst [vmem:[#allocation4 + $0xd8] sm:$0xff] %v2318
      %2383 = vst [vmem:[#allocation4 + $0xe0] sm:$0xff] %v2319
      %2384 = vst [vmem:[#allocation4 + $0xe8] sm:$0xff] %v2320
      %2385 = vst [vmem:[#allocation4 + $0xf0] sm:$0xff] %v2321
      %2386 = vst [vmem:[#allocation4 + $0xf8] sm:$0xff] %v2322
      %2387 = vst [vmem:[#allocation4 + $0x100] sm:$0xff] %v2323
      %2388 = vst [vmem:[#allocation4 + $0x108] sm:$0xff] %v2324
      %2389 = vst [vmem:[#allocation4 + $0x110] sm:$0xff] %v2325
      %2390 = vst [vmem:[#allocation4 + $0x118] sm:$0xff] %v2326
      %2391 = vst [vmem:[#allocation4 + $0x120] sm:$0xff] %v2327
      %2392 = vst [vmem:[#allocation4 + $0x128] sm:$0xff] %v2328
      %2393 = vst [vmem:[#allocation4 + $0x130] sm:$0xff] %v2329
      %2394 = vst [vmem:[#allocation4 + $0x138] sm:$0xff] %v2330
      %2395 = vst [vmem:[#allocation4 + $0x140] sm:$0xff] %v2331
      %2396 = vst [vmem:[#allocation4 + $0x148] sm:$0xff] %v2332
      %2397 = vst [vmem:[#allocation4 + $0x150] sm:$0xff] %v2333
      %2398 = vst [vmem:[#allocation4 + $0x158] sm:$0xff] %v2334
      %2399 = vst [vmem:[#allocation4 + $0x160] sm:$0xff] %v2335
      %2400 = vst [vmem:[#allocation4 + $0x168] sm:$0xff] %v2336
      %2401 = vst [vmem:[#allocation4 + $0x170] sm:$0xff] %v2337
      %2402 = vst [vmem:[#allocation4 + $0x178] sm:$0xff] %v2338
      %2403 = vst [vmem:[#allocation4 + $0x180] sm:$0xff] %v2339
      %2404 = vst [vmem:[#allocation4 + $0x188] sm:$0xff] %v2340
      %2405 = vst [vmem:[#allocation4 + $0x190] sm:$0xff] %v2341
      %2406 = vst [vmem:[#allocation4 + $0x198] sm:$0xff] %v2342
      %2407 = vst [vmem:[#allocation4 + $0x1a0] sm:$0xff] %v2343
      %2408 = vst [vmem:[#allocation4 + $0x1a8] sm:$0xff] %v2344
      %2409 = vst [vmem:[#allocation4 + $0x1b0] sm:$0xff] %v2345
      %2410 = vst [vmem:[#allocation4 + $0x1b8] sm:$0xff] %v2346
      %2411 = vst [vmem:[#allocation4 + $0x1c0] sm:$0xff] %v2347
      %2412 = vst [vmem:[#allocation4 + $0x1c8] sm:$0xff] %v2348
      %2413 = vst [vmem:[#allocation4 + $0x1d0] sm:$0xff] %v2349
      %2414 = vst [vmem:[#allocation4 + $0x1d8] sm:$0xff] %v2350
      %2415 = vst [vmem:[#allocation4 + $0x1e0] sm:$0xff] %v2351
      %2416 = vst [vmem:[#allocation4 + $0x1e8] sm:$0xff] %v2352
      %2417 = vst [vmem:[#allocation4 + $0x1f0] sm:$0xff] %v2353
      %2418 = vst [vmem:[#allocation4 + $0x1f8] sm:$0xff] %v2354
      %v2419 = vlaneseq
      %v2420 = vshrl.u32 %v2419, 7
      %v2421 = vadd.s32 %v2420, 16
      %2422 = vset.pattern.permute.xlu0 %v2421
      %2423 = vperm.xlu0 %2422, %v1139
      %v2424 = vpop.permute.xlu0 %2423
      %v2425 = vlaneseq
      %v2426 = vshrl.u32 %v2425, 7
      %v2427 = vadd.s32 %v2426, 16
      %2428 = vset.pattern.permute.xlu0 %v2427
      %2429 = vperm.xlu0 %2428, %v1146
      %v2430 = vpop.permute.xlu0 %2429
      %v2431 = vlaneseq
      %v2432 = vshrl.u32 %v2431, 7
      %v2433 = vadd.s32 %v2432, 16
      %2434 = vset.pattern.permute.xlu0 %v2433
      %2435 = vperm.xlu0 %2434, %v1153
      %v2436 = vpop.permute.xlu0 %2435
      %v2437 = vlaneseq
      %v2438 = vshrl.u32 %v2437, 7
      %v2439 = vadd.s32 %v2438, 16
      %2440 = vset.pattern.permute.xlu0 %v2439
      %2441 = vperm.xlu0 %2440, %v1160
      %v2442 = vpop.permute.xlu0 %2441
      %v2443 = vlaneseq
      %v2444 = vshrl.u32 %v2443, 7
      %v2445 = vadd.s32 %v2444, 16
      %2446 = vset.pattern.permute.xlu0 %v2445
      %2447 = vperm.xlu0 %2446, %v1167
      %v2448 = vpop.permute.xlu0 %2447
      %v2449 = vlaneseq
      %v2450 = vshrl.u32 %v2449, 7
      %v2451 = vadd.s32 %v2450, 16
      %2452 = vset.pattern.permute.xlu0 %v2451
      %2453 = vperm.xlu0 %2452, %v1174
      %v2454 = vpop.permute.xlu0 %2453
      %v2455 = vlaneseq
      %v2456 = vshrl.u32 %v2455, 7
      %v2457 = vadd.s32 %v2456, 16
      %2458 = vset.pattern.permute.xlu0 %v2457
      %2459 = vperm.xlu0 %2458, %v1181
      %v2460 = vpop.permute.xlu0 %2459
      %v2461 = vlaneseq
      %v2462 = vshrl.u32 %v2461, 7
      %v2463 = vadd.s32 %v2462, 16
      %2464 = vset.pattern.permute.xlu0 %v2463
      %2465 = vperm.xlu0 %2464, %v1188
      %v2466 = vpop.permute.xlu0 %2465
      %v2467 = vlaneseq
      %v2468 = vshrl.u32 %v2467, 7
      %v2469 = vadd.s32 %v2468, 16
      %2470 = vset.pattern.permute.xlu0 %v2469
      %2471 = vperm.xlu0 %2470, %v1195
      %v2472 = vpop.permute.xlu0 %2471
      %v2473 = vlaneseq
      %v2474 = vshrl.u32 %v2473, 7
      %v2475 = vadd.s32 %v2474, 16
      %2476 = vset.pattern.permute.xlu0 %v2475
      %2477 = vperm.xlu0 %2476, %v1202
      %v2478 = vpop.permute.xlu0 %2477
      %v2479 = vlaneseq
      %v2480 = vshrl.u32 %v2479, 7
      %v2481 = vadd.s32 %v2480, 16
      %2482 = vset.pattern.permute.xlu0 %v2481
      %2483 = vperm.xlu0 %2482, %v1209
      %v2484 = vpop.permute.xlu0 %2483
      %v2485 = vlaneseq
      %v2486 = vshrl.u32 %v2485, 7
      %v2487 = vadd.s32 %v2486, 16
      %2488 = vset.pattern.permute.xlu0 %v2487
      %2489 = vperm.xlu0 %2488, %v1216
      %v2490 = vpop.permute.xlu0 %2489
      %v2491 = vlaneseq
      %v2492 = vshrl.u32 %v2491, 7
      %v2493 = vadd.s32 %v2492, 16
      %2494 = vset.pattern.permute.xlu0 %v2493
      %2495 = vperm.xlu0 %2494, %v1223
      %v2496 = vpop.permute.xlu0 %2495
      %v2497 = vlaneseq
      %v2498 = vshrl.u32 %v2497, 7
      %v2499 = vadd.s32 %v2498, 16
      %2500 = vset.pattern.permute.xlu0 %v2499
      %2501 = vperm.xlu0 %2500, %v1230
      %v2502 = vpop.permute.xlu0 %2501
      %v2503 = vlaneseq
      %v2504 = vshrl.u32 %v2503, 7
      %v2505 = vadd.s32 %v2504, 16
      %2506 = vset.pattern.permute.xlu0 %v2505
      %2507 = vperm.xlu0 %2506, %v1237
      %v2508 = vpop.permute.xlu0 %2507
      %v2509 = vlaneseq
      %v2510 = vshrl.u32 %v2509, 7
      %v2511 = vadd.s32 %v2510, 16
      %2512 = vset.pattern.permute.xlu0 %v2511
      %2513 = vperm.xlu0 %2512, %v1244
      %v2514 = vpop.permute.xlu0 %2513
      %v2515 = vlaneseq
      %v2516 = vshrl.u32 %v2515, 7
      %v2517 = vadd.s32 %v2516, 16
      %2518 = vset.pattern.permute.xlu0 %v2517
      %2519 = vperm.xlu0 %2518, %v1251
      %v2520 = vpop.permute.xlu0 %2519
      %v2521 = vlaneseq
      %v2522 = vshrl.u32 %v2521, 7
      %v2523 = vadd.s32 %v2522, 16
      %2524 = vset.pattern.permute.xlu0 %v2523
      %2525 = vperm.xlu0 %2524, %v1258
      %v2526 = vpop.permute.xlu0 %2525
      %v2527 = vlaneseq
      %v2528 = vshrl.u32 %v2527, 7
      %v2529 = vadd.s32 %v2528, 16
      %2530 = vset.pattern.permute.xlu0 %v2529
      %2531 = vperm.xlu0 %2530, %v1265
      %v2532 = vpop.permute.xlu0 %2531
      %v2533 = vlaneseq
      %v2534 = vshrl.u32 %v2533, 7
      %v2535 = vadd.s32 %v2534, 16
      %2536 = vset.pattern.permute.xlu0 %v2535
      %2537 = vperm.xlu0 %2536, %v1272
      %v2538 = vpop.permute.xlu0 %2537
      %v2539 = vlaneseq
      %v2540 = vshrl.u32 %v2539, 7
      %v2541 = vadd.s32 %v2540, 16
      %2542 = vset.pattern.permute.xlu0 %v2541
      %2543 = vperm.xlu0 %2542, %v1279
      %v2544 = vpop.permute.xlu0 %2543
      %v2545 = vlaneseq
      %v2546 = vshrl.u32 %v2545, 7
      %v2547 = vadd.s32 %v2546, 16
      %2548 = vset.pattern.permute.xlu0 %v2547
      %2549 = vperm.xlu0 %2548, %v1286
      %v2550 = vpop.permute.xlu0 %2549
      %v2551 = vlaneseq
      %v2552 = vshrl.u32 %v2551, 7
      %v2553 = vadd.s32 %v2552, 16
      %2554 = vset.pattern.permute.xlu0 %v2553
      %2555 = vperm.xlu0 %2554, %v1293
      %v2556 = vpop.permute.xlu0 %2555
      %v2557 = vlaneseq
      %v2558 = vshrl.u32 %v2557, 7
      %v2559 = vadd.s32 %v2558, 16
      %2560 = vset.pattern.permute.xlu0 %v2559
      %2561 = vperm.xlu0 %2560, %v1300
      %v2562 = vpop.permute.xlu0 %2561
      %v2563 = vlaneseq
      %v2564 = vshrl.u32 %v2563, 7
      %v2565 = vadd.s32 %v2564, 16
      %2566 = vset.pattern.permute.xlu0 %v2565
      %2567 = vperm.xlu0 %2566, %v1307
      %v2568 = vpop.permute.xlu0 %2567
      %v2569 = vlaneseq
      %v2570 = vshrl.u32 %v2569, 7
      %v2571 = vadd.s32 %v2570, 16
      %2572 = vset.pattern.permute.xlu0 %v2571
      %2573 = vperm.xlu0 %2572, %v1314
      %v2574 = vpop.permute.xlu0 %2573
      %v2575 = vlaneseq
      %v2576 = vshrl.u32 %v2575, 7
      %v2577 = vadd.s32 %v2576, 16
      %2578 = vset.pattern.permute.xlu0 %v2577
      %2579 = vperm.xlu0 %2578, %v1321
      %v2580 = vpop.permute.xlu0 %2579
      %v2581 = vlaneseq
      %v2582 = vshrl.u32 %v2581, 7
      %v2583 = vadd.s32 %v2582, 16
      %2584 = vset.pattern.permute.xlu0 %v2583
      %2585 = vperm.xlu0 %2584, %v1328
      %v2586 = vpop.permute.xlu0 %2585
      %v2587 = vlaneseq
      %v2588 = vshrl.u32 %v2587, 7
      %v2589 = vadd.s32 %v2588, 16
      %2590 = vset.pattern.permute.xlu0 %v2589
      %2591 = vperm.xlu0 %2590, %v1335
      %v2592 = vpop.permute.xlu0 %2591
      %v2593 = vlaneseq
      %v2594 = vshrl.u32 %v2593, 7
      %v2595 = vadd.s32 %v2594, 16
      %2596 = vset.pattern.permute.xlu0 %v2595
      %2597 = vperm.xlu0 %2596, %v1342
      %v2598 = vpop.permute.xlu0 %2597
      %v2599 = vlaneseq
      %v2600 = vshrl.u32 %v2599, 7
      %v2601 = vadd.s32 %v2600, 16
      %2602 = vset.pattern.permute.xlu0 %v2601
      %2603 = vperm.xlu0 %2602, %v1349
      %v2604 = vpop.permute.xlu0 %2603
      %v2605 = vlaneseq
      %v2606 = vshrl.u32 %v2605, 7
      %v2607 = vadd.s32 %v2606, 16
      %2608 = vset.pattern.permute.xlu0 %v2607
      %2609 = vperm.xlu0 %2608, %v1356
      %v2610 = vpop.permute.xlu0 %2609
      %v2611 = vlaneseq
      %v2612 = vshrl.u32 %v2611, 7
      %v2613 = vadd.s32 %v2612, 16
      %2614 = vset.pattern.permute.xlu0 %v2613
      %2615 = vperm.xlu0 %2614, %v1363
      %v2616 = vpop.permute.xlu0 %2615
      %v2617 = vlaneseq
      %v2618 = vshrl.u32 %v2617, 7
      %v2619 = vadd.s32 %v2618, 16
      %2620 = vset.pattern.permute.xlu0 %v2619
      %2621 = vperm.xlu0 %2620, %v1370
      %v2622 = vpop.permute.xlu0 %2621
      %v2623 = vlaneseq
      %v2624 = vshrl.u32 %v2623, 7
      %v2625 = vadd.s32 %v2624, 16
      %2626 = vset.pattern.permute.xlu0 %v2625
      %2627 = vperm.xlu0 %2626, %v1377
      %v2628 = vpop.permute.xlu0 %2627
      %v2629 = vlaneseq
      %v2630 = vshrl.u32 %v2629, 7
      %v2631 = vadd.s32 %v2630, 16
      %2632 = vset.pattern.permute.xlu0 %v2631
      %2633 = vperm.xlu0 %2632, %v1384
      %v2634 = vpop.permute.xlu0 %2633
      %v2635 = vlaneseq
      %v2636 = vshrl.u32 %v2635, 7
      %v2637 = vadd.s32 %v2636, 16
      %2638 = vset.pattern.permute.xlu0 %v2637
      %2639 = vperm.xlu0 %2638, %v1391
      %v2640 = vpop.permute.xlu0 %2639
      %v2641 = vlaneseq
      %v2642 = vshrl.u32 %v2641, 7
      %v2643 = vadd.s32 %v2642, 16
      %2644 = vset.pattern.permute.xlu0 %v2643
      %2645 = vperm.xlu0 %2644, %v1398
      %v2646 = vpop.permute.xlu0 %2645
      %v2647 = vlaneseq
      %v2648 = vshrl.u32 %v2647, 7
      %v2649 = vadd.s32 %v2648, 16
      %2650 = vset.pattern.permute.xlu0 %v2649
      %2651 = vperm.xlu0 %2650, %v1405
      %v2652 = vpop.permute.xlu0 %2651
      %v2653 = vlaneseq
      %v2654 = vshrl.u32 %v2653, 7
      %v2655 = vadd.s32 %v2654, 16
      %2656 = vset.pattern.permute.xlu0 %v2655
      %2657 = vperm.xlu0 %2656, %v1412
      %v2658 = vpop.permute.xlu0 %2657
      %v2659 = vlaneseq
      %v2660 = vshrl.u32 %v2659, 7
      %v2661 = vadd.s32 %v2660, 16
      %2662 = vset.pattern.permute.xlu0 %v2661
      %2663 = vperm.xlu0 %2662, %v1419
      %v2664 = vpop.permute.xlu0 %2663
      %v2665 = vlaneseq
      %v2666 = vshrl.u32 %v2665, 7
      %v2667 = vadd.s32 %v2666, 16
      %2668 = vset.pattern.permute.xlu0 %v2667
      %2669 = vperm.xlu0 %2668, %v1426
      %v2670 = vpop.permute.xlu0 %2669
      %v2671 = vlaneseq
      %v2672 = vshrl.u32 %v2671, 7
      %v2673 = vadd.s32 %v2672, 16
      %2674 = vset.pattern.permute.xlu0 %v2673
      %2675 = vperm.xlu0 %2674, %v1433
      %v2676 = vpop.permute.xlu0 %2675
      %v2677 = vlaneseq
      %v2678 = vshrl.u32 %v2677, 7
      %v2679 = vadd.s32 %v2678, 16
      %2680 = vset.pattern.permute.xlu0 %v2679
      %2681 = vperm.xlu0 %2680, %v1440
      %v2682 = vpop.permute.xlu0 %2681
      %v2683 = vlaneseq
      %v2684 = vshrl.u32 %v2683, 7
      %v2685 = vadd.s32 %v2684, 16
      %2686 = vset.pattern.permute.xlu0 %v2685
      %2687 = vperm.xlu0 %2686, %v1447
      %v2688 = vpop.permute.xlu0 %2687
      %v2689 = vlaneseq
      %v2690 = vshrl.u32 %v2689, 7
      %v2691 = vadd.s32 %v2690, 16
      %2692 = vset.pattern.permute.xlu0 %v2691
      %2693 = vperm.xlu0 %2692, %v1454
      %v2694 = vpop.permute.xlu0 %2693
      %v2695 = vlaneseq
      %v2696 = vshrl.u32 %v2695, 7
      %v2697 = vadd.s32 %v2696, 16
      %2698 = vset.pattern.permute.xlu0 %v2697
      %2699 = vperm.xlu0 %2698, %v1461
      %v2700 = vpop.permute.xlu0 %2699
      %v2701 = vlaneseq
      %v2702 = vshrl.u32 %v2701, 7
      %v2703 = vadd.s32 %v2702, 16
      %2704 = vset.pattern.permute.xlu0 %v2703
      %2705 = vperm.xlu0 %2704, %v1468
      %v2706 = vpop.permute.xlu0 %2705
      %v2707 = vlaneseq
      %v2708 = vshrl.u32 %v2707, 7
      %v2709 = vadd.s32 %v2708, 16
      %2710 = vset.pattern.permute.xlu0 %v2709
      %2711 = vperm.xlu0 %2710, %v1475
      %v2712 = vpop.permute.xlu0 %2711
      %v2713 = vlaneseq
      %v2714 = vshrl.u32 %v2713, 7
      %v2715 = vadd.s32 %v2714, 16
      %2716 = vset.pattern.permute.xlu0 %v2715
      %2717 = vperm.xlu0 %2716, %v1482
      %v2718 = vpop.permute.xlu0 %2717
      %v2719 = vlaneseq
      %v2720 = vshrl.u32 %v2719, 7
      %v2721 = vadd.s32 %v2720, 16
      %2722 = vset.pattern.permute.xlu0 %v2721
      %2723 = vperm.xlu0 %2722, %v1489
      %v2724 = vpop.permute.xlu0 %2723
      %v2725 = vlaneseq
      %v2726 = vshrl.u32 %v2725, 7
      %v2727 = vadd.s32 %v2726, 16
      %2728 = vset.pattern.permute.xlu0 %v2727
      %2729 = vperm.xlu0 %2728, %v1496
      %v2730 = vpop.permute.xlu0 %2729
      %v2731 = vlaneseq
      %v2732 = vshrl.u32 %v2731, 7
      %v2733 = vadd.s32 %v2732, 16
      %2734 = vset.pattern.permute.xlu0 %v2733
      %2735 = vperm.xlu0 %2734, %v1503
      %v2736 = vpop.permute.xlu0 %2735
      %v2737 = vlaneseq
      %v2738 = vshrl.u32 %v2737, 7
      %v2739 = vadd.s32 %v2738, 16
      %2740 = vset.pattern.permute.xlu0 %v2739
      %2741 = vperm.xlu0 %2740, %v1510
      %v2742 = vpop.permute.xlu0 %2741
      %v2743 = vlaneseq
      %v2744 = vshrl.u32 %v2743, 7
      %v2745 = vadd.s32 %v2744, 16
      %2746 = vset.pattern.permute.xlu0 %v2745
      %2747 = vperm.xlu0 %2746, %v1517
      %v2748 = vpop.permute.xlu0 %2747
      %v2749 = vlaneseq
      %v2750 = vshrl.u32 %v2749, 7
      %v2751 = vadd.s32 %v2750, 16
      %2752 = vset.pattern.permute.xlu0 %v2751
      %2753 = vperm.xlu0 %2752, %v1524
      %v2754 = vpop.permute.xlu0 %2753
      %v2755 = vlaneseq
      %v2756 = vshrl.u32 %v2755, 7
      %v2757 = vadd.s32 %v2756, 16
      %2758 = vset.pattern.permute.xlu0 %v2757
      %2759 = vperm.xlu0 %2758, %v1531
      %v2760 = vpop.permute.xlu0 %2759
      %v2761 = vlaneseq
      %v2762 = vshrl.u32 %v2761, 7
      %v2763 = vadd.s32 %v2762, 16
      %2764 = vset.pattern.permute.xlu0 %v2763
      %2765 = vperm.xlu0 %2764, %v1538
      %v2766 = vpop.permute.xlu0 %2765
      %v2767 = vlaneseq
      %v2768 = vshrl.u32 %v2767, 7
      %v2769 = vadd.s32 %v2768, 16
      %2770 = vset.pattern.permute.xlu0 %v2769
      %2771 = vperm.xlu0 %2770, %v1545
      %v2772 = vpop.permute.xlu0 %2771
      %v2773 = vlaneseq
      %v2774 = vshrl.u32 %v2773, 7
      %v2775 = vadd.s32 %v2774, 16
      %2776 = vset.pattern.permute.xlu0 %v2775
      %2777 = vperm.xlu0 %2776, %v1552
      %v2778 = vpop.permute.xlu0 %2777
      %v2779 = vlaneseq
      %v2780 = vshrl.u32 %v2779, 7
      %v2781 = vadd.s32 %v2780, 16
      %2782 = vset.pattern.permute.xlu0 %v2781
      %2783 = vperm.xlu0 %2782, %v1559
      %v2784 = vpop.permute.xlu0 %2783
      %v2785 = vlaneseq
      %v2786 = vshrl.u32 %v2785, 7
      %v2787 = vadd.s32 %v2786, 16
      %2788 = vset.pattern.permute.xlu0 %v2787
      %2789 = vperm.xlu0 %2788, %v1566
      %v2790 = vpop.permute.xlu0 %2789
      %v2791 = vlaneseq
      %v2792 = vshrl.u32 %v2791, 7
      %v2793 = vadd.s32 %v2792, 16
      %2794 = vset.pattern.permute.xlu0 %v2793
      %2795 = vperm.xlu0 %2794, %v1573
      %v2796 = vpop.permute.xlu0 %2795
      %v2797 = vlaneseq
      %v2798 = vshrl.u32 %v2797, 7
      %v2799 = vadd.s32 %v2798, 16
      %2800 = vset.pattern.permute.xlu0 %v2799
      %2801 = vperm.xlu0 %2800, %v1580
      %v2802 = vpop.permute.xlu0 %2801
      %v2803 = vlaneseq
      %v2804 = vshrl.u32 %v2803, 7
      %v2805 = vadd.s32 %v2804, 24
      %2806 = vset.pattern.permute.xlu0 %v2805
      %2807 = vperm.xlu0 %2806, %v1139
      %v2808 = vpop.permute.xlu0 %2807
      %v2809 = vlaneseq
      %v2810 = vshrl.u32 %v2809, 7
      %v2811 = vadd.s32 %v2810, 24
      %2812 = vset.pattern.permute.xlu0 %v2811
      %2813 = vperm.xlu0 %2812, %v1146
      %v2814 = vpop.permute.xlu0 %2813
      %v2815 = vlaneseq
      %v2816 = vshrl.u32 %v2815, 7
      %v2817 = vadd.s32 %v2816, 24
      %2818 = vset.pattern.permute.xlu0 %v2817
      %2819 = vperm.xlu0 %2818, %v1153
      %v2820 = vpop.permute.xlu0 %2819
      %v2821 = vlaneseq
      %v2822 = vshrl.u32 %v2821, 7
      %v2823 = vadd.s32 %v2822, 24
      %2824 = vset.pattern.permute.xlu0 %v2823
      %2825 = vperm.xlu0 %2824, %v1160
      %v2826 = vpop.permute.xlu0 %2825
      %v2827 = vlaneseq
      %v2828 = vshrl.u32 %v2827, 7
      %v2829 = vadd.s32 %v2828, 24
      %2830 = vset.pattern.permute.xlu0 %v2829
      %2831 = vperm.xlu0 %2830, %v1167
      %v2832 = vpop.permute.xlu0 %2831
      %v2833 = vlaneseq
      %v2834 = vshrl.u32 %v2833, 7
      %v2835 = vadd.s32 %v2834, 24
      %2836 = vset.pattern.permute.xlu0 %v2835
      %2837 = vperm.xlu0 %2836, %v1174
      %v2838 = vpop.permute.xlu0 %2837
      %v2839 = vlaneseq
      %v2840 = vshrl.u32 %v2839, 7
      %v2841 = vadd.s32 %v2840, 24
      %2842 = vset.pattern.permute.xlu0 %v2841
      %2843 = vperm.xlu0 %2842, %v1181
      %v2844 = vpop.permute.xlu0 %2843
      %v2845 = vlaneseq
      %v2846 = vshrl.u32 %v2845, 7
      %v2847 = vadd.s32 %v2846, 24
      %2848 = vset.pattern.permute.xlu0 %v2847
      %2849 = vperm.xlu0 %2848, %v1188
      %v2850 = vpop.permute.xlu0 %2849
      %v2851 = vlaneseq
      %v2852 = vshrl.u32 %v2851, 7
      %v2853 = vadd.s32 %v2852, 24
      %2854 = vset.pattern.permute.xlu0 %v2853
      %2855 = vperm.xlu0 %2854, %v1195
      %v2856 = vpop.permute.xlu0 %2855
      %v2857 = vlaneseq
      %v2858 = vshrl.u32 %v2857, 7
      %v2859 = vadd.s32 %v2858, 24
      %2860 = vset.pattern.permute.xlu0 %v2859
      %2861 = vperm.xlu0 %2860, %v1202
      %v2862 = vpop.permute.xlu0 %2861
      %v2863 = vlaneseq
      %v2864 = vshrl.u32 %v2863, 7
      %v2865 = vadd.s32 %v2864, 24
      %2866 = vset.pattern.permute.xlu0 %v2865
      %2867 = vperm.xlu0 %2866, %v1209
      %v2868 = vpop.permute.xlu0 %2867
      %v2869 = vlaneseq
      %v2870 = vshrl.u32 %v2869, 7
      %v2871 = vadd.s32 %v2870, 24
      %2872 = vset.pattern.permute.xlu0 %v2871
      %2873 = vperm.xlu0 %2872, %v1216
      %v2874 = vpop.permute.xlu0 %2873
      %v2875 = vlaneseq
      %v2876 = vshrl.u32 %v2875, 7
      %v2877 = vadd.s32 %v2876, 24
      %2878 = vset.pattern.permute.xlu0 %v2877
      %2879 = vperm.xlu0 %2878, %v1223
      %v2880 = vpop.permute.xlu0 %2879
      %v2881 = vlaneseq
      %v2882 = vshrl.u32 %v2881, 7
      %v2883 = vadd.s32 %v2882, 24
      %2884 = vset.pattern.permute.xlu0 %v2883
      %2885 = vperm.xlu0 %2884, %v1230
      %v2886 = vpop.permute.xlu0 %2885
      %v2887 = vlaneseq
      %v2888 = vshrl.u32 %v2887, 7
      %v2889 = vadd.s32 %v2888, 24
      %2890 = vset.pattern.permute.xlu0 %v2889
      %2891 = vperm.xlu0 %2890, %v1237
      %v2892 = vpop.permute.xlu0 %2891
      %v2893 = vlaneseq
      %v2894 = vshrl.u32 %v2893, 7
      %v2895 = vadd.s32 %v2894, 24
      %2896 = vset.pattern.permute.xlu0 %v2895
      %2897 = vperm.xlu0 %2896, %v1244
      %v2898 = vpop.permute.xlu0 %2897
      %v2899 = vlaneseq
      %v2900 = vshrl.u32 %v2899, 7
      %v2901 = vadd.s32 %v2900, 24
      %2902 = vset.pattern.permute.xlu0 %v2901
      %2903 = vperm.xlu0 %2902, %v1251
      %v2904 = vpop.permute.xlu0 %2903
      %v2905 = vlaneseq
      %v2906 = vshrl.u32 %v2905, 7
      %v2907 = vadd.s32 %v2906, 24
      %2908 = vset.pattern.permute.xlu0 %v2907
      %2909 = vperm.xlu0 %2908, %v1258
      %v2910 = vpop.permute.xlu0 %2909
      %v2911 = vlaneseq
      %v2912 = vshrl.u32 %v2911, 7
      %v2913 = vadd.s32 %v2912, 24
      %2914 = vset.pattern.permute.xlu0 %v2913
      %2915 = vperm.xlu0 %2914, %v1265
      %v2916 = vpop.permute.xlu0 %2915
      %v2917 = vlaneseq
      %v2918 = vshrl.u32 %v2917, 7
      %v2919 = vadd.s32 %v2918, 24
      %2920 = vset.pattern.permute.xlu0 %v2919
      %2921 = vperm.xlu0 %2920, %v1272
      %v2922 = vpop.permute.xlu0 %2921
      %v2923 = vlaneseq
      %v2924 = vshrl.u32 %v2923, 7
      %v2925 = vadd.s32 %v2924, 24
      %2926 = vset.pattern.permute.xlu0 %v2925
      %2927 = vperm.xlu0 %2926, %v1279
      %v2928 = vpop.permute.xlu0 %2927
      %v2929 = vlaneseq
      %v2930 = vshrl.u32 %v2929, 7
      %v2931 = vadd.s32 %v2930, 24
      %2932 = vset.pattern.permute.xlu0 %v2931
      %2933 = vperm.xlu0 %2932, %v1286
      %v2934 = vpop.permute.xlu0 %2933
      %v2935 = vlaneseq
      %v2936 = vshrl.u32 %v2935, 7
      %v2937 = vadd.s32 %v2936, 24
      %2938 = vset.pattern.permute.xlu0 %v2937
      %2939 = vperm.xlu0 %2938, %v1293
      %v2940 = vpop.permute.xlu0 %2939
      %v2941 = vlaneseq
      %v2942 = vshrl.u32 %v2941, 7
      %v2943 = vadd.s32 %v2942, 24
      %2944 = vset.pattern.permute.xlu0 %v2943
      %2945 = vperm.xlu0 %2944, %v1300
      %v2946 = vpop.permute.xlu0 %2945
      %v2947 = vlaneseq
      %v2948 = vshrl.u32 %v2947, 7
      %v2949 = vadd.s32 %v2948, 24
      %2950 = vset.pattern.permute.xlu0 %v2949
      %2951 = vperm.xlu0 %2950, %v1307
      %v2952 = vpop.permute.xlu0 %2951
      %v2953 = vlaneseq
      %v2954 = vshrl.u32 %v2953, 7
      %v2955 = vadd.s32 %v2954, 24
      %2956 = vset.pattern.permute.xlu0 %v2955
      %2957 = vperm.xlu0 %2956, %v1314
      %v2958 = vpop.permute.xlu0 %2957
      %v2959 = vlaneseq
      %v2960 = vshrl.u32 %v2959, 7
      %v2961 = vadd.s32 %v2960, 24
      %2962 = vset.pattern.permute.xlu0 %v2961
      %2963 = vperm.xlu0 %2962, %v1321
      %v2964 = vpop.permute.xlu0 %2963
      %v2965 = vlaneseq
      %v2966 = vshrl.u32 %v2965, 7
      %v2967 = vadd.s32 %v2966, 24
      %2968 = vset.pattern.permute.xlu0 %v2967
      %2969 = vperm.xlu0 %2968, %v1328
      %v2970 = vpop.permute.xlu0 %2969
      %v2971 = vlaneseq
      %v2972 = vshrl.u32 %v2971, 7
      %v2973 = vadd.s32 %v2972, 24
      %2974 = vset.pattern.permute.xlu0 %v2973
      %2975 = vperm.xlu0 %2974, %v1335
      %v2976 = vpop.permute.xlu0 %2975
      %v2977 = vlaneseq
      %v2978 = vshrl.u32 %v2977, 7
      %v2979 = vadd.s32 %v2978, 24
      %2980 = vset.pattern.permute.xlu0 %v2979
      %2981 = vperm.xlu0 %2980, %v1342
      %v2982 = vpop.permute.xlu0 %2981
      %v2983 = vlaneseq
      %v2984 = vshrl.u32 %v2983, 7
      %v2985 = vadd.s32 %v2984, 24
      %2986 = vset.pattern.permute.xlu0 %v2985
      %2987 = vperm.xlu0 %2986, %v1349
      %v2988 = vpop.permute.xlu0 %2987
      %v2989 = vlaneseq
      %v2990 = vshrl.u32 %v2989, 7
      %v2991 = vadd.s32 %v2990, 24
      %2992 = vset.pattern.permute.xlu0 %v2991
      %2993 = vperm.xlu0 %2992, %v1356
      %v2994 = vpop.permute.xlu0 %2993
      %v2995 = vlaneseq
      %v2996 = vshrl.u32 %v2995, 7
      %v2997 = vadd.s32 %v2996, 24
      %2998 = vset.pattern.permute.xlu0 %v2997
      %2999 = vperm.xlu0 %2998, %v1363
      %v3000 = vpop.permute.xlu0 %2999
      %v3001 = vlaneseq
      %v3002 = vshrl.u32 %v3001, 7
      %v3003 = vadd.s32 %v3002, 24
      %3004 = vset.pattern.permute.xlu0 %v3003
      %3005 = vperm.xlu0 %3004, %v1370
      %v3006 = vpop.permute.xlu0 %3005
      %v3007 = vlaneseq
      %v3008 = vshrl.u32 %v3007, 7
      %v3009 = vadd.s32 %v3008, 24
      %3010 = vset.pattern.permute.xlu0 %v3009
      %3011 = vperm.xlu0 %3010, %v1377
      %v3012 = vpop.permute.xlu0 %3011
      %v3013 = vlaneseq
      %v3014 = vshrl.u32 %v3013, 7
      %v3015 = vadd.s32 %v3014, 24
      %3016 = vset.pattern.permute.xlu0 %v3015
      %3017 = vperm.xlu0 %3016, %v1384
      %v3018 = vpop.permute.xlu0 %3017
      %v3019 = vlaneseq
      %v3020 = vshrl.u32 %v3019, 7
      %v3021 = vadd.s32 %v3020, 24
      %3022 = vset.pattern.permute.xlu0 %v3021
      %3023 = vperm.xlu0 %3022, %v1391
      %v3024 = vpop.permute.xlu0 %3023
      %v3025 = vlaneseq
      %v3026 = vshrl.u32 %v3025, 7
      %v3027 = vadd.s32 %v3026, 24
      %3028 = vset.pattern.permute.xlu0 %v3027
      %3029 = vperm.xlu0 %3028, %v1398
      %v3030 = vpop.permute.xlu0 %3029
      %v3031 = vlaneseq
      %v3032 = vshrl.u32 %v3031, 7
      %v3033 = vadd.s32 %v3032, 24
      %3034 = vset.pattern.permute.xlu0 %v3033
      %3035 = vperm.xlu0 %3034, %v1405
      %v3036 = vpop.permute.xlu0 %3035
      %v3037 = vlaneseq
      %v3038 = vshrl.u32 %v3037, 7
      %v3039 = vadd.s32 %v3038, 24
      %3040 = vset.pattern.permute.xlu0 %v3039
      %3041 = vperm.xlu0 %3040, %v1412
      %v3042 = vpop.permute.xlu0 %3041
      %v3043 = vlaneseq
      %v3044 = vshrl.u32 %v3043, 7
      %v3045 = vadd.s32 %v3044, 24
      %3046 = vset.pattern.permute.xlu0 %v3045
      %3047 = vperm.xlu0 %3046, %v1419
      %v3048 = vpop.permute.xlu0 %3047
      %v3049 = vlaneseq
      %v3050 = vshrl.u32 %v3049, 7
      %v3051 = vadd.s32 %v3050, 24
      %3052 = vset.pattern.permute.xlu0 %v3051
      %3053 = vperm.xlu0 %3052, %v1426
      %v3054 = vpop.permute.xlu0 %3053
      %v3055 = vlaneseq
      %v3056 = vshrl.u32 %v3055, 7
      %v3057 = vadd.s32 %v3056, 24
      %3058 = vset.pattern.permute.xlu0 %v3057
      %3059 = vperm.xlu0 %3058, %v1433
      %v3060 = vpop.permute.xlu0 %3059
      %v3061 = vlaneseq
      %v3062 = vshrl.u32 %v3061, 7
      %v3063 = vadd.s32 %v3062, 24
      %3064 = vset.pattern.permute.xlu0 %v3063
      %3065 = vperm.xlu0 %3064, %v1440
      %v3066 = vpop.permute.xlu0 %3065
      %v3067 = vlaneseq
      %v3068 = vshrl.u32 %v3067, 7
      %v3069 = vadd.s32 %v3068, 24
      %3070 = vset.pattern.permute.xlu0 %v3069
      %3071 = vperm.xlu0 %3070, %v1447
      %v3072 = vpop.permute.xlu0 %3071
      %v3073 = vlaneseq
      %v3074 = vshrl.u32 %v3073, 7
      %v3075 = vadd.s32 %v3074, 24
      %3076 = vset.pattern.permute.xlu0 %v3075
      %3077 = vperm.xlu0 %3076, %v1454
      %v3078 = vpop.permute.xlu0 %3077
      %v3079 = vlaneseq
      %v3080 = vshrl.u32 %v3079, 7
      %v3081 = vadd.s32 %v3080, 24
      %3082 = vset.pattern.permute.xlu0 %v3081
      %3083 = vperm.xlu0 %3082, %v1461
      %v3084 = vpop.permute.xlu0 %3083
      %v3085 = vlaneseq
      %v3086 = vshrl.u32 %v3085, 7
      %v3087 = vadd.s32 %v3086, 24
      %3088 = vset.pattern.permute.xlu0 %v3087
      %3089 = vperm.xlu0 %3088, %v1468
      %v3090 = vpop.permute.xlu0 %3089
      %v3091 = vlaneseq
      %v3092 = vshrl.u32 %v3091, 7
      %v3093 = vadd.s32 %v3092, 24
      %3094 = vset.pattern.permute.xlu0 %v3093
      %3095 = vperm.xlu0 %3094, %v1475
      %v3096 = vpop.permute.xlu0 %3095
      %v3097 = vlaneseq
      %v3098 = vshrl.u32 %v3097, 7
      %v3099 = vadd.s32 %v3098, 24
      %3100 = vset.pattern.permute.xlu0 %v3099
      %3101 = vperm.xlu0 %3100, %v1482
      %v3102 = vpop.permute.xlu0 %3101
      %v3103 = vlaneseq
      %v3104 = vshrl.u32 %v3103, 7
      %v3105 = vadd.s32 %v3104, 24
      %3106 = vset.pattern.permute.xlu0 %v3105
      %3107 = vperm.xlu0 %3106, %v1489
      %v3108 = vpop.permute.xlu0 %3107
      %v3109 = vlaneseq
      %v3110 = vshrl.u32 %v3109, 7
      %v3111 = vadd.s32 %v3110, 24
      %3112 = vset.pattern.permute.xlu0 %v3111
      %3113 = vperm.xlu0 %3112, %v1496
      %v3114 = vpop.permute.xlu0 %3113
      %v3115 = vlaneseq
      %v3116 = vshrl.u32 %v3115, 7
      %v3117 = vadd.s32 %v3116, 24
      %3118 = vset.pattern.permute.xlu0 %v3117
      %3119 = vperm.xlu0 %3118, %v1503
      %v3120 = vpop.permute.xlu0 %3119
      %v3121 = vlaneseq
      %v3122 = vshrl.u32 %v3121, 7
      %v3123 = vadd.s32 %v3122, 24
      %3124 = vset.pattern.permute.xlu0 %v3123
      %3125 = vperm.xlu0 %3124, %v1510
      %v3126 = vpop.permute.xlu0 %3125
      %v3127 = vlaneseq
      %v3128 = vshrl.u32 %v3127, 7
      %v3129 = vadd.s32 %v3128, 24
      %3130 = vset.pattern.permute.xlu0 %v3129
      %3131 = vperm.xlu0 %3130, %v1517
      %v3132 = vpop.permute.xlu0 %3131
      %v3133 = vlaneseq
      %v3134 = vshrl.u32 %v3133, 7
      %v3135 = vadd.s32 %v3134, 24
      %3136 = vset.pattern.permute.xlu0 %v3135
      %3137 = vperm.xlu0 %3136, %v1524
      %v3138 = vpop.permute.xlu0 %3137
      %v3139 = vlaneseq
      %v3140 = vshrl.u32 %v3139, 7
      %v3141 = vadd.s32 %v3140, 24
      %3142 = vset.pattern.permute.xlu0 %v3141
      %3143 = vperm.xlu0 %3142, %v1531
      %v3144 = vpop.permute.xlu0 %3143
      %v3145 = vlaneseq
      %v3146 = vshrl.u32 %v3145, 7
      %v3147 = vadd.s32 %v3146, 24
      %3148 = vset.pattern.permute.xlu0 %v3147
      %3149 = vperm.xlu0 %3148, %v1538
      %v3150 = vpop.permute.xlu0 %3149
      %v3151 = vlaneseq
      %v3152 = vshrl.u32 %v3151, 7
      %v3153 = vadd.s32 %v3152, 24
      %3154 = vset.pattern.permute.xlu0 %v3153
      %3155 = vperm.xlu0 %3154, %v1545
      %v3156 = vpop.permute.xlu0 %3155
      %v3157 = vlaneseq
      %v3158 = vshrl.u32 %v3157, 7
      %v3159 = vadd.s32 %v3158, 24
      %3160 = vset.pattern.permute.xlu0 %v3159
      %3161 = vperm.xlu0 %3160, %v1552
      %v3162 = vpop.permute.xlu0 %3161
      %v3163 = vlaneseq
      %v3164 = vshrl.u32 %v3163, 7
      %v3165 = vadd.s32 %v3164, 24
      %3166 = vset.pattern.permute.xlu0 %v3165
      %3167 = vperm.xlu0 %3166, %v1559
      %v3168 = vpop.permute.xlu0 %3167
      %v3169 = vlaneseq
      %v3170 = vshrl.u32 %v3169, 7
      %v3171 = vadd.s32 %v3170, 24
      %3172 = vset.pattern.permute.xlu0 %v3171
      %3173 = vperm.xlu0 %3172, %v1566
      %v3174 = vpop.permute.xlu0 %3173
      %v3175 = vlaneseq
      %v3176 = vshrl.u32 %v3175, 7
      %v3177 = vadd.s32 %v3176, 24
      %3178 = vset.pattern.permute.xlu0 %v3177
      %3179 = vperm.xlu0 %3178, %v1573
      %v3180 = vpop.permute.xlu0 %3179
      %v3181 = vlaneseq
      %v3182 = vshrl.u32 %v3181, 7
      %v3183 = vadd.s32 %v3182, 24
      %3184 = vset.pattern.permute.xlu0 %v3183
      %3185 = vperm.xlu0 %3184, %v1580
      %v3186 = vpop.permute.xlu0 %3185
      %v3187 = vsel %vm401, %v2424, %v2808
      %v3188 = vsel %vm401, %v2430, %v2814
      %v3189 = vsel %vm401, %v2436, %v2820
      %v3190 = vsel %vm401, %v2442, %v2826
      %v3191 = vsel %vm401, %v2448, %v2832
      %v3192 = vsel %vm401, %v2454, %v2838
      %v3193 = vsel %vm401, %v2460, %v2844
      %v3194 = vsel %vm401, %v2466, %v2850
      %v3195 = vsel %vm401, %v2472, %v2856
      %v3196 = vsel %vm401, %v2478, %v2862
      %v3197 = vsel %vm401, %v2484, %v2868
      %v3198 = vsel %vm401, %v2490, %v2874
      %v3199 = vsel %vm401, %v2496, %v2880
      %v3200 = vsel %vm401, %v2502, %v2886
      %v3201 = vsel %vm401, %v2508, %v2892
      %v3202 = vsel %vm401, %v2514, %v2898
      %v3203 = vsel %vm401, %v2520, %v2904
      %v3204 = vsel %vm401, %v2526, %v2910
      %v3205 = vsel %vm401, %v2532, %v2916
      %v3206 = vsel %vm401, %v2538, %v2922
      %v3207 = vsel %vm401, %v2544, %v2928
      %v3208 = vsel %vm401, %v2550, %v2934
      %v3209 = vsel %vm401, %v2556, %v2940
      %v3210 = vsel %vm401, %v2562, %v2946
      %v3211 = vsel %vm401, %v2568, %v2952
      %v3212 = vsel %vm401, %v2574, %v2958
      %v3213 = vsel %vm401, %v2580, %v2964
      %v3214 = vsel %vm401, %v2586, %v2970
      %v3215 = vsel %vm401, %v2592, %v2976
      %v3216 = vsel %vm401, %v2598, %v2982
      %v3217 = vsel %vm401, %v2604, %v2988
      %v3218 = vsel %vm401, %v2610, %v2994
      %v3219 = vsel %vm401, %v2616, %v3000
      %v3220 = vsel %vm401, %v2622, %v3006
      %v3221 = vsel %vm401, %v2628, %v3012
      %v3222 = vsel %vm401, %v2634, %v3018
      %v3223 = vsel %vm401, %v2640, %v3024
      %v3224 = vsel %vm401, %v2646, %v3030
      %v3225 = vsel %vm401, %v2652, %v3036
      %v3226 = vsel %vm401, %v2658, %v3042
      %v3227 = vsel %vm401, %v2664, %v3048
      %v3228 = vsel %vm401, %v2670, %v3054
      %v3229 = vsel %vm401, %v2676, %v3060
      %v3230 = vsel %vm401, %v2682, %v3066
      %v3231 = vsel %vm401, %v2688, %v3072
      %v3232 = vsel %vm401, %v2694, %v3078
      %v3233 = vsel %vm401, %v2700, %v3084
      %v3234 = vsel %vm401, %v2706, %v3090
      %v3235 = vsel %vm401, %v2712, %v3096
      %v3236 = vsel %vm401, %v2718, %v3102
      %v3237 = vsel %vm401, %v2724, %v3108
      %v3238 = vsel %vm401, %v2730, %v3114
      %v3239 = vsel %vm401, %v2736, %v3120
      %v3240 = vsel %vm401, %v2742, %v3126
      %v3241 = vsel %vm401, %v2748, %v3132
      %v3242 = vsel %vm401, %v2754, %v3138
      %v3243 = vsel %vm401, %v2760, %v3144
      %v3244 = vsel %vm401, %v2766, %v3150
      %v3245 = vsel %vm401, %v2772, %v3156
      %v3246 = vsel %vm401, %v2778, %v3162
      %v3247 = vsel %vm401, %v2784, %v3168
      %v3248 = vsel %vm401, %v2790, %v3174
      %v3249 = vsel %vm401, %v2796, %v3180
      %v3250 = vsel %vm401, %v2802, %v3186
      %3251 = vst [vmem:[#allocation5] sm:$0xff] %v3187
      %3252 = vst [vmem:[#allocation5 + $0x8] sm:$0xff] %v3188
      %3253 = vst [vmem:[#allocation5 + $0x10] sm:$0xff] %v3189
      %3254 = vst [vmem:[#allocation5 + $0x18] sm:$0xff] %v3190
      %3255 = vst [vmem:[#allocation5 + $0x20] sm:$0xff] %v3191
      %3256 = vst [vmem:[#allocation5 + $0x28] sm:$0xff] %v3192
      %3257 = vst [vmem:[#allocation5 + $0x30] sm:$0xff] %v3193
      %3258 = vst [vmem:[#allocation5 + $0x38] sm:$0xff] %v3194
      %3259 = vst [vmem:[#allocation5 + $0x40] sm:$0xff] %v3195
      %3260 = vst [vmem:[#allocation5 + $0x48] sm:$0xff] %v3196
      %3261 = vst [vmem:[#allocation5 + $0x50] sm:$0xff] %v3197
      %3262 = vst [vmem:[#allocation5 + $0x58] sm:$0xff] %v3198
      %3263 = vst [vmem:[#allocation5 + $0x60] sm:$0xff] %v3199
      %3264 = vst [vmem:[#allocation5 + $0x68] sm:$0xff] %v3200
      %3265 = vst [vmem:[#allocation5 + $0x70] sm:$0xff] %v3201
      %3266 = vst [vmem:[#allocation5 + $0x78] sm:$0xff] %v3202
      %3267 = vst [vmem:[#allocation5 + $0x80] sm:$0xff] %v3203
      %3268 = vst [vmem:[#allocation5 + $0x88] sm:$0xff] %v3204
      %3269 = vst [vmem:[#allocation5 + $0x90] sm:$0xff] %v3205
      %3270 = vst [vmem:[#allocation5 + $0x98] sm:$0xff] %v3206
      %3271 = vst [vmem:[#allocation5 + $0xa0] sm:$0xff] %v3207
      %3272 = vst [vmem:[#allocation5 + $0xa8] sm:$0xff] %v3208
      %3273 = vst [vmem:[#allocation5 + $0xb0] sm:$0xff] %v3209
      %3274 = vst [vmem:[#allocation5 + $0xb8] sm:$0xff] %v3210
      %3275 = vst [vmem:[#allocation5 + $0xc0] sm:$0xff] %v3211
      %3276 = vst [vmem:[#allocation5 + $0xc8] sm:$0xff] %v3212
      %3277 = vst [vmem:[#allocation5 + $0xd0] sm:$0xff] %v3213
      %3278 = vst [vmem:[#allocation5 + $0xd8] sm:$0xff] %v3214
      %3279 = vst [vmem:[#allocation5 + $0xe0] sm:$0xff] %v3215
      %3280 = vst [vmem:[#allocation5 + $0xe8] sm:$0xff] %v3216
      %3281 = vst [vmem:[#allocation5 + $0xf0] sm:$0xff] %v3217
      %3282 = vst [vmem:[#allocation5 + $0xf8] sm:$0xff] %v3218
      %3283 = vst [vmem:[#allocation5 + $0x100] sm:$0xff] %v3219
      %3284 = vst [vmem:[#allocation5 + $0x108] sm:$0xff] %v3220
      %3285 = vst [vmem:[#allocation5 + $0x110] sm:$0xff] %v3221
      %3286 = vst [vmem:[#allocation5 + $0x118] sm:$0xff] %v3222
      %3287 = vst [vmem:[#allocation5 + $0x120] sm:$0xff] %v3223
      %3288 = vst [vmem:[#allocation5 + $0x128] sm:$0xff] %v3224
      %3289 = vst [vmem:[#allocation5 + $0x130] sm:$0xff] %v3225
      %3290 = vst [vmem:[#allocation5 + $0x138] sm:$0xff] %v3226
      %3291 = vst [vmem:[#allocation5 + $0x140] sm:$0xff] %v3227
      %3292 = vst [vmem:[#allocation5 + $0x148] sm:$0xff] %v3228
      %3293 = vst [vmem:[#allocation5 + $0x150] sm:$0xff] %v3229
      %3294 = vst [vmem:[#allocation5 + $0x158] sm:$0xff] %v3230
      %3295 = vst [vmem:[#allocation5 + $0x160] sm:$0xff] %v3231
      %3296 = vst [vmem:[#allocation5 + $0x168] sm:$0xff] %v3232
      %3297 = vst [vmem:[#allocation5 + $0x170] sm:$0xff] %v3233
      %3298 = vst [vmem:[#allocation5 + $0x178] sm:$0xff] %v3234
      %3299 = vst [vmem:[#allocation5 + $0x180] sm:$0xff] %v3235
      %3300 = vst [vmem:[#allocation5 + $0x188] sm:$0xff] %v3236
      %3301 = vst [vmem:[#allocation5 + $0x190] sm:$0xff] %v3237
      %3302 = vst [vmem:[#allocation5 + $0x198] sm:$0xff] %v3238
      %3303 = vst [vmem:[#allocation5 + $0x1a0] sm:$0xff] %v3239
      %3304 = vst [vmem:[#allocation5 + $0x1a8] sm:$0xff] %v3240
      %3305 = vst [vmem:[#allocation5 + $0x1b0] sm:$0xff] %v3241
      %3306 = vst [vmem:[#allocation5 + $0x1b8] sm:$0xff] %v3242
      %3307 = vst [vmem:[#allocation5 + $0x1c0] sm:$0xff] %v3243
      %3308 = vst [vmem:[#allocation5 + $0x1c8] sm:$0xff] %v3244
      %3309 = vst [vmem:[#allocation5 + $0x1d0] sm:$0xff] %v3245
      %3310 = vst [vmem:[#allocation5 + $0x1d8] sm:$0xff] %v3246
      %3311 = vst [vmem:[#allocation5 + $0x1e0] sm:$0xff] %v3247
      %3312 = vst [vmem:[#allocation5 + $0x1e8] sm:$0xff] %v3248
      %3313 = vst [vmem:[#allocation5 + $0x1f0] sm:$0xff] %v3249
      %3314 = vst [vmem:[#allocation5 + $0x1f8] sm:$0xff] %v3250
      %v3315 = vld [vmem:[#allocation2] sm:$0xff]
      %v3316 = vld [vmem:[#allocation2 + $0x8] sm:$0xff]
      %v3317 = vld [vmem:[#allocation2 + $0x10] sm:$0xff]
      %v3318 = vld [vmem:[#allocation2 + $0x18] sm:$0xff]
      %v3319 = vld [vmem:[#allocation2 + $0x20] sm:$0xff]
      %v3320 = vld [vmem:[#allocation2 + $0x28] sm:$0xff]
      %v3321 = vld [vmem:[#allocation2 + $0x30] sm:$0xff]
      %v3322 = vld [vmem:[#allocation2 + $0x38] sm:$0xff]
      %v3323 = vpack.c.bf16 %v3316, %v3315
      %v3324 = vpack.c.bf16 %v3318, %v3317
      %v3325 = vpack.c.bf16 %v3320, %v3319
      %v3326 = vpack.c.bf16 %v3322, %v3321
      %v3327 = vld [vmem:[%s5] sm:$0xff]
      %v3328 = vld [vmem:[%s5 + $0x8] sm:$0xff]
      %v3329 = vld [vmem:[%s5 + $0x10] sm:$0xff]
      %v3330 = vld [vmem:[%s5 + $0x18] sm:$0xff]
      %v3331 = vld [vmem:[%s5 + $0x20] sm:$0xff]
      %v3332 = vld [vmem:[%s5 + $0x28] sm:$0xff]
      %v3333 = vld [vmem:[%s5 + $0x30] sm:$0xff]
      %v3334 = vld [vmem:[%s5 + $0x38] sm:$0xff]
      %v3335 = vld [vmem:[%s5 + $0x40] sm:$0xff]
      %v3336 = vld [vmem:[%s5 + $0x48] sm:$0xff]
      %v3337 = vld [vmem:[%s5 + $0x50] sm:$0xff]
      %v3338 = vld [vmem:[%s5 + $0x58] sm:$0xff]
      %v3339 = vld [vmem:[%s5 + $0x60] sm:$0xff]
      %v3340 = vld [vmem:[%s5 + $0x68] sm:$0xff]
      %v3341 = vld [vmem:[%s5 + $0x70] sm:$0xff]
      %v3342 = vld [vmem:[%s5 + $0x78] sm:$0xff]
      %v3343 = vld [vmem:[%s6] sm:$0x3]
      %v3345 = vperm.slane %v3343, 0
      %v3346 = vperm.slane %v3343, 1
      %v3365 = vunpack.c.l.b16 %v3327
      %v3366 = vunpack.c.h.b16 %v3327
      %v3367 = vunpack.c.l.b16 %v3328
      %v3368 = vunpack.c.h.b16 %v3328
      %v3369 = vunpack.c.l.b16 %v3329
      %v3370 = vunpack.c.h.b16 %v3329
      %v3371 = vunpack.c.l.b16 %v3330
      %v3372 = vunpack.c.h.b16 %v3330
      %v3373 = vunpack.c.l.b16 %v3331
      %v3374 = vunpack.c.h.b16 %v3331
      %v3375 = vunpack.c.l.b16 %v3332
      %v3376 = vunpack.c.h.b16 %v3332
      %v3377 = vunpack.c.l.b16 %v3333
      %v3378 = vunpack.c.h.b16 %v3333
      %v3379 = vunpack.c.l.b16 %v3334
      %v3380 = vunpack.c.h.b16 %v3334
      %v3381 = vunpack.c.l.b16 %v3335
      %v3382 = vunpack.c.h.b16 %v3335
      %v3383 = vunpack.c.l.b16 %v3336
      %v3384 = vunpack.c.h.b16 %v3336
      %v3385 = vunpack.c.l.b16 %v3337
      %v3386 = vunpack.c.h.b16 %v3337
      %v3387 = vunpack.c.l.b16 %v3338
      %v3388 = vunpack.c.h.b16 %v3338
      %v3389 = vunpack.c.l.b16 %v3339
      %v3390 = vunpack.c.h.b16 %v3339
      %v3391 = vunpack.c.l.b16 %v3340
      %v3392 = vunpack.c.h.b16 %v3340
      %v3393 = vunpack.c.l.b16 %v3341
      %v3394 = vunpack.c.h.b16 %v3341
      %v3395 = vunpack.c.l.b16 %v3342
      %v3396 = vunpack.c.h.b16 %v3342
      %v3397 = vpack.c.b16 %v3367, %v3365
      %v3398 = vpack.c.b16 %v3368, %v3366
      %v3399 = vpack.c.b16 %v3371, %v3369
      %v3400 = vpack.c.b16 %v3372, %v3370
      %v3401 = vpack.c.b16 %v3375, %v3373
      %v3402 = vpack.c.b16 %v3376, %v3374
      %v3403 = vpack.c.b16 %v3379, %v3377
      %v3404 = vpack.c.b16 %v3380, %v3378
      %v3405 = vpack.c.b16 %v3383, %v3381
      %v3406 = vpack.c.b16 %v3384, %v3382
      %v3407 = vpack.c.b16 %v3387, %v3385
      %v3408 = vpack.c.b16 %v3388, %v3386
      %v3409 = vpack.c.b16 %v3391, %v3389
      %v3410 = vpack.c.b16 %v3392, %v3390
      %v3411 = vpack.c.b16 %v3395, %v3393
      %v3412 = vpack.c.b16 %v3396, %v3394
      %3429 = vmatpush.bf16.msra.mxu0 %v3411
      %3430 = vmatpush.bf16.msra.mxu0 %v3409
      %3431 = vmatpush.bf16.msra.mxu0 %v3407
      %3432 = vmatpush.bf16.msra.mxu0 %v3405
      %3433 = vmatpush.bf16.msra.mxu0 %v3403
      %3434 = vmatpush.bf16.msra.mxu0 %v3401
      %3435 = vmatpush.bf16.msra.mxu0 %v3399
      %3436 = vmatpush.bf16.msra.mxu0 %v3397
      %3437 = vmatmul.bf16.gmra.mxu0 %v3323
      %v3438 = vpop.f32.mrf.mxu0
      %v3439 = vadd.f32 %v3345, %v3438
      %v3440 = vpop.f32.mrf.mxu0
      %v3441 = vadd.f32 %v3345, %v3440
      %3442 = vmatmul.bf16.gmra.mxu0 %v3324
      %v3443 = vpop.f32.mrf.mxu0
      %v3444 = vadd.f32 %v3345, %v3443
      %v3445 = vpop.f32.mrf.mxu0
      %v3446 = vadd.f32 %v3345, %v3445
      %3447 = vmatmul.bf16.gmra.mxu0 %v3325
      %v3448 = vpop.f32.mrf.mxu0
      %v3449 = vadd.f32 %v3345, %v3448
      %v3450 = vpop.f32.mrf.mxu0
      %v3451 = vadd.f32 %v3345, %v3450
      %3452 = vmatmul.bf16.gmra.mxu0 %v3326
      %v3453 = vpop.f32.mrf.mxu0
      %v3454 = vadd.f32 %v3345, %v3453
      %v3455 = vpop.f32.mrf.mxu0
      %v3456 = vadd.f32 %v3345, %v3455
      %3457 = vdwg.mxu0
      %3458 = vmatpush.bf16.msra.mxu0 %v3412
      %3459 = vmatpush.bf16.msra.mxu0 %v3410
      %3460 = vmatpush.bf16.msra.mxu0 %v3408
      %3461 = vmatpush.bf16.msra.mxu0 %v3406
      %3462 = vmatpush.bf16.msra.mxu0 %v3404
      %3463 = vmatpush.bf16.msra.mxu0 %v3402
      %3464 = vmatpush.bf16.msra.mxu0 %v3400
      %3465 = vmatpush.bf16.msra.mxu0 %v3398
      %3466 = vmatmul.bf16.gmra.mxu0 %v3323
      %v3467 = vpop.f32.mrf.mxu0
      %v3468 = vadd.f32 %v3346, %v3467
      %v3469 = vpop.f32.mrf.mxu0
      %v3470 = vadd.f32 %v3346, %v3469
      %3471 = vmatmul.bf16.gmra.mxu0 %v3324
      %v3472 = vpop.f32.mrf.mxu0
      %v3473 = vadd.f32 %v3346, %v3472
      %v3474 = vpop.f32.mrf.mxu0
      %v3475 = vadd.f32 %v3346, %v3474
      %3476 = vmatmul.bf16.gmra.mxu0 %v3325
      %v3477 = vpop.f32.mrf.mxu0
      %v3478 = vadd.f32 %v3346, %v3477
      %v3479 = vpop.f32.mrf.mxu0
      %v3480 = vadd.f32 %v3346, %v3479
      %3481 = vmatmul.bf16.gmra.mxu0 %v3326
      %v3482 = vpop.f32.mrf.mxu0
      %v3483 = vadd.f32 %v3346, %v3482
      %v3484 = vpop.f32.mrf.mxu0
      %v3485 = vadd.f32 %v3346, %v3484
      %3486 = vdwg.mxu0
      %v3487 = vmax.f32 %v3439, 0.0
      %v3488 = vmax.f32 %v3441, 0.0
      %v3489 = vmax.f32 %v3444, 0.0
      %v3490 = vmax.f32 %v3446, 0.0
      %v3491 = vmax.f32 %v3449, 0.0
      %v3492 = vmax.f32 %v3451, 0.0
      %v3493 = vmax.f32 %v3454, 0.0
      %v3494 = vmax.f32 %v3456, 0.0
      %v3495 = vand.u32 2147483647, %v3439
      %v3496 = vand.u32 2147483647, %v3441
      %v3497 = vand.u32 2147483647, %v3444
      %v3498 = vand.u32 2147483647, %v3446
      %v3499 = vand.u32 2147483647, %v3449
      %v3500 = vand.u32 2147483647, %v3451
      %v3501 = vand.u32 2147483647, %v3454
      %v3502 = vand.u32 2147483647, %v3456
      %v3503 = vsub.f32 0.0, %v3495
      %v3504 = vsub.f32 0.0, %v3496
      %v3505 = vsub.f32 0.0, %v3497
      %v3506 = vsub.f32 0.0, %v3498
      %v3507 = vsub.f32 0.0, %v3499
      %v3508 = vsub.f32 0.0, %v3500
      %v3509 = vsub.f32 0.0, %v3501
      %v3510 = vsub.f32 0.0, %v3502
      %v3511 = vmul.f32 %v3503, 1.442695
      %v3512 = vpow.pop %v3511
      %v3513 = vmul.f32 %v3504, 1.442695
      %v3514 = vpow.pop %v3513
      %v3515 = vmul.f32 %v3505, 1.442695
      %v3516 = vpow.pop %v3515
      %v3517 = vmul.f32 %v3506, 1.442695
      %v3518 = vpow.pop %v3517
      %v3519 = vmul.f32 %v3507, 1.442695
      %v3520 = vpow.pop %v3519
      %v3521 = vmul.f32 %v3508, 1.442695
      %v3522 = vpow.pop %v3521
      %v3523 = vmul.f32 %v3509, 1.442695
      %v3524 = vpow.pop %v3523
      %v3525 = vmul.f32 %v3510, 1.442695
      %v3526 = vpow.pop %v3525
      %v3527 = vadd.f32 %v3512, 1.0
      %v3528 = vadd.f32 %v3514, 1.0
      %v3529 = vadd.f32 %v3516, 1.0
      %v3530 = vadd.f32 %v3518, 1.0
      %v3531 = vadd.f32 %v3520, 1.0
      %v3532 = vadd.f32 %v3522, 1.0
      %v3533 = vadd.f32 %v3524, 1.0
      %v3534 = vadd.f32 %v3526, 1.0
      %v3535 = vlog2.pop %v3527
      %v3536 = vmul.f32 %v3535, 0.6931472
      %v3537 = vlog2.pop %v3528
      %v3538 = vmul.f32 %v3537, 0.6931472
      %v3539 = vlog2.pop %v3529
      %v3540 = vmul.f32 %v3539, 0.6931472
      %v3541 = vlog2.pop %v3530
      %v3542 = vmul.f32 %v3541, 0.6931472
      %v3543 = vlog2.pop %v3531
      %v3544 = vmul.f32 %v3543, 0.6931472
      %v3545 = vlog2.pop %v3532
      %v3546 = vmul.f32 %v3545, 0.6931472
      %v3547 = vlog2.pop %v3533
      %v3548 = vmul.f32 %v3547, 0.6931472
      %v3549 = vlog2.pop %v3534
      %v3550 = vmul.f32 %v3549, 0.6931472
      %v3551 = vadd.f32 %v3487, %v3536
      %v3552 = vadd.f32 %v3488, %v3538
      %v3553 = vadd.f32 %v3489, %v3540
      %v3554 = vadd.f32 %v3490, %v3542
      %v3555 = vadd.f32 %v3491, %v3544
      %v3556 = vadd.f32 %v3492, %v3546
      %v3557 = vadd.f32 %v3493, %v3548
      %v3558 = vadd.f32 %v3494, %v3550
      %v3559 = vmul.f32 %v3551, %v3315
      %v3560 = vmul.f32 %v3552, %v3316
      %v3561 = vmul.f32 %v3553, %v3317
      %v3562 = vmul.f32 %v3554, %v3318
      %v3563 = vmul.f32 %v3555, %v3319
      %v3564 = vmul.f32 %v3556, %v3320
      %v3565 = vmul.f32 %v3557, %v3321
      %v3566 = vmul.f32 %v3558, %v3322
      %v3575 = vrot.slane %v3551, 1
      %v3576 = vrot.slane %v3551, 2
      %v3577 = vrot.slane %v3551, 3
      %v3578 = vrot.slane %v3551, 4
      %v3579 = vrot.slane %v3551, 5
      %v3580 = vrot.slane %v3551, 6
      %v3581 = vrot.slane %v3551, 7
      %v3582 = vrot.slane %v3552, 1
      %v3583 = vrot.slane %v3552, 2
      %v3584 = vrot.slane %v3552, 3
      %v3585 = vrot.slane %v3552, 4
      %v3586 = vrot.slane %v3552, 5
      %v3587 = vrot.slane %v3552, 6
      %v3588 = vrot.slane %v3552, 7
      %v3589 = vrot.slane %v3553, 1
      %v3590 = vrot.slane %v3553, 2
      %v3591 = vrot.slane %v3553, 3
      %v3592 = vrot.slane %v3553, 4
      %v3593 = vrot.slane %v3553, 5
      %v3594 = vrot.slane %v3553, 6
      %v3595 = vrot.slane %v3553, 7
      %v3596 = vrot.slane %v3554, 1
      %v3597 = vrot.slane %v3554, 2
      %v3598 = vrot.slane %v3554, 3
      %v3599 = vrot.slane %v3554, 4
      %v3600 = vrot.slane %v3554, 5
      %v3601 = vrot.slane %v3554, 6
      %v3602 = vrot.slane %v3554, 7
      %v3603 = vrot.slane %v3555, 1
      %v3604 = vrot.slane %v3555, 2
      %v3605 = vrot.slane %v3555, 3
      %v3606 = vrot.slane %v3555, 4
      %v3607 = vrot.slane %v3555, 5
      %v3608 = vrot.slane %v3555, 6
      %v3609 = vrot.slane %v3555, 7
      %v3610 = vrot.slane %v3556, 1
      %v3611 = vrot.slane %v3556, 2
      %v3612 = vrot.slane %v3556, 3
      %v3613 = vrot.slane %v3556, 4
      %v3614 = vrot.slane %v3556, 5
      %v3615 = vrot.slane %v3556, 6
      %v3616 = vrot.slane %v3556, 7
      %v3617 = vrot.slane %v3557, 1
      %v3618 = vrot.slane %v3557, 2
      %v3619 = vrot.slane %v3557, 3
      %v3620 = vrot.slane %v3557, 4
      %v3621 = vrot.slane %v3557, 5
      %v3622 = vrot.slane %v3557, 6
      %v3623 = vrot.slane %v3557, 7
      %v3624 = vrot.slane %v3558, 1
      %v3625 = vrot.slane %v3558, 2
      %v3626 = vrot.slane %v3558, 3
      %v3627 = vrot.slane %v3558, 4
      %v3628 = vrot.slane %v3558, 5
      %v3629 = vrot.slane %v3558, 6
      %v3630 = vrot.slane %v3558, 7
      %v3631 = vld [vmem:[%s7] sm:$0xff]
      %v3632 = vperm.slane %v3551, 0
      %v3633 = vperm.slane %v3575, 0
      %v3634 = vperm.slane %v3576, 0
      %v3635 = vperm.slane %v3577, 0
      %v3636 = vperm.slane %v3578, 0
      %v3637 = vperm.slane %v3579, 0
      %v3638 = vperm.slane %v3580, 0
      %v3639 = vperm.slane %v3581, 0
      %v3640 = vperm.slane %v3552, 0
      %v3641 = vperm.slane %v3582, 0
      %v3642 = vperm.slane %v3583, 0
      %v3643 = vperm.slane %v3584, 0
      %v3644 = vperm.slane %v3585, 0
      %v3645 = vperm.slane %v3586, 0
      %v3646 = vperm.slane %v3587, 0
      %v3647 = vperm.slane %v3588, 0
      %v3648 = vperm.slane %v3553, 0
      %v3649 = vperm.slane %v3589, 0
      %v3650 = vperm.slane %v3590, 0
      %v3651 = vperm.slane %v3591, 0
      %v3652 = vperm.slane %v3592, 0
      %v3653 = vperm.slane %v3593, 0
      %v3654 = vperm.slane %v3594, 0
      %v3655 = vperm.slane %v3595, 0
      %v3656 = vperm.slane %v3554, 0
      %v3657 = vperm.slane %v3596, 0
      %v3658 = vperm.slane %v3597, 0
      %v3659 = vperm.slane %v3598, 0
      %v3660 = vperm.slane %v3599, 0
      %v3661 = vperm.slane %v3600, 0
      %v3662 = vperm.slane %v3601, 0
      %v3663 = vperm.slane %v3602, 0
      %v3664 = vperm.slane %v3555, 0
      %v3665 = vperm.slane %v3603, 0
      %v3666 = vperm.slane %v3604, 0
      %v3667 = vperm.slane %v3605, 0
      %v3668 = vperm.slane %v3606, 0
      %v3669 = vperm.slane %v3607, 0
      %v3670 = vperm.slane %v3608, 0
      %v3671 = vperm.slane %v3609, 0
      %v3672 = vperm.slane %v3556, 0
      %v3673 = vperm.slane %v3610, 0
      %v3674 = vperm.slane %v3611, 0
      %v3675 = vperm.slane %v3612, 0
      %v3676 = vperm.slane %v3613, 0
      %v3677 = vperm.slane %v3614, 0
      %v3678 = vperm.slane %v3615, 0
      %v3679 = vperm.slane %v3616, 0
      %v3680 = vperm.slane %v3557, 0
      %v3681 = vperm.slane %v3617, 0
      %v3682 = vperm.slane %v3618, 0
      %v3683 = vperm.slane %v3619, 0
      %v3684 = vperm.slane %v3620, 0
      %v3685 = vperm.slane %v3621, 0
      %v3686 = vperm.slane %v3622, 0
      %v3687 = vperm.slane %v3623, 0
      %v3688 = vperm.slane %v3558, 0
      %v3689 = vperm.slane %v3624, 0
      %v3690 = vperm.slane %v3625, 0
      %v3691 = vperm.slane %v3626, 0
      %v3692 = vperm.slane %v3627, 0
      %v3693 = vperm.slane %v3628, 0
      %v3694 = vperm.slane %v3629, 0
      %v3695 = vperm.slane %v3630, 0
      %v3760 = vmul.f32 %v3632, %v3631
      %v3761 = vmul.f32 %v3633, %v3631
      %v3762 = vmul.f32 %v3634, %v3631
      %v3763 = vmul.f32 %v3635, %v3631
      %v3764 = vmul.f32 %v3636, %v3631
      %v3765 = vmul.f32 %v3637, %v3631
      %v3766 = vmul.f32 %v3638, %v3631
      %v3767 = vmul.f32 %v3639, %v3631
      %v3768 = vmul.f32 %v3640, %v3631
      %v3769 = vmul.f32 %v3641, %v3631
      %v3770 = vmul.f32 %v3642, %v3631
      %v3771 = vmul.f32 %v3643, %v3631
      %v3772 = vmul.f32 %v3644, %v3631
      %v3773 = vmul.f32 %v3645, %v3631
      %v3774 = vmul.f32 %v3646, %v3631
      %v3775 = vmul.f32 %v3647, %v3631
      %v3776 = vmul.f32 %v3648, %v3631
      %v3777 = vmul.f32 %v3649, %v3631
      %v3778 = vmul.f32 %v3650, %v3631
      %v3779 = vmul.f32 %v3651, %v3631
      %v3780 = vmul.f32 %v3652, %v3631
      %v3781 = vmul.f32 %v3653, %v3631
      %v3782 = vmul.f32 %v3654, %v3631
      %v3783 = vmul.f32 %v3655, %v3631
      %v3784 = vmul.f32 %v3656, %v3631
      %v3785 = vmul.f32 %v3657, %v3631
      %v3786 = vmul.f32 %v3658, %v3631
      %v3787 = vmul.f32 %v3659, %v3631
      %v3788 = vmul.f32 %v3660, %v3631
      %v3789 = vmul.f32 %v3661, %v3631
      %v3790 = vmul.f32 %v3662, %v3631
      %v3791 = vmul.f32 %v3663, %v3631
      %v3792 = vmul.f32 %v3664, %v3631
      %v3793 = vmul.f32 %v3665, %v3631
      %v3794 = vmul.f32 %v3666, %v3631
      %v3795 = vmul.f32 %v3667, %v3631
      %v3796 = vmul.f32 %v3668, %v3631
      %v3797 = vmul.f32 %v3669, %v3631
      %v3798 = vmul.f32 %v3670, %v3631
      %v3799 = vmul.f32 %v3671, %v3631
      %v3800 = vmul.f32 %v3672, %v3631
      %v3801 = vmul.f32 %v3673, %v3631
      %v3802 = vmul.f32 %v3674, %v3631
      %v3803 = vmul.f32 %v3675, %v3631
      %v3804 = vmul.f32 %v3676, %v3631
      %v3805 = vmul.f32 %v3677, %v3631
      %v3806 = vmul.f32 %v3678, %v3631
      %v3807 = vmul.f32 %v3679, %v3631
      %v3808 = vmul.f32 %v3680, %v3631
      %v3809 = vmul.f32 %v3681, %v3631
      %v3810 = vmul.f32 %v3682, %v3631
      %v3811 = vmul.f32 %v3683, %v3631
      %v3812 = vmul.f32 %v3684, %v3631
      %v3813 = vmul.f32 %v3685, %v3631
      %v3814 = vmul.f32 %v3686, %v3631
      %v3815 = vmul.f32 %v3687, %v3631
      %v3816 = vmul.f32 %v3688, %v3631
      %v3817 = vmul.f32 %v3689, %v3631
      %v3818 = vmul.f32 %v3690, %v3631
      %v3819 = vmul.f32 %v3691, %v3631
      %v3820 = vmul.f32 %v3692, %v3631
      %v3821 = vmul.f32 %v3693, %v3631
      %v3822 = vmul.f32 %v3694, %v3631
      %v3823 = vmul.f32 %v3695, %v3631
      %v3824 = vmul.f32 %v3760, 1.442695
      %v3825 = vpow.pop %v3824
      %v3826 = vmul.f32 %v3761, 1.442695
      %v3827 = vpow.pop %v3826
      %v3828 = vmul.f32 %v3762, 1.442695
      %v3829 = vpow.pop %v3828
      %v3830 = vmul.f32 %v3763, 1.442695
      %v3831 = vpow.pop %v3830
      %v3832 = vmul.f32 %v3764, 1.442695
      %v3833 = vpow.pop %v3832
      %v3834 = vmul.f32 %v3765, 1.442695
      %v3835 = vpow.pop %v3834
      %v3836 = vmul.f32 %v3766, 1.442695
      %v3837 = vpow.pop %v3836
      %v3838 = vmul.f32 %v3767, 1.442695
      %v3839 = vpow.pop %v3838
      %v3840 = vmul.f32 %v3768, 1.442695
      %v3841 = vpow.pop %v3840
      %v3842 = vmul.f32 %v3769, 1.442695
      %v3843 = vpow.pop %v3842
      %v3844 = vmul.f32 %v3770, 1.442695
      %v3845 = vpow.pop %v3844
      %v3846 = vmul.f32 %v3771, 1.442695
      %v3847 = vpow.pop %v3846
      %v3848 = vmul.f32 %v3772, 1.442695
      %v3849 = vpow.pop %v3848
      %v3850 = vmul.f32 %v3773, 1.442695
      %v3851 = vpow.pop %v3850
      %v3852 = vmul.f32 %v3774, 1.442695
      %v3853 = vpow.pop %v3852
      %v3854 = vmul.f32 %v3775, 1.442695
      %v3855 = vpow.pop %v3854
      %v3856 = vmul.f32 %v3776, 1.442695
      %v3857 = vpow.pop %v3856
      %v3858 = vmul.f32 %v3777, 1.442695
      %v3859 = vpow.pop %v3858
      %v3860 = vmul.f32 %v3778, 1.442695
      %v3861 = vpow.pop %v3860
      %v3862 = vmul.f32 %v3779, 1.442695
      %v3863 = vpow.pop %v3862
      %v3864 = vmul.f32 %v3780, 1.442695
      %v3865 = vpow.pop %v3864
      %v3866 = vmul.f32 %v3781, 1.442695
      %v3867 = vpow.pop %v3866
      %v3868 = vmul.f32 %v3782, 1.442695
      %v3869 = vpow.pop %v3868
      %v3870 = vmul.f32 %v3783, 1.442695
      %v3871 = vpow.pop %v3870
      %v3872 = vmul.f32 %v3784, 1.442695
      %v3873 = vpow.pop %v3872
      %v3874 = vmul.f32 %v3785, 1.442695
      %v3875 = vpow.pop %v3874
      %v3876 = vmul.f32 %v3786, 1.442695
      %v3877 = vpow.pop %v3876
      %v3878 = vmul.f32 %v3787, 1.442695
      %v3879 = vpow.pop %v3878
      %v3880 = vmul.f32 %v3788, 1.442695
      %v3881 = vpow.pop %v3880
      %v3882 = vmul.f32 %v3789, 1.442695
      %v3883 = vpow.pop %v3882
      %v3884 = vmul.f32 %v3790, 1.442695
      %v3885 = vpow.pop %v3884
      %v3886 = vmul.f32 %v3791, 1.442695
      %v3887 = vpow.pop %v3886
      %v3888 = vmul.f32 %v3792, 1.442695
      %v3889 = vpow.pop %v3888
      %v3890 = vmul.f32 %v3793, 1.442695
      %v3891 = vpow.pop %v3890
      %v3892 = vmul.f32 %v3794, 1.442695
      %v3893 = vpow.pop %v3892
      %v3894 = vmul.f32 %v3795, 1.442695
      %v3895 = vpow.pop %v3894
      %v3896 = vmul.f32 %v3796, 1.442695
      %v3897 = vpow.pop %v3896
      %v3898 = vmul.f32 %v3797, 1.442695
      %v3899 = vpow.pop %v3898
      %v3900 = vmul.f32 %v3798, 1.442695
      %v3901 = vpow.pop %v3900
      %v3902 = vmul.f32 %v3799, 1.442695
      %v3903 = vpow.pop %v3902
      %v3904 = vmul.f32 %v3800, 1.442695
      %v3905 = vpow.pop %v3904
      %v3906 = vmul.f32 %v3801, 1.442695
      %v3907 = vpow.pop %v3906
      %v3908 = vmul.f32 %v3802, 1.442695
      %v3909 = vpow.pop %v3908
      %v3910 = vmul.f32 %v3803, 1.442695
      %v3911 = vpow.pop %v3910
      %v3912 = vmul.f32 %v3804, 1.442695
      %v3913 = vpow.pop %v3912
      %v3914 = vmul.f32 %v3805, 1.442695
      %v3915 = vpow.pop %v3914
      %v3916 = vmul.f32 %v3806, 1.442695
      %v3917 = vpow.pop %v3916
      %v3918 = vmul.f32 %v3807, 1.442695
      %v3919 = vpow.pop %v3918
      %v3920 = vmul.f32 %v3808, 1.442695
      %v3921 = vpow.pop %v3920
      %v3922 = vmul.f32 %v3809, 1.442695
      %v3923 = vpow.pop %v3922
      %v3924 = vmul.f32 %v3810, 1.442695
      %v3925 = vpow.pop %v3924
      %v3926 = vmul.f32 %v3811, 1.442695
      %v3927 = vpow.pop %v3926
      %v3928 = vmul.f32 %v3812, 1.442695
      %v3929 = vpow.pop %v3928
      %v3930 = vmul.f32 %v3813, 1.442695
      %v3931 = vpow.pop %v3930
      %v3932 = vmul.f32 %v3814, 1.442695
      %v3933 = vpow.pop %v3932
      %v3934 = vmul.f32 %v3815, 1.442695
      %v3935 = vpow.pop %v3934
      %v3936 = vmul.f32 %v3816, 1.442695
      %v3937 = vpow.pop %v3936
      %v3938 = vmul.f32 %v3817, 1.442695
      %v3939 = vpow.pop %v3938
      %v3940 = vmul.f32 %v3818, 1.442695
      %v3941 = vpow.pop %v3940
      %v3942 = vmul.f32 %v3819, 1.442695
      %v3943 = vpow.pop %v3942
      %v3944 = vmul.f32 %v3820, 1.442695
      %v3945 = vpow.pop %v3944
      %v3946 = vmul.f32 %v3821, 1.442695
      %v3947 = vpow.pop %v3946
      %v3948 = vmul.f32 %v3822, 1.442695
      %v3949 = vpow.pop %v3948
      %v3950 = vmul.f32 %v3823, 1.442695
      %v3951 = vpow.pop %v3950
      %3952 = vst [vmem:[#allocation6] sm:$0xff] %v3825
      %3953 = vst [vmem:[#allocation6 + $0x8] sm:$0xff] %v3827
      %3954 = vst [vmem:[#allocation6 + $0x10] sm:$0xff] %v3829
      %3955 = vst [vmem:[#allocation6 + $0x18] sm:$0xff] %v3831
      %3956 = vst [vmem:[#allocation6 + $0x20] sm:$0xff] %v3833
      %3957 = vst [vmem:[#allocation6 + $0x28] sm:$0xff] %v3835
      %3958 = vst [vmem:[#allocation6 + $0x30] sm:$0xff] %v3837
      %3959 = vst [vmem:[#allocation6 + $0x38] sm:$0xff] %v3839
      %3960 = vst [vmem:[#allocation6 + $0x40] sm:$0xff] %v3841
      %3961 = vst [vmem:[#allocation6 + $0x48] sm:$0xff] %v3843
      %3962 = vst [vmem:[#allocation6 + $0x50] sm:$0xff] %v3845
      %3963 = vst [vmem:[#allocation6 + $0x58] sm:$0xff] %v3847
      %3964 = vst [vmem:[#allocation6 + $0x60] sm:$0xff] %v3849
      %3965 = vst [vmem:[#allocation6 + $0x68] sm:$0xff] %v3851
      %3966 = vst [vmem:[#allocation6 + $0x70] sm:$0xff] %v3853
      %3967 = vst [vmem:[#allocation6 + $0x78] sm:$0xff] %v3855
      %3968 = vst [vmem:[#allocation6 + $0x80] sm:$0xff] %v3857
      %3969 = vst [vmem:[#allocation6 + $0x88] sm:$0xff] %v3859
      %3970 = vst [vmem:[#allocation6 + $0x90] sm:$0xff] %v3861
      %3971 = vst [vmem:[#allocation6 + $0x98] sm:$0xff] %v3863
      %3972 = vst [vmem:[#allocation6 + $0xa0] sm:$0xff] %v3865
      %3973 = vst [vmem:[#allocation6 + $0xa8] sm:$0xff] %v3867
      %3974 = vst [vmem:[#allocation6 + $0xb0] sm:$0xff] %v3869
      %3975 = vst [vmem:[#allocation6 + $0xb8] sm:$0xff] %v3871
      %3976 = vst [vmem:[#allocation6 + $0xc0] sm:$0xff] %v3873
      %3977 = vst [vmem:[#allocation6 + $0xc8] sm:$0xff] %v3875
      %3978 = vst [vmem:[#allocation6 + $0xd0] sm:$0xff] %v3877
      %3979 = vst [vmem:[#allocation6 + $0xd8] sm:$0xff] %v3879
      %3980 = vst [vmem:[#allocation6 + $0xe0] sm:$0xff] %v3881
      %3981 = vst [vmem:[#allocation6 + $0xe8] sm:$0xff] %v3883
      %3982 = vst [vmem:[#allocation6 + $0xf0] sm:$0xff] %v3885
      %3983 = vst [vmem:[#allocation6 + $0xf8] sm:$0xff] %v3887
      %3984 = vst [vmem:[#allocation6 + $0x100] sm:$0xff] %v3889
      %3985 = vst [vmem:[#allocation6 + $0x108] sm:$0xff] %v3891
      %3986 = vst [vmem:[#allocation6 + $0x110] sm:$0xff] %v3893
      %3987 = vst [vmem:[#allocation6 + $0x118] sm:$0xff] %v3895
      %3988 = vst [vmem:[#allocation6 + $0x120] sm:$0xff] %v3897
      %3989 = vst [vmem:[#allocation6 + $0x128] sm:$0xff] %v3899
      %3990 = vst [vmem:[#allocation6 + $0x130] sm:$0xff] %v3901
      %3991 = vst [vmem:[#allocation6 + $0x138] sm:$0xff] %v3903
      %3992 = vst [vmem:[#allocation6 + $0x140] sm:$0xff] %v3905
      %3993 = vst [vmem:[#allocation6 + $0x148] sm:$0xff] %v3907
      %3994 = vst [vmem:[#allocation6 + $0x150] sm:$0xff] %v3909
      %3995 = vst [vmem:[#allocation6 + $0x158] sm:$0xff] %v3911
      %3996 = vst [vmem:[#allocation6 + $0x160] sm:$0xff] %v3913
      %3997 = vst [vmem:[#allocation6 + $0x168] sm:$0xff] %v3915
      %3998 = vst [vmem:[#allocation6 + $0x170] sm:$0xff] %v3917
      %3999 = vst [vmem:[#allocation6 + $0x178] sm:$0xff] %v3919
      %4000 = vst [vmem:[#allocation6 + $0x180] sm:$0xff] %v3921
      %4001 = vst [vmem:[#allocation6 + $0x188] sm:$0xff] %v3923
      %4002 = vst [vmem:[#allocation6 + $0x190] sm:$0xff] %v3925
      %4003 = vst [vmem:[#allocation6 + $0x198] sm:$0xff] %v3927
      %4004 = vst [vmem:[#allocation6 + $0x1a0] sm:$0xff] %v3929
      %4005 = vst [vmem:[#allocation6 + $0x1a8] sm:$0xff] %v3931
      %4006 = vst [vmem:[#allocation6 + $0x1b0] sm:$0xff] %v3933
      %4007 = vst [vmem:[#allocation6 + $0x1b8] sm:$0xff] %v3935
      %4008 = vst [vmem:[#allocation6 + $0x1c0] sm:$0xff] %v3937
      %4009 = vst [vmem:[#allocation6 + $0x1c8] sm:$0xff] %v3939
      %4010 = vst [vmem:[#allocation6 + $0x1d0] sm:$0xff] %v3941
      %4011 = vst [vmem:[#allocation6 + $0x1d8] sm:$0xff] %v3943
      %4012 = vst [vmem:[#allocation6 + $0x1e0] sm:$0xff] %v3945
      %4013 = vst [vmem:[#allocation6 + $0x1e8] sm:$0xff] %v3947
      %4014 = vst [vmem:[#allocation6 + $0x1f0] sm:$0xff] %v3949
      %4015 = vst [vmem:[#allocation6 + $0x1f8] sm:$0xff] %v3951
      %v4016 = vperm.slane %v3468, 0
      %v4017 = vlaneseq
      %v4018 = vshrl.u32 %v4017, 7
      %4020 = vset.pattern.permute.xlu0 %v4018
      %4021 = vperm.xlu0 %4020, %v4016
      %v4022 = vpop.permute.xlu0 %4021
      %v4023 = vperm.slane %v3468, 1
      %v4024 = vlaneseq
      %v4025 = vshrl.u32 %v4024, 7
      %4027 = vset.pattern.permute.xlu0 %v4025
      %4028 = vperm.xlu0 %4027, %v4023
      %v4029 = vpop.permute.xlu0 %4028
      %v4030 = vperm.slane %v3468, 2
      %v4031 = vlaneseq
      %v4032 = vshrl.u32 %v4031, 7
      %4034 = vset.pattern.permute.xlu0 %v4032
      %4035 = vperm.xlu0 %4034, %v4030
      %v4036 = vpop.permute.xlu0 %4035
      %v4037 = vperm.slane %v3468, 3
      %v4038 = vlaneseq
      %v4039 = vshrl.u32 %v4038, 7
      %4041 = vset.pattern.permute.xlu0 %v4039
      %4042 = vperm.xlu0 %4041, %v4037
      %v4043 = vpop.permute.xlu0 %4042
      %v4044 = vperm.slane %v3468, 4
      %v4045 = vlaneseq
      %v4046 = vshrl.u32 %v4045, 7
      %4048 = vset.pattern.permute.xlu0 %v4046
      %4049 = vperm.xlu0 %4048, %v4044
      %v4050 = vpop.permute.xlu0 %4049
      %v4051 = vperm.slane %v3468, 5
      %v4052 = vlaneseq
      %v4053 = vshrl.u32 %v4052, 7
      %4055 = vset.pattern.permute.xlu0 %v4053
      %4056 = vperm.xlu0 %4055, %v4051
      %v4057 = vpop.permute.xlu0 %4056
      %v4058 = vperm.slane %v3468, 6
      %v4059 = vlaneseq
      %v4060 = vshrl.u32 %v4059, 7
      %4062 = vset.pattern.permute.xlu0 %v4060
      %4063 = vperm.xlu0 %4062, %v4058
      %v4064 = vpop.permute.xlu0 %4063
      %v4065 = vperm.slane %v3468, 7
      %v4066 = vlaneseq
      %v4067 = vshrl.u32 %v4066, 7
      %4069 = vset.pattern.permute.xlu0 %v4067
      %4070 = vperm.xlu0 %4069, %v4065
      %v4071 = vpop.permute.xlu0 %4070
      %v4072 = vperm.slane %v3470, 0
      %v4073 = vlaneseq
      %v4074 = vshrl.u32 %v4073, 7
      %4076 = vset.pattern.permute.xlu0 %v4074
      %4077 = vperm.xlu0 %4076, %v4072
      %v4078 = vpop.permute.xlu0 %4077
      %v4079 = vperm.slane %v3470, 1
      %v4080 = vlaneseq
      %v4081 = vshrl.u32 %v4080, 7
      %4083 = vset.pattern.permute.xlu0 %v4081
      %4084 = vperm.xlu0 %4083, %v4079
      %v4085 = vpop.permute.xlu0 %4084
      %v4086 = vperm.slane %v3470, 2
      %v4087 = vlaneseq
      %v4088 = vshrl.u32 %v4087, 7
      %4090 = vset.pattern.permute.xlu0 %v4088
      %4091 = vperm.xlu0 %4090, %v4086
      %v4092 = vpop.permute.xlu0 %4091
      %v4093 = vperm.slane %v3470, 3
      %v4094 = vlaneseq
      %v4095 = vshrl.u32 %v4094, 7
      %4097 = vset.pattern.permute.xlu0 %v4095
      %4098 = vperm.xlu0 %4097, %v4093
      %v4099 = vpop.permute.xlu0 %4098
      %v4100 = vperm.slane %v3470, 4
      %v4101 = vlaneseq
      %v4102 = vshrl.u32 %v4101, 7
      %4104 = vset.pattern.permute.xlu0 %v4102
      %4105 = vperm.xlu0 %4104, %v4100
      %v4106 = vpop.permute.xlu0 %4105
      %v4107 = vperm.slane %v3470, 5
      %v4108 = vlaneseq
      %v4109 = vshrl.u32 %v4108, 7
      %4111 = vset.pattern.permute.xlu0 %v4109
      %4112 = vperm.xlu0 %4111, %v4107
      %v4113 = vpop.permute.xlu0 %4112
      %v4114 = vperm.slane %v3470, 6
      %v4115 = vlaneseq
      %v4116 = vshrl.u32 %v4115, 7
      %4118 = vset.pattern.permute.xlu0 %v4116
      %4119 = vperm.xlu0 %4118, %v4114
      %v4120 = vpop.permute.xlu0 %4119
      %v4121 = vperm.slane %v3470, 7
      %v4122 = vlaneseq
      %v4123 = vshrl.u32 %v4122, 7
      %4125 = vset.pattern.permute.xlu0 %v4123
      %4126 = vperm.xlu0 %4125, %v4121
      %v4127 = vpop.permute.xlu0 %4126
      %v4128 = vperm.slane %v3473, 0
      %v4129 = vlaneseq
      %v4130 = vshrl.u32 %v4129, 7
      %4132 = vset.pattern.permute.xlu0 %v4130
      %4133 = vperm.xlu0 %4132, %v4128
      %v4134 = vpop.permute.xlu0 %4133
      %v4135 = vperm.slane %v3473, 1
      %v4136 = vlaneseq
      %v4137 = vshrl.u32 %v4136, 7
      %4139 = vset.pattern.permute.xlu0 %v4137
      %4140 = vperm.xlu0 %4139, %v4135
      %v4141 = vpop.permute.xlu0 %4140
      %v4142 = vperm.slane %v3473, 2
      %v4143 = vlaneseq
      %v4144 = vshrl.u32 %v4143, 7
      %4146 = vset.pattern.permute.xlu0 %v4144
      %4147 = vperm.xlu0 %4146, %v4142
      %v4148 = vpop.permute.xlu0 %4147
      %v4149 = vperm.slane %v3473, 3
      %v4150 = vlaneseq
      %v4151 = vshrl.u32 %v4150, 7
      %4153 = vset.pattern.permute.xlu0 %v4151
      %4154 = vperm.xlu0 %4153, %v4149
      %v4155 = vpop.permute.xlu0 %4154
      %v4156 = vperm.slane %v3473, 4
      %v4157 = vlaneseq
      %v4158 = vshrl.u32 %v4157, 7
      %4160 = vset.pattern.permute.xlu0 %v4158
      %4161 = vperm.xlu0 %4160, %v4156
      %v4162 = vpop.permute.xlu0 %4161
      %v4163 = vperm.slane %v3473, 5
      %v4164 = vlaneseq
      %v4165 = vshrl.u32 %v4164, 7
      %4167 = vset.pattern.permute.xlu0 %v4165
      %4168 = vperm.xlu0 %4167, %v4163
      %v4169 = vpop.permute.xlu0 %4168
      %v4170 = vperm.slane %v3473, 6
      %v4171 = vlaneseq
      %v4172 = vshrl.u32 %v4171, 7
      %4174 = vset.pattern.permute.xlu0 %v4172
      %4175 = vperm.xlu0 %4174, %v4170
      %v4176 = vpop.permute.xlu0 %4175
      %v4177 = vperm.slane %v3473, 7
      %v4178 = vlaneseq
      %v4179 = vshrl.u32 %v4178, 7
      %4181 = vset.pattern.permute.xlu0 %v4179
      %4182 = vperm.xlu0 %4181, %v4177
      %v4183 = vpop.permute.xlu0 %4182
      %v4184 = vperm.slane %v3475, 0
      %v4185 = vlaneseq
      %v4186 = vshrl.u32 %v4185, 7
      %4188 = vset.pattern.permute.xlu0 %v4186
      %4189 = vperm.xlu0 %4188, %v4184
      %v4190 = vpop.permute.xlu0 %4189
      %v4191 = vperm.slane %v3475, 1
      %v4192 = vlaneseq
      %v4193 = vshrl.u32 %v4192, 7
      %4195 = vset.pattern.permute.xlu0 %v4193
      %4196 = vperm.xlu0 %4195, %v4191
      %v4197 = vpop.permute.xlu0 %4196
      %v4198 = vperm.slane %v3475, 2
      %v4199 = vlaneseq
      %v4200 = vshrl.u32 %v4199, 7
      %4202 = vset.pattern.permute.xlu0 %v4200
      %4203 = vperm.xlu0 %4202, %v4198
      %v4204 = vpop.permute.xlu0 %4203
      %v4205 = vperm.slane %v3475, 3
      %v4206 = vlaneseq
      %v4207 = vshrl.u32 %v4206, 7
      %4209 = vset.pattern.permute.xlu0 %v4207
      %4210 = vperm.xlu0 %4209, %v4205
      %v4211 = vpop.permute.xlu0 %4210
      %v4212 = vperm.slane %v3475, 4
      %v4213 = vlaneseq
      %v4214 = vshrl.u32 %v4213, 7
      %4216 = vset.pattern.permute.xlu0 %v4214
      %4217 = vperm.xlu0 %4216, %v4212
      %v4218 = vpop.permute.xlu0 %4217
      %v4219 = vperm.slane %v3475, 5
      %v4220 = vlaneseq
      %v4221 = vshrl.u32 %v4220, 7
      %4223 = vset.pattern.permute.xlu0 %v4221
      %4224 = vperm.xlu0 %4223, %v4219
      %v4225 = vpop.permute.xlu0 %4224
      %v4226 = vperm.slane %v3475, 6
      %v4227 = vlaneseq
      %v4228 = vshrl.u32 %v4227, 7
      %4230 = vset.pattern.permute.xlu0 %v4228
      %4231 = vperm.xlu0 %4230, %v4226
      %v4232 = vpop.permute.xlu0 %4231
      %v4233 = vperm.slane %v3475, 7
      %v4234 = vlaneseq
      %v4235 = vshrl.u32 %v4234, 7
      %4237 = vset.pattern.permute.xlu0 %v4235
      %4238 = vperm.xlu0 %4237, %v4233
      %v4239 = vpop.permute.xlu0 %4238
      %v4240 = vperm.slane %v3478, 0
      %v4241 = vlaneseq
      %v4242 = vshrl.u32 %v4241, 7
      %4244 = vset.pattern.permute.xlu0 %v4242
      %4245 = vperm.xlu0 %4244, %v4240
      %v4246 = vpop.permute.xlu0 %4245
      %v4247 = vperm.slane %v3478, 1
      %v4248 = vlaneseq
      %v4249 = vshrl.u32 %v4248, 7
      %4251 = vset.pattern.permute.xlu0 %v4249
      %4252 = vperm.xlu0 %4251, %v4247
      %v4253 = vpop.permute.xlu0 %4252
      %v4254 = vperm.slane %v3478, 2
      %v4255 = vlaneseq
      %v4256 = vshrl.u32 %v4255, 7
      %4258 = vset.pattern.permute.xlu0 %v4256
      %4259 = vperm.xlu0 %4258, %v4254
      %v4260 = vpop.permute.xlu0 %4259
      %v4261 = vperm.slane %v3478, 3
      %v4262 = vlaneseq
      %v4263 = vshrl.u32 %v4262, 7
      %4265 = vset.pattern.permute.xlu0 %v4263
      %4266 = vperm.xlu0 %4265, %v4261
      %v4267 = vpop.permute.xlu0 %4266
      %v4268 = vperm.slane %v3478, 4
      %v4269 = vlaneseq
      %v4270 = vshrl.u32 %v4269, 7
      %4272 = vset.pattern.permute.xlu0 %v4270
      %4273 = vperm.xlu0 %4272, %v4268
      %v4274 = vpop.permute.xlu0 %4273
      %v4275 = vperm.slane %v3478, 5
      %v4276 = vlaneseq
      %v4277 = vshrl.u32 %v4276, 7
      %4279 = vset.pattern.permute.xlu0 %v4277
      %4280 = vperm.xlu0 %4279, %v4275
      %v4281 = vpop.permute.xlu0 %4280
      %v4282 = vperm.slane %v3478, 6
      %v4283 = vlaneseq
      %v4284 = vshrl.u32 %v4283, 7
      %4286 = vset.pattern.permute.xlu0 %v4284
      %4287 = vperm.xlu0 %4286, %v4282
      %v4288 = vpop.permute.xlu0 %4287
      %v4289 = vperm.slane %v3478, 7
      %v4290 = vlaneseq
      %v4291 = vshrl.u32 %v4290, 7
      %4293 = vset.pattern.permute.xlu0 %v4291
      %4294 = vperm.xlu0 %4293, %v4289
      %v4295 = vpop.permute.xlu0 %4294
      %v4296 = vperm.slane %v3480, 0
      %v4297 = vlaneseq
      %v4298 = vshrl.u32 %v4297, 7
      %4300 = vset.pattern.permute.xlu0 %v4298
      %4301 = vperm.xlu0 %4300, %v4296
      %v4302 = vpop.permute.xlu0 %4301
      %v4303 = vperm.slane %v3480, 1
      %v4304 = vlaneseq
      %v4305 = vshrl.u32 %v4304, 7
      %4307 = vset.pattern.permute.xlu0 %v4305
      %4308 = vperm.xlu0 %4307, %v4303
      %v4309 = vpop.permute.xlu0 %4308
      %v4310 = vperm.slane %v3480, 2
      %v4311 = vlaneseq
      %v4312 = vshrl.u32 %v4311, 7
      %4314 = vset.pattern.permute.xlu0 %v4312
      %4315 = vperm.xlu0 %4314, %v4310
      %v4316 = vpop.permute.xlu0 %4315
      %v4317 = vperm.slane %v3480, 3
      %v4318 = vlaneseq
      %v4319 = vshrl.u32 %v4318, 7
      %4321 = vset.pattern.permute.xlu0 %v4319
      %4322 = vperm.xlu0 %4321, %v4317
      %v4323 = vpop.permute.xlu0 %4322
      %v4324 = vperm.slane %v3480, 4
      %v4325 = vlaneseq
      %v4326 = vshrl.u32 %v4325, 7
      %4328 = vset.pattern.permute.xlu0 %v4326
      %4329 = vperm.xlu0 %4328, %v4324
      %v4330 = vpop.permute.xlu0 %4329
      %v4331 = vperm.slane %v3480, 5
      %v4332 = vlaneseq
      %v4333 = vshrl.u32 %v4332, 7
      %4335 = vset.pattern.permute.xlu0 %v4333
      %4336 = vperm.xlu0 %4335, %v4331
      %v4337 = vpop.permute.xlu0 %4336
      %v4338 = vperm.slane %v3480, 6
      %v4339 = vlaneseq
      %v4340 = vshrl.u32 %v4339, 7
      %4342 = vset.pattern.permute.xlu0 %v4340
      %4343 = vperm.xlu0 %4342, %v4338
      %v4344 = vpop.permute.xlu0 %4343
      %v4345 = vperm.slane %v3480, 7
      %v4346 = vlaneseq
      %v4347 = vshrl.u32 %v4346, 7
      %4349 = vset.pattern.permute.xlu0 %v4347
      %4350 = vperm.xlu0 %4349, %v4345
      %v4351 = vpop.permute.xlu0 %4350
      %v4352 = vperm.slane %v3483, 0
      %v4353 = vlaneseq
      %v4354 = vshrl.u32 %v4353, 7
      %4356 = vset.pattern.permute.xlu0 %v4354
      %4357 = vperm.xlu0 %4356, %v4352
      %v4358 = vpop.permute.xlu0 %4357
      %v4359 = vperm.slane %v3483, 1
      %v4360 = vlaneseq
      %v4361 = vshrl.u32 %v4360, 7
      %4363 = vset.pattern.permute.xlu0 %v4361
      %4364 = vperm.xlu0 %4363, %v4359
      %v4365 = vpop.permute.xlu0 %4364
      %v4366 = vperm.slane %v3483, 2
      %v4367 = vlaneseq
      %v4368 = vshrl.u32 %v4367, 7
      %4370 = vset.pattern.permute.xlu0 %v4368
      %4371 = vperm.xlu0 %4370, %v4366
      %v4372 = vpop.permute.xlu0 %4371
      %v4373 = vperm.slane %v3483, 3
      %v4374 = vlaneseq
      %v4375 = vshrl.u32 %v4374, 7
      %4377 = vset.pattern.permute.xlu0 %v4375
      %4378 = vperm.xlu0 %4377, %v4373
      %v4379 = vpop.permute.xlu0 %4378
      %v4380 = vperm.slane %v3483, 4
      %v4381 = vlaneseq
      %v4382 = vshrl.u32 %v4381, 7
      %4384 = vset.pattern.permute.xlu0 %v4382
      %4385 = vperm.xlu0 %4384, %v4380
      %v4386 = vpop.permute.xlu0 %4385
      %v4387 = vperm.slane %v3483, 5
      %v4388 = vlaneseq
      %v4389 = vshrl.u32 %v4388, 7
      %4391 = vset.pattern.permute.xlu0 %v4389
      %4392 = vperm.xlu0 %4391, %v4387
      %v4393 = vpop.permute.xlu0 %4392
      %v4394 = vperm.slane %v3483, 6
      %v4395 = vlaneseq
      %v4396 = vshrl.u32 %v4395, 7
      %4398 = vset.pattern.permute.xlu0 %v4396
      %4399 = vperm.xlu0 %4398, %v4394
      %v4400 = vpop.permute.xlu0 %4399
      %v4401 = vperm.slane %v3483, 7
      %v4402 = vlaneseq
      %v4403 = vshrl.u32 %v4402, 7
      %4405 = vset.pattern.permute.xlu0 %v4403
      %4406 = vperm.xlu0 %4405, %v4401
      %v4407 = vpop.permute.xlu0 %4406
      %v4408 = vperm.slane %v3485, 0
      %v4409 = vlaneseq
      %v4410 = vshrl.u32 %v4409, 7
      %4412 = vset.pattern.permute.xlu0 %v4410
      %4413 = vperm.xlu0 %4412, %v4408
      %v4414 = vpop.permute.xlu0 %4413
      %v4415 = vperm.slane %v3485, 1
      %v4416 = vlaneseq
      %v4417 = vshrl.u32 %v4416, 7
      %4419 = vset.pattern.permute.xlu0 %v4417
      %4420 = vperm.xlu0 %4419, %v4415
      %v4421 = vpop.permute.xlu0 %4420
      %v4422 = vperm.slane %v3485, 2
      %v4423 = vlaneseq
      %v4424 = vshrl.u32 %v4423, 7
      %4426 = vset.pattern.permute.xlu0 %v4424
      %4427 = vperm.xlu0 %4426, %v4422
      %v4428 = vpop.permute.xlu0 %4427
      %v4429 = vperm.slane %v3485, 3
      %v4430 = vlaneseq
      %v4431 = vshrl.u32 %v4430, 7
      %4433 = vset.pattern.permute.xlu0 %v4431
      %4434 = vperm.xlu0 %4433, %v4429
      %v4435 = vpop.permute.xlu0 %4434
      %v4436 = vperm.slane %v3485, 4
      %v4437 = vlaneseq
      %v4438 = vshrl.u32 %v4437, 7
      %4440 = vset.pattern.permute.xlu0 %v4438
      %4441 = vperm.xlu0 %4440, %v4436
      %v4442 = vpop.permute.xlu0 %4441
      %v4443 = vperm.slane %v3485, 5
      %v4444 = vlaneseq
      %v4445 = vshrl.u32 %v4444, 7
      %4447 = vset.pattern.permute.xlu0 %v4445
      %4448 = vperm.xlu0 %4447, %v4443
      %v4449 = vpop.permute.xlu0 %4448
      %v4450 = vperm.slane %v3485, 6
      %v4451 = vlaneseq
      %v4452 = vshrl.u32 %v4451, 7
      %4454 = vset.pattern.permute.xlu0 %v4452
      %4455 = vperm.xlu0 %4454, %v4450
      %v4456 = vpop.permute.xlu0 %4455
      %v4457 = vperm.slane %v3485, 7
      %v4458 = vlaneseq
      %v4459 = vshrl.u32 %v4458, 7
      %4461 = vset.pattern.permute.xlu0 %v4459
      %4462 = vperm.xlu0 %4461, %v4457
      %v4463 = vpop.permute.xlu0 %4462
      %v4472 = vrot.slane %v3559, 1
      %v4473 = vrot.slane %v3559, 2
      %v4474 = vrot.slane %v3559, 3
      %v4475 = vrot.slane %v3559, 4
      %v4476 = vrot.slane %v3559, 5
      %v4477 = vrot.slane %v3559, 6
      %v4478 = vrot.slane %v3559, 7
      %v4479 = vrot.slane %v3560, 1
      %v4480 = vrot.slane %v3560, 2
      %v4481 = vrot.slane %v3560, 3
      %v4482 = vrot.slane %v3560, 4
      %v4483 = vrot.slane %v3560, 5
      %v4484 = vrot.slane %v3560, 6
      %v4485 = vrot.slane %v3560, 7
      %v4486 = vrot.slane %v3561, 1
      %v4487 = vrot.slane %v3561, 2
      %v4488 = vrot.slane %v3561, 3
      %v4489 = vrot.slane %v3561, 4
      %v4490 = vrot.slane %v3561, 5
      %v4491 = vrot.slane %v3561, 6
      %v4492 = vrot.slane %v3561, 7
      %v4493 = vrot.slane %v3562, 1
      %v4494 = vrot.slane %v3562, 2
      %v4495 = vrot.slane %v3562, 3
      %v4496 = vrot.slane %v3562, 4
      %v4497 = vrot.slane %v3562, 5
      %v4498 = vrot.slane %v3562, 6
      %v4499 = vrot.slane %v3562, 7
      %v4500 = vrot.slane %v3563, 1
      %v4501 = vrot.slane %v3563, 2
      %v4502 = vrot.slane %v3563, 3
      %v4503 = vrot.slane %v3563, 4
      %v4504 = vrot.slane %v3563, 5
      %v4505 = vrot.slane %v3563, 6
      %v4506 = vrot.slane %v3563, 7
      %v4507 = vrot.slane %v3564, 1
      %v4508 = vrot.slane %v3564, 2
      %v4509 = vrot.slane %v3564, 3
      %v4510 = vrot.slane %v3564, 4
      %v4511 = vrot.slane %v3564, 5
      %v4512 = vrot.slane %v3564, 6
      %v4513 = vrot.slane %v3564, 7
      %v4514 = vrot.slane %v3565, 1
      %v4515 = vrot.slane %v3565, 2
      %v4516 = vrot.slane %v3565, 3
      %v4517 = vrot.slane %v3565, 4
      %v4518 = vrot.slane %v3565, 5
      %v4519 = vrot.slane %v3565, 6
      %v4520 = vrot.slane %v3565, 7
      %v4521 = vrot.slane %v3566, 1
      %v4522 = vrot.slane %v3566, 2
      %v4523 = vrot.slane %v3566, 3
      %v4524 = vrot.slane %v3566, 4
      %v4525 = vrot.slane %v3566, 5
      %v4526 = vrot.slane %v3566, 6
      %v4527 = vrot.slane %v3566, 7
      %v4528 = vperm.slane %v3559, 0
      %v4529 = vperm.slane %v4472, 0
      %v4530 = vperm.slane %v4473, 0
      %v4531 = vperm.slane %v4474, 0
      %v4532 = vperm.slane %v4475, 0
      %v4533 = vperm.slane %v4476, 0
      %v4534 = vperm.slane %v4477, 0
      %v4535 = vperm.slane %v4478, 0
      %v4536 = vperm.slane %v3560, 0
      %v4537 = vperm.slane %v4479, 0
      %v4538 = vperm.slane %v4480, 0
      %v4539 = vperm.slane %v4481, 0
      %v4540 = vperm.slane %v4482, 0
      %v4541 = vperm.slane %v4483, 0
      %v4542 = vperm.slane %v4484, 0
      %v4543 = vperm.slane %v4485, 0
      %v4544 = vperm.slane %v3561, 0
      %v4545 = vperm.slane %v4486, 0
      %v4546 = vperm.slane %v4487, 0
      %v4547 = vperm.slane %v4488, 0
      %v4548 = vperm.slane %v4489, 0
      %v4549 = vperm.slane %v4490, 0
      %v4550 = vperm.slane %v4491, 0
      %v4551 = vperm.slane %v4492, 0
      %v4552 = vperm.slane %v3562, 0
      %v4553 = vperm.slane %v4493, 0
      %v4554 = vperm.slane %v4494, 0
      %v4555 = vperm.slane %v4495, 0
      %v4556 = vperm.slane %v4496, 0
      %v4557 = vperm.slane %v4497, 0
      %v4558 = vperm.slane %v4498, 0
      %v4559 = vperm.slane %v4499, 0
      %v4560 = vperm.slane %v3563, 0
      %v4561 = vperm.slane %v4500, 0
      %v4562 = vperm.slane %v4501, 0
      %v4563 = vperm.slane %v4502, 0
      %v4564 = vperm.slane %v4503, 0
      %v4565 = vperm.slane %v4504, 0
      %v4566 = vperm.slane %v4505, 0
      %v4567 = vperm.slane %v4506, 0
      %v4568 = vperm.slane %v3564, 0
      %v4569 = vperm.slane %v4507, 0
      %v4570 = vperm.slane %v4508, 0
      %v4571 = vperm.slane %v4509, 0
      %v4572 = vperm.slane %v4510, 0
      %v4573 = vperm.slane %v4511, 0
      %v4574 = vperm.slane %v4512, 0
      %v4575 = vperm.slane %v4513, 0
      %v4576 = vperm.slane %v3565, 0
      %v4577 = vperm.slane %v4514, 0
      %v4578 = vperm.slane %v4515, 0
      %v4579 = vperm.slane %v4516, 0
      %v4580 = vperm.slane %v4517, 0
      %v4581 = vperm.slane %v4518, 0
      %v4582 = vperm.slane %v4519, 0
      %v4583 = vperm.slane %v4520, 0
      %v4584 = vperm.slane %v3566, 0
      %v4585 = vperm.slane %v4521, 0
      %v4586 = vperm.slane %v4522, 0
      %v4587 = vperm.slane %v4523, 0
      %v4588 = vperm.slane %v4524, 0
      %v4589 = vperm.slane %v4525, 0
      %v4590 = vperm.slane %v4526, 0
      %v4591 = vperm.slane %v4527, 0
      %v4656 = vmul.f32 %v4022, %v4528
      %v4657 = vmul.f32 %v4029, %v4529
      %v4658 = vmul.f32 %v4036, %v4530
      %v4659 = vmul.f32 %v4043, %v4531
      %v4660 = vmul.f32 %v4050, %v4532
      %v4661 = vmul.f32 %v4057, %v4533
      %v4662 = vmul.f32 %v4064, %v4534
      %v4663 = vmul.f32 %v4071, %v4535
      %v4664 = vmul.f32 %v4078, %v4536
      %v4665 = vmul.f32 %v4085, %v4537
      %v4666 = vmul.f32 %v4092, %v4538
      %v4667 = vmul.f32 %v4099, %v4539
      %v4668 = vmul.f32 %v4106, %v4540
      %v4669 = vmul.f32 %v4113, %v4541
      %v4670 = vmul.f32 %v4120, %v4542
      %v4671 = vmul.f32 %v4127, %v4543
      %v4672 = vmul.f32 %v4134, %v4544
      %v4673 = vmul.f32 %v4141, %v4545
      %v4674 = vmul.f32 %v4148, %v4546
      %v4675 = vmul.f32 %v4155, %v4547
      %v4676 = vmul.f32 %v4162, %v4548
      %v4677 = vmul.f32 %v4169, %v4549
      %v4678 = vmul.f32 %v4176, %v4550
      %v4679 = vmul.f32 %v4183, %v4551
      %v4680 = vmul.f32 %v4190, %v4552
      %v4681 = vmul.f32 %v4197, %v4553
      %v4682 = vmul.f32 %v4204, %v4554
      %v4683 = vmul.f32 %v4211, %v4555
      %v4684 = vmul.f32 %v4218, %v4556
      %v4685 = vmul.f32 %v4225, %v4557
      %v4686 = vmul.f32 %v4232, %v4558
      %v4687 = vmul.f32 %v4239, %v4559
      %v4688 = vmul.f32 %v4246, %v4560
      %v4689 = vmul.f32 %v4253, %v4561
      %v4690 = vmul.f32 %v4260, %v4562
      %v4691 = vmul.f32 %v4267, %v4563
      %v4692 = vmul.f32 %v4274, %v4564
      %v4693 = vmul.f32 %v4281, %v4565
      %v4694 = vmul.f32 %v4288, %v4566
      %v4695 = vmul.f32 %v4295, %v4567
      %v4696 = vmul.f32 %v4302, %v4568
      %v4697 = vmul.f32 %v4309, %v4569
      %v4698 = vmul.f32 %v4316, %v4570
      %v4699 = vmul.f32 %v4323, %v4571
      %v4700 = vmul.f32 %v4330, %v4572
      %v4701 = vmul.f32 %v4337, %v4573
      %v4702 = vmul.f32 %v4344, %v4574
      %v4703 = vmul.f32 %v4351, %v4575
      %v4704 = vmul.f32 %v4358, %v4576
      %v4705 = vmul.f32 %v4365, %v4577
      %v4706 = vmul.f32 %v4372, %v4578
      %v4707 = vmul.f32 %v4379, %v4579
      %v4708 = vmul.f32 %v4386, %v4580
      %v4709 = vmul.f32 %v4393, %v4581
      %v4710 = vmul.f32 %v4400, %v4582
      %v4711 = vmul.f32 %v4407, %v4583
      %v4712 = vmul.f32 %v4414, %v4584
      %v4713 = vmul.f32 %v4421, %v4585
      %v4714 = vmul.f32 %v4428, %v4586
      %v4715 = vmul.f32 %v4435, %v4587
      %v4716 = vmul.f32 %v4442, %v4588
      %v4717 = vmul.f32 %v4449, %v4589
      %v4718 = vmul.f32 %v4456, %v4590
      %v4719 = vmul.f32 %v4463, %v4591
      %v4720 = vlaneseq
      %v4721 = vshrl.u32 %v4720, 7
      %v4722 = vadd.s32 %v4721, 8
      %4723 = vset.pattern.permute.xlu0 %v4722
      %4724 = vperm.xlu0 %4723, %v4016
      %v4725 = vpop.permute.xlu0 %4724
      %v4726 = vlaneseq
      %v4727 = vshrl.u32 %v4726, 7
      %v4728 = vadd.s32 %v4727, 8
      %4729 = vset.pattern.permute.xlu0 %v4728
      %4730 = vperm.xlu0 %4729, %v4023
      %v4731 = vpop.permute.xlu0 %4730
      %v4732 = vlaneseq
      %v4733 = vshrl.u32 %v4732, 7
      %v4734 = vadd.s32 %v4733, 8
      %4735 = vset.pattern.permute.xlu0 %v4734
      %4736 = vperm.xlu0 %4735, %v4030
      %v4737 = vpop.permute.xlu0 %4736
      %v4738 = vlaneseq
      %v4739 = vshrl.u32 %v4738, 7
      %v4740 = vadd.s32 %v4739, 8
      %4741 = vset.pattern.permute.xlu0 %v4740
      %4742 = vperm.xlu0 %4741, %v4037
      %v4743 = vpop.permute.xlu0 %4742
      %v4744 = vlaneseq
      %v4745 = vshrl.u32 %v4744, 7
      %v4746 = vadd.s32 %v4745, 8
      %4747 = vset.pattern.permute.xlu0 %v4746
      %4748 = vperm.xlu0 %4747, %v4044
      %v4749 = vpop.permute.xlu0 %4748
      %v4750 = vlaneseq
      %v4751 = vshrl.u32 %v4750, 7
      %v4752 = vadd.s32 %v4751, 8
      %4753 = vset.pattern.permute.xlu0 %v4752
      %4754 = vperm.xlu0 %4753, %v4051
      %v4755 = vpop.permute.xlu0 %4754
      %v4756 = vlaneseq
      %v4757 = vshrl.u32 %v4756, 7
      %v4758 = vadd.s32 %v4757, 8
      %4759 = vset.pattern.permute.xlu0 %v4758
      %4760 = vperm.xlu0 %4759, %v4058
      %v4761 = vpop.permute.xlu0 %4760
      %v4762 = vlaneseq
      %v4763 = vshrl.u32 %v4762, 7
      %v4764 = vadd.s32 %v4763, 8
      %4765 = vset.pattern.permute.xlu0 %v4764
      %4766 = vperm.xlu0 %4765, %v4065
      %v4767 = vpop.permute.xlu0 %4766
      %v4768 = vlaneseq
      %v4769 = vshrl.u32 %v4768, 7
      %v4770 = vadd.s32 %v4769, 8
      %4771 = vset.pattern.permute.xlu0 %v4770
      %4772 = vperm.xlu0 %4771, %v4072
      %v4773 = vpop.permute.xlu0 %4772
      %v4774 = vlaneseq
      %v4775 = vshrl.u32 %v4774, 7
      %v4776 = vadd.s32 %v4775, 8
      %4777 = vset.pattern.permute.xlu0 %v4776
      %4778 = vperm.xlu0 %4777, %v4079
      %v4779 = vpop.permute.xlu0 %4778
      %v4780 = vlaneseq
      %v4781 = vshrl.u32 %v4780, 7
      %v4782 = vadd.s32 %v4781, 8
      %4783 = vset.pattern.permute.xlu0 %v4782
      %4784 = vperm.xlu0 %4783, %v4086
      %v4785 = vpop.permute.xlu0 %4784
      %v4786 = vlaneseq
      %v4787 = vshrl.u32 %v4786, 7
      %v4788 = vadd.s32 %v4787, 8
      %4789 = vset.pattern.permute.xlu0 %v4788
      %4790 = vperm.xlu0 %4789, %v4093
      %v4791 = vpop.permute.xlu0 %4790
      %v4792 = vlaneseq
      %v4793 = vshrl.u32 %v4792, 7
      %v4794 = vadd.s32 %v4793, 8
      %4795 = vset.pattern.permute.xlu0 %v4794
      %4796 = vperm.xlu0 %4795, %v4100
      %v4797 = vpop.permute.xlu0 %4796
      %v4798 = vlaneseq
      %v4799 = vshrl.u32 %v4798, 7
      %v4800 = vadd.s32 %v4799, 8
      %4801 = vset.pattern.permute.xlu0 %v4800
      %4802 = vperm.xlu0 %4801, %v4107
      %v4803 = vpop.permute.xlu0 %4802
      %v4804 = vlaneseq
      %v4805 = vshrl.u32 %v4804, 7
      %v4806 = vadd.s32 %v4805, 8
      %4807 = vset.pattern.permute.xlu0 %v4806
      %4808 = vperm.xlu0 %4807, %v4114
      %v4809 = vpop.permute.xlu0 %4808
      %v4810 = vlaneseq
      %v4811 = vshrl.u32 %v4810, 7
      %v4812 = vadd.s32 %v4811, 8
      %4813 = vset.pattern.permute.xlu0 %v4812
      %4814 = vperm.xlu0 %4813, %v4121
      %v4815 = vpop.permute.xlu0 %4814
      %v4816 = vlaneseq
      %v4817 = vshrl.u32 %v4816, 7
      %v4818 = vadd.s32 %v4817, 8
      %4819 = vset.pattern.permute.xlu0 %v4818
      %4820 = vperm.xlu0 %4819, %v4128
      %v4821 = vpop.permute.xlu0 %4820
      %v4822 = vlaneseq
      %v4823 = vshrl.u32 %v4822, 7
      %v4824 = vadd.s32 %v4823, 8
      %4825 = vset.pattern.permute.xlu0 %v4824
      %4826 = vperm.xlu0 %4825, %v4135
      %v4827 = vpop.permute.xlu0 %4826
      %v4828 = vlaneseq
      %v4829 = vshrl.u32 %v4828, 7
      %v4830 = vadd.s32 %v4829, 8
      %4831 = vset.pattern.permute.xlu0 %v4830
      %4832 = vperm.xlu0 %4831, %v4142
      %v4833 = vpop.permute.xlu0 %4832
      %v4834 = vlaneseq
      %v4835 = vshrl.u32 %v4834, 7
      %v4836 = vadd.s32 %v4835, 8
      %4837 = vset.pattern.permute.xlu0 %v4836
      %4838 = vperm.xlu0 %4837, %v4149
      %v4839 = vpop.permute.xlu0 %4838
      %v4840 = vlaneseq
      %v4841 = vshrl.u32 %v4840, 7
      %v4842 = vadd.s32 %v4841, 8
      %4843 = vset.pattern.permute.xlu0 %v4842
      %4844 = vperm.xlu0 %4843, %v4156
      %v4845 = vpop.permute.xlu0 %4844
      %v4846 = vlaneseq
      %v4847 = vshrl.u32 %v4846, 7
      %v4848 = vadd.s32 %v4847, 8
      %4849 = vset.pattern.permute.xlu0 %v4848
      %4850 = vperm.xlu0 %4849, %v4163
      %v4851 = vpop.permute.xlu0 %4850
      %v4852 = vlaneseq
      %v4853 = vshrl.u32 %v4852, 7
      %v4854 = vadd.s32 %v4853, 8
      %4855 = vset.pattern.permute.xlu0 %v4854
      %4856 = vperm.xlu0 %4855, %v4170
      %v4857 = vpop.permute.xlu0 %4856
      %v4858 = vlaneseq
      %v4859 = vshrl.u32 %v4858, 7
      %v4860 = vadd.s32 %v4859, 8
      %4861 = vset.pattern.permute.xlu0 %v4860
      %4862 = vperm.xlu0 %4861, %v4177
      %v4863 = vpop.permute.xlu0 %4862
      %v4864 = vlaneseq
      %v4865 = vshrl.u32 %v4864, 7
      %v4866 = vadd.s32 %v4865, 8
      %4867 = vset.pattern.permute.xlu0 %v4866
      %4868 = vperm.xlu0 %4867, %v4184
      %v4869 = vpop.permute.xlu0 %4868
      %v4870 = vlaneseq
      %v4871 = vshrl.u32 %v4870, 7
      %v4872 = vadd.s32 %v4871, 8
      %4873 = vset.pattern.permute.xlu0 %v4872
      %4874 = vperm.xlu0 %4873, %v4191
      %v4875 = vpop.permute.xlu0 %4874
      %v4876 = vlaneseq
      %v4877 = vshrl.u32 %v4876, 7
      %v4878 = vadd.s32 %v4877, 8
      %4879 = vset.pattern.permute.xlu0 %v4878
      %4880 = vperm.xlu0 %4879, %v4198
      %v4881 = vpop.permute.xlu0 %4880
      %v4882 = vlaneseq
      %v4883 = vshrl.u32 %v4882, 7
      %v4884 = vadd.s32 %v4883, 8
      %4885 = vset.pattern.permute.xlu0 %v4884
      %4886 = vperm.xlu0 %4885, %v4205
      %v4887 = vpop.permute.xlu0 %4886
      %v4888 = vlaneseq
      %v4889 = vshrl.u32 %v4888, 7
      %v4890 = vadd.s32 %v4889, 8
      %4891 = vset.pattern.permute.xlu0 %v4890
      %4892 = vperm.xlu0 %4891, %v4212
      %v4893 = vpop.permute.xlu0 %4892
      %v4894 = vlaneseq
      %v4895 = vshrl.u32 %v4894, 7
      %v4896 = vadd.s32 %v4895, 8
      %4897 = vset.pattern.permute.xlu0 %v4896
      %4898 = vperm.xlu0 %4897, %v4219
      %v4899 = vpop.permute.xlu0 %4898
      %v4900 = vlaneseq
      %v4901 = vshrl.u32 %v4900, 7
      %v4902 = vadd.s32 %v4901, 8
      %4903 = vset.pattern.permute.xlu0 %v4902
      %4904 = vperm.xlu0 %4903, %v4226
      %v4905 = vpop.permute.xlu0 %4904
      %v4906 = vlaneseq
      %v4907 = vshrl.u32 %v4906, 7
      %v4908 = vadd.s32 %v4907, 8
      %4909 = vset.pattern.permute.xlu0 %v4908
      %4910 = vperm.xlu0 %4909, %v4233
      %v4911 = vpop.permute.xlu0 %4910
      %v4912 = vlaneseq
      %v4913 = vshrl.u32 %v4912, 7
      %v4914 = vadd.s32 %v4913, 8
      %4915 = vset.pattern.permute.xlu0 %v4914
      %4916 = vperm.xlu0 %4915, %v4240
      %v4917 = vpop.permute.xlu0 %4916
      %v4918 = vlaneseq
      %v4919 = vshrl.u32 %v4918, 7
      %v4920 = vadd.s32 %v4919, 8
      %4921 = vset.pattern.permute.xlu0 %v4920
      %4922 = vperm.xlu0 %4921, %v4247
      %v4923 = vpop.permute.xlu0 %4922
      %v4924 = vlaneseq
      %v4925 = vshrl.u32 %v4924, 7
      %v4926 = vadd.s32 %v4925, 8
      %4927 = vset.pattern.permute.xlu0 %v4926
      %4928 = vperm.xlu0 %4927, %v4254
      %v4929 = vpop.permute.xlu0 %4928
      %v4930 = vlaneseq
      %v4931 = vshrl.u32 %v4930, 7
      %v4932 = vadd.s32 %v4931, 8
      %4933 = vset.pattern.permute.xlu0 %v4932
      %4934 = vperm.xlu0 %4933, %v4261
      %v4935 = vpop.permute.xlu0 %4934
      %v4936 = vlaneseq
      %v4937 = vshrl.u32 %v4936, 7
      %v4938 = vadd.s32 %v4937, 8
      %4939 = vset.pattern.permute.xlu0 %v4938
      %4940 = vperm.xlu0 %4939, %v4268
      %v4941 = vpop.permute.xlu0 %4940
      %v4942 = vlaneseq
      %v4943 = vshrl.u32 %v4942, 7
      %v4944 = vadd.s32 %v4943, 8
      %4945 = vset.pattern.permute.xlu0 %v4944
      %4946 = vperm.xlu0 %4945, %v4275
      %v4947 = vpop.permute.xlu0 %4946
      %v4948 = vlaneseq
      %v4949 = vshrl.u32 %v4948, 7
      %v4950 = vadd.s32 %v4949, 8
      %4951 = vset.pattern.permute.xlu0 %v4950
      %4952 = vperm.xlu0 %4951, %v4282
      %v4953 = vpop.permute.xlu0 %4952
      %v4954 = vlaneseq
      %v4955 = vshrl.u32 %v4954, 7
      %v4956 = vadd.s32 %v4955, 8
      %4957 = vset.pattern.permute.xlu0 %v4956
      %4958 = vperm.xlu0 %4957, %v4289
      %v4959 = vpop.permute.xlu0 %4958
      %v4960 = vlaneseq
      %v4961 = vshrl.u32 %v4960, 7
      %v4962 = vadd.s32 %v4961, 8
      %4963 = vset.pattern.permute.xlu0 %v4962
      %4964 = vperm.xlu0 %4963, %v4296
      %v4965 = vpop.permute.xlu0 %4964
      %v4966 = vlaneseq
      %v4967 = vshrl.u32 %v4966, 7
      %v4968 = vadd.s32 %v4967, 8
      %4969 = vset.pattern.permute.xlu0 %v4968
      %4970 = vperm.xlu0 %4969, %v4303
      %v4971 = vpop.permute.xlu0 %4970
      %v4972 = vlaneseq
      %v4973 = vshrl.u32 %v4972, 7
      %v4974 = vadd.s32 %v4973, 8
      %4975 = vset.pattern.permute.xlu0 %v4974
      %4976 = vperm.xlu0 %4975, %v4310
      %v4977 = vpop.permute.xlu0 %4976
      %v4978 = vlaneseq
      %v4979 = vshrl.u32 %v4978, 7
      %v4980 = vadd.s32 %v4979, 8
      %4981 = vset.pattern.permute.xlu0 %v4980
      %4982 = vperm.xlu0 %4981, %v4317
      %v4983 = vpop.permute.xlu0 %4982
      %v4984 = vlaneseq
      %v4985 = vshrl.u32 %v4984, 7
      %v4986 = vadd.s32 %v4985, 8
      %4987 = vset.pattern.permute.xlu0 %v4986
      %4988 = vperm.xlu0 %4987, %v4324
      %v4989 = vpop.permute.xlu0 %4988
      %v4990 = vlaneseq
      %v4991 = vshrl.u32 %v4990, 7
      %v4992 = vadd.s32 %v4991, 8
      %4993 = vset.pattern.permute.xlu0 %v4992
      %4994 = vperm.xlu0 %4993, %v4331
      %v4995 = vpop.permute.xlu0 %4994
      %v4996 = vlaneseq
      %v4997 = vshrl.u32 %v4996, 7
      %v4998 = vadd.s32 %v4997, 8
      %4999 = vset.pattern.permute.xlu0 %v4998
      %5000 = vperm.xlu0 %4999, %v4338
      %v5001 = vpop.permute.xlu0 %5000
      %v5002 = vlaneseq
      %v5003 = vshrl.u32 %v5002, 7
      %v5004 = vadd.s32 %v5003, 8
      %5005 = vset.pattern.permute.xlu0 %v5004
      %5006 = vperm.xlu0 %5005, %v4345
      %v5007 = vpop.permute.xlu0 %5006
      %v5008 = vlaneseq
      %v5009 = vshrl.u32 %v5008, 7
      %v5010 = vadd.s32 %v5009, 8
      %5011 = vset.pattern.permute.xlu0 %v5010
      %5012 = vperm.xlu0 %5011, %v4352
      %v5013 = vpop.permute.xlu0 %5012
      %v5014 = vlaneseq
      %v5015 = vshrl.u32 %v5014, 7
      %v5016 = vadd.s32 %v5015, 8
      %5017 = vset.pattern.permute.xlu0 %v5016
      %5018 = vperm.xlu0 %5017, %v4359
      %v5019 = vpop.permute.xlu0 %5018
      %v5020 = vlaneseq
      %v5021 = vshrl.u32 %v5020, 7
      %v5022 = vadd.s32 %v5021, 8
      %5023 = vset.pattern.permute.xlu0 %v5022
      %5024 = vperm.xlu0 %5023, %v4366
      %v5025 = vpop.permute.xlu0 %5024
      %v5026 = vlaneseq
      %v5027 = vshrl.u32 %v5026, 7
      %v5028 = vadd.s32 %v5027, 8
      %5029 = vset.pattern.permute.xlu0 %v5028
      %5030 = vperm.xlu0 %5029, %v4373
      %v5031 = vpop.permute.xlu0 %5030
      %v5032 = vlaneseq
      %v5033 = vshrl.u32 %v5032, 7
      %v5034 = vadd.s32 %v5033, 8
      %5035 = vset.pattern.permute.xlu0 %v5034
      %5036 = vperm.xlu0 %5035, %v4380
      %v5037 = vpop.permute.xlu0 %5036
      %v5038 = vlaneseq
      %v5039 = vshrl.u32 %v5038, 7
      %v5040 = vadd.s32 %v5039, 8
      %5041 = vset.pattern.permute.xlu0 %v5040
      %5042 = vperm.xlu0 %5041, %v4387
      %v5043 = vpop.permute.xlu0 %5042
      %v5044 = vlaneseq
      %v5045 = vshrl.u32 %v5044, 7
      %v5046 = vadd.s32 %v5045, 8
      %5047 = vset.pattern.permute.xlu0 %v5046
      %5048 = vperm.xlu0 %5047, %v4394
      %v5049 = vpop.permute.xlu0 %5048
      %v5050 = vlaneseq
      %v5051 = vshrl.u32 %v5050, 7
      %v5052 = vadd.s32 %v5051, 8
      %5053 = vset.pattern.permute.xlu0 %v5052
      %5054 = vperm.xlu0 %5053, %v4401
      %v5055 = vpop.permute.xlu0 %5054
      %v5056 = vlaneseq
      %v5057 = vshrl.u32 %v5056, 7
      %v5058 = vadd.s32 %v5057, 8
      %5059 = vset.pattern.permute.xlu0 %v5058
      %5060 = vperm.xlu0 %5059, %v4408
      %v5061 = vpop.permute.xlu0 %5060
      %v5062 = vlaneseq
      %v5063 = vshrl.u32 %v5062, 7
      %v5064 = vadd.s32 %v5063, 8
      %5065 = vset.pattern.permute.xlu0 %v5064
      %5066 = vperm.xlu0 %5065, %v4415
      %v5067 = vpop.permute.xlu0 %5066
      %v5068 = vlaneseq
      %v5069 = vshrl.u32 %v5068, 7
      %v5070 = vadd.s32 %v5069, 8
      %5071 = vset.pattern.permute.xlu0 %v5070
      %5072 = vperm.xlu0 %5071, %v4422
      %v5073 = vpop.permute.xlu0 %5072
      %v5074 = vlaneseq
      %v5075 = vshrl.u32 %v5074, 7
      %v5076 = vadd.s32 %v5075, 8
      %5077 = vset.pattern.permute.xlu0 %v5076
      %5078 = vperm.xlu0 %5077, %v4429
      %v5079 = vpop.permute.xlu0 %5078
      %v5080 = vlaneseq
      %v5081 = vshrl.u32 %v5080, 7
      %v5082 = vadd.s32 %v5081, 8
      %5083 = vset.pattern.permute.xlu0 %v5082
      %5084 = vperm.xlu0 %5083, %v4436
      %v5085 = vpop.permute.xlu0 %5084
      %v5086 = vlaneseq
      %v5087 = vshrl.u32 %v5086, 7
      %v5088 = vadd.s32 %v5087, 8
      %5089 = vset.pattern.permute.xlu0 %v5088
      %5090 = vperm.xlu0 %5089, %v4443
      %v5091 = vpop.permute.xlu0 %5090
      %v5092 = vlaneseq
      %v5093 = vshrl.u32 %v5092, 7
      %v5094 = vadd.s32 %v5093, 8
      %5095 = vset.pattern.permute.xlu0 %v5094
      %5096 = vperm.xlu0 %5095, %v4450
      %v5097 = vpop.permute.xlu0 %5096
      %v5098 = vlaneseq
      %v5099 = vshrl.u32 %v5098, 7
      %v5100 = vadd.s32 %v5099, 8
      %5101 = vset.pattern.permute.xlu0 %v5100
      %5102 = vperm.xlu0 %5101, %v4457
      %v5103 = vpop.permute.xlu0 %5102
      %v5104 = vmul.f32 %v4725, %v4528
      %v5105 = vmul.f32 %v4731, %v4529
      %v5106 = vmul.f32 %v4737, %v4530
      %v5107 = vmul.f32 %v4743, %v4531
      %v5108 = vmul.f32 %v4749, %v4532
      %v5109 = vmul.f32 %v4755, %v4533
      %v5110 = vmul.f32 %v4761, %v4534
      %v5111 = vmul.f32 %v4767, %v4535
      %v5112 = vmul.f32 %v4773, %v4536
      %v5113 = vmul.f32 %v4779, %v4537
      %v5114 = vmul.f32 %v4785, %v4538
      %v5115 = vmul.f32 %v4791, %v4539
      %v5116 = vmul.f32 %v4797, %v4540
      %v5117 = vmul.f32 %v4803, %v4541
      %v5118 = vmul.f32 %v4809, %v4542
      %v5119 = vmul.f32 %v4815, %v4543
      %v5120 = vmul.f32 %v4821, %v4544
      %v5121 = vmul.f32 %v4827, %v4545
      %v5122 = vmul.f32 %v4833, %v4546
      %v5123 = vmul.f32 %v4839, %v4547
      %v5124 = vmul.f32 %v4845, %v4548
      %v5125 = vmul.f32 %v4851, %v4549
      %v5126 = vmul.f32 %v4857, %v4550
      %v5127 = vmul.f32 %v4863, %v4551
      %v5128 = vmul.f32 %v4869, %v4552
      %v5129 = vmul.f32 %v4875, %v4553
      %v5130 = vmul.f32 %v4881, %v4554
      %v5131 = vmul.f32 %v4887, %v4555
      %v5132 = vmul.f32 %v4893, %v4556
      %v5133 = vmul.f32 %v4899, %v4557
      %v5134 = vmul.f32 %v4905, %v4558
      %v5135 = vmul.f32 %v4911, %v4559
      %v5136 = vmul.f32 %v4917, %v4560
      %v5137 = vmul.f32 %v4923, %v4561
      %v5138 = vmul.f32 %v4929, %v4562
      %v5139 = vmul.f32 %v4935, %v4563
      %v5140 = vmul.f32 %v4941, %v4564
      %v5141 = vmul.f32 %v4947, %v4565
      %v5142 = vmul.f32 %v4953, %v4566
      %v5143 = vmul.f32 %v4959, %v4567
      %v5144 = vmul.f32 %v4965, %v4568
      %v5145 = vmul.f32 %v4971, %v4569
      %v5146 = vmul.f32 %v4977, %v4570
      %v5147 = vmul.f32 %v4983, %v4571
      %v5148 = vmul.f32 %v4989, %v4572
      %v5149 = vmul.f32 %v4995, %v4573
      %v5150 = vmul.f32 %v5001, %v4574
      %v5151 = vmul.f32 %v5007, %v4575
      %v5152 = vmul.f32 %v5013, %v4576
      %v5153 = vmul.f32 %v5019, %v4577
      %v5154 = vmul.f32 %v5025, %v4578
      %v5155 = vmul.f32 %v5031, %v4579
      %v5156 = vmul.f32 %v5037, %v4580
      %v5157 = vmul.f32 %v5043, %v4581
      %v5158 = vmul.f32 %v5049, %v4582
      %v5159 = vmul.f32 %v5055, %v4583
      %v5160 = vmul.f32 %v5061, %v4584
      %v5161 = vmul.f32 %v5067, %v4585
      %v5162 = vmul.f32 %v5073, %v4586
      %v5163 = vmul.f32 %v5079, %v4587
      %v5164 = vmul.f32 %v5085, %v4588
      %v5165 = vmul.f32 %v5091, %v4589
      %v5166 = vmul.f32 %v5097, %v4590
      %v5167 = vmul.f32 %v5103, %v4591
      %v5168 = vsel %vm401, %v4656, %v5104
      %v5169 = vsel %vm401, %v4657, %v5105
      %v5170 = vsel %vm401, %v4658, %v5106
      %v5171 = vsel %vm401, %v4659, %v5107
      %v5172 = vsel %vm401, %v4660, %v5108
      %v5173 = vsel %vm401, %v4661, %v5109
      %v5174 = vsel %vm401, %v4662, %v5110
      %v5175 = vsel %vm401, %v4663, %v5111
      %v5176 = vsel %vm401, %v4664, %v5112
      %v5177 = vsel %vm401, %v4665, %v5113
      %v5178 = vsel %vm401, %v4666, %v5114
      %v5179 = vsel %vm401, %v4667, %v5115
      %v5180 = vsel %vm401, %v4668, %v5116
      %v5181 = vsel %vm401, %v4669, %v5117
      %v5182 = vsel %vm401, %v4670, %v5118
      %v5183 = vsel %vm401, %v4671, %v5119
      %v5184 = vsel %vm401, %v4672, %v5120
      %v5185 = vsel %vm401, %v4673, %v5121
      %v5186 = vsel %vm401, %v4674, %v5122
      %v5187 = vsel %vm401, %v4675, %v5123
      %v5188 = vsel %vm401, %v4676, %v5124
      %v5189 = vsel %vm401, %v4677, %v5125
      %v5190 = vsel %vm401, %v4678, %v5126
      %v5191 = vsel %vm401, %v4679, %v5127
      %v5192 = vsel %vm401, %v4680, %v5128
      %v5193 = vsel %vm401, %v4681, %v5129
      %v5194 = vsel %vm401, %v4682, %v5130
      %v5195 = vsel %vm401, %v4683, %v5131
      %v5196 = vsel %vm401, %v4684, %v5132
      %v5197 = vsel %vm401, %v4685, %v5133
      %v5198 = vsel %vm401, %v4686, %v5134
      %v5199 = vsel %vm401, %v4687, %v5135
      %v5200 = vsel %vm401, %v4688, %v5136
      %v5201 = vsel %vm401, %v4689, %v5137
      %v5202 = vsel %vm401, %v4690, %v5138
      %v5203 = vsel %vm401, %v4691, %v5139
      %v5204 = vsel %vm401, %v4692, %v5140
      %v5205 = vsel %vm401, %v4693, %v5141
      %v5206 = vsel %vm401, %v4694, %v5142
      %v5207 = vsel %vm401, %v4695, %v5143
      %v5208 = vsel %vm401, %v4696, %v5144
      %v5209 = vsel %vm401, %v4697, %v5145
      %v5210 = vsel %vm401, %v4698, %v5146
      %v5211 = vsel %vm401, %v4699, %v5147
      %v5212 = vsel %vm401, %v4700, %v5148
      %v5213 = vsel %vm401, %v4701, %v5149
      %v5214 = vsel %vm401, %v4702, %v5150
      %v5215 = vsel %vm401, %v4703, %v5151
      %v5216 = vsel %vm401, %v4704, %v5152
      %v5217 = vsel %vm401, %v4705, %v5153
      %v5218 = vsel %vm401, %v4706, %v5154
      %v5219 = vsel %vm401, %v4707, %v5155
      %v5220 = vsel %vm401, %v4708, %v5156
      %v5221 = vsel %vm401, %v4709, %v5157
      %v5222 = vsel %vm401, %v4710, %v5158
      %v5223 = vsel %vm401, %v4711, %v5159
      %v5224 = vsel %vm401, %v4712, %v5160
      %v5225 = vsel %vm401, %v4713, %v5161
      %v5226 = vsel %vm401, %v4714, %v5162
      %v5227 = vsel %vm401, %v4715, %v5163
      %v5228 = vsel %vm401, %v4716, %v5164
      %v5229 = vsel %vm401, %v4717, %v5165
      %v5230 = vsel %vm401, %v4718, %v5166
      %v5231 = vsel %vm401, %v4719, %v5167
      %5232 = vst [vmem:[#allocation7] sm:$0xff] %v5168
      %5233 = vst [vmem:[#allocation7 + $0x8] sm:$0xff] %v5169
      %5234 = vst [vmem:[#allocation7 + $0x10] sm:$0xff] %v5170
      %5235 = vst [vmem:[#allocation7 + $0x18] sm:$0xff] %v5171
      %5236 = vst [vmem:[#allocation7 + $0x20] sm:$0xff] %v5172
      %5237 = vst [vmem:[#allocation7 + $0x28] sm:$0xff] %v5173
      %5238 = vst [vmem:[#allocation7 + $0x30] sm:$0xff] %v5174
      %5239 = vst [vmem:[#allocation7 + $0x38] sm:$0xff] %v5175
      %5240 = vst [vmem:[#allocation7 + $0x40] sm:$0xff] %v5176
      %5241 = vst [vmem:[#allocation7 + $0x48] sm:$0xff] %v5177
      %5242 = vst [vmem:[#allocation7 + $0x50] sm:$0xff] %v5178
      %5243 = vst [vmem:[#allocation7 + $0x58] sm:$0xff] %v5179
      %5244 = vst [vmem:[#allocation7 + $0x60] sm:$0xff] %v5180
      %5245 = vst [vmem:[#allocation7 + $0x68] sm:$0xff] %v5181
      %5246 = vst [vmem:[#allocation7 + $0x70] sm:$0xff] %v5182
      %5247 = vst [vmem:[#allocation7 + $0x78] sm:$0xff] %v5183
      %5248 = vst [vmem:[#allocation7 + $0x80] sm:$0xff] %v5184
      %5249 = vst [vmem:[#allocation7 + $0x88] sm:$0xff] %v5185
      %5250 = vst [vmem:[#allocation7 + $0x90] sm:$0xff] %v5186
      %5251 = vst [vmem:[#allocation7 + $0x98] sm:$0xff] %v5187
      %5252 = vst [vmem:[#allocation7 + $0xa0] sm:$0xff] %v5188
      %5253 = vst [vmem:[#allocation7 + $0xa8] sm:$0xff] %v5189
      %5254 = vst [vmem:[#allocation7 + $0xb0] sm:$0xff] %v5190
      %5255 = vst [vmem:[#allocation7 + $0xb8] sm:$0xff] %v5191
      %5256 = vst [vmem:[#allocation7 + $0xc0] sm:$0xff] %v5192
      %5257 = vst [vmem:[#allocation7 + $0xc8] sm:$0xff] %v5193
      %5258 = vst [vmem:[#allocation7 + $0xd0] sm:$0xff] %v5194
      %5259 = vst [vmem:[#allocation7 + $0xd8] sm:$0xff] %v5195
      %5260 = vst [vmem:[#allocation7 + $0xe0] sm:$0xff] %v5196
      %5261 = vst [vmem:[#allocation7 + $0xe8] sm:$0xff] %v5197
      %5262 = vst [vmem:[#allocation7 + $0xf0] sm:$0xff] %v5198
      %5263 = vst [vmem:[#allocation7 + $0xf8] sm:$0xff] %v5199
      %5264 = vst [vmem:[#allocation7 + $0x100] sm:$0xff] %v5200
      %5265 = vst [vmem:[#allocation7 + $0x108] sm:$0xff] %v5201
      %5266 = vst [vmem:[#allocation7 + $0x110] sm:$0xff] %v5202
      %5267 = vst [vmem:[#allocation7 + $0x118] sm:$0xff] %v5203
      %5268 = vst [vmem:[#allocation7 + $0x120] sm:$0xff] %v5204
      %5269 = vst [vmem:[#allocation7 + $0x128] sm:$0xff] %v5205
      %5270 = vst [vmem:[#allocation7 + $0x130] sm:$0xff] %v5206
      %5271 = vst [vmem:[#allocation7 + $0x138] sm:$0xff] %v5207
      %5272 = vst [vmem:[#allocation7 + $0x140] sm:$0xff] %v5208
      %5273 = vst [vmem:[#allocation7 + $0x148] sm:$0xff] %v5209
      %5274 = vst [vmem:[#allocation7 + $0x150] sm:$0xff] %v5210
      %5275 = vst [vmem:[#allocation7 + $0x158] sm:$0xff] %v5211
      %5276 = vst [vmem:[#allocation7 + $0x160] sm:$0xff] %v5212
      %5277 = vst [vmem:[#allocation7 + $0x168] sm:$0xff] %v5213
      %5278 = vst [vmem:[#allocation7 + $0x170] sm:$0xff] %v5214
      %5279 = vst [vmem:[#allocation7 + $0x178] sm:$0xff] %v5215
      %5280 = vst [vmem:[#allocation7 + $0x180] sm:$0xff] %v5216
      %5281 = vst [vmem:[#allocation7 + $0x188] sm:$0xff] %v5217
      %5282 = vst [vmem:[#allocation7 + $0x190] sm:$0xff] %v5218
      %5283 = vst [vmem:[#allocation7 + $0x198] sm:$0xff] %v5219
      %5284 = vst [vmem:[#allocation7 + $0x1a0] sm:$0xff] %v5220
      %5285 = vst [vmem:[#allocation7 + $0x1a8] sm:$0xff] %v5221
      %5286 = vst [vmem:[#allocation7 + $0x1b0] sm:$0xff] %v5222
      %5287 = vst [vmem:[#allocation7 + $0x1b8] sm:$0xff] %v5223
      %5288 = vst [vmem:[#allocation7 + $0x1c0] sm:$0xff] %v5224
      %5289 = vst [vmem:[#allocation7 + $0x1c8] sm:$0xff] %v5225
      %5290 = vst [vmem:[#allocation7 + $0x1d0] sm:$0xff] %v5226
      %5291 = vst [vmem:[#allocation7 + $0x1d8] sm:$0xff] %v5227
      %5292 = vst [vmem:[#allocation7 + $0x1e0] sm:$0xff] %v5228
      %5293 = vst [vmem:[#allocation7 + $0x1e8] sm:$0xff] %v5229
      %5294 = vst [vmem:[#allocation7 + $0x1f0] sm:$0xff] %v5230
      %5295 = vst [vmem:[#allocation7 + $0x1f8] sm:$0xff] %v5231
      %v5296 = vlaneseq
      %v5297 = vshrl.u32 %v5296, 7
      %v5298 = vadd.s32 %v5297, 16
      %5299 = vset.pattern.permute.xlu0 %v5298
      %5300 = vperm.xlu0 %5299, %v4016
      %v5301 = vpop.permute.xlu0 %5300
      %v5302 = vlaneseq
      %v5303 = vshrl.u32 %v5302, 7
      %v5304 = vadd.s32 %v5303, 16
      %5305 = vset.pattern.permute.xlu0 %v5304
      %5306 = vperm.xlu0 %5305, %v4023
      %v5307 = vpop.permute.xlu0 %5306
      %v5308 = vlaneseq
      %v5309 = vshrl.u32 %v5308, 7
      %v5310 = vadd.s32 %v5309, 16
      %5311 = vset.pattern.permute.xlu0 %v5310
      %5312 = vperm.xlu0 %5311, %v4030
      %v5313 = vpop.permute.xlu0 %5312
      %v5314 = vlaneseq
      %v5315 = vshrl.u32 %v5314, 7
      %v5316 = vadd.s32 %v5315, 16
      %5317 = vset.pattern.permute.xlu0 %v5316
      %5318 = vperm.xlu0 %5317, %v4037
      %v5319 = vpop.permute.xlu0 %5318
      %v5320 = vlaneseq
      %v5321 = vshrl.u32 %v5320, 7
      %v5322 = vadd.s32 %v5321, 16
      %5323 = vset.pattern.permute.xlu0 %v5322
      %5324 = vperm.xlu0 %5323, %v4044
      %v5325 = vpop.permute.xlu0 %5324
      %v5326 = vlaneseq
      %v5327 = vshrl.u32 %v5326, 7
      %v5328 = vadd.s32 %v5327, 16
      %5329 = vset.pattern.permute.xlu0 %v5328
      %5330 = vperm.xlu0 %5329, %v4051
      %v5331 = vpop.permute.xlu0 %5330
      %v5332 = vlaneseq
      %v5333 = vshrl.u32 %v5332, 7
      %v5334 = vadd.s32 %v5333, 16
      %5335 = vset.pattern.permute.xlu0 %v5334
      %5336 = vperm.xlu0 %5335, %v4058
      %v5337 = vpop.permute.xlu0 %5336
      %v5338 = vlaneseq
      %v5339 = vshrl.u32 %v5338, 7
      %v5340 = vadd.s32 %v5339, 16
      %5341 = vset.pattern.permute.xlu0 %v5340
      %5342 = vperm.xlu0 %5341, %v4065
      %v5343 = vpop.permute.xlu0 %5342
      %v5344 = vlaneseq
      %v5345 = vshrl.u32 %v5344, 7
      %v5346 = vadd.s32 %v5345, 16
      %5347 = vset.pattern.permute.xlu0 %v5346
      %5348 = vperm.xlu0 %5347, %v4072
      %v5349 = vpop.permute.xlu0 %5348
      %v5350 = vlaneseq
      %v5351 = vshrl.u32 %v5350, 7
      %v5352 = vadd.s32 %v5351, 16
      %5353 = vset.pattern.permute.xlu0 %v5352
      %5354 = vperm.xlu0 %5353, %v4079
      %v5355 = vpop.permute.xlu0 %5354
      %v5356 = vlaneseq
      %v5357 = vshrl.u32 %v5356, 7
      %v5358 = vadd.s32 %v5357, 16
      %5359 = vset.pattern.permute.xlu0 %v5358
      %5360 = vperm.xlu0 %5359, %v4086
      %v5361 = vpop.permute.xlu0 %5360
      %v5362 = vlaneseq
      %v5363 = vshrl.u32 %v5362, 7
      %v5364 = vadd.s32 %v5363, 16
      %5365 = vset.pattern.permute.xlu0 %v5364
      %5366 = vperm.xlu0 %5365, %v4093
      %v5367 = vpop.permute.xlu0 %5366
      %v5368 = vlaneseq
      %v5369 = vshrl.u32 %v5368, 7
      %v5370 = vadd.s32 %v5369, 16
      %5371 = vset.pattern.permute.xlu0 %v5370
      %5372 = vperm.xlu0 %5371, %v4100
      %v5373 = vpop.permute.xlu0 %5372
      %v5374 = vlaneseq
      %v5375 = vshrl.u32 %v5374, 7
      %v5376 = vadd.s32 %v5375, 16
      %5377 = vset.pattern.permute.xlu0 %v5376
      %5378 = vperm.xlu0 %5377, %v4107
      %v5379 = vpop.permute.xlu0 %5378
      %v5380 = vlaneseq
      %v5381 = vshrl.u32 %v5380, 7
      %v5382 = vadd.s32 %v5381, 16
      %5383 = vset.pattern.permute.xlu0 %v5382
      %5384 = vperm.xlu0 %5383, %v4114
      %v5385 = vpop.permute.xlu0 %5384
      %v5386 = vlaneseq
      %v5387 = vshrl.u32 %v5386, 7
      %v5388 = vadd.s32 %v5387, 16
      %5389 = vset.pattern.permute.xlu0 %v5388
      %5390 = vperm.xlu0 %5389, %v4121
      %v5391 = vpop.permute.xlu0 %5390
      %v5392 = vlaneseq
      %v5393 = vshrl.u32 %v5392, 7
      %v5394 = vadd.s32 %v5393, 16
      %5395 = vset.pattern.permute.xlu0 %v5394
      %5396 = vperm.xlu0 %5395, %v4128
      %v5397 = vpop.permute.xlu0 %5396
      %v5398 = vlaneseq
      %v5399 = vshrl.u32 %v5398, 7
      %v5400 = vadd.s32 %v5399, 16
      %5401 = vset.pattern.permute.xlu0 %v5400
      %5402 = vperm.xlu0 %5401, %v4135
      %v5403 = vpop.permute.xlu0 %5402
      %v5404 = vlaneseq
      %v5405 = vshrl.u32 %v5404, 7
      %v5406 = vadd.s32 %v5405, 16
      %5407 = vset.pattern.permute.xlu0 %v5406
      %5408 = vperm.xlu0 %5407, %v4142
      %v5409 = vpop.permute.xlu0 %5408
      %v5410 = vlaneseq
      %v5411 = vshrl.u32 %v5410, 7
      %v5412 = vadd.s32 %v5411, 16
      %5413 = vset.pattern.permute.xlu0 %v5412
      %5414 = vperm.xlu0 %5413, %v4149
      %v5415 = vpop.permute.xlu0 %5414
      %v5416 = vlaneseq
      %v5417 = vshrl.u32 %v5416, 7
      %v5418 = vadd.s32 %v5417, 16
      %5419 = vset.pattern.permute.xlu0 %v5418
      %5420 = vperm.xlu0 %5419, %v4156
      %v5421 = vpop.permute.xlu0 %5420
      %v5422 = vlaneseq
      %v5423 = vshrl.u32 %v5422, 7
      %v5424 = vadd.s32 %v5423, 16
      %5425 = vset.pattern.permute.xlu0 %v5424
      %5426 = vperm.xlu0 %5425, %v4163
      %v5427 = vpop.permute.xlu0 %5426
      %v5428 = vlaneseq
      %v5429 = vshrl.u32 %v5428, 7
      %v5430 = vadd.s32 %v5429, 16
      %5431 = vset.pattern.permute.xlu0 %v5430
      %5432 = vperm.xlu0 %5431, %v4170
      %v5433 = vpop.permute.xlu0 %5432
      %v5434 = vlaneseq
      %v5435 = vshrl.u32 %v5434, 7
      %v5436 = vadd.s32 %v5435, 16
      %5437 = vset.pattern.permute.xlu0 %v5436
      %5438 = vperm.xlu0 %5437, %v4177
      %v5439 = vpop.permute.xlu0 %5438
      %v5440 = vlaneseq
      %v5441 = vshrl.u32 %v5440, 7
      %v5442 = vadd.s32 %v5441, 16
      %5443 = vset.pattern.permute.xlu0 %v5442
      %5444 = vperm.xlu0 %5443, %v4184
      %v5445 = vpop.permute.xlu0 %5444
      %v5446 = vlaneseq
      %v5447 = vshrl.u32 %v5446, 7
      %v5448 = vadd.s32 %v5447, 16
      %5449 = vset.pattern.permute.xlu0 %v5448
      %5450 = vperm.xlu0 %5449, %v4191
      %v5451 = vpop.permute.xlu0 %5450
      %v5452 = vlaneseq
      %v5453 = vshrl.u32 %v5452, 7
      %v5454 = vadd.s32 %v5453, 16
      %5455 = vset.pattern.permute.xlu0 %v5454
      %5456 = vperm.xlu0 %5455, %v4198
      %v5457 = vpop.permute.xlu0 %5456
      %v5458 = vlaneseq
      %v5459 = vshrl.u32 %v5458, 7
      %v5460 = vadd.s32 %v5459, 16
      %5461 = vset.pattern.permute.xlu0 %v5460
      %5462 = vperm.xlu0 %5461, %v4205
      %v5463 = vpop.permute.xlu0 %5462
      %v5464 = vlaneseq
      %v5465 = vshrl.u32 %v5464, 7
      %v5466 = vadd.s32 %v5465, 16
      %5467 = vset.pattern.permute.xlu0 %v5466
      %5468 = vperm.xlu0 %5467, %v4212
      %v5469 = vpop.permute.xlu0 %5468
      %v5470 = vlaneseq
      %v5471 = vshrl.u32 %v5470, 7
      %v5472 = vadd.s32 %v5471, 16
      %5473 = vset.pattern.permute.xlu0 %v5472
      %5474 = vperm.xlu0 %5473, %v4219
      %v5475 = vpop.permute.xlu0 %5474
      %v5476 = vlaneseq
      %v5477 = vshrl.u32 %v5476, 7
      %v5478 = vadd.s32 %v5477, 16
      %5479 = vset.pattern.permute.xlu0 %v5478
      %5480 = vperm.xlu0 %5479, %v4226
      %v5481 = vpop.permute.xlu0 %5480
      %v5482 = vlaneseq
      %v5483 = vshrl.u32 %v5482, 7
      %v5484 = vadd.s32 %v5483, 16
      %5485 = vset.pattern.permute.xlu0 %v5484
      %5486 = vperm.xlu0 %5485, %v4233
      %v5487 = vpop.permute.xlu0 %5486
      %v5488 = vlaneseq
      %v5489 = vshrl.u32 %v5488, 7
      %v5490 = vadd.s32 %v5489, 16
      %5491 = vset.pattern.permute.xlu0 %v5490
      %5492 = vperm.xlu0 %5491, %v4240
      %v5493 = vpop.permute.xlu0 %5492
      %v5494 = vlaneseq
      %v5495 = vshrl.u32 %v5494, 7
      %v5496 = vadd.s32 %v5495, 16
      %5497 = vset.pattern.permute.xlu0 %v5496
      %5498 = vperm.xlu0 %5497, %v4247
      %v5499 = vpop.permute.xlu0 %5498
      %v5500 = vlaneseq
      %v5501 = vshrl.u32 %v5500, 7
      %v5502 = vadd.s32 %v5501, 16
      %5503 = vset.pattern.permute.xlu0 %v5502
      %5504 = vperm.xlu0 %5503, %v4254
      %v5505 = vpop.permute.xlu0 %5504
      %v5506 = vlaneseq
      %v5507 = vshrl.u32 %v5506, 7
      %v5508 = vadd.s32 %v5507, 16
      %5509 = vset.pattern.permute.xlu0 %v5508
      %5510 = vperm.xlu0 %5509, %v4261
      %v5511 = vpop.permute.xlu0 %5510
      %v5512 = vlaneseq
      %v5513 = vshrl.u32 %v5512, 7
      %v5514 = vadd.s32 %v5513, 16
      %5515 = vset.pattern.permute.xlu0 %v5514
      %5516 = vperm.xlu0 %5515, %v4268
      %v5517 = vpop.permute.xlu0 %5516
      %v5518 = vlaneseq
      %v5519 = vshrl.u32 %v5518, 7
      %v5520 = vadd.s32 %v5519, 16
      %5521 = vset.pattern.permute.xlu0 %v5520
      %5522 = vperm.xlu0 %5521, %v4275
      %v5523 = vpop.permute.xlu0 %5522
      %v5524 = vlaneseq
      %v5525 = vshrl.u32 %v5524, 7
      %v5526 = vadd.s32 %v5525, 16
      %5527 = vset.pattern.permute.xlu0 %v5526
      %5528 = vperm.xlu0 %5527, %v4282
      %v5529 = vpop.permute.xlu0 %5528
      %v5530 = vlaneseq
      %v5531 = vshrl.u32 %v5530, 7
      %v5532 = vadd.s32 %v5531, 16
      %5533 = vset.pattern.permute.xlu0 %v5532
      %5534 = vperm.xlu0 %5533, %v4289
      %v5535 = vpop.permute.xlu0 %5534
      %v5536 = vlaneseq
      %v5537 = vshrl.u32 %v5536, 7
      %v5538 = vadd.s32 %v5537, 16
      %5539 = vset.pattern.permute.xlu0 %v5538
      %5540 = vperm.xlu0 %5539, %v4296
      %v5541 = vpop.permute.xlu0 %5540
      %v5542 = vlaneseq
      %v5543 = vshrl.u32 %v5542, 7
      %v5544 = vadd.s32 %v5543, 16
      %5545 = vset.pattern.permute.xlu0 %v5544
      %5546 = vperm.xlu0 %5545, %v4303
      %v5547 = vpop.permute.xlu0 %5546
      %v5548 = vlaneseq
      %v5549 = vshrl.u32 %v5548, 7
      %v5550 = vadd.s32 %v5549, 16
      %5551 = vset.pattern.permute.xlu0 %v5550
      %5552 = vperm.xlu0 %5551, %v4310
      %v5553 = vpop.permute.xlu0 %5552
      %v5554 = vlaneseq
      %v5555 = vshrl.u32 %v5554, 7
      %v5556 = vadd.s32 %v5555, 16
      %5557 = vset.pattern.permute.xlu0 %v5556
      %5558 = vperm.xlu0 %5557, %v4317
      %v5559 = vpop.permute.xlu0 %5558
      %v5560 = vlaneseq
      %v5561 = vshrl.u32 %v5560, 7
      %v5562 = vadd.s32 %v5561, 16
      %5563 = vset.pattern.permute.xlu0 %v5562
      %5564 = vperm.xlu0 %5563, %v4324
      %v5565 = vpop.permute.xlu0 %5564
      %v5566 = vlaneseq
      %v5567 = vshrl.u32 %v5566, 7
      %v5568 = vadd.s32 %v5567, 16
      %5569 = vset.pattern.permute.xlu0 %v5568
      %5570 = vperm.xlu0 %5569, %v4331
      %v5571 = vpop.permute.xlu0 %5570
      %v5572 = vlaneseq
      %v5573 = vshrl.u32 %v5572, 7
      %v5574 = vadd.s32 %v5573, 16
      %5575 = vset.pattern.permute.xlu0 %v5574
      %5576 = vperm.xlu0 %5575, %v4338
      %v5577 = vpop.permute.xlu0 %5576
      %v5578 = vlaneseq
      %v5579 = vshrl.u32 %v5578, 7
      %v5580 = vadd.s32 %v5579, 16
      %5581 = vset.pattern.permute.xlu0 %v5580
      %5582 = vperm.xlu0 %5581, %v4345
      %v5583 = vpop.permute.xlu0 %5582
      %v5584 = vlaneseq
      %v5585 = vshrl.u32 %v5584, 7
      %v5586 = vadd.s32 %v5585, 16
      %5587 = vset.pattern.permute.xlu0 %v5586
      %5588 = vperm.xlu0 %5587, %v4352
      %v5589 = vpop.permute.xlu0 %5588
      %v5590 = vlaneseq
      %v5591 = vshrl.u32 %v5590, 7
      %v5592 = vadd.s32 %v5591, 16
      %5593 = vset.pattern.permute.xlu0 %v5592
      %5594 = vperm.xlu0 %5593, %v4359
      %v5595 = vpop.permute.xlu0 %5594
      %v5596 = vlaneseq
      %v5597 = vshrl.u32 %v5596, 7
      %v5598 = vadd.s32 %v5597, 16
      %5599 = vset.pattern.permute.xlu0 %v5598
      %5600 = vperm.xlu0 %5599, %v4366
      %v5601 = vpop.permute.xlu0 %5600
      %v5602 = vlaneseq
      %v5603 = vshrl.u32 %v5602, 7
      %v5604 = vadd.s32 %v5603, 16
      %5605 = vset.pattern.permute.xlu0 %v5604
      %5606 = vperm.xlu0 %5605, %v4373
      %v5607 = vpop.permute.xlu0 %5606
      %v5608 = vlaneseq
      %v5609 = vshrl.u32 %v5608, 7
      %v5610 = vadd.s32 %v5609, 16
      %5611 = vset.pattern.permute.xlu0 %v5610
      %5612 = vperm.xlu0 %5611, %v4380
      %v5613 = vpop.permute.xlu0 %5612
      %v5614 = vlaneseq
      %v5615 = vshrl.u32 %v5614, 7
      %v5616 = vadd.s32 %v5615, 16
      %5617 = vset.pattern.permute.xlu0 %v5616
      %5618 = vperm.xlu0 %5617, %v4387
      %v5619 = vpop.permute.xlu0 %5618
      %v5620 = vlaneseq
      %v5621 = vshrl.u32 %v5620, 7
      %v5622 = vadd.s32 %v5621, 16
      %5623 = vset.pattern.permute.xlu0 %v5622
      %5624 = vperm.xlu0 %5623, %v4394
      %v5625 = vpop.permute.xlu0 %5624
      %v5626 = vlaneseq
      %v5627 = vshrl.u32 %v5626, 7
      %v5628 = vadd.s32 %v5627, 16
      %5629 = vset.pattern.permute.xlu0 %v5628
      %5630 = vperm.xlu0 %5629, %v4401
      %v5631 = vpop.permute.xlu0 %5630
      %v5632 = vlaneseq
      %v5633 = vshrl.u32 %v5632, 7
      %v5634 = vadd.s32 %v5633, 16
      %5635 = vset.pattern.permute.xlu0 %v5634
      %5636 = vperm.xlu0 %5635, %v4408
      %v5637 = vpop.permute.xlu0 %5636
      %v5638 = vlaneseq
      %v5639 = vshrl.u32 %v5638, 7
      %v5640 = vadd.s32 %v5639, 16
      %5641 = vset.pattern.permute.xlu0 %v5640
      %5642 = vperm.xlu0 %5641, %v4415
      %v5643 = vpop.permute.xlu0 %5642
      %v5644 = vlaneseq
      %v5645 = vshrl.u32 %v5644, 7
      %v5646 = vadd.s32 %v5645, 16
      %5647 = vset.pattern.permute.xlu0 %v5646
      %5648 = vperm.xlu0 %5647, %v4422
      %v5649 = vpop.permute.xlu0 %5648
      %v5650 = vlaneseq
      %v5651 = vshrl.u32 %v5650, 7
      %v5652 = vadd.s32 %v5651, 16
      %5653 = vset.pattern.permute.xlu0 %v5652
      %5654 = vperm.xlu0 %5653, %v4429
      %v5655 = vpop.permute.xlu0 %5654
      %v5656 = vlaneseq
      %v5657 = vshrl.u32 %v5656, 7
      %v5658 = vadd.s32 %v5657, 16
      %5659 = vset.pattern.permute.xlu0 %v5658
      %5660 = vperm.xlu0 %5659, %v4436
      %v5661 = vpop.permute.xlu0 %5660
      %v5662 = vlaneseq
      %v5663 = vshrl.u32 %v5662, 7
      %v5664 = vadd.s32 %v5663, 16
      %5665 = vset.pattern.permute.xlu0 %v5664
      %5666 = vperm.xlu0 %5665, %v4443
      %v5667 = vpop.permute.xlu0 %5666
      %v5668 = vlaneseq
      %v5669 = vshrl.u32 %v5668, 7
      %v5670 = vadd.s32 %v5669, 16
      %5671 = vset.pattern.permute.xlu0 %v5670
      %5672 = vperm.xlu0 %5671, %v4450
      %v5673 = vpop.permute.xlu0 %5672
      %v5674 = vlaneseq
      %v5675 = vshrl.u32 %v5674, 7
      %v5676 = vadd.s32 %v5675, 16
      %5677 = vset.pattern.permute.xlu0 %v5676
      %5678 = vperm.xlu0 %5677, %v4457
      %v5679 = vpop.permute.xlu0 %5678
      %v5680 = vlaneseq
      %v5681 = vshrl.u32 %v5680, 7
      %v5682 = vadd.s32 %v5681, 24
      %5683 = vset.pattern.permute.xlu0 %v5682
      %5684 = vperm.xlu0 %5683, %v4016
      %v5685 = vpop.permute.xlu0 %5684
      %v5686 = vlaneseq
      %v5687 = vshrl.u32 %v5686, 7
      %v5688 = vadd.s32 %v5687, 24
      %5689 = vset.pattern.permute.xlu0 %v5688
      %5690 = vperm.xlu0 %5689, %v4023
      %v5691 = vpop.permute.xlu0 %5690
      %v5692 = vlaneseq
      %v5693 = vshrl.u32 %v5692, 7
      %v5694 = vadd.s32 %v5693, 24
      %5695 = vset.pattern.permute.xlu0 %v5694
      %5696 = vperm.xlu0 %5695, %v4030
      %v5697 = vpop.permute.xlu0 %5696
      %v5698 = vlaneseq
      %v5699 = vshrl.u32 %v5698, 7
      %v5700 = vadd.s32 %v5699, 24
      %5701 = vset.pattern.permute.xlu0 %v5700
      %5702 = vperm.xlu0 %5701, %v4037
      %v5703 = vpop.permute.xlu0 %5702
      %v5704 = vlaneseq
      %v5705 = vshrl.u32 %v5704, 7
      %v5706 = vadd.s32 %v5705, 24
      %5707 = vset.pattern.permute.xlu0 %v5706
      %5708 = vperm.xlu0 %5707, %v4044
      %v5709 = vpop.permute.xlu0 %5708
      %v5710 = vlaneseq
      %v5711 = vshrl.u32 %v5710, 7
      %v5712 = vadd.s32 %v5711, 24
      %5713 = vset.pattern.permute.xlu0 %v5712
      %5714 = vperm.xlu0 %5713, %v4051
      %v5715 = vpop.permute.xlu0 %5714
      %v5716 = vlaneseq
      %v5717 = vshrl.u32 %v5716, 7
      %v5718 = vadd.s32 %v5717, 24
      %5719 = vset.pattern.permute.xlu0 %v5718
      %5720 = vperm.xlu0 %5719, %v4058
      %v5721 = vpop.permute.xlu0 %5720
      %v5722 = vlaneseq
      %v5723 = vshrl.u32 %v5722, 7
      %v5724 = vadd.s32 %v5723, 24
      %5725 = vset.pattern.permute.xlu0 %v5724
      %5726 = vperm.xlu0 %5725, %v4065
      %v5727 = vpop.permute.xlu0 %5726
      %v5728 = vlaneseq
      %v5729 = vshrl.u32 %v5728, 7
      %v5730 = vadd.s32 %v5729, 24
      %5731 = vset.pattern.permute.xlu0 %v5730
      %5732 = vperm.xlu0 %5731, %v4072
      %v5733 = vpop.permute.xlu0 %5732
      %v5734 = vlaneseq
      %v5735 = vshrl.u32 %v5734, 7
      %v5736 = vadd.s32 %v5735, 24
      %5737 = vset.pattern.permute.xlu0 %v5736
      %5738 = vperm.xlu0 %5737, %v4079
      %v5739 = vpop.permute.xlu0 %5738
      %v5740 = vlaneseq
      %v5741 = vshrl.u32 %v5740, 7
      %v5742 = vadd.s32 %v5741, 24
      %5743 = vset.pattern.permute.xlu0 %v5742
      %5744 = vperm.xlu0 %5743, %v4086
      %v5745 = vpop.permute.xlu0 %5744
      %v5746 = vlaneseq
      %v5747 = vshrl.u32 %v5746, 7
      %v5748 = vadd.s32 %v5747, 24
      %5749 = vset.pattern.permute.xlu0 %v5748
      %5750 = vperm.xlu0 %5749, %v4093
      %v5751 = vpop.permute.xlu0 %5750
      %v5752 = vlaneseq
      %v5753 = vshrl.u32 %v5752, 7
      %v5754 = vadd.s32 %v5753, 24
      %5755 = vset.pattern.permute.xlu0 %v5754
      %5756 = vperm.xlu0 %5755, %v4100
      %v5757 = vpop.permute.xlu0 %5756
      %v5758 = vlaneseq
      %v5759 = vshrl.u32 %v5758, 7
      %v5760 = vadd.s32 %v5759, 24
      %5761 = vset.pattern.permute.xlu0 %v5760
      %5762 = vperm.xlu0 %5761, %v4107
      %v5763 = vpop.permute.xlu0 %5762
      %v5764 = vlaneseq
      %v5765 = vshrl.u32 %v5764, 7
      %v5766 = vadd.s32 %v5765, 24
      %5767 = vset.pattern.permute.xlu0 %v5766
      %5768 = vperm.xlu0 %5767, %v4114
      %v5769 = vpop.permute.xlu0 %5768
      %v5770 = vlaneseq
      %v5771 = vshrl.u32 %v5770, 7
      %v5772 = vadd.s32 %v5771, 24
      %5773 = vset.pattern.permute.xlu0 %v5772
      %5774 = vperm.xlu0 %5773, %v4121
      %v5775 = vpop.permute.xlu0 %5774
      %v5776 = vlaneseq
      %v5777 = vshrl.u32 %v5776, 7
      %v5778 = vadd.s32 %v5777, 24
      %5779 = vset.pattern.permute.xlu0 %v5778
      %5780 = vperm.xlu0 %5779, %v4128
      %v5781 = vpop.permute.xlu0 %5780
      %v5782 = vlaneseq
      %v5783 = vshrl.u32 %v5782, 7
      %v5784 = vadd.s32 %v5783, 24
      %5785 = vset.pattern.permute.xlu0 %v5784
      %5786 = vperm.xlu0 %5785, %v4135
      %v5787 = vpop.permute.xlu0 %5786
      %v5788 = vlaneseq
      %v5789 = vshrl.u32 %v5788, 7
      %v5790 = vadd.s32 %v5789, 24
      %5791 = vset.pattern.permute.xlu0 %v5790
      %5792 = vperm.xlu0 %5791, %v4142
      %v5793 = vpop.permute.xlu0 %5792
      %v5794 = vlaneseq
      %v5795 = vshrl.u32 %v5794, 7
      %v5796 = vadd.s32 %v5795, 24
      %5797 = vset.pattern.permute.xlu0 %v5796
      %5798 = vperm.xlu0 %5797, %v4149
      %v5799 = vpop.permute.xlu0 %5798
      %v5800 = vlaneseq
      %v5801 = vshrl.u32 %v5800, 7
      %v5802 = vadd.s32 %v5801, 24
      %5803 = vset.pattern.permute.xlu0 %v5802
      %5804 = vperm.xlu0 %5803, %v4156
      %v5805 = vpop.permute.xlu0 %5804
      %v5806 = vlaneseq
      %v5807 = vshrl.u32 %v5806, 7
      %v5808 = vadd.s32 %v5807, 24
      %5809 = vset.pattern.permute.xlu0 %v5808
      %5810 = vperm.xlu0 %5809, %v4163
      %v5811 = vpop.permute.xlu0 %5810
      %v5812 = vlaneseq
      %v5813 = vshrl.u32 %v5812, 7
      %v5814 = vadd.s32 %v5813, 24
      %5815 = vset.pattern.permute.xlu0 %v5814
      %5816 = vperm.xlu0 %5815, %v4170
      %v5817 = vpop.permute.xlu0 %5816
      %v5818 = vlaneseq
      %v5819 = vshrl.u32 %v5818, 7
      %v5820 = vadd.s32 %v5819, 24
      %5821 = vset.pattern.permute.xlu0 %v5820
      %5822 = vperm.xlu0 %5821, %v4177
      %v5823 = vpop.permute.xlu0 %5822
      %v5824 = vlaneseq
      %v5825 = vshrl.u32 %v5824, 7
      %v5826 = vadd.s32 %v5825, 24
      %5827 = vset.pattern.permute.xlu0 %v5826
      %5828 = vperm.xlu0 %5827, %v4184
      %v5829 = vpop.permute.xlu0 %5828
      %v5830 = vlaneseq
      %v5831 = vshrl.u32 %v5830, 7
      %v5832 = vadd.s32 %v5831, 24
      %5833 = vset.pattern.permute.xlu0 %v5832
      %5834 = vperm.xlu0 %5833, %v4191
      %v5835 = vpop.permute.xlu0 %5834
      %v5836 = vlaneseq
      %v5837 = vshrl.u32 %v5836, 7
      %v5838 = vadd.s32 %v5837, 24
      %5839 = vset.pattern.permute.xlu0 %v5838
      %5840 = vperm.xlu0 %5839, %v4198
      %v5841 = vpop.permute.xlu0 %5840
      %v5842 = vlaneseq
      %v5843 = vshrl.u32 %v5842, 7
      %v5844 = vadd.s32 %v5843, 24
      %5845 = vset.pattern.permute.xlu0 %v5844
      %5846 = vperm.xlu0 %5845, %v4205
      %v5847 = vpop.permute.xlu0 %5846
      %v5848 = vlaneseq
      %v5849 = vshrl.u32 %v5848, 7
      %v5850 = vadd.s32 %v5849, 24
      %5851 = vset.pattern.permute.xlu0 %v5850
      %5852 = vperm.xlu0 %5851, %v4212
      %v5853 = vpop.permute.xlu0 %5852
      %v5854 = vlaneseq
      %v5855 = vshrl.u32 %v5854, 7
      %v5856 = vadd.s32 %v5855, 24
      %5857 = vset.pattern.permute.xlu0 %v5856
      %5858 = vperm.xlu0 %5857, %v4219
      %v5859 = vpop.permute.xlu0 %5858
      %v5860 = vlaneseq
      %v5861 = vshrl.u32 %v5860, 7
      %v5862 = vadd.s32 %v5861, 24
      %5863 = vset.pattern.permute.xlu0 %v5862
      %5864 = vperm.xlu0 %5863, %v4226
      %v5865 = vpop.permute.xlu0 %5864
      %v5866 = vlaneseq
      %v5867 = vshrl.u32 %v5866, 7
      %v5868 = vadd.s32 %v5867, 24
      %5869 = vset.pattern.permute.xlu0 %v5868
      %5870 = vperm.xlu0 %5869, %v4233
      %v5871 = vpop.permute.xlu0 %5870
      %v5872 = vlaneseq
      %v5873 = vshrl.u32 %v5872, 7
      %v5874 = vadd.s32 %v5873, 24
      %5875 = vset.pattern.permute.xlu0 %v5874
      %5876 = vperm.xlu0 %5875, %v4240
      %v5877 = vpop.permute.xlu0 %5876
      %v5878 = vlaneseq
      %v5879 = vshrl.u32 %v5878, 7
      %v5880 = vadd.s32 %v5879, 24
      %5881 = vset.pattern.permute.xlu0 %v5880
      %5882 = vperm.xlu0 %5881, %v4247
      %v5883 = vpop.permute.xlu0 %5882
      %v5884 = vlaneseq
      %v5885 = vshrl.u32 %v5884, 7
      %v5886 = vadd.s32 %v5885, 24
      %5887 = vset.pattern.permute.xlu0 %v5886
      %5888 = vperm.xlu0 %5887, %v4254
      %v5889 = vpop.permute.xlu0 %5888
      %v5890 = vlaneseq
      %v5891 = vshrl.u32 %v5890, 7
      %v5892 = vadd.s32 %v5891, 24
      %5893 = vset.pattern.permute.xlu0 %v5892
      %5894 = vperm.xlu0 %5893, %v4261
      %v5895 = vpop.permute.xlu0 %5894
      %v5896 = vlaneseq
      %v5897 = vshrl.u32 %v5896, 7
      %v5898 = vadd.s32 %v5897, 24
      %5899 = vset.pattern.permute.xlu0 %v5898
      %5900 = vperm.xlu0 %5899, %v4268
      %v5901 = vpop.permute.xlu0 %5900
      %v5902 = vlaneseq
      %v5903 = vshrl.u32 %v5902, 7
      %v5904 = vadd.s32 %v5903, 24
      %5905 = vset.pattern.permute.xlu0 %v5904
      %5906 = vperm.xlu0 %5905, %v4275
      %v5907 = vpop.permute.xlu0 %5906
      %v5908 = vlaneseq
      %v5909 = vshrl.u32 %v5908, 7
      %v5910 = vadd.s32 %v5909, 24
      %5911 = vset.pattern.permute.xlu0 %v5910
      %5912 = vperm.xlu0 %5911, %v4282
      %v5913 = vpop.permute.xlu0 %5912
      %v5914 = vlaneseq
      %v5915 = vshrl.u32 %v5914, 7
      %v5916 = vadd.s32 %v5915, 24
      %5917 = vset.pattern.permute.xlu0 %v5916
      %5918 = vperm.xlu0 %5917, %v4289
      %v5919 = vpop.permute.xlu0 %5918
      %v5920 = vlaneseq
      %v5921 = vshrl.u32 %v5920, 7
      %v5922 = vadd.s32 %v5921, 24
      %5923 = vset.pattern.permute.xlu0 %v5922
      %5924 = vperm.xlu0 %5923, %v4296
      %v5925 = vpop.permute.xlu0 %5924
      %v5926 = vlaneseq
      %v5927 = vshrl.u32 %v5926, 7
      %v5928 = vadd.s32 %v5927, 24
      %5929 = vset.pattern.permute.xlu0 %v5928
      %5930 = vperm.xlu0 %5929, %v4303
      %v5931 = vpop.permute.xlu0 %5930
      %v5932 = vlaneseq
      %v5933 = vshrl.u32 %v5932, 7
      %v5934 = vadd.s32 %v5933, 24
      %5935 = vset.pattern.permute.xlu0 %v5934
      %5936 = vperm.xlu0 %5935, %v4310
      %v5937 = vpop.permute.xlu0 %5936
      %v5938 = vlaneseq
      %v5939 = vshrl.u32 %v5938, 7
      %v5940 = vadd.s32 %v5939, 24
      %5941 = vset.pattern.permute.xlu0 %v5940
      %5942 = vperm.xlu0 %5941, %v4317
      %v5943 = vpop.permute.xlu0 %5942
      %v5944 = vlaneseq
      %v5945 = vshrl.u32 %v5944, 7
      %v5946 = vadd.s32 %v5945, 24
      %5947 = vset.pattern.permute.xlu0 %v5946
      %5948 = vperm.xlu0 %5947, %v4324
      %v5949 = vpop.permute.xlu0 %5948
      %v5950 = vlaneseq
      %v5951 = vshrl.u32 %v5950, 7
      %v5952 = vadd.s32 %v5951, 24
      %5953 = vset.pattern.permute.xlu0 %v5952
      %5954 = vperm.xlu0 %5953, %v4331
      %v5955 = vpop.permute.xlu0 %5954
      %v5956 = vlaneseq
      %v5957 = vshrl.u32 %v5956, 7
      %v5958 = vadd.s32 %v5957, 24
      %5959 = vset.pattern.permute.xlu0 %v5958
      %5960 = vperm.xlu0 %5959, %v4338
      %v5961 = vpop.permute.xlu0 %5960
      %v5962 = vlaneseq
      %v5963 = vshrl.u32 %v5962, 7
      %v5964 = vadd.s32 %v5963, 24
      %5965 = vset.pattern.permute.xlu0 %v5964
      %5966 = vperm.xlu0 %5965, %v4345
      %v5967 = vpop.permute.xlu0 %5966
      %v5968 = vlaneseq
      %v5969 = vshrl.u32 %v5968, 7
      %v5970 = vadd.s32 %v5969, 24
      %5971 = vset.pattern.permute.xlu0 %v5970
      %5972 = vperm.xlu0 %5971, %v4352
      %v5973 = vpop.permute.xlu0 %5972
      %v5974 = vlaneseq
      %v5975 = vshrl.u32 %v5974, 7
      %v5976 = vadd.s32 %v5975, 24
      %5977 = vset.pattern.permute.xlu0 %v5976
      %5978 = vperm.xlu0 %5977, %v4359
      %v5979 = vpop.permute.xlu0 %5978
      %v5980 = vlaneseq
      %v5981 = vshrl.u32 %v5980, 7
      %v5982 = vadd.s32 %v5981, 24
      %5983 = vset.pattern.permute.xlu0 %v5982
      %5984 = vperm.xlu0 %5983, %v4366
      %v5985 = vpop.permute.xlu0 %5984
      %v5986 = vlaneseq
      %v5987 = vshrl.u32 %v5986, 7
      %v5988 = vadd.s32 %v5987, 24
      %5989 = vset.pattern.permute.xlu0 %v5988
      %5990 = vperm.xlu0 %5989, %v4373
      %v5991 = vpop.permute.xlu0 %5990
      %v5992 = vlaneseq
      %v5993 = vshrl.u32 %v5992, 7
      %v5994 = vadd.s32 %v5993, 24
      %5995 = vset.pattern.permute.xlu0 %v5994
      %5996 = vperm.xlu0 %5995, %v4380
      %v5997 = vpop.permute.xlu0 %5996
      %v5998 = vlaneseq
      %v5999 = vshrl.u32 %v5998, 7
      %v6000 = vadd.s32 %v5999, 24
      %6001 = vset.pattern.permute.xlu0 %v6000
      %6002 = vperm.xlu0 %6001, %v4387
      %v6003 = vpop.permute.xlu0 %6002
      %v6004 = vlaneseq
      %v6005 = vshrl.u32 %v6004, 7
      %v6006 = vadd.s32 %v6005, 24
      %6007 = vset.pattern.permute.xlu0 %v6006
      %6008 = vperm.xlu0 %6007, %v4394
      %v6009 = vpop.permute.xlu0 %6008
      %v6010 = vlaneseq
      %v6011 = vshrl.u32 %v6010, 7
      %v6012 = vadd.s32 %v6011, 24
      %6013 = vset.pattern.permute.xlu0 %v6012
      %6014 = vperm.xlu0 %6013, %v4401
      %v6015 = vpop.permute.xlu0 %6014
      %v6016 = vlaneseq
      %v6017 = vshrl.u32 %v6016, 7
      %v6018 = vadd.s32 %v6017, 24
      %6019 = vset.pattern.permute.xlu0 %v6018
      %6020 = vperm.xlu0 %6019, %v4408
      %v6021 = vpop.permute.xlu0 %6020
      %v6022 = vlaneseq
      %v6023 = vshrl.u32 %v6022, 7
      %v6024 = vadd.s32 %v6023, 24
      %6025 = vset.pattern.permute.xlu0 %v6024
      %6026 = vperm.xlu0 %6025, %v4415
      %v6027 = vpop.permute.xlu0 %6026
      %v6028 = vlaneseq
      %v6029 = vshrl.u32 %v6028, 7
      %v6030 = vadd.s32 %v6029, 24
      %6031 = vset.pattern.permute.xlu0 %v6030
      %6032 = vperm.xlu0 %6031, %v4422
      %v6033 = vpop.permute.xlu0 %6032
      %v6034 = vlaneseq
      %v6035 = vshrl.u32 %v6034, 7
      %v6036 = vadd.s32 %v6035, 24
      %6037 = vset.pattern.permute.xlu0 %v6036
      %6038 = vperm.xlu0 %6037, %v4429
      %v6039 = vpop.permute.xlu0 %6038
      %v6040 = vlaneseq
      %v6041 = vshrl.u32 %v6040, 7
      %v6042 = vadd.s32 %v6041, 24
      %6043 = vset.pattern.permute.xlu0 %v6042
      %6044 = vperm.xlu0 %6043, %v4436
      %v6045 = vpop.permute.xlu0 %6044
      %v6046 = vlaneseq
      %v6047 = vshrl.u32 %v6046, 7
      %v6048 = vadd.s32 %v6047, 24
      %6049 = vset.pattern.permute.xlu0 %v6048
      %6050 = vperm.xlu0 %6049, %v4443
      %v6051 = vpop.permute.xlu0 %6050
      %v6052 = vlaneseq
      %v6053 = vshrl.u32 %v6052, 7
      %v6054 = vadd.s32 %v6053, 24
      %6055 = vset.pattern.permute.xlu0 %v6054
      %6056 = vperm.xlu0 %6055, %v4450
      %v6057 = vpop.permute.xlu0 %6056
      %v6058 = vlaneseq
      %v6059 = vshrl.u32 %v6058, 7
      %v6060 = vadd.s32 %v6059, 24
      %6061 = vset.pattern.permute.xlu0 %v6060
      %6062 = vperm.xlu0 %6061, %v4457
      %v6063 = vpop.permute.xlu0 %6062
      %v6064 = vsel %vm401, %v5301, %v5685
      %v6065 = vsel %vm401, %v5307, %v5691
      %v6066 = vsel %vm401, %v5313, %v5697
      %v6067 = vsel %vm401, %v5319, %v5703
      %v6068 = vsel %vm401, %v5325, %v5709
      %v6069 = vsel %vm401, %v5331, %v5715
      %v6070 = vsel %vm401, %v5337, %v5721
      %v6071 = vsel %vm401, %v5343, %v5727
      %v6072 = vsel %vm401, %v5349, %v5733
      %v6073 = vsel %vm401, %v5355, %v5739
      %v6074 = vsel %vm401, %v5361, %v5745
      %v6075 = vsel %vm401, %v5367, %v5751
      %v6076 = vsel %vm401, %v5373, %v5757
      %v6077 = vsel %vm401, %v5379, %v5763
      %v6078 = vsel %vm401, %v5385, %v5769
      %v6079 = vsel %vm401, %v5391, %v5775
      %v6080 = vsel %vm401, %v5397, %v5781
      %v6081 = vsel %vm401, %v5403, %v5787
      %v6082 = vsel %vm401, %v5409, %v5793
      %v6083 = vsel %vm401, %v5415, %v5799
      %v6084 = vsel %vm401, %v5421, %v5805
      %v6085 = vsel %vm401, %v5427, %v5811
      %v6086 = vsel %vm401, %v5433, %v5817
      %v6087 = vsel %vm401, %v5439, %v5823
      %v6088 = vsel %vm401, %v5445, %v5829
      %v6089 = vsel %vm401, %v5451, %v5835
      %v6090 = vsel %vm401, %v5457, %v5841
      %v6091 = vsel %vm401, %v5463, %v5847
      %v6092 = vsel %vm401, %v5469, %v5853
      %v6093 = vsel %vm401, %v5475, %v5859
      %v6094 = vsel %vm401, %v5481, %v5865
      %v6095 = vsel %vm401, %v5487, %v5871
      %v6096 = vsel %vm401, %v5493, %v5877
      %v6097 = vsel %vm401, %v5499, %v5883
      %v6098 = vsel %vm401, %v5505, %v5889
      %v6099 = vsel %vm401, %v5511, %v5895
      %v6100 = vsel %vm401, %v5517, %v5901
      %v6101 = vsel %vm401, %v5523, %v5907
      %v6102 = vsel %vm401, %v5529, %v5913
      %v6103 = vsel %vm401, %v5535, %v5919
      %v6104 = vsel %vm401, %v5541, %v5925
      %v6105 = vsel %vm401, %v5547, %v5931
      %v6106 = vsel %vm401, %v5553, %v5937
      %v6107 = vsel %vm401, %v5559, %v5943
      %v6108 = vsel %vm401, %v5565, %v5949
      %v6109 = vsel %vm401, %v5571, %v5955
      %v6110 = vsel %vm401, %v5577, %v5961
      %v6111 = vsel %vm401, %v5583, %v5967
      %v6112 = vsel %vm401, %v5589, %v5973
      %v6113 = vsel %vm401, %v5595, %v5979
      %v6114 = vsel %vm401, %v5601, %v5985
      %v6115 = vsel %vm401, %v5607, %v5991
      %v6116 = vsel %vm401, %v5613, %v5997
      %v6117 = vsel %vm401, %v5619, %v6003
      %v6118 = vsel %vm401, %v5625, %v6009
      %v6119 = vsel %vm401, %v5631, %v6015
      %v6120 = vsel %vm401, %v5637, %v6021
      %v6121 = vsel %vm401, %v5643, %v6027
      %v6122 = vsel %vm401, %v5649, %v6033
      %v6123 = vsel %vm401, %v5655, %v6039
      %v6124 = vsel %vm401, %v5661, %v6045
      %v6125 = vsel %vm401, %v5667, %v6051
      %v6126 = vsel %vm401, %v5673, %v6057
      %v6127 = vsel %vm401, %v5679, %v6063
      %6128 = vst [vmem:[#allocation8] sm:$0xff] %v6064
      %6129 = vst [vmem:[#allocation8 + $0x8] sm:$0xff] %v6065
      %6130 = vst [vmem:[#allocation8 + $0x10] sm:$0xff] %v6066
      %6131 = vst [vmem:[#allocation8 + $0x18] sm:$0xff] %v6067
      %6132 = vst [vmem:[#allocation8 + $0x20] sm:$0xff] %v6068
      %6133 = vst [vmem:[#allocation8 + $0x28] sm:$0xff] %v6069
      %6134 = vst [vmem:[#allocation8 + $0x30] sm:$0xff] %v6070
      %6135 = vst [vmem:[#allocation8 + $0x38] sm:$0xff] %v6071
      %6136 = vst [vmem:[#allocation8 + $0x40] sm:$0xff] %v6072
      %6137 = vst [vmem:[#allocation8 + $0x48] sm:$0xff] %v6073
      %6138 = vst [vmem:[#allocation8 + $0x50] sm:$0xff] %v6074
      %6139 = vst [vmem:[#allocation8 + $0x58] sm:$0xff] %v6075
      %6140 = vst [vmem:[#allocation8 + $0x60] sm:$0xff] %v6076
      %6141 = vst [vmem:[#allocation8 + $0x68] sm:$0xff] %v6077
      %6142 = vst [vmem:[#allocation8 + $0x70] sm:$0xff] %v6078
      %6143 = vst [vmem:[#allocation8 + $0x78] sm:$0xff] %v6079
      %6144 = vst [vmem:[#allocation8 + $0x80] sm:$0xff] %v6080
      %6145 = vst [vmem:[#allocation8 + $0x88] sm:$0xff] %v6081
      %6146 = vst [vmem:[#allocation8 + $0x90] sm:$0xff] %v6082
      %6147 = vst [vmem:[#allocation8 + $0x98] sm:$0xff] %v6083
      %6148 = vst [vmem:[#allocation8 + $0xa0] sm:$0xff] %v6084
      %6149 = vst [vmem:[#allocation8 + $0xa8] sm:$0xff] %v6085
      %6150 = vst [vmem:[#allocation8 + $0xb0] sm:$0xff] %v6086
      %6151 = vst [vmem:[#allocation8 + $0xb8] sm:$0xff] %v6087
      %6152 = vst [vmem:[#allocation8 + $0xc0] sm:$0xff] %v6088
      %6153 = vst [vmem:[#allocation8 + $0xc8] sm:$0xff] %v6089
      %6154 = vst [vmem:[#allocation8 + $0xd0] sm:$0xff] %v6090
      %6155 = vst [vmem:[#allocation8 + $0xd8] sm:$0xff] %v6091
      %6156 = vst [vmem:[#allocation8 + $0xe0] sm:$0xff] %v6092
      %6157 = vst [vmem:[#allocation8 + $0xe8] sm:$0xff] %v6093
      %6158 = vst [vmem:[#allocation8 + $0xf0] sm:$0xff] %v6094
      %6159 = vst [vmem:[#allocation8 + $0xf8] sm:$0xff] %v6095
      %6160 = vst [vmem:[#allocation8 + $0x100] sm:$0xff] %v6096
      %6161 = vst [vmem:[#allocation8 + $0x108] sm:$0xff] %v6097
      %6162 = vst [vmem:[#allocation8 + $0x110] sm:$0xff] %v6098
      %6163 = vst [vmem:[#allocation8 + $0x118] sm:$0xff] %v6099
      %6164 = vst [vmem:[#allocation8 + $0x120] sm:$0xff] %v6100
      %6165 = vst [vmem:[#allocation8 + $0x128] sm:$0xff] %v6101
      %6166 = vst [vmem:[#allocation8 + $0x130] sm:$0xff] %v6102
      %6167 = vst [vmem:[#allocation8 + $0x138] sm:$0xff] %v6103
      %6168 = vst [vmem:[#allocation8 + $0x140] sm:$0xff] %v6104
      %6169 = vst [vmem:[#allocation8 + $0x148] sm:$0xff] %v6105
      %6170 = vst [vmem:[#allocation8 + $0x150] sm:$0xff] %v6106
      %6171 = vst [vmem:[#allocation8 + $0x158] sm:$0xff] %v6107
      %6172 = vst [vmem:[#allocation8 + $0x160] sm:$0xff] %v6108
      %6173 = vst [vmem:[#allocation8 + $0x168] sm:$0xff] %v6109
      %6174 = vst [vmem:[#allocation8 + $0x170] sm:$0xff] %v6110
      %6175 = vst [vmem:[#allocation8 + $0x178] sm:$0xff] %v6111
      %6176 = vst [vmem:[#allocation8 + $0x180] sm:$0xff] %v6112
      %6177 = vst [vmem:[#allocation8 + $0x188] sm:$0xff] %v6113
      %6178 = vst [vmem:[#allocation8 + $0x190] sm:$0xff] %v6114
      %6179 = vst [vmem:[#allocation8 + $0x198] sm:$0xff] %v6115
      %6180 = vst [vmem:[#allocation8 + $0x1a0] sm:$0xff] %v6116
      %6181 = vst [vmem:[#allocation8 + $0x1a8] sm:$0xff] %v6117
      %6182 = vst [vmem:[#allocation8 + $0x1b0] sm:$0xff] %v6118
      %6183 = vst [vmem:[#allocation8 + $0x1b8] sm:$0xff] %v6119
      %6184 = vst [vmem:[#allocation8 + $0x1c0] sm:$0xff] %v6120
      %6185 = vst [vmem:[#allocation8 + $0x1c8] sm:$0xff] %v6121
      %6186 = vst [vmem:[#allocation8 + $0x1d0] sm:$0xff] %v6122
      %6187 = vst [vmem:[#allocation8 + $0x1d8] sm:$0xff] %v6123
      %6188 = vst [vmem:[#allocation8 + $0x1e0] sm:$0xff] %v6124
      %6189 = vst [vmem:[#allocation8 + $0x1e8] sm:$0xff] %v6125
      %6190 = vst [vmem:[#allocation8 + $0x1f0] sm:$0xff] %v6126
      %6191 = vst [vmem:[#allocation8 + $0x1f8] sm:$0xff] %v6127
      loop: start=0, step=1, limit=8
      $region57: #{_lambda_.12} parent=55 // loop_pre_header
        _
      $region58: #{_lambda_.12} parent=55 // loop_header
        %s6193 = sphi 0, %s6197
        %p6194 = scmp.ge.s32.totalorder %s6193, 8
        %v6198 = vphi 0.0, %v6295
        %v6199 = vphi 0.0, %v6409
      $region59: #{_lambda_.12} parent=55 // loop_header_branch
        %6196 = sbr.rel (%p6194) target = $region63
      $region60: #{_lambda_.12} parent=55 // loop_body
        %s6200 = smul.u32 %s6193, 8
        %s6201 = ssub.s32 7, %s6193
        %s6202 = smul.u32 %s6201, 8
        %s6203 = smul.u32 %s6200, 8
        %s6204 = scalar_lea.vmem [#allocation3], %s6203
        %v6205 = vld [vmem:[%s6204] sm:$0xff]
        %v6206 = vld [vmem:[%s6204 + $0x8] sm:$0xff]
        %v6207 = vld [vmem:[%s6204 + $0x10] sm:$0xff]
        %v6208 = vld [vmem:[%s6204 + $0x18] sm:$0xff]
        %v6209 = vld [vmem:[%s6204 + $0x20] sm:$0xff]
        %v6210 = vld [vmem:[%s6204 + $0x28] sm:$0xff]
        %v6211 = vld [vmem:[%s6204 + $0x30] sm:$0xff]
        %v6212 = vld [vmem:[%s6204 + $0x38] sm:$0xff]
        %s6213 = scalar_lea.vmem [#allocation4], %s6203
        %v6214 = vld [vmem:[%s6213] sm:$0xff]
        %v6215 = vld [vmem:[%s6213 + $0x8] sm:$0xff]
        %v6216 = vld [vmem:[%s6213 + $0x10] sm:$0xff]
        %v6217 = vld [vmem:[%s6213 + $0x18] sm:$0xff]
        %v6218 = vld [vmem:[%s6213 + $0x20] sm:$0xff]
        %v6219 = vld [vmem:[%s6213 + $0x28] sm:$0xff]
        %v6220 = vld [vmem:[%s6213 + $0x30] sm:$0xff]
        %v6221 = vld [vmem:[%s6213 + $0x38] sm:$0xff]
        %s6222 = scalar_lea.vmem [#allocation5], %s6203
        %v6223 = vld [vmem:[%s6222] sm:$0xff]
        %v6224 = vld [vmem:[%s6222 + $0x8] sm:$0xff]
        %v6225 = vld [vmem:[%s6222 + $0x10] sm:$0xff]
        %v6226 = vld [vmem:[%s6222 + $0x18] sm:$0xff]
        %v6227 = vld [vmem:[%s6222 + $0x20] sm:$0xff]
        %v6228 = vld [vmem:[%s6222 + $0x28] sm:$0xff]
        %v6229 = vld [vmem:[%s6222 + $0x30] sm:$0xff]
        %v6230 = vld [vmem:[%s6222 + $0x38] sm:$0xff]
        %v6231 = vmul.f32 %v6205, %v6198
        %v6232 = vadd.f32 %v6231, %v6214
        %v6233 = vmul.f32 %v6223, %v6232
        %v6234 = vrot.slane %v6233, 4
        %v6235 = vadd.f32 %v6233, %v6234
        %v6236 = vrot.slane %v6235, 2
        %v6237 = vadd.f32 %v6235, %v6236
        %v6238 = vrot.slane %v6237, 1
        %v6239 = vadd.f32 %v6237, %v6238
        %v6240 = vmul.f32 %v6206, %v6232
        %v6241 = vadd.f32 %v6240, %v6215
        %v6242 = vmul.f32 %v6224, %v6241
        %v6243 = vrot.slane %v6242, 4
        %v6244 = vadd.f32 %v6242, %v6243
        %v6245 = vrot.slane %v6244, 2
        %v6246 = vadd.f32 %v6244, %v6245
        %v6247 = vrot.slane %v6246, 1
        %v6248 = vadd.f32 %v6246, %v6247
        %v6249 = vmul.f32 %v6207, %v6241
        %v6250 = vadd.f32 %v6249, %v6216
        %v6251 = vmul.f32 %v6225, %v6250
        %v6252 = vrot.slane %v6251, 4
        %v6253 = vadd.f32 %v6251, %v6252
        %v6254 = vrot.slane %v6253, 2
        %v6255 = vadd.f32 %v6253, %v6254
        %v6256 = vrot.slane %v6255, 1
        %v6257 = vadd.f32 %v6255, %v6256
        %v6258 = vmul.f32 %v6208, %v6250
        %v6259 = vadd.f32 %v6258, %v6217
        %v6260 = vmul.f32 %v6226, %v6259
        %v6261 = vrot.slane %v6260, 4
        %v6262 = vadd.f32 %v6260, %v6261
        %v6263 = vrot.slane %v6262, 2
        %v6264 = vadd.f32 %v6262, %v6263
        %v6265 = vrot.slane %v6264, 1
        %v6266 = vadd.f32 %v6264, %v6265
        %v6267 = vmul.f32 %v6209, %v6259
        %v6268 = vadd.f32 %v6267, %v6218
        %v6269 = vmul.f32 %v6227, %v6268
        %v6270 = vrot.slane %v6269, 4
        %v6271 = vadd.f32 %v6269, %v6270
        %v6272 = vrot.slane %v6271, 2
        %v6273 = vadd.f32 %v6271, %v6272
        %v6274 = vrot.slane %v6273, 1
        %v6275 = vadd.f32 %v6273, %v6274
        %v6276 = vmul.f32 %v6210, %v6268
        %v6277 = vadd.f32 %v6276, %v6219
        %v6278 = vmul.f32 %v6228, %v6277
        %v6279 = vrot.slane %v6278, 4
        %v6280 = vadd.f32 %v6278, %v6279
        %v6281 = vrot.slane %v6280, 2
        %v6282 = vadd.f32 %v6280, %v6281
        %v6283 = vrot.slane %v6282, 1
        %v6284 = vadd.f32 %v6282, %v6283
        %v6285 = vmul.f32 %v6211, %v6277
        %v6286 = vadd.f32 %v6285, %v6220
        %v6287 = vmul.f32 %v6229, %v6286
        %v6288 = vrot.slane %v6287, 4
        %v6289 = vadd.f32 %v6287, %v6288
        %v6290 = vrot.slane %v6289, 2
        %v6291 = vadd.f32 %v6289, %v6290
        %v6292 = vrot.slane %v6291, 1
        %v6293 = vadd.f32 %v6291, %v6292
        %v6294 = vmul.f32 %v6212, %v6286
        %v6295 = vadd.f32 %v6294, %v6221
        %v6296 = vmul.f32 %v6230, %v6295
        %v6297 = vrot.slane %v6296, 4
        %v6298 = vadd.f32 %v6296, %v6297
        %v6299 = vrot.slane %v6298, 2
        %v6300 = vadd.f32 %v6298, %v6299
        %v6301 = vrot.slane %v6300, 1
        %v6302 = vadd.f32 %v6300, %v6301
        %vm6303 = vcmask 1040384
        %v6304 = vsel %vm6303, %v6239, %v6248
        %vm6305 = vcmask 1041408
        %v6306 = vsel %vm6305, %v6304, %v6257
        %vm6307 = vcmask 1042432
        %v6308 = vsel %vm6307, %v6306, %v6266
        %vm6309 = vcmask 1043456
        %v6310 = vsel %vm6309, %v6308, %v6275
        %vm6311 = vcmask 1044480
        %v6312 = vsel %vm6311, %v6310, %v6284
        %vm6313 = vcmask 1045504
        %v6314 = vsel %vm6313, %v6312, %v6293
        %vm6315 = vcmask 1046528
        %v6316 = vsel %vm6315, %v6314, %v6302
        %s6317 = smul.u32 %s6202, 8
        %s6318 = scalar_lea.vmem [#allocation6], %s6317
        %v6319 = vld [vmem:[%s6318] sm:$0xff]
        %v6320 = vld [vmem:[%s6318 + $0x8] sm:$0xff]
        %v6321 = vld [vmem:[%s6318 + $0x10] sm:$0xff]
        %v6322 = vld [vmem:[%s6318 + $0x18] sm:$0xff]
        %v6323 = vld [vmem:[%s6318 + $0x20] sm:$0xff]
        %v6324 = vld [vmem:[%s6318 + $0x28] sm:$0xff]
        %v6325 = vld [vmem:[%s6318 + $0x30] sm:$0xff]
        %v6326 = vld [vmem:[%s6318 + $0x38] sm:$0xff]
        %s6327 = scalar_lea.vmem [#allocation7], %s6317
        %v6328 = vld [vmem:[%s6327] sm:$0xff]
        %v6329 = vld [vmem:[%s6327 + $0x8] sm:$0xff]
        %v6330 = vld [vmem:[%s6327 + $0x10] sm:$0xff]
        %v6331 = vld [vmem:[%s6327 + $0x18] sm:$0xff]
        %v6332 = vld [vmem:[%s6327 + $0x20] sm:$0xff]
        %v6333 = vld [vmem:[%s6327 + $0x28] sm:$0xff]
        %v6334 = vld [vmem:[%s6327 + $0x30] sm:$0xff]
        %v6335 = vld [vmem:[%s6327 + $0x38] sm:$0xff]
        %s6336 = scalar_lea.vmem [#allocation8], %s6317
        %v6337 = vld [vmem:[%s6336] sm:$0xff]
        %v6338 = vld [vmem:[%s6336 + $0x8] sm:$0xff]
        %v6339 = vld [vmem:[%s6336 + $0x10] sm:$0xff]
        %v6340 = vld [vmem:[%s6336 + $0x18] sm:$0xff]
        %v6341 = vld [vmem:[%s6336 + $0x20] sm:$0xff]
        %v6342 = vld [vmem:[%s6336 + $0x28] sm:$0xff]
        %v6343 = vld [vmem:[%s6336 + $0x30] sm:$0xff]
        %v6344 = vld [vmem:[%s6336 + $0x38] sm:$0xff]
        %v6345 = vmul.f32 %v6326, %v6199
        %v6346 = vadd.f32 %v6345, %v6335
        %v6347 = vmul.f32 %v6344, %v6346
        %v6348 = vrot.slane %v6347, 4
        %v6349 = vadd.f32 %v6347, %v6348
        %v6350 = vrot.slane %v6349, 2
        %v6351 = vadd.f32 %v6349, %v6350
        %v6352 = vrot.slane %v6351, 1
        %v6353 = vadd.f32 %v6351, %v6352
        %v6354 = vmul.f32 %v6325, %v6346
        %v6355 = vadd.f32 %v6354, %v6334
        %v6356 = vmul.f32 %v6343, %v6355
        %v6357 = vrot.slane %v6356, 4
        %v6358 = vadd.f32 %v6356, %v6357
        %v6359 = vrot.slane %v6358, 2
        %v6360 = vadd.f32 %v6358, %v6359
        %v6361 = vrot.slane %v6360, 1
        %v6362 = vadd.f32 %v6360, %v6361
        %v6363 = vmul.f32 %v6324, %v6355
        %v6364 = vadd.f32 %v6363, %v6333
        %v6365 = vmul.f32 %v6342, %v6364
        %v6366 = vrot.slane %v6365, 4
        %v6367 = vadd.f32 %v6365, %v6366
        %v6368 = vrot.slane %v6367, 2
        %v6369 = vadd.f32 %v6367, %v6368
        %v6370 = vrot.slane %v6369, 1
        %v6371 = vadd.f32 %v6369, %v6370
        %v6372 = vmul.f32 %v6323, %v6364
        %v6373 = vadd.f32 %v6372, %v6332
        %v6374 = vmul.f32 %v6341, %v6373
        %v6375 = vrot.slane %v6374, 4
        %v6376 = vadd.f32 %v6374, %v6375
        %v6377 = vrot.slane %v6376, 2
        %v6378 = vadd.f32 %v6376, %v6377
        %v6379 = vrot.slane %v6378, 1
        %v6380 = vadd.f32 %v6378, %v6379
        %v6381 = vmul.f32 %v6322, %v6373
        %v6382 = vadd.f32 %v6381, %v6331
        %v6383 = vmul.f32 %v6340, %v6382
        %v6384 = vrot.slane %v6383, 4
        %v6385 = vadd.f32 %v6383, %v6384
        %v6386 = vrot.slane %v6385, 2
        %v6387 = vadd.f32 %v6385, %v6386
        %v6388 = vrot.slane %v6387, 1
        %v6389 = vadd.f32 %v6387, %v6388
        %v6390 = vmul.f32 %v6321, %v6382
        %v6391 = vadd.f32 %v6390, %v6330
        %v6392 = vmul.f32 %v6339, %v6391
        %v6393 = vrot.slane %v6392, 4
        %v6394 = vadd.f32 %v6392, %v6393
        %v6395 = vrot.slane %v6394, 2
        %v6396 = vadd.f32 %v6394, %v6395
        %v6397 = vrot.slane %v6396, 1
        %v6398 = vadd.f32 %v6396, %v6397
        %v6399 = vmul.f32 %v6320, %v6391
        %v6400 = vadd.f32 %v6399, %v6329
        %v6401 = vmul.f32 %v6338, %v6400
        %v6402 = vrot.slane %v6401, 4
        %v6403 = vadd.f32 %v6401, %v6402
        %v6404 = vrot.slane %v6403, 2
        %v6405 = vadd.f32 %v6403, %v6404
        %v6406 = vrot.slane %v6405, 1
        %v6407 = vadd.f32 %v6405, %v6406
        %v6408 = vmul.f32 %v6319, %v6400
        %v6409 = vadd.f32 %v6408, %v6328
        %v6410 = vmul.f32 %v6337, %v6409
        %v6411 = vrot.slane %v6410, 4
        %v6412 = vadd.f32 %v6410, %v6411
        %v6413 = vrot.slane %v6412, 2
        %v6414 = vadd.f32 %v6412, %v6413
        %v6415 = vrot.slane %v6414, 1
        %v6416 = vadd.f32 %v6414, %v6415
        %v6417 = vsel %vm6303, %v6416, %v6407
        %v6418 = vsel %vm6305, %v6417, %v6398
        %v6419 = vsel %vm6307, %v6418, %v6389
        %v6420 = vsel %vm6309, %v6419, %v6380
        %v6421 = vsel %vm6311, %v6420, %v6371
        %v6422 = vsel %vm6313, %v6421, %v6362
        %v6423 = vsel %vm6315, %v6422, %v6353
        %s6424 = sadd.s32 0, %s6200
        %s6425 = sadd.s32 0, %s6202
        %s6426 = scalar_lea.vmem %s352, %s6424
        %v6427 = vld [vmem:[%s6426] sm:$0xff]
        %v6428 = vadd.f32 %v6427, %v6316
        %6429 = vst [vmem:[%s6426] sm:$0xff] %v6428
        %s6430 = scalar_lea.vmem %s352, %s6425
        %v6431 = vld [vmem:[%s6430] sm:$0xff]
        %v6432 = vadd.f32 %v6431, %v6423
        %6433 = vst [vmem:[%s6430] sm:$0xff] %v6432
      $region61: #{_lambda_.12} parent=55 // loop_footer
        %s6197 = sadd.s32 1, %s6193
      $region62: #{_lambda_.12} parent=55 // loop_footer_branch
        %6192 = sbr.rel target = $region58
      $region63: #{_lambda_.12} parent=55 // loop_exit
        _
      %p6434 = scmp.lt.s32.totalorder %s20, 1
      %s6435 = scalar_select %p6434, %s20, 1
      %s6436 = smul.addr %s6435, 8
      %s6437 = smul.addr %s6436, 8
      %s6438 = scalar_lea.vmem %s9, %s6437
      // Predicated region
      $region64: #{_lambda_.12} parent=55 // pred_check
        %p6439 = pneg %p237
      $region65: #{_lambda_.12} parent=55 // pred_check_branch
        %6441 = sbr.rel (%p6439) target = $region67
      $region66: #{_lambda_.12} parent=55 // pred_region
        _
      $region67: #{_lambda_.12} parent=55 // pred_fallthru
        _
    $region56: #{_lambda_.12} parent=5 // pred_fallthru
      _
    %p6442 = scmp.le.s32.totalorder 2, %s15
    // Predicated region
    $region68: #{_lambda_.12} parent=5 // pred_check
      %p6443 = pneg %p6442
    $region69: #{_lambda_.12} parent=5 // pred_check_branch
      %6445 = sbr.rel (%p6443) target = $region71
    $region70: #{_lambda_.12} parent=5 // pred_region
      %s6446 = ssub.s32 %s15, 2
      // Predicated region
      $region72: #{_lambda_.12} parent=70 // pred_check
        %p6447 = pneg %p243
      $region73: #{_lambda_.12} parent=70 // pred_check_branch
        %6449 = sbr.rel (%p6447) target = $region75
      $region74: #{_lambda_.12} parent=70 // pred_region
        %p6450 = scmp.lt.s32.totalorder %s21, 1
        %s6451 = scalar_select %p6450, %s21, 1
        %s6452 = smul.addr %s6451, 8
        %s6453 = smul.addr %s6452, 8
        %s6454 = scalar_lea.vmem %s9, %s6453
      $region75: #{_lambda_.12} parent=70 // pred_fallthru
        _
    $region71: #{_lambda_.12} parent=5 // pred_fallthru
      _
  $region6: #{_lambda_.12} parent=0 // loop_footer
    %s19 = sadd.s32 1, %s15
  $region7: #{_lambda_.12} parent=0 // loop_footer_branch
    %14 = sbr.rel target = $region3
  $region8: #{_lambda_.12} parent=0 // loop_exit
    _

</llo_original>
